<compile_context>
chip_gen: v7x
topology: tpu7x:2x2x1
jax: 0.10.0
libtpu: 0.0.40
codegen_flags: <defaults>
</compile_context>

<pallas_src>
import functools
import math

import jax
import jax.numpy as jnp
from jax import lax
from jax.experimental import pallas as pl
from jax.experimental.pallas import tpu as pltpu

BN_EPS = 1e-5


def _round_up(x, m):
    return (x + m - 1) // m * m


def _pick_tile_rows(ho, wo, target_m=512):
    """Largest divisor of `ho` whose tile (rows * wo) stays <= target_m."""
    best = 1
    for d in range(1, ho + 1):
        if ho % d == 0 and d * wo <= max(target_m, wo):
            best = d
    return best
    # TODO(synk): handle non-divisor remainders with a masked final tile.


# ---------------------------------------------------------------------------
# Pallas kernels
# ---------------------------------------------------------------------------
def _shifted_matmul_accumulate(x_ref, w_ref, *, k, th, wp):
    """k*k shifted matmuls accumulated in f32 (the transposed conv, per tile).

    x_ref: (crows, cin_p) bf16 Ref — spatially flattened conv input rows
           (th + k - 1 padded-image rows of width wp, + k-1 spill rows).
    w_ref: (k*k, cin_p, cout_p) bf16 Ref — flipped transposed-conv weights.
    Returns (th*wp, cout_p) f32; row r*wp + c is output pixel (r, c); columns
    c >= wo are garbage (masked in the stats pass, sliced off in the wrapper).
    """
    cout_p = w_ref.shape[-1]
    acc = jnp.zeros((th * wp, cout_p), jnp.float32)
    for dy in range(k):
        for dx in range(k):
            off = dy * wp + dx
            xs = x_ref[off:off + th * wp, :]          # static 2-D row slice
            acc = acc + jnp.dot(xs, w_ref[dy * k + dx],
                                preferred_element_type=jnp.float32)
    return acc


def convt_stats_kernel(x_ref, w_ref, mask_ref, ps_ref, *, k, th, wp):
    """Pass 1: conv tile -> per-tile (sum, sum_sq) BN partials (one traversal)."""
    z = _shifted_matmul_accumulate(x_ref, w_ref, k=k, th=th, wp=wp)
    zm = z * mask_ref[...]                            # zero out garbage columns
    s = jnp.sum(zm, axis=0, keepdims=True)            # (1, cout_p)
    ss = jnp.sum(zm * z, axis=0, keepdims=True)       # (1, cout_p)
    ps_ref[...] = jnp.concatenate([s, ss], axis=0)    # (2, cout_p)


def convt_bn_relu_kernel(x_ref, w_ref, scale_ref, shift_ref, y_ref, *, k, th, wp):
    """Pass 2: conv tile -> fused BN (folded scale/shift) + ReLU, lane-dense store."""
    z = _shifted_matmul_accumulate(x_ref, w_ref, k=k, th=th, wp=wp)
    y = z * scale_ref[...] + shift_ref[...]
    y_ref[...] = jnp.maximum(y, 0.0)


# ---------------------------------------------------------------------------
# Wrapper: layout plumbing + two-pass orchestration
# ---------------------------------------------------------------------------
def deconv_block(x_nchw, params, output_size, kernel, stride, pad):
    """DeconvBlock.forward(x, output_size): ConvTranspose2d -> BN(train) -> ReLU."""
    k, s, p = kernel, stride, pad
    w_t = params["w"]                                  # (Cin, Cout, k, k) torch layout
    gamma, beta = params["gamma"], params["beta"]
    cin, cout = w_t.shape[0], w_t.shape[1]
    n, cx, h, w = x_nchw.shape
    assert cx == cin
    ho, wo = int(output_size[-2]), int(output_size[-1])

    # output_padding implied by output_size (PyTorch ConvTranspose2d semantics).
    op_h = ho - ((h - 1) * s - 2 * p + k)
    op_w = wo - ((w - 1) * s - 2 * p + k)
    assert 0 <= op_h < s and 0 <= op_w < s, "invalid output_size for this config"
    assert k - 1 - p >= 0  # TODO(synk): support pad > kernel-1 (needs cropping).

    cin_p = _round_up(cin, 8)
    cout_p = _round_up(cout, 128)                      # lane-dense output channels

    # ---- transposed conv -> equivalent stride-1 conv input (XLA glue) ----
    x = jnp.transpose(x_nchw, (0, 2, 3, 1))            # NHWC
    hd, wd = (h - 1) * s + 1, (w - 1) * s + 1
    xd = jnp.zeros((n, hd, wd, cin), x.dtype).at[:, ::s, ::s, :].set(x)
    pb = k - 1 - p
    xpad = jnp.pad(xd, ((0, 0), (pb, pb + op_h), (pb, pb + op_w), (0, 0)))
    xpad = jnp.pad(xpad, ((0, 0), (0, 0), (0, 0), (0, cin_p - cin)))
    xpad = xpad.astype(jnp.bfloat16)                   # bf16 MXU inputs, f32 accumulate
    hp, wp = xpad.shape[1], xpad.shape[2]
    assert hp == ho + k - 1 and wp == wo + k - 1

    # Overlapping, spatially-flattened row chunks so each grid step is independent.
    th = _pick_tile_rows(ho, wo, target_m=512)
    ch = th + k - 1
    nblk = ho // th
    xflat = xpad.reshape(n, hp * wp, cin_p)
    xflat = jnp.pad(xflat, ((0, 0), (0, k - 1), (0, 0)))
    crows = ch * wp + (k - 1)
    row_idx = jnp.arange(nblk)[:, None] * (th * wp) + jnp.arange(crows)[None, :]
    chunks = xflat[:, row_idx].reshape(n * nblk, crows, cin_p)

    # Flipped transposed-conv weights in matmul layout (k*k, cin_p, cout_p).
    w_conv = jnp.transpose(w_t[:, :, ::-1, ::-1], (2, 3, 0, 1))     # (k, k, cin, cout)
    w_conv = jnp.pad(w_conv, ((0, 0), (0, 0), (0, cin_p - cin), (0, cout_p - cout)))
    w_conv = w_conv.reshape(k * k, cin_p, cout_p).astype(jnp.bfloat16)

    # Column-validity mask for the stats pass (columns >= wo are halo garbage).
    mask = ((jnp.arange(th * wp, dtype=jnp.int32) % wp) < wo)
    mask = mask.astype(jnp.float32).reshape(th * wp, 1)

    grid = (n * nblk,)
    chunk_spec = pl.BlockSpec((None, crows, cin_p), lambda i: (i, 0, 0))
    w_spec = pl.BlockSpec((k * k, cin_p, cout_p), lambda i: (0, 0, 0))
    cparams = pltpu.CompilerParams(dimension_semantics=("parallel",),
                                   vmem_limit_bytes=32 * 1024 * 1024)

    m_total = n * ho * wo
    conv_flops = 2 * (n * nblk * th * wp) * (k * k) * cin_p * cout_p
    chunk_bytes = chunks.size * 2
    w_bytes = w_conv.size * 2

    # ---- pass 1: per-tile partial BN statistics (sum, sum of squares) ----
    partial = pl.pallas_call(
        functools.partial(convt_stats_kernel, k=k, th=th, wp=wp),
        grid=grid,
        in_specs=[chunk_spec, w_spec,
                  pl.BlockSpec((th * wp, 1), lambda i: (0, 0))],
        out_specs=pl.BlockSpec((None, 2, cout_p), lambda i: (i, 0, 0)),
        out_shape=jax.ShapeDtypeStruct((n * nblk, 2, cout_p), jnp.float32),
        compiler_params=cparams,
        cost_estimate=pl.CostEstimate(
            flops=conv_flops, transcendentals=0,
            bytes_accessed=chunk_bytes + w_bytes + mask.size * 4
                           + n * nblk * 2 * cout_p * 4),
    )(chunks, w_conv, mask)

    # ---- tiny cross-tile reduction + BN scale/shift folding (wrapper glue) ----
    tot = jnp.sum(partial, axis=0)                     # (2, cout_p)
    mean = tot[0] / m_total
    var = jnp.maximum(tot[1] / m_total - mean * mean, 0.0)   # biased variance
    gamma_p = jnp.pad(gamma.astype(jnp.float32), (0, cout_p - cout))
    beta_p = jnp.pad(beta.astype(jnp.float32), (0, cout_p - cout))
    scale = gamma_p * lax.rsqrt(var + BN_EPS)
    shift = beta_p - mean * scale
    scale = scale.reshape(1, cout_p)
    shift = shift.reshape(1, cout_p)

    # ---- pass 2: conv recompute + fused BN + ReLU, lane-dense output ----
    y = pl.pallas_call(
        functools.partial(convt_bn_relu_kernel, k=k, th=th, wp=wp),
        grid=grid,
        in_specs=[chunk_spec, w_spec,
                  pl.BlockSpec((1, cout_p), lambda i: (0, 0)),
                  pl.BlockSpec((1, cout_p), lambda i: (0, 0))],
        out_specs=pl.BlockSpec((None, th * wp, cout_p), lambda i: (i, 0, 0)),
        out_shape=jax.ShapeDtypeStruct((n * nblk, th * wp, cout_p), jnp.float32),
        compiler_params=cparams,
        cost_estimate=pl.CostEstimate(
            flops=conv_flops + 3 * (n * nblk * th * wp) * cout_p, transcendentals=0,
            bytes_accessed=chunk_bytes + w_bytes + 2 * cout_p * 4
                           + n * nblk * th * wp * cout_p * 4),
    )(chunks, w_conv, scale, shift)

    # Strip halo columns and channel padding; back to NCHW.
    y = y.reshape(n, nblk, th, wp, cout_p)[:, :, :, :wo, :cout]
    y = y.reshape(n, ho, wo, cout)
    return jnp.transpose(y, (0, 3, 1, 2))


# ---------------------------------------------------------------------------
# Deterministic parameter init (shapes of a fresh ConvTranspose2d + BatchNorm2d)
# ---------------------------------------------------------------------------
def init_deconv_params(key, inp, out, kernel):
    bound = 1.0 / math.sqrt(out * kernel * kernel)
    w = jax.random.uniform(key, (inp, out, kernel, kernel), jnp.float32, -bound, bound)
    # ConvTranspose2d bias omitted on purpose: with training-mode BatchNorm
    # immediately after, a per-channel constant is exactly cancelled.
    return {"w": w,
            "gamma": jnp.ones((out,), jnp.float32),    # fresh BatchNorm2d weight
            "beta": jnp.zeros((out,), jnp.float32)}    # fresh BatchNorm2d bias


# ---------------------------------------------------------------------------
if __name__ == "__main__":
    key = jax.random.PRNGKey(0)
    k_x, k_p = jax.random.split(key)

    # DeconvBlock(inp=4, out=8, kernal=3, stride=2, pad=1); LinkNet-style 2x upsample.
    N, C_IN, C_OUT, H, W = 2, 4, 8, 16, 16
    KERNEL, STRIDE, PAD = 3, 2, 1
    OUTPUT_SIZE = (2 * H, 2 * W)

    x = jax.random.normal(k_x, (N, C_IN, H, W), jnp.float32)   # NCHW, like PyTorch
    params = init_deconv_params(k_p, C_IN, C_OUT, KERNEL)

    fwd = jax.jit(deconv_block, static_argnums=(2, 3, 4, 5))
    y = fwd(x, params, OUTPUT_SIZE, KERNEL, STRIDE, PAD)
    y = jax.block_until_ready(y)

    assert y.shape == (N, C_OUT, OUTPUT_SIZE[0], OUTPUT_SIZE[1]), y.shape
    assert bool(jnp.all(jnp.isfinite(y)))
    assert bool(jnp.all(y >= 0.0))
    print("KERNEL_OK")
</pallas_src>

<mosaic_0001>
module attributes {stable_mosaic.version = 11 : i64} {
  func.func @convt_stats_kernel(%arg0: i32, %arg1: memref<1x614x8xbf16, #tpu.memory_space<vmem>>, %arg2: memref<9x8x128xbf16, #tpu.memory_space<vmem>>, %arg3: memref<544x1xf32, #tpu.memory_space<vmem>>, %arg4: memref<1x2x128xf32, #tpu.memory_space<vmem>>) attributes {dimension_semantics = [#tpu.dimension_semantics<parallel>], iteration_bounds = array<i64: 4>, scalar_prefetch = 0 : i64, scratch_operands = 0 : i64, tpu.core_type = #tpu.core_type<tc>, window_params = [{transform_indices = @transform_0, window_bounds = array<i64: 1, 614, 8>}, {pipeline_mode = #tpu.pipeline_mode<synchronous>, transform_indices = @transform_1, window_bounds = array<i64: 9, 8, 128>}, {pipeline_mode = #tpu.pipeline_mode<synchronous>, transform_indices = @transform_2, window_bounds = array<i64: 544, 1>}, {transform_indices = @transform_3, window_bounds = array<i64: 1, 2, 128>}]} {
    %cst = arith.constant 0.000000e+00 : f32
    %0 = vector.broadcast %cst : f32 to vector<544x128xf32>
    %c0 = arith.constant 0 : index
    %c0_0 = arith.constant 0 : index
    %c0_1 = arith.constant 0 : index
    %1 = vector.load %arg1[%c0, %c0_0, %c0_1] : memref<1x614x8xbf16, #tpu.memory_space<vmem>>, vector<1x544x8xbf16>
    %2 = vector.shape_cast %1 : vector<1x544x8xbf16> to vector<544x8xbf16>
    %c0_2 = arith.constant 0 : index
    %c0_3 = arith.constant 0 : index
    %c0_4 = arith.constant 0 : index
    %3 = vector.load %arg2[%c0_2, %c0_3, %c0_4] : memref<9x8x128xbf16, #tpu.memory_space<vmem>>, vector<1x8x128xbf16>
    %4 = vector.shape_cast %3 : vector<1x8x128xbf16> to vector<8x128xbf16>
    %cst_5 = arith.constant dense<0.000000e+00> : vector<544x128xf32>
    %5 = tpu.matmul %2, %4, %cst_5 {dimension_numbers = #tpu.dot_dimension_numbers<[1], [0], [0], [1], [0, 0, 1, 1], [], []>} : vector<544x8xbf16>, vector<8x128xbf16>, vector<544x128xf32> -> vector<544x128xf32>
    %6 = arith.addf %0, %5 : vector<544x128xf32>
    %c0_6 = arith.constant 0 : index
    %c1 = arith.constant 1 : index
    %c0_7 = arith.constant 0 : index
    %7 = vector.load %arg1[%c0_6, %c1, %c0_7] : memref<1x614x8xbf16, #tpu.memory_space<vmem>>, vector<1x544x8xbf16>
    %8 = vector.shape_cast %7 : vector<1x544x8xbf16> to vector<544x8xbf16>
    %c1_8 = arith.constant 1 : index
    %c0_9 = arith.constant 0 : index
    %c0_10 = arith.constant 0 : index
    %9 = vector.load %arg2[%c1_8, %c0_9, %c0_10] : memref<9x8x128xbf16, #tpu.memory_space<vmem>>, vector<1x8x128xbf16>
    %10 = vector.shape_cast %9 : vector<1x8x128xbf16> to vector<8x128xbf16>
    %cst_11 = arith.constant dense<0.000000e+00> : vector<544x128xf32>
    %11 = tpu.matmul %8, %10, %cst_11 {dimension_numbers = #tpu.dot_dimension_numbers<[1], [0], [0], [1], [0, 0, 1, 1], [], []>} : vector<544x8xbf16>, vector<8x128xbf16>, vector<544x128xf32> -> vector<544x128xf32>
    %12 = arith.addf %6, %11 : vector<544x128xf32>
    %c0_12 = arith.constant 0 : index
    %c2 = arith.constant 2 : index
    %c0_13 = arith.constant 0 : index
    %13 = vector.load %arg1[%c0_12, %c2, %c0_13] : memref<1x614x8xbf16, #tpu.memory_space<vmem>>, vector<1x544x8xbf16>
    %14 = vector.shape_cast %13 : vector<1x544x8xbf16> to vector<544x8xbf16>
    %c2_14 = arith.constant 2 : index
    %c0_15 = arith.constant 0 : index
    %c0_16 = arith.constant 0 : index
    %15 = vector.load %arg2[%c2_14, %c0_15, %c0_16] : memref<9x8x128xbf16, #tpu.memory_space<vmem>>, vector<1x8x128xbf16>
    %16 = vector.shape_cast %15 : vector<1x8x128xbf16> to vector<8x128xbf16>
    %cst_17 = arith.constant dense<0.000000e+00> : vector<544x128xf32>
    %17 = tpu.matmul %14, %16, %cst_17 {dimension_numbers = #tpu.dot_dimension_numbers<[1], [0], [0], [1], [0, 0, 1, 1], [], []>} : vector<544x8xbf16>, vector<8x128xbf16>, vector<544x128xf32> -> vector<544x128xf32>
    %18 = arith.addf %12, %17 : vector<544x128xf32>
    %c0_18 = arith.constant 0 : index
    %c34 = arith.constant 34 : index
    %c0_19 = arith.constant 0 : index
    %19 = vector.load %arg1[%c0_18, %c34, %c0_19] : memref<1x614x8xbf16, #tpu.memory_space<vmem>>, vector<1x544x8xbf16>
    %20 = vector.shape_cast %19 : vector<1x544x8xbf16> to vector<544x8xbf16>
    %c3 = arith.constant 3 : index
    %c0_20 = arith.constant 0 : index
    %c0_21 = arith.constant 0 : index
    %21 = vector.load %arg2[%c3, %c0_20, %c0_21] : memref<9x8x128xbf16, #tpu.memory_space<vmem>>, vector<1x8x128xbf16>
    %22 = vector.shape_cast %21 : vector<1x8x128xbf16> to vector<8x128xbf16>
    %cst_22 = arith.constant dense<0.000000e+00> : vector<544x128xf32>
    %23 = tpu.matmul %20, %22, %cst_22 {dimension_numbers = #tpu.dot_dimension_numbers<[1], [0], [0], [1], [0, 0, 1, 1], [], []>} : vector<544x8xbf16>, vector<8x128xbf16>, vector<544x128xf32> -> vector<544x128xf32>
    %24 = arith.addf %18, %23 : vector<544x128xf32>
    %c0_23 = arith.constant 0 : index
    %c35 = arith.constant 35 : index
    %c0_24 = arith.constant 0 : index
    %25 = vector.load %arg1[%c0_23, %c35, %c0_24] : memref<1x614x8xbf16, #tpu.memory_space<vmem>>, vector<1x544x8xbf16>
    %26 = vector.shape_cast %25 : vector<1x544x8xbf16> to vector<544x8xbf16>
    %c4 = arith.constant 4 : index
    %c0_25 = arith.constant 0 : index
    %c0_26 = arith.constant 0 : index
    %27 = vector.load %arg2[%c4, %c0_25, %c0_26] : memref<9x8x128xbf16, #tpu.memory_space<vmem>>, vector<1x8x128xbf16>
    %28 = vector.shape_cast %27 : vector<1x8x128xbf16> to vector<8x128xbf16>
    %cst_27 = arith.constant dense<0.000000e+00> : vector<544x128xf32>
    %29 = tpu.matmul %26, %28, %cst_27 {dimension_numbers = #tpu.dot_dimension_numbers<[1], [0], [0], [1], [0, 0, 1, 1], [], []>} : vector<544x8xbf16>, vector<8x128xbf16>, vector<544x128xf32> -> vector<544x128xf32>
    %30 = arith.addf %24, %29 : vector<544x128xf32>
    %c0_28 = arith.constant 0 : index
    %c36 = arith.constant 36 : index
    %c0_29 = arith.constant 0 : index
    %31 = vector.load %arg1[%c0_28, %c36, %c0_29] : memref<1x614x8xbf16, #tpu.memory_space<vmem>>, vector<1x544x8xbf16>
    %32 = vector.shape_cast %31 : vector<1x544x8xbf16> to vector<544x8xbf16>
    %c5 = arith.constant 5 : index
    %c0_30 = arith.constant 0 : index
    %c0_31 = arith.constant 0 : index
    %33 = vector.load %arg2[%c5, %c0_30, %c0_31] : memref<9x8x128xbf16, #tpu.memory_space<vmem>>, vector<1x8x128xbf16>
    %34 = vector.shape_cast %33 : vector<1x8x128xbf16> to vector<8x128xbf16>
    %cst_32 = arith.constant dense<0.000000e+00> : vector<544x128xf32>
    %35 = tpu.matmul %32, %34, %cst_32 {dimension_numbers = #tpu.dot_dimension_numbers<[1], [0], [0], [1], [0, 0, 1, 1], [], []>} : vector<544x8xbf16>, vector<8x128xbf16>, vector<544x128xf32> -> vector<544x128xf32>
    %36 = arith.addf %30, %35 : vector<544x128xf32>
    %c0_33 = arith.constant 0 : index
    %c68 = arith.constant 68 : index
    %c0_34 = arith.constant 0 : index
    %37 = vector.load %arg1[%c0_33, %c68, %c0_34] : memref<1x614x8xbf16, #tpu.memory_space<vmem>>, vector<1x544x8xbf16>
    %38 = vector.shape_cast %37 : vector<1x544x8xbf16> to vector<544x8xbf16>
    %c6 = arith.constant 6 : index
    %c0_35 = arith.constant 0 : index
    %c0_36 = arith.constant 0 : index
    %39 = vector.load %arg2[%c6, %c0_35, %c0_36] : memref<9x8x128xbf16, #tpu.memory_space<vmem>>, vector<1x8x128xbf16>
    %40 = vector.shape_cast %39 : vector<1x8x128xbf16> to vector<8x128xbf16>
    %cst_37 = arith.constant dense<0.000000e+00> : vector<544x128xf32>
    %41 = tpu.matmul %38, %40, %cst_37 {dimension_numbers = #tpu.dot_dimension_numbers<[1], [0], [0], [1], [0, 0, 1, 1], [], []>} : vector<544x8xbf16>, vector<8x128xbf16>, vector<544x128xf32> -> vector<544x128xf32>
    %42 = arith.addf %36, %41 : vector<544x128xf32>
    %c0_38 = arith.constant 0 : index
    %c69 = arith.constant 69 : index
    %c0_39 = arith.constant 0 : index
    %43 = vector.load %arg1[%c0_38, %c69, %c0_39] : memref<1x614x8xbf16, #tpu.memory_space<vmem>>, vector<1x544x8xbf16>
    %44 = vector.shape_cast %43 : vector<1x544x8xbf16> to vector<544x8xbf16>
    %c7 = arith.constant 7 : index
    %c0_40 = arith.constant 0 : index
    %c0_41 = arith.constant 0 : index
    %45 = vector.load %arg2[%c7, %c0_40, %c0_41] : memref<9x8x128xbf16, #tpu.memory_space<vmem>>, vector<1x8x128xbf16>
    %46 = vector.shape_cast %45 : vector<1x8x128xbf16> to vector<8x128xbf16>
    %cst_42 = arith.constant dense<0.000000e+00> : vector<544x128xf32>
    %47 = tpu.matmul %44, %46, %cst_42 {dimension_numbers = #tpu.dot_dimension_numbers<[1], [0], [0], [1], [0, 0, 1, 1], [], []>} : vector<544x8xbf16>, vector<8x128xbf16>, vector<544x128xf32> -> vector<544x128xf32>
    %48 = arith.addf %42, %47 : vector<544x128xf32>
    %c0_43 = arith.constant 0 : index
    %c70 = arith.constant 70 : index
    %c0_44 = arith.constant 0 : index
    %49 = vector.load %arg1[%c0_43, %c70, %c0_44] : memref<1x614x8xbf16, #tpu.memory_space<vmem>>, vector<1x544x8xbf16>
    %50 = vector.shape_cast %49 : vector<1x544x8xbf16> to vector<544x8xbf16>
    %c8 = arith.constant 8 : index
    %c0_45 = arith.constant 0 : index
    %c0_46 = arith.constant 0 : index
    %51 = vector.load %arg2[%c8, %c0_45, %c0_46] : memref<9x8x128xbf16, #tpu.memory_space<vmem>>, vector<1x8x128xbf16>
    %52 = vector.shape_cast %51 : vector<1x8x128xbf16> to vector<8x128xbf16>
    %cst_47 = arith.constant dense<0.000000e+00> : vector<544x128xf32>
    %53 = tpu.matmul %50, %52, %cst_47 {dimension_numbers = #tpu.dot_dimension_numbers<[1], [0], [0], [1], [0, 0, 1, 1], [], []>} : vector<544x8xbf16>, vector<8x128xbf16>, vector<544x128xf32> -> vector<544x128xf32>
    %54 = arith.addf %48, %53 : vector<544x128xf32>
    %c0_48 = arith.constant 0 : index
    %c0_49 = arith.constant 0 : index
    %55 = vector.load %arg3[%c0_48, %c0_49] : memref<544x1xf32, #tpu.memory_space<vmem>>, vector<544x1xf32>
    %56 = vector.broadcast %55 : vector<544x1xf32> to vector<544x128xf32>
    %57 = arith.mulf %54, %56 : vector<544x128xf32>
    %cst_50 = arith.constant dense<0.000000e+00> : vector<128xf32>
    %58 = vector.multi_reduction <add>, %57, %cst_50 [0] : vector<544x128xf32> to vector<128xf32>
    %59 = vector.shape_cast %58 : vector<128xf32> to vector<1x128xf32>
    %60 = arith.mulf %57, %54 : vector<544x128xf32>
    %cst_51 = arith.constant dense<0.000000e+00> : vector<128xf32>
    %61 = vector.multi_reduction <add>, %60, %cst_51 [0] : vector<544x128xf32> to vector<128xf32>
    %62 = vector.shape_cast %61 : vector<128xf32> to vector<1x128xf32>
    %63 = tpu.concatenate %59, %62 in 0 : vector<1x128xf32>, vector<1x128xf32> -> vector<2x128xf32>
    %c0_52 = arith.constant 0 : index
    %c0_53 = arith.constant 0 : index
    %c0_54 = arith.constant 0 : index
    %64 = vector.load %arg4[%c0_52, %c0_53, %c0_54] : memref<1x2x128xf32, #tpu.memory_space<vmem>>, vector<1x2x128xf32>
    %65 = vector.shape_cast %64 : vector<1x2x128xf32> to vector<2x128xf32>
    %66 = vector.shape_cast %63 : vector<2x128xf32> to vector<1x2x128xf32>
    tpu.vector_store %arg4[%c0_52, %c0_53, %c0_54], %66 {strides = array<i32>} : memref<1x2x128xf32, #tpu.memory_space<vmem>>, vector<1x2x128xf32>,
    return
  }
  func.func @transform_0(%arg0: i32) -> (i32, i32, i32) {
    %c0_i32 = arith.constant 0 : i32
    %c0_i32_0 = arith.constant 0 : i32
    %c0_i32_1 = arith.constant 0 : i32
    return %arg0, %c0_i32, %c0_i32_0 : i32, i32, i32
  }
  func.func @transform_1(%arg0: i32) -> (i32, i32, i32) {
    %c0_i32 = arith.constant 0 : i32
    %c0_i32_0 = arith.constant 0 : i32
    %c0_i32_1 = arith.constant 0 : i32
    %c0_i32_2 = arith.constant 0 : i32
    return %c0_i32, %c0_i32_0, %c0_i32_1 : i32, i32, i32
  }
  func.func @transform_2(%arg0: i32) -> (i32, i32) {
    %c0_i32 = arith.constant 0 : i32
    %c0_i32_0 = arith.constant 0 : i32
    %c0_i32_1 = arith.constant 0 : i32
    return %c0_i32, %c0_i32_0 : i32, i32
  }
  func.func @transform_3(%arg0: i32) -> (i32, i32, i32) {
    %c0_i32 = arith.constant 0 : i32
    %c0_i32_0 = arith.constant 0 : i32
    %c0_i32_1 = arith.constant 0 : i32
    return %arg0, %c0_i32, %c0_i32_0 : i32, i32, i32
  }
}

module attributes {stable_mosaic.version = 11 : i64} {
  func.func @convt_bn_relu_kernel(%arg0: i32, %arg1: memref<1x614x8xbf16, #tpu.memory_space<vmem>>, %arg2: memref<9x8x128xbf16, #tpu.memory_space<vmem>>, %arg3: memref<1x128xf32, #tpu.memory_space<vmem>>, %arg4: memref<1x128xf32, #tpu.memory_space<vmem>>, %arg5: memref<1x544x128xf32, #tpu.memory_space<vmem>>) attributes {dimension_semantics = [#tpu.dimension_semantics<parallel>], iteration_bounds = array<i64: 4>, scalar_prefetch = 0 : i64, scratch_operands = 0 : i64, tpu.core_type = #tpu.core_type<tc>, window_params = [{transform_indices = @transform_0, window_bounds = array<i64: 1, 614, 8>}, {pipeline_mode = #tpu.pipeline_mode<synchronous>, transform_indices = @transform_1, window_bounds = array<i64: 9, 8, 128>}, {pipeline_mode = #tpu.pipeline_mode<synchronous>, transform_indices = @transform_2, window_bounds = array<i64: 1, 128>}, {pipeline_mode = #tpu.pipeline_mode<synchronous>, transform_indices = @transform_3, window_bounds = array<i64: 1, 128>}, {transform_indices = @transform_4, window_bounds = array<i64: 1, 544, 128>}]} {
    %cst = arith.constant 0.000000e+00 : f32
    %0 = vector.broadcast %cst : f32 to vector<544x128xf32>
    %c0 = arith.constant 0 : index
    %c0_0 = arith.constant 0 : index
    %c0_1 = arith.constant 0 : index
    %1 = vector.load %arg1[%c0, %c0_0, %c0_1] : memref<1x614x8xbf16, #tpu.memory_space<vmem>>, vector<1x544x8xbf16>
    %2 = vector.shape_cast %1 : vector<1x544x8xbf16> to vector<544x8xbf16>
    %c0_2 = arith.constant 0 : index
    %c0_3 = arith.constant 0 : index
    %c0_4 = arith.constant 0 : index
    %3 = vector.load %arg2[%c0_2, %c0_3, %c0_4] : memref<9x8x128xbf16, #tpu.memory_space<vmem>>, vector<1x8x128xbf16>
    %4 = vector.shape_cast %3 : vector<1x8x128xbf16> to vector<8x128xbf16>
    %cst_5 = arith.constant dense<0.000000e+00> : vector<544x128xf32>
    %5 = tpu.matmul %2, %4, %cst_5 {dimension_numbers = #tpu.dot_dimension_numbers<[1], [0], [0], [1], [0, 0, 1, 1], [], []>} : vector<544x8xbf16>, vector<8x128xbf16>, vector<544x128xf32> -> vector<544x128xf32>
    %6 = arith.addf %0, %5 : vector<544x128xf32>
    %c0_6 = arith.constant 0 : index
    %c1 = arith.constant 1 : index
    %c0_7 = arith.constant 0 : index
    %7 = vector.load %arg1[%c0_6, %c1, %c0_7] : memref<1x614x8xbf16, #tpu.memory_space<vmem>>, vector<1x544x8xbf16>
    %8 = vector.shape_cast %7 : vector<1x544x8xbf16> to vector<544x8xbf16>
    %c1_8 = arith.constant 1 : index
    %c0_9 = arith.constant 0 : index
    %c0_10 = arith.constant 0 : index
    %9 = vector.load %arg2[%c1_8, %c0_9, %c0_10] : memref<9x8x128xbf16, #tpu.memory_space<vmem>>, vector<1x8x128xbf16>
    %10 = vector.shape_cast %9 : vector<1x8x128xbf16> to vector<8x128xbf16>
    %cst_11 = arith.constant dense<0.000000e+00> : vector<544x128xf32>
    %11 = tpu.matmul %8, %10, %cst_11 {dimension_numbers = #tpu.dot_dimension_numbers<[1], [0], [0], [1], [0, 0, 1, 1], [], []>} : vector<544x8xbf16>, vector<8x128xbf16>, vector<544x128xf32> -> vector<544x128xf32>
    %12 = arith.addf %6, %11 : vector<544x128xf32>
    %c0_12 = arith.constant 0 : index
    %c2 = arith.constant 2 : index
    %c0_13 = arith.constant 0 : index
    %13 = vector.load %arg1[%c0_12, %c2, %c0_13] : memref<1x614x8xbf16, #tpu.memory_space<vmem>>, vector<1x544x8xbf16>
    %14 = vector.shape_cast %13 : vector<1x544x8xbf16> to vector<544x8xbf16>
    %c2_14 = arith.constant 2 : index
    %c0_15 = arith.constant 0 : index
    %c0_16 = arith.constant 0 : index
    %15 = vector.load %arg2[%c2_14, %c0_15, %c0_16] : memref<9x8x128xbf16, #tpu.memory_space<vmem>>, vector<1x8x128xbf16>
    %16 = vector.shape_cast %15 : vector<1x8x128xbf16> to vector<8x128xbf16>
    %cst_17 = arith.constant dense<0.000000e+00> : vector<544x128xf32>
    %17 = tpu.matmul %14, %16, %cst_17 {dimension_numbers = #tpu.dot_dimension_numbers<[1], [0], [0], [1], [0, 0, 1, 1], [], []>} : vector<544x8xbf16>, vector<8x128xbf16>, vector<544x128xf32> -> vector<544x128xf32>
    %18 = arith.addf %12, %17 : vector<544x128xf32>
    %c0_18 = arith.constant 0 : index
    %c34 = arith.constant 34 : index
    %c0_19 = arith.constant 0 : index
    %19 = vector.load %arg1[%c0_18, %c34, %c0_19] : memref<1x614x8xbf16, #tpu.memory_space<vmem>>, vector<1x544x8xbf16>
    %20 = vector.shape_cast %19 : vector<1x544x8xbf16> to vector<544x8xbf16>
    %c3 = arith.constant 3 : index
    %c0_20 = arith.constant 0 : index
    %c0_21 = arith.constant 0 : index
    %21 = vector.load %arg2[%c3, %c0_20, %c0_21] : memref<9x8x128xbf16, #tpu.memory_space<vmem>>, vector<1x8x128xbf16>
    %22 = vector.shape_cast %21 : vector<1x8x128xbf16> to vector<8x128xbf16>
    %cst_22 = arith.constant dense<0.000000e+00> : vector<544x128xf32>
    %23 = tpu.matmul %20, %22, %cst_22 {dimension_numbers = #tpu.dot_dimension_numbers<[1], [0], [0], [1], [0, 0, 1, 1], [], []>} : vector<544x8xbf16>, vector<8x128xbf16>, vector<544x128xf32> -> vector<544x128xf32>
    %24 = arith.addf %18, %23 : vector<544x128xf32>
    %c0_23 = arith.constant 0 : index
    %c35 = arith.constant 35 : index
    %c0_24 = arith.constant 0 : index
    %25 = vector.load %arg1[%c0_23, %c35, %c0_24] : memref<1x614x8xbf16, #tpu.memory_space<vmem>>, vector<1x544x8xbf16>
    %26 = vector.shape_cast %25 : vector<1x544x8xbf16> to vector<544x8xbf16>
    %c4 = arith.constant 4 : index
    %c0_25 = arith.constant 0 : index
    %c0_26 = arith.constant 0 : index
    %27 = vector.load %arg2[%c4, %c0_25, %c0_26] : memref<9x8x128xbf16, #tpu.memory_space<vmem>>, vector<1x8x128xbf16>
    %28 = vector.shape_cast %27 : vector<1x8x128xbf16> to vector<8x128xbf16>
    %cst_27 = arith.constant dense<0.000000e+00> : vector<544x128xf32>
    %29 = tpu.matmul %26, %28, %cst_27 {dimension_numbers = #tpu.dot_dimension_numbers<[1], [0], [0], [1], [0, 0, 1, 1], [], []>} : vector<544x8xbf16>, vector<8x128xbf16>, vector<544x128xf32> -> vector<544x128xf32>
    %30 = arith.addf %24, %29 : vector<544x128xf32>
    %c0_28 = arith.constant 0 : index
    %c36 = arith.constant 36 : index
    %c0_29 = arith.constant 0 : index
    %31 = vector.load %arg1[%c0_28, %c36, %c0_29] : memref<1x614x8xbf16, #tpu.memory_space<vmem>>, vector<1x544x8xbf16>
    %32 = vector.shape_cast %31 : vector<1x544x8xbf16> to vector<544x8xbf16>
    %c5 = arith.constant 5 : index
    %c0_30 = arith.constant 0 : index
    %c0_31 = arith.constant 0 : index
    %33 = vector.load %arg2[%c5, %c0_30, %c0_31] : memref<9x8x128xbf16, #tpu.memory_space<vmem>>, vector<1x8x128xbf16>
    %34 = vector.shape_cast %33 : vector<1x8x128xbf16> to vector<8x128xbf16>
    %cst_32 = arith.constant dense<0.000000e+00> : vector<544x128xf32>
    %35 = tpu.matmul %32, %34, %cst_32 {dimension_numbers = #tpu.dot_dimension_numbers<[1], [0], [0], [1], [0, 0, 1, 1], [], []>} : vector<544x8xbf16>, vector<8x128xbf16>, vector<544x128xf32> -> vector<544x128xf32>
    %36 = arith.addf %30, %35 : vector<544x128xf32>
    %c0_33 = arith.constant 0 : index
    %c68 = arith.constant 68 : index
    %c0_34 = arith.constant 0 : index
    %37 = vector.load %arg1[%c0_33, %c68, %c0_34] : memref<1x614x8xbf16, #tpu.memory_space<vmem>>, vector<1x544x8xbf16>
    %38 = vector.shape_cast %37 : vector<1x544x8xbf16> to vector<544x8xbf16>
    %c6 = arith.constant 6 : index
    %c0_35 = arith.constant 0 : index
    %c0_36 = arith.constant 0 : index
    %39 = vector.load %arg2[%c6, %c0_35, %c0_36] : memref<9x8x128xbf16, #tpu.memory_space<vmem>>, vector<1x8x128xbf16>
    %40 = vector.shape_cast %39 : vector<1x8x128xbf16> to vector<8x128xbf16>
    %cst_37 = arith.constant dense<0.000000e+00> : vector<544x128xf32>
    %41 = tpu.matmul %38, %40, %cst_37 {dimension_numbers = #tpu.dot_dimension_numbers<[1], [0], [0], [1], [0, 0, 1, 1], [], []>} : vector<544x8xbf16>, vector<8x128xbf16>, vector<544x128xf32> -> vector<544x128xf32>
    %42 = arith.addf %36, %41 : vector<544x128xf32>
    %c0_38 = arith.constant 0 : index
    %c69 = arith.constant 69 : index
    %c0_39 = arith.constant 0 : index
    %43 = vector.load %arg1[%c0_38, %c69, %c0_39] : memref<1x614x8xbf16, #tpu.memory_space<vmem>>, vector<1x544x8xbf16>
    %44 = vector.shape_cast %43 : vector<1x544x8xbf16> to vector<544x8xbf16>
    %c7 = arith.constant 7 : index
    %c0_40 = arith.constant 0 : index
    %c0_41 = arith.constant 0 : index
    %45 = vector.load %arg2[%c7, %c0_40, %c0_41] : memref<9x8x128xbf16, #tpu.memory_space<vmem>>, vector<1x8x128xbf16>
    %46 = vector.shape_cast %45 : vector<1x8x128xbf16> to vector<8x128xbf16>
    %cst_42 = arith.constant dense<0.000000e+00> : vector<544x128xf32>
    %47 = tpu.matmul %44, %46, %cst_42 {dimension_numbers = #tpu.dot_dimension_numbers<[1], [0], [0], [1], [0, 0, 1, 1], [], []>} : vector<544x8xbf16>, vector<8x128xbf16>, vector<544x128xf32> -> vector<544x128xf32>
    %48 = arith.addf %42, %47 : vector<544x128xf32>
    %c0_43 = arith.constant 0 : index
    %c70 = arith.constant 70 : index
    %c0_44 = arith.constant 0 : index
    %49 = vector.load %arg1[%c0_43, %c70, %c0_44] : memref<1x614x8xbf16, #tpu.memory_space<vmem>>, vector<1x544x8xbf16>
    %50 = vector.shape_cast %49 : vector<1x544x8xbf16> to vector<544x8xbf16>
    %c8 = arith.constant 8 : index
    %c0_45 = arith.constant 0 : index
    %c0_46 = arith.constant 0 : index
    %51 = vector.load %arg2[%c8, %c0_45, %c0_46] : memref<9x8x128xbf16, #tpu.memory_space<vmem>>, vector<1x8x128xbf16>
    %52 = vector.shape_cast %51 : vector<1x8x128xbf16> to vector<8x128xbf16>
    %cst_47 = arith.constant dense<0.000000e+00> : vector<544x128xf32>
    %53 = tpu.matmul %50, %52, %cst_47 {dimension_numbers = #tpu.dot_dimension_numbers<[1], [0], [0], [1], [0, 0, 1, 1], [], []>} : vector<544x8xbf16>, vector<8x128xbf16>, vector<544x128xf32> -> vector<544x128xf32>
    %54 = arith.addf %48, %53 : vector<544x128xf32>
    %c0_48 = arith.constant 0 : index
    %c0_49 = arith.constant 0 : index
    %55 = vector.load %arg3[%c0_48, %c0_49] : memref<1x128xf32, #tpu.memory_space<vmem>>, vector<1x128xf32>
    %56 = vector.broadcast %55 : vector<1x128xf32> to vector<544x128xf32>
    %57 = arith.mulf %54, %56 : vector<544x128xf32>
    %c0_50 = arith.constant 0 : index
    %c0_51 = arith.constant 0 : index
    %58 = vector.load %arg4[%c0_50, %c0_51] : memref<1x128xf32, #tpu.memory_space<vmem>>, vector<1x128xf32>
    %59 = vector.broadcast %58 : vector<1x128xf32> to vector<544x128xf32>
    %60 = arith.addf %57, %59 : vector<544x128xf32>
    %cst_52 = arith.constant 0.000000e+00 : f32
    %61 = vector.broadcast %cst_52 : f32 to vector<544x128xf32>
    %62 = arith.maximumf %60, %61 : vector<544x128xf32>
    %c0_53 = arith.constant 0 : index
    %c0_54 = arith.constant 0 : index
    %c0_55 = arith.constant 0 : index
    %63 = vector.load %arg5[%c0_53, %c0_54, %c0_55] : memref<1x544x128xf32, #tpu.memory_space<vmem>>, vector<1x544x128xf32>
    %64 = vector.shape_cast %63 : vector<1x544x128xf32> to vector<544x128xf32>
    %65 = vector.shape_cast %62 : vector<544x128xf32> to vector<1x544x128xf32>
    tpu.vector_store %arg5[%c0_53, %c0_54, %c0_55], %65 {strides = array<i32>} : memref<1x544x128xf32, #tpu.memory_space<vmem>>, vector<1x544x128xf32>,
    return
  }
  func.func @transform_0(%arg0: i32) -> (i32, i32, i32) {
    %c0_i32 = arith.constant 0 : i32
    %c0_i32_0 = arith.constant 0 : i32
    %c0_i32_1 = arith.constant 0 : i32
    return %arg0, %c0_i32, %c0_i32_0 : i32, i32, i32
  }
  func.func @transform_1(%arg0: i32) -> (i32, i32, i32) {
    %c0_i32 = arith.constant 0 : i32
    %c0_i32_0 = arith.constant 0 : i32
    %c0_i32_1 = arith.constant 0 : i32
    %c0_i32_2 = arith.constant 0 : i32
    return %c0_i32, %c0_i32_0, %c0_i32_1 : i32, i32, i32
  }
  func.func @transform_2(%arg0: i32) -> (i32, i32) {
    %c0_i32 = arith.constant 0 : i32
    %c0_i32_0 = arith.constant 0 : i32
    %c0_i32_1 = arith.constant 0 : i32
    return %c0_i32, %c0_i32_0 : i32, i32
  }
  func.func @transform_3(%arg0: i32) -> (i32, i32) {
    %c0_i32 = arith.constant 0 : i32
    %c0_i32_0 = arith.constant 0 : i32
    %c0_i32_1 = arith.constant 0 : i32
    return %c0_i32, %c0_i32_0 : i32, i32
  }
  func.func @transform_4(%arg0: i32) -> (i32, i32, i32) {
    %c0_i32 = arith.constant 0 : i32
    %c0_i32_0 = arith.constant 0 : i32
    %c0_i32_1 = arith.constant 0 : i32
    return %arg0, %c0_i32, %c0_i32_0 : i32, i32, i32
  }
}

</mosaic_0001>

<llo_original>
// kernel: deconv_block.3
$region0: #{deconv_block.3}
  #allocation0 [shape = 'u32[]', space=smem, size = 0x4, offset = 0x4, fixed_abs, tag = 'smem constant byte address 0x4 - core index']
  #allocation1 [shape = 'u32[144,128]{1,0:T(1,128)}', space=vmem, size = 0x12000, scoped, tag = 'internal scratch']
  %s0 = inlined_call_operand.vmem [shape: bf16[4,614,8], index: 0, kind: input, shape index: {}]
  %s1 = inlined_call_operand.vmem [shape: bf16[9,8,128], index: 1, kind: input, shape index: {}]
  %s2 = inlined_call_operand.vmem [shape: f32[1,128], index: 2, kind: input, shape index: {}]
  %s3 = inlined_call_operand.vmem [shape: f32[1,128], index: 3, kind: input, shape index: {}]
  %s4 = inlined_call_operand.vmem [shape: f32[4,544,128], index: 4, kind: output, shape index: {}]
  %s5 = sld [smem:[#allocation0]]
  $region49: #{deconv_block.3} parent=0
    _
  %s7 = ssub.s32 1, %s5
  %s8 = scalar_select 0, %s7, %s5
  loop: start=0, step=1, limit=6
  $region2: #{deconv_block.3} parent=0 // loop_pre_header
    _
  $region3: #{deconv_block.3} parent=0 // loop_header
    %s10 = sphi 0, %s14
    %p11 = scmp.ge.s32.totalorder %s10, 6
    %s20 = sphi 0, %s22
    %s23 = sphi 0, %s20
    %s24 = sphi 0, %s23
    %s40 = sphi 0, %s24
    %s44 = sphi 0, %s44
    %s46 = sphi 0, %s44
    %s47 = sphi 0, %s46
    %s61 = sphi 0, %s47
    %s65 = sphi 0, %s65
    %s67 = sphi 0, %s65
    %s68 = sphi 0, %s67
    %s82 = sphi 0, %s68
    %s86 = sphi 0, %s86
    %s88 = sphi 0, %s86
    %s89 = sphi 0, %s88
    %s103 = sphi 0, %s89
    %s109 = sphi 0, %s111
    %s112 = sphi 0, %s109
    %s113 = sphi 0, %s112
    %s129 = sphi 0, %s113
  $region4: #{deconv_block.3} parent=0 // loop_header_branch
    %13 = sbr.rel (%p11) target = $region8
  $region5: #{deconv_block.3} parent=0 // loop_body
    %s15 = ssub.s32 %s10, 1
    %s16 = ssub.s32 %s10, 2
    %s17 = sadd.s32 %s10, 1
    %s18 = ssub.s32 %s10, %s17
    %p19 = scmp.eq.s32.totalorder %s18, 0
    %s21 = sadd.s32 %s20, 1
    %s22 = scalar_select %p19, %s20, %s21
    %p25 = pneg %p19
    %p26 = scmp.eq.s32.totalorder %s10, 3
    %p27 = por %p25, %p26
    %p28 = scmp.ne.s32.totalorder %s20, %s23
    %p29 = scmp.eq.s32.totalorder %s10, 0
    %p30 = por %p28, %p29
    %p31 = scmp.ne.s32.totalorder %s20, %s23
    %p32 = scmp.eq.s32.totalorder %s15, 3
    %p33 = por %p31, %p32
    %p34 = scmp.ne.s32.totalorder %s23, %s24
    %p35 = scmp.eq.s32.totalorder %s15, 0
    %p36 = por %p34, %p35
    %p37 = scmp.ne.s32.totalorder %s23, %s24
    %p38 = scmp.eq.s32.totalorder %s16, 3
    %p39 = por %p37, %p38
    %p41 = scmp.ne.s32.totalorder %s24, %s40
    %p42 = scmp.eq.s32.totalorder %s16, 0
    %p43 = por %p41, %p42
    %s45 = sadd.s32 %s44, 1
    %p48 = scmp.eq.s32.totalorder %s10, 3
    %p49 = scmp.ne.s32.totalorder %s44, %s46
    %p50 = scmp.eq.s32.totalorder %s10, 0
    %p51 = por %p49, %p50
    %p52 = scmp.ne.s32.totalorder %s44, %s46
    %p53 = scmp.eq.s32.totalorder %s15, 3
    %p54 = por %p52, %p53
    %p55 = scmp.ne.s32.totalorder %s46, %s47
    %p56 = scmp.eq.s32.totalorder %s15, 0
    %p57 = por %p55, %p56
    %p58 = scmp.ne.s32.totalorder %s46, %s47
    %p59 = scmp.eq.s32.totalorder %s16, 3
    %p60 = por %p58, %p59
    %p62 = scmp.ne.s32.totalorder %s47, %s61
    %p63 = scmp.eq.s32.totalorder %s16, 0
    %p64 = por %p62, %p63
    %s66 = sadd.s32 %s65, 1
    %p69 = scmp.eq.s32.totalorder %s10, 3
    %p70 = scmp.ne.s32.totalorder %s65, %s67
    %p71 = scmp.eq.s32.totalorder %s10, 0
    %p72 = por %p70, %p71
    %p73 = scmp.ne.s32.totalorder %s65, %s67
    %p74 = scmp.eq.s32.totalorder %s15, 3
    %p75 = por %p73, %p74
    %p76 = scmp.ne.s32.totalorder %s67, %s68
    %p77 = scmp.eq.s32.totalorder %s15, 0
    %p78 = por %p76, %p77
    %p79 = scmp.ne.s32.totalorder %s67, %s68
    %p80 = scmp.eq.s32.totalorder %s16, 3
    %p81 = por %p79, %p80
    %p83 = scmp.ne.s32.totalorder %s68, %s82
    %p84 = scmp.eq.s32.totalorder %s16, 0
    %p85 = por %p83, %p84
    %s87 = sadd.s32 %s86, 1
    %p90 = scmp.eq.s32.totalorder %s10, 3
    %p91 = scmp.ne.s32.totalorder %s86, %s88
    %p92 = scmp.eq.s32.totalorder %s10, 0
    %p93 = por %p91, %p92
    %p94 = scmp.ne.s32.totalorder %s86, %s88
    %p95 = scmp.eq.s32.totalorder %s15, 3
    %p96 = por %p94, %p95
    %p97 = scmp.ne.s32.totalorder %s88, %s89
    %p98 = scmp.eq.s32.totalorder %s15, 0
    %p99 = por %p97, %p98
    %p100 = scmp.ne.s32.totalorder %s88, %s89
    %p101 = scmp.eq.s32.totalorder %s16, 3
    %p102 = por %p100, %p101
    %p104 = scmp.ne.s32.totalorder %s89, %s103
    %p105 = scmp.eq.s32.totalorder %s16, 0
    %p106 = por %p104, %p105
    %s107 = ssub.s32 %s10, %s17
    %p108 = scmp.eq.s32.totalorder %s107, 0
    %s110 = sadd.s32 %s109, 1
    %s111 = scalar_select %p108, %s109, %s110
    %p114 = pneg %p108
    %p115 = scmp.eq.s32.totalorder %s10, 3
    %p116 = por %p114, %p115
    %p117 = scmp.ne.s32.totalorder %s109, %s112
    %p118 = scmp.eq.s32.totalorder %s10, 0
    %p119 = por %p117, %p118
    %p120 = scmp.ne.s32.totalorder %s109, %s112
    %p121 = scmp.eq.s32.totalorder %s15, 3
    %p122 = por %p120, %p121
    %p123 = scmp.ne.s32.totalorder %s112, %s113
    %p124 = scmp.eq.s32.totalorder %s15, 0
    %p125 = por %p123, %p124
    %p126 = scmp.ne.s32.totalorder %s112, %s113
    %p127 = scmp.eq.s32.totalorder %s16, 3
    %p128 = por %p126, %p127
    %p130 = scmp.ne.s32.totalorder %s113, %s129
    %p131 = scmp.eq.s32.totalorder %s16, 0
    %p132 = por %p130, %p131
    %p133 = scmp.le.s32.totalorder 1, %s10
    %p134 = scmp.lt.s32.totalorder %s10, 5
    %p135 = pnand %p133, %p134
    %p136 = pneg %p135
    // Predicated region
    $region9: #{deconv_block.3} parent=5 // pred_check
      _
    $region10: #{deconv_block.3} parent=5 // pred_check_branch
      %138 = sbr.rel (%p135) target = $region12
    $region11: #{deconv_block.3} parent=5 // pred_region
      %s139 = ssub.s32 %s10, 1
      // Predicated region
      $region13: #{deconv_block.3} parent=11 // pred_check
        %p140 = pneg %p57
      $region14: #{deconv_block.3} parent=11 // pred_check_branch
        %142 = sbr.rel (%p140) target = $region16
      $region15: #{deconv_block.3} parent=11 // pred_region
        _
      $region16: #{deconv_block.3} parent=11 // pred_fallthru
        _
      // Predicated region
      $region17: #{deconv_block.3} parent=11 // pred_check
        %p143 = pneg %p78
      $region18: #{deconv_block.3} parent=11 // pred_check_branch
        %145 = sbr.rel (%p143) target = $region20
      $region19: #{deconv_block.3} parent=11 // pred_region
        _
      $region20: #{deconv_block.3} parent=11 // pred_fallthru
        _
      // Predicated region
      $region21: #{deconv_block.3} parent=11 // pred_check
        %p146 = pneg %p99
      $region22: #{deconv_block.3} parent=11 // pred_check_branch
        %148 = sbr.rel (%p146) target = $region24
      $region23: #{deconv_block.3} parent=11 // pred_region
        _
      $region24: #{deconv_block.3} parent=11 // pred_fallthru
        _
    $region12: #{deconv_block.3} parent=5 // pred_fallthru
      _
    %p149 = scmp.lt.s32.totalorder %s10, 4
    // Predicated region
    $region25: #{deconv_block.3} parent=5 // pred_check
      %p150 = pneg %p149
    $region26: #{deconv_block.3} parent=5 // pred_check_branch
      %152 = sbr.rel (%p150) target = $region28
    $region27: #{deconv_block.3} parent=5 // pred_region
      // Predicated region
      $region29: #{deconv_block.3} parent=27 // pred_check
        %p153 = pneg %p30
      $region30: #{deconv_block.3} parent=27 // pred_check_branch
        %155 = sbr.rel (%p153) target = $region32
      $region31: #{deconv_block.3} parent=27 // pred_region
        %p156 = scmp.lt.s32.totalorder %s10, 3
        %s157 = scalar_select %p156, %s10, 3
        %s158 = smul.addr %s157, 77
        %s159 = smul.addr %s158, 4
        %s160 = scalar_lea.vmem %s0, %s159
      $region32: #{deconv_block.3} parent=27 // pred_fallthru
        _
    $region28: #{deconv_block.3} parent=5 // pred_fallthru
      _
    %p161 = scmp.le.s32.totalorder 1, %s10
    %p162 = scmp.lt.s32.totalorder %s10, 5
    %p163 = pnand %p161, %p162
    %p164 = pneg %p163
    // Predicated region
    $region33: #{deconv_block.3} parent=5 // pred_check
      _
    $region34: #{deconv_block.3} parent=5 // pred_check_branch
      %166 = sbr.rel (%p163) target = $region36
    $region35: #{deconv_block.3} parent=5 // pred_region
      %s167 = ssub.s32 %s10, 1
      %p168 = scmp.lt.s32.totalorder %s15, 3
      %s169 = scalar_select %p168, %s15, 3
      %s170 = smul.addr %s169, 77
      %s171 = smul.addr %s170, 4
      %s172 = scalar_lea.vmem %s0, %s171
      %p173 = pneg %p36
      %p174 = pneg %p33
      %p175 = pneg %p57
      %p176 = pneg %p54
      %p177 = pneg %p78
      %p178 = pneg %p75
      %p179 = pneg %p99
      %p180 = pneg %p96
      %p181 = pneg %p125
      %p182 = pneg %p122
      %p183 = scmp.lt.s32.totalorder %s15, 3
      %s184 = scalar_select %p183, %s15, 3
      %s185 = smul.addr %s184, 68
      %s186 = smul.addr %s185, 8
      %s187 = scalar_lea.vmem %s4, %s186
      %p188 = scmp.lt.s32.totalorder %s15, 3
      %s189 = scalar_select %p188, %s15, 3
      %s190 = smul.addr %s189, 77
      %s191 = smul.addr %s190, 4
      %s192 = scalar_lea.vmem %s0, %s191
      %p193 = scmp.lt.s32.totalorder %s15, 3
      %s194 = scalar_select %p193, %s15, 3
      %s195 = smul.addr %s194, 68
      %s196 = smul.addr %s195, 8
      %s197 = scalar_lea.vmem %s4, %s196
      %v199 = vld [vmem:[%s192] sm:$0xf]
      %v200 = vld [vmem:[%s192 + $0x4] sm:$0xf]
      %v201 = vld [vmem:[%s192 + $0x8] sm:$0xf]
      %v202 = vld [vmem:[%s192 + $0xc] sm:$0xf]
      %v203 = vld [vmem:[%s192 + $0x10] sm:$0xf]
      %v204 = vld [vmem:[%s192 + $0x14] sm:$0xf]
      %v205 = vld [vmem:[%s192 + $0x18] sm:$0xf]
      %v206 = vld [vmem:[%s192 + $0x1c] sm:$0xf]
      %v207 = vld [vmem:[%s192 + $0x20] sm:$0xf]
      %v208 = vld [vmem:[%s192 + $0x24] sm:$0xf]
      %v209 = vld [vmem:[%s192 + $0x28] sm:$0xf]
      %v210 = vld [vmem:[%s192 + $0x2c] sm:$0xf]
      %v211 = vld [vmem:[%s192 + $0x30] sm:$0xf]
      %v212 = vld [vmem:[%s192 + $0x34] sm:$0xf]
      %v213 = vld [vmem:[%s192 + $0x38] sm:$0xf]
      %v214 = vld [vmem:[%s192 + $0x3c] sm:$0xf]
      %v215 = vld [vmem:[%s192 + $0x40] sm:$0xf]
      %v216 = vld [vmem:[%s192 + $0x44] sm:$0xf]
      %v217 = vld [vmem:[%s192 + $0x48] sm:$0xf]
      %v218 = vld [vmem:[%s192 + $0x4c] sm:$0xf]
      %v219 = vld [vmem:[%s192 + $0x50] sm:$0xf]
      %v220 = vld [vmem:[%s192 + $0x54] sm:$0xf]
      %v221 = vld [vmem:[%s192 + $0x58] sm:$0xf]
      %v222 = vld [vmem:[%s192 + $0x5c] sm:$0xf]
      %v223 = vld [vmem:[%s192 + $0x60] sm:$0xf]
      %v224 = vld [vmem:[%s192 + $0x64] sm:$0xf]
      %v225 = vld [vmem:[%s192 + $0x68] sm:$0xf]
      %v226 = vld [vmem:[%s192 + $0x6c] sm:$0xf]
      %v227 = vld [vmem:[%s192 + $0x70] sm:$0xf]
      %v228 = vld [vmem:[%s192 + $0x74] sm:$0xf]
      %v229 = vld [vmem:[%s192 + $0x78] sm:$0xf]
      %v230 = vld [vmem:[%s192 + $0x7c] sm:$0xf]
      %v231 = vld [vmem:[%s192 + $0x80] sm:$0xf]
      %v232 = vld [vmem:[%s192 + $0x84] sm:$0xf]
      %v233 = vld [vmem:[%s192 + $0x88] sm:$0xf]
      %v234 = vld [vmem:[%s192 + $0x8c] sm:$0xf]
      %v235 = vld [vmem:[%s192 + $0x90] sm:$0xf]
      %v236 = vld [vmem:[%s192 + $0x94] sm:$0xf]
      %v237 = vld [vmem:[%s192 + $0x98] sm:$0xf]
      %v238 = vld [vmem:[%s192 + $0x9c] sm:$0xf]
      %v239 = vld [vmem:[%s192 + $0xa0] sm:$0xf]
      %v240 = vld [vmem:[%s192 + $0xa4] sm:$0xf]
      %v241 = vld [vmem:[%s192 + $0xa8] sm:$0xf]
      %v242 = vld [vmem:[%s192 + $0xac] sm:$0xf]
      %v243 = vld [vmem:[%s192 + $0xb0] sm:$0xf]
      %v244 = vld [vmem:[%s192 + $0xb4] sm:$0xf]
      %v245 = vld [vmem:[%s192 + $0xb8] sm:$0xf]
      %v246 = vld [vmem:[%s192 + $0xbc] sm:$0xf]
      %v247 = vld [vmem:[%s192 + $0xc0] sm:$0xf]
      %v248 = vld [vmem:[%s192 + $0xc4] sm:$0xf]
      %v249 = vld [vmem:[%s192 + $0xc8] sm:$0xf]
      %v250 = vld [vmem:[%s192 + $0xcc] sm:$0xf]
      %v251 = vld [vmem:[%s192 + $0xd0] sm:$0xf]
      %v252 = vld [vmem:[%s192 + $0xd4] sm:$0xf]
      %v253 = vld [vmem:[%s192 + $0xd8] sm:$0xf]
      %v254 = vld [vmem:[%s192 + $0xdc] sm:$0xf]
      %v255 = vld [vmem:[%s192 + $0xe0] sm:$0xf]
      %v256 = vld [vmem:[%s192 + $0xe4] sm:$0xf]
      %v257 = vld [vmem:[%s192 + $0xe8] sm:$0xf]
      %v258 = vld [vmem:[%s192 + $0xec] sm:$0xf]
      %v259 = vld [vmem:[%s192 + $0xf0] sm:$0xf]
      %v260 = vld [vmem:[%s192 + $0xf4] sm:$0xf]
      %v261 = vld [vmem:[%s192 + $0xf8] sm:$0xf]
      %v262 = vld [vmem:[%s192 + $0xfc] sm:$0xf]
      %v263 = vld [vmem:[%s192 + $0x100] sm:$0xf]
      %v264 = vld [vmem:[%s192 + $0x104] sm:$0xf]
      %v265 = vld [vmem:[%s192 + $0x108] sm:$0xf]
      %v266 = vld [vmem:[%s192 + $0x10c] sm:$0xf]
      %v267 = vld [vmem:[%s1] sm:$0xf]
      %v268 = vld [vmem:[%s192 + $0x110] sm:$0x1]
      %s269 = scalar_lea.vmem %s1, 4
      %v270 = vld [vmem:[%s269] sm:$0xf]
      %v340 = vunpack.c.l.b16 %v199
      %v341 = vunpack.c.l.b16 %v200
      %v342 = vunpack.c.l.b16 %v201
      %v343 = vunpack.c.l.b16 %v202
      %v344 = vunpack.c.l.b16 %v203
      %v345 = vunpack.c.l.b16 %v204
      %v346 = vunpack.c.l.b16 %v205
      %v347 = vunpack.c.l.b16 %v206
      %v348 = vunpack.c.l.b16 %v207
      %v349 = vunpack.c.l.b16 %v208
      %v350 = vunpack.c.l.b16 %v209
      %v351 = vunpack.c.l.b16 %v210
      %v352 = vunpack.c.l.b16 %v211
      %v353 = vunpack.c.l.b16 %v212
      %v354 = vunpack.c.l.b16 %v213
      %v355 = vunpack.c.l.b16 %v214
      %v356 = vunpack.c.l.b16 %v215
      %v357 = vunpack.c.l.b16 %v216
      %v358 = vunpack.c.l.b16 %v217
      %v359 = vunpack.c.l.b16 %v218
      %v360 = vunpack.c.l.b16 %v219
      %v361 = vunpack.c.l.b16 %v220
      %v362 = vunpack.c.l.b16 %v221
      %v363 = vunpack.c.l.b16 %v222
      %v364 = vunpack.c.l.b16 %v223
      %v365 = vunpack.c.l.b16 %v224
      %v366 = vunpack.c.l.b16 %v225
      %v367 = vunpack.c.l.b16 %v226
      %v368 = vunpack.c.l.b16 %v227
      %v369 = vunpack.c.l.b16 %v228
      %v370 = vunpack.c.l.b16 %v229
      %v371 = vunpack.c.l.b16 %v230
      %v372 = vunpack.c.l.b16 %v231
      %v373 = vunpack.c.l.b16 %v232
      %v374 = vunpack.c.l.b16 %v233
      %v375 = vunpack.c.l.b16 %v234
      %v376 = vunpack.c.l.b16 %v235
      %v377 = vunpack.c.l.b16 %v236
      %v378 = vunpack.c.l.b16 %v237
      %v379 = vunpack.c.l.b16 %v238
      %v380 = vunpack.c.l.b16 %v239
      %v381 = vunpack.c.l.b16 %v240
      %v382 = vunpack.c.l.b16 %v241
      %v383 = vunpack.c.l.b16 %v242
      %v384 = vunpack.c.l.b16 %v243
      %v385 = vunpack.c.l.b16 %v244
      %v386 = vunpack.c.l.b16 %v245
      %v387 = vunpack.c.l.b16 %v246
      %v388 = vunpack.c.l.b16 %v247
      %v389 = vunpack.c.l.b16 %v248
      %v390 = vunpack.c.l.b16 %v249
      %v391 = vunpack.c.l.b16 %v250
      %v392 = vunpack.c.l.b16 %v251
      %v393 = vunpack.c.l.b16 %v252
      %v394 = vunpack.c.l.b16 %v253
      %v395 = vunpack.c.l.b16 %v254
      %v396 = vunpack.c.l.b16 %v255
      %v397 = vunpack.c.l.b16 %v256
      %v398 = vunpack.c.l.b16 %v257
      %v399 = vunpack.c.l.b16 %v258
      %v400 = vunpack.c.l.b16 %v259
      %v401 = vunpack.c.l.b16 %v260
      %v402 = vunpack.c.l.b16 %v261
      %v403 = vunpack.c.l.b16 %v262
      %v404 = vunpack.c.l.b16 %v263
      %v405 = vunpack.c.l.b16 %v264
      %v406 = vunpack.c.l.b16 %v265
      %v407 = vunpack.c.l.b16 %v266
      %v408 = vunpack.c.l.b16 %v268
      %v409 = vpack.c.b16 %v341, %v340
      %v410 = vpack.c.b16 %v343, %v342
      %v411 = vpack.c.b16 %v345, %v344
      %v412 = vpack.c.b16 %v347, %v346
      %v413 = vpack.c.b16 %v349, %v348
      %v414 = vpack.c.b16 %v351, %v350
      %v415 = vpack.c.b16 %v353, %v352
      %v416 = vpack.c.b16 %v355, %v354
      %v417 = vpack.c.b16 %v357, %v356
      %v418 = vpack.c.b16 %v359, %v358
      %v419 = vpack.c.b16 %v361, %v360
      %v420 = vpack.c.b16 %v363, %v362
      %v421 = vpack.c.b16 %v365, %v364
      %v422 = vpack.c.b16 %v367, %v366
      %v423 = vpack.c.b16 %v369, %v368
      %v424 = vpack.c.b16 %v371, %v370
      %v425 = vpack.c.b16 %v373, %v372
      %v426 = vpack.c.b16 %v375, %v374
      %v427 = vpack.c.b16 %v377, %v376
      %v428 = vpack.c.b16 %v379, %v378
      %v429 = vpack.c.b16 %v381, %v380
      %v430 = vpack.c.b16 %v383, %v382
      %v431 = vpack.c.b16 %v385, %v384
      %v432 = vpack.c.b16 %v387, %v386
      %v433 = vpack.c.b16 %v389, %v388
      %v434 = vpack.c.b16 %v391, %v390
      %v435 = vpack.c.b16 %v393, %v392
      %v436 = vpack.c.b16 %v395, %v394
      %v437 = vpack.c.b16 %v397, %v396
      %v438 = vpack.c.b16 %v399, %v398
      %v439 = vpack.c.b16 %v401, %v400
      %v440 = vpack.c.b16 %v403, %v402
      %v441 = vpack.c.b16 %v405, %v404
      %v442 = vpack.c.b16 %v407, %v406
      %v443 = vpack.c.b16 %v408, %v408
      %vm444 = vsmask.f32 7424
      %v446 = vshrl.u32 %v409, 16
      %v448 = vshll.u32 %v409, 16
      %v450 = vrot.slane %v448, 1
      %v451 = vor.u32 %v446, %v450
      %v453 = vshll.u32 %v410, 16
      %v455 = vrot.slane %v453, 1
      %v456 = vsel %vm444, %v451, %v455
      %v457 = vshrl.u32 %v410, 16
      %v459 = vor.u32 %v457, %v455
      %v461 = vshll.u32 %v411, 16
      %v463 = vrot.slane %v461, 1
      %v464 = vsel %vm444, %v459, %v463
      %v465 = vshrl.u32 %v411, 16
      %v467 = vor.u32 %v465, %v463
      %v469 = vshll.u32 %v412, 16
      %v471 = vrot.slane %v469, 1
      %v472 = vsel %vm444, %v467, %v471
      %v473 = vshrl.u32 %v412, 16
      %v475 = vor.u32 %v473, %v471
      %v477 = vshll.u32 %v413, 16
      %v479 = vrot.slane %v477, 1
      %v480 = vsel %vm444, %v475, %v479
      %v481 = vshrl.u32 %v413, 16
      %v483 = vor.u32 %v481, %v479
      %v485 = vshll.u32 %v414, 16
      %v487 = vrot.slane %v485, 1
      %v488 = vsel %vm444, %v483, %v487
      %v489 = vshrl.u32 %v414, 16
      %v491 = vor.u32 %v489, %v487
      %v493 = vshll.u32 %v415, 16
      %v495 = vrot.slane %v493, 1
      %v496 = vsel %vm444, %v491, %v495
      %v497 = vshrl.u32 %v415, 16
      %v499 = vor.u32 %v497, %v495
      %v501 = vshll.u32 %v416, 16
      %v503 = vrot.slane %v501, 1
      %v504 = vsel %vm444, %v499, %v503
      %v505 = vshrl.u32 %v416, 16
      %v507 = vor.u32 %v505, %v503
      %v509 = vshll.u32 %v417, 16
      %v511 = vrot.slane %v509, 1
      %v512 = vsel %vm444, %v507, %v511
      %v513 = vshrl.u32 %v417, 16
      %v515 = vor.u32 %v513, %v511
      %v517 = vshll.u32 %v418, 16
      %v519 = vrot.slane %v517, 1
      %v520 = vsel %vm444, %v515, %v519
      %v521 = vshrl.u32 %v418, 16
      %v523 = vor.u32 %v521, %v519
      %v525 = vshll.u32 %v419, 16
      %v527 = vrot.slane %v525, 1
      %v528 = vsel %vm444, %v523, %v527
      %v529 = vshrl.u32 %v419, 16
      %v531 = vor.u32 %v529, %v527
      %v533 = vshll.u32 %v420, 16
      %v535 = vrot.slane %v533, 1
      %v536 = vsel %vm444, %v531, %v535
      %v537 = vshrl.u32 %v420, 16
      %v539 = vor.u32 %v537, %v535
      %v541 = vshll.u32 %v421, 16
      %v543 = vrot.slane %v541, 1
      %v544 = vsel %vm444, %v539, %v543
      %v545 = vshrl.u32 %v421, 16
      %v547 = vor.u32 %v545, %v543
      %v549 = vshll.u32 %v422, 16
      %v551 = vrot.slane %v549, 1
      %v552 = vsel %vm444, %v547, %v551
      %v553 = vshrl.u32 %v422, 16
      %v555 = vor.u32 %v553, %v551
      %v557 = vshll.u32 %v423, 16
      %v559 = vrot.slane %v557, 1
      %v560 = vsel %vm444, %v555, %v559
      %v561 = vshrl.u32 %v423, 16
      %v563 = vor.u32 %v561, %v559
      %v565 = vshll.u32 %v424, 16
      %v567 = vrot.slane %v565, 1
      %v568 = vsel %vm444, %v563, %v567
      %v569 = vshrl.u32 %v424, 16
      %v571 = vor.u32 %v569, %v567
      %v573 = vshll.u32 %v425, 16
      %v575 = vrot.slane %v573, 1
      %v576 = vsel %vm444, %v571, %v575
      %v577 = vshrl.u32 %v425, 16
      %v579 = vor.u32 %v577, %v575
      %v581 = vshll.u32 %v426, 16
      %v583 = vrot.slane %v581, 1
      %v584 = vsel %vm444, %v579, %v583
      %v585 = vshrl.u32 %v426, 16
      %v587 = vor.u32 %v585, %v583
      %v589 = vshll.u32 %v427, 16
      %v591 = vrot.slane %v589, 1
      %v592 = vsel %vm444, %v587, %v591
      %v593 = vshrl.u32 %v427, 16
      %v595 = vor.u32 %v593, %v591
      %v597 = vshll.u32 %v428, 16
      %v599 = vrot.slane %v597, 1
      %v600 = vsel %vm444, %v595, %v599
      %v601 = vshrl.u32 %v428, 16
      %v603 = vor.u32 %v601, %v599
      %v605 = vshll.u32 %v429, 16
      %v607 = vrot.slane %v605, 1
      %v608 = vsel %vm444, %v603, %v607
      %v609 = vshrl.u32 %v429, 16
      %v611 = vor.u32 %v609, %v607
      %v613 = vshll.u32 %v430, 16
      %v615 = vrot.slane %v613, 1
      %v616 = vsel %vm444, %v611, %v615
      %v617 = vshrl.u32 %v430, 16
      %v619 = vor.u32 %v617, %v615
      %v621 = vshll.u32 %v431, 16
      %v623 = vrot.slane %v621, 1
      %v624 = vsel %vm444, %v619, %v623
      %v625 = vshrl.u32 %v431, 16
      %v627 = vor.u32 %v625, %v623
      %v629 = vshll.u32 %v432, 16
      %v631 = vrot.slane %v629, 1
      %v632 = vsel %vm444, %v627, %v631
      %v633 = vshrl.u32 %v432, 16
      %v635 = vor.u32 %v633, %v631
      %v637 = vshll.u32 %v433, 16
      %v639 = vrot.slane %v637, 1
      %v640 = vsel %vm444, %v635, %v639
      %v641 = vshrl.u32 %v433, 16
      %v643 = vor.u32 %v641, %v639
      %v645 = vshll.u32 %v434, 16
      %v647 = vrot.slane %v645, 1
      %v648 = vsel %vm444, %v643, %v647
      %v649 = vshrl.u32 %v434, 16
      %v651 = vor.u32 %v649, %v647
      %v653 = vshll.u32 %v435, 16
      %v655 = vrot.slane %v653, 1
      %v656 = vsel %vm444, %v651, %v655
      %v657 = vshrl.u32 %v435, 16
      %v659 = vor.u32 %v657, %v655
      %v661 = vshll.u32 %v436, 16
      %v663 = vrot.slane %v661, 1
      %v664 = vsel %vm444, %v659, %v663
      %v665 = vshrl.u32 %v436, 16
      %v667 = vor.u32 %v665, %v663
      %v669 = vshll.u32 %v437, 16
      %v671 = vrot.slane %v669, 1
      %v672 = vsel %vm444, %v667, %v671
      %v673 = vshrl.u32 %v437, 16
      %v675 = vor.u32 %v673, %v671
      %v677 = vshll.u32 %v438, 16
      %v679 = vrot.slane %v677, 1
      %v680 = vsel %vm444, %v675, %v679
      %v681 = vshrl.u32 %v438, 16
      %v683 = vor.u32 %v681, %v679
      %v685 = vshll.u32 %v439, 16
      %v687 = vrot.slane %v685, 1
      %v688 = vsel %vm444, %v683, %v687
      %v689 = vshrl.u32 %v439, 16
      %v691 = vor.u32 %v689, %v687
      %v693 = vshll.u32 %v440, 16
      %v695 = vrot.slane %v693, 1
      %v696 = vsel %vm444, %v691, %v695
      %v697 = vshrl.u32 %v440, 16
      %v699 = vor.u32 %v697, %v695
      %v701 = vshll.u32 %v441, 16
      %v703 = vrot.slane %v701, 1
      %v704 = vsel %vm444, %v699, %v703
      %v705 = vshrl.u32 %v441, 16
      %v707 = vor.u32 %v705, %v703
      %v709 = vshll.u32 %v442, 16
      %v711 = vrot.slane %v709, 1
      %v712 = vsel %vm444, %v707, %v711
      %v713 = vshrl.u32 %v442, 16
      %v715 = vor.u32 %v713, %v711
      %v717 = vshll.u32 %v443, 16
      %v719 = vrot.slane %v717, 1
      %v720 = vsel %vm444, %v715, %v719
      %vm721 = vcmask 64512
      %v723 = vsel %vm721, %v456, 0
      %v726 = vsel %vm721, %v464, 0
      %v729 = vsel %vm721, %v472, 0
      %v732 = vsel %vm721, %v480, 0
      %v735 = vsel %vm721, %v488, 0
      %v738 = vsel %vm721, %v496, 0
      %v741 = vsel %vm721, %v504, 0
      %v744 = vsel %vm721, %v512, 0
      %v747 = vsel %vm721, %v520, 0
      %v750 = vsel %vm721, %v528, 0
      %v753 = vsel %vm721, %v536, 0
      %v756 = vsel %vm721, %v544, 0
      %v759 = vsel %vm721, %v552, 0
      %v762 = vsel %vm721, %v560, 0
      %v765 = vsel %vm721, %v568, 0
      %v768 = vsel %vm721, %v576, 0
      %v771 = vsel %vm721, %v584, 0
      %v774 = vsel %vm721, %v592, 0
      %v777 = vsel %vm721, %v600, 0
      %v780 = vsel %vm721, %v608, 0
      %v783 = vsel %vm721, %v616, 0
      %v786 = vsel %vm721, %v624, 0
      %v789 = vsel %vm721, %v632, 0
      %v792 = vsel %vm721, %v640, 0
      %v795 = vsel %vm721, %v648, 0
      %v798 = vsel %vm721, %v656, 0
      %v801 = vsel %vm721, %v664, 0
      %v804 = vsel %vm721, %v672, 0
      %v807 = vsel %vm721, %v680, 0
      %v810 = vsel %vm721, %v688, 0
      %v813 = vsel %vm721, %v696, 0
      %v816 = vsel %vm721, %v704, 0
      %v819 = vsel %vm721, %v712, 0
      %v822 = vsel %vm721, %v720, 0
      %vm824 = vcmask 1043456
      %v826 = vsel %vm824, %v270, 0
      %828 = vmatprep.subr.bf16.mxu0 0
      %829 = vmatpush1.bf16.msra.mxu0 %v826
      %830 = vmatprep.subr.bf16.mxu0 0
      %831 = vmatpush1.bf16.msra.mxu0 0
      %832 = vmatprep.subr.bf16.mxu0 0
      %833 = vmatpush1.bf16.msra.mxu0 0
      %834 = vmatprep.subr.bf16.mxu0 0
      %835 = vmatpush1.bf16.msra.mxu0 0
      %836 = vmatprep.subr.bf16.mxu0 0
      %837 = vmatpush1.bf16.msra.mxu0 0
      %838 = vmatprep.subr.bf16.mxu0 0
      %839 = vmatpush1.bf16.msra.mxu0 0
      %840 = vmatprep.subr.bf16.mxu0 0
      %841 = vmatpush1.bf16.msra.mxu0 0
      %842 = vmatprep.subr.bf16.mxu0 0
      %843 = vmatpush1.bf16.msra.mxu0 0
      %844 = vmatprep.subr.bf16.mxu0 0
      %845 = vmatpush1.bf16.msra.mxu0 0
      %846 = vmatprep.subr.bf16.mxu0 0
      %847 = vmatpush1.bf16.msra.mxu0 0
      %848 = vmatprep.subr.bf16.mxu0 0
      %849 = vmatpush1.bf16.msra.mxu0 0
      %850 = vmatprep.subr.bf16.mxu0 0
      %851 = vmatpush1.bf16.msra.mxu0 0
      %852 = vmatprep.subr.bf16.mxu0 0
      %853 = vmatpush1.bf16.msra.mxu0 0
      %854 = vmatprep.subr.bf16.mxu0 0
      %855 = vmatpush1.bf16.msra.mxu0 0
      %856 = vmatprep.subr.bf16.mxu0 0
      %857 = vmatpush1.bf16.msra.mxu0 0
      %858 = vmatprep.subr.bf16.mxu0 0
      %859 = vmatpush1.bf16.msra.mxu0 0
      %860 = vmatprep.mubr.bf16.mxu0 0
      %861 = vmatmul.mubr.bf16.gmra.mrb[0].mxu0 %v723
      %v862 = vpop.f32.mrb[0].mxu0
      %v863 = vadd.f32 0.0, %v862
      %v864 = vpop.f32.mrb[0].mxu0
      %v865 = vpop.f32.mrb[0].mxu0
      %v866 = vadd.f32 0.0, %v865
      %v867 = vpop.f32.mrb[0].mxu0
      %868 = vmatprep.mubr.bf16.mxu0 0
      %869 = vmatmul.mubr.bf16.gmra.mrb[0].mxu0 %v726
      %v870 = vpop.f32.mrb[0].mxu0
      %v871 = vadd.f32 0.0, %v870
      %v872 = vpop.f32.mrb[0].mxu0
      %v873 = vpop.f32.mrb[0].mxu0
      %v874 = vadd.f32 0.0, %v873
      %v875 = vpop.f32.mrb[0].mxu0
      %876 = vmatprep.mubr.bf16.mxu0 0
      %877 = vmatmul.mubr.bf16.gmra.mrb[0].mxu0 %v729
      %v878 = vpop.f32.mrb[0].mxu0
      %v879 = vadd.f32 0.0, %v878
      %v880 = vpop.f32.mrb[0].mxu0
      %v881 = vpop.f32.mrb[0].mxu0
      %v882 = vadd.f32 0.0, %v881
      %v883 = vpop.f32.mrb[0].mxu0
      %884 = vmatprep.mubr.bf16.mxu0 0
      %885 = vmatmul.mubr.bf16.gmra.mrb[0].mxu0 %v732
      %v886 = vpop.f32.mrb[0].mxu0
      %v887 = vadd.f32 0.0, %v886
      %v888 = vpop.f32.mrb[0].mxu0
      %v889 = vpop.f32.mrb[0].mxu0
      %v890 = vadd.f32 0.0, %v889
      %v891 = vpop.f32.mrb[0].mxu0
      %892 = vmatprep.mubr.bf16.mxu0 0
      %893 = vmatmul.mubr.bf16.gmra.mrb[0].mxu0 %v735
      %v894 = vpop.f32.mrb[0].mxu0
      %v895 = vadd.f32 0.0, %v894
      %v896 = vpop.f32.mrb[0].mxu0
      %v897 = vpop.f32.mrb[0].mxu0
      %v898 = vadd.f32 0.0, %v897
      %v899 = vpop.f32.mrb[0].mxu0
      %900 = vmatprep.mubr.bf16.mxu0 0
      %901 = vmatmul.mubr.bf16.gmra.mrb[0].mxu0 %v738
      %v902 = vpop.f32.mrb[0].mxu0
      %v903 = vadd.f32 0.0, %v902
      %v904 = vpop.f32.mrb[0].mxu0
      %v905 = vpop.f32.mrb[0].mxu0
      %v906 = vadd.f32 0.0, %v905
      %v907 = vpop.f32.mrb[0].mxu0
      %908 = vmatprep.mubr.bf16.mxu0 0
      %909 = vmatmul.mubr.bf16.gmra.mrb[0].mxu0 %v741
      %v910 = vpop.f32.mrb[0].mxu0
      %v911 = vadd.f32 0.0, %v910
      %v912 = vpop.f32.mrb[0].mxu0
      %v913 = vpop.f32.mrb[0].mxu0
      %v914 = vadd.f32 0.0, %v913
      %v915 = vpop.f32.mrb[0].mxu0
      %916 = vmatprep.mubr.bf16.mxu0 0
      %917 = vmatmul.mubr.bf16.gmra.mrb[0].mxu0 %v744
      %v918 = vpop.f32.mrb[0].mxu0
      %v919 = vadd.f32 0.0, %v918
      %v920 = vpop.f32.mrb[0].mxu0
      %v921 = vpop.f32.mrb[0].mxu0
      %v922 = vadd.f32 0.0, %v921
      %v923 = vpop.f32.mrb[0].mxu0
      %924 = vmatprep.mubr.bf16.mxu0 0
      %925 = vmatmul.mubr.bf16.gmra.mrb[0].mxu0 %v747
      %v926 = vpop.f32.mrb[0].mxu0
      %v927 = vadd.f32 0.0, %v926
      %v928 = vpop.f32.mrb[0].mxu0
      %v929 = vpop.f32.mrb[0].mxu0
      %v930 = vadd.f32 0.0, %v929
      %v931 = vpop.f32.mrb[0].mxu0
      %932 = vmatprep.mubr.bf16.mxu0 0
      %933 = vmatmul.mubr.bf16.gmra.mrb[0].mxu0 %v750
      %v934 = vpop.f32.mrb[0].mxu0
      %v935 = vadd.f32 0.0, %v934
      %v936 = vpop.f32.mrb[0].mxu0
      %v937 = vpop.f32.mrb[0].mxu0
      %v938 = vadd.f32 0.0, %v937
      %v939 = vpop.f32.mrb[0].mxu0
      %940 = vmatprep.mubr.bf16.mxu0 0
      %941 = vmatmul.mubr.bf16.gmra.mrb[0].mxu0 %v753
      %v942 = vpop.f32.mrb[0].mxu0
      %v943 = vadd.f32 0.0, %v942
      %v944 = vpop.f32.mrb[0].mxu0
      %v945 = vpop.f32.mrb[0].mxu0
      %v946 = vadd.f32 0.0, %v945
      %v947 = vpop.f32.mrb[0].mxu0
      %948 = vmatprep.mubr.bf16.mxu0 0
      %949 = vmatmul.mubr.bf16.gmra.mrb[0].mxu0 %v756
      %v950 = vpop.f32.mrb[0].mxu0
      %v951 = vadd.f32 0.0, %v950
      %v952 = vpop.f32.mrb[0].mxu0
      %v953 = vpop.f32.mrb[0].mxu0
      %v954 = vadd.f32 0.0, %v953
      %v955 = vpop.f32.mrb[0].mxu0
      %956 = vmatprep.mubr.bf16.mxu0 0
      %957 = vmatmul.mubr.bf16.gmra.mrb[0].mxu0 %v759
      %v958 = vpop.f32.mrb[0].mxu0
      %v959 = vadd.f32 0.0, %v958
      %v960 = vpop.f32.mrb[0].mxu0
      %v961 = vpop.f32.mrb[0].mxu0
      %v962 = vadd.f32 0.0, %v961
      %v963 = vpop.f32.mrb[0].mxu0
      %964 = vmatprep.mubr.bf16.mxu0 0
      %965 = vmatmul.mubr.bf16.gmra.mrb[0].mxu0 %v762
      %v966 = vpop.f32.mrb[0].mxu0
      %v967 = vadd.f32 0.0, %v966
      %v968 = vpop.f32.mrb[0].mxu0
      %v969 = vpop.f32.mrb[0].mxu0
      %v970 = vadd.f32 0.0, %v969
      %v971 = vpop.f32.mrb[0].mxu0
      %972 = vmatprep.mubr.bf16.mxu0 0
      %973 = vmatmul.mubr.bf16.gmra.mrb[0].mxu0 %v765
      %v974 = vpop.f32.mrb[0].mxu0
      %v975 = vadd.f32 0.0, %v974
      %v976 = vpop.f32.mrb[0].mxu0
      %v977 = vpop.f32.mrb[0].mxu0
      %v978 = vadd.f32 0.0, %v977
      %v979 = vpop.f32.mrb[0].mxu0
      %980 = vmatprep.mubr.bf16.mxu0 0
      %981 = vmatmul.mubr.bf16.gmra.mrb[0].mxu0 %v768
      %v982 = vpop.f32.mrb[0].mxu0
      %v983 = vadd.f32 0.0, %v982
      %v984 = vpop.f32.mrb[0].mxu0
      %v985 = vpop.f32.mrb[0].mxu0
      %v986 = vadd.f32 0.0, %v985
      %v987 = vpop.f32.mrb[0].mxu0
      %988 = vmatprep.mubr.bf16.mxu0 0
      %989 = vmatmul.mubr.bf16.gmra.mrb[0].mxu0 %v771
      %v990 = vpop.f32.mrb[0].mxu0
      %v991 = vadd.f32 0.0, %v990
      %v992 = vpop.f32.mrb[0].mxu0
      %v993 = vpop.f32.mrb[0].mxu0
      %v994 = vadd.f32 0.0, %v993
      %v995 = vpop.f32.mrb[0].mxu0
      %996 = vmatprep.mubr.bf16.mxu0 0
      %997 = vmatmul.mubr.bf16.gmra.mrb[0].mxu0 %v774
      %v998 = vpop.f32.mrb[0].mxu0
      %v999 = vadd.f32 0.0, %v998
      %v1000 = vpop.f32.mrb[0].mxu0
      %v1001 = vpop.f32.mrb[0].mxu0
      %v1002 = vadd.f32 0.0, %v1001
      %v1003 = vpop.f32.mrb[0].mxu0
      %1004 = vmatprep.mubr.bf16.mxu0 0
      %1005 = vmatmul.mubr.bf16.gmra.mrb[0].mxu0 %v777
      %v1006 = vpop.f32.mrb[0].mxu0
      %v1007 = vadd.f32 0.0, %v1006
      %v1008 = vpop.f32.mrb[0].mxu0
      %v1009 = vpop.f32.mrb[0].mxu0
      %v1010 = vadd.f32 0.0, %v1009
      %v1011 = vpop.f32.mrb[0].mxu0
      %1012 = vmatprep.mubr.bf16.mxu0 0
      %1013 = vmatmul.mubr.bf16.gmra.mrb[0].mxu0 %v780
      %v1014 = vpop.f32.mrb[0].mxu0
      %v1015 = vadd.f32 0.0, %v1014
      %v1016 = vpop.f32.mrb[0].mxu0
      %v1017 = vpop.f32.mrb[0].mxu0
      %v1018 = vadd.f32 0.0, %v1017
      %v1019 = vpop.f32.mrb[0].mxu0
      %1020 = vmatprep.mubr.bf16.mxu0 0
      %1021 = vmatmul.mubr.bf16.gmra.mrb[0].mxu0 %v783
      %v1022 = vpop.f32.mrb[0].mxu0
      %v1023 = vadd.f32 0.0, %v1022
      %v1024 = vpop.f32.mrb[0].mxu0
      %v1025 = vpop.f32.mrb[0].mxu0
      %v1026 = vadd.f32 0.0, %v1025
      %v1027 = vpop.f32.mrb[0].mxu0
      %1028 = vmatprep.mubr.bf16.mxu0 0
      %1029 = vmatmul.mubr.bf16.gmra.mrb[0].mxu0 %v786
      %v1030 = vpop.f32.mrb[0].mxu0
      %v1031 = vadd.f32 0.0, %v1030
      %v1032 = vpop.f32.mrb[0].mxu0
      %v1033 = vpop.f32.mrb[0].mxu0
      %v1034 = vadd.f32 0.0, %v1033
      %v1035 = vpop.f32.mrb[0].mxu0
      %1036 = vmatprep.mubr.bf16.mxu0 0
      %1037 = vmatmul.mubr.bf16.gmra.mrb[0].mxu0 %v789
      %v1038 = vpop.f32.mrb[0].mxu0
      %v1039 = vadd.f32 0.0, %v1038
      %v1040 = vpop.f32.mrb[0].mxu0
      %v1041 = vpop.f32.mrb[0].mxu0
      %v1042 = vadd.f32 0.0, %v1041
      %v1043 = vpop.f32.mrb[0].mxu0
      %1044 = vmatprep.mubr.bf16.mxu0 0
      %1045 = vmatmul.mubr.bf16.gmra.mrb[0].mxu0 %v792
      %v1046 = vpop.f32.mrb[0].mxu0
      %v1047 = vadd.f32 0.0, %v1046
      %v1048 = vpop.f32.mrb[0].mxu0
      %v1049 = vpop.f32.mrb[0].mxu0
      %v1050 = vadd.f32 0.0, %v1049
      %v1051 = vpop.f32.mrb[0].mxu0
      %1052 = vmatprep.mubr.bf16.mxu0 0
      %1053 = vmatmul.mubr.bf16.gmra.mrb[0].mxu0 %v795
      %v1054 = vpop.f32.mrb[0].mxu0
      %v1055 = vadd.f32 0.0, %v1054
      %v1056 = vpop.f32.mrb[0].mxu0
      %v1057 = vpop.f32.mrb[0].mxu0
      %v1058 = vadd.f32 0.0, %v1057
      %v1059 = vpop.f32.mrb[0].mxu0
      %1060 = vmatprep.mubr.bf16.mxu0 0
      %1061 = vmatmul.mubr.bf16.gmra.mrb[0].mxu0 %v798
      %v1062 = vpop.f32.mrb[0].mxu0
      %v1063 = vadd.f32 0.0, %v1062
      %v1064 = vpop.f32.mrb[0].mxu0
      %v1065 = vpop.f32.mrb[0].mxu0
      %v1066 = vadd.f32 0.0, %v1065
      %v1067 = vpop.f32.mrb[0].mxu0
      %1068 = vmatprep.mubr.bf16.mxu0 0
      %1069 = vmatmul.mubr.bf16.gmra.mrb[0].mxu0 %v801
      %v1070 = vpop.f32.mrb[0].mxu0
      %v1071 = vadd.f32 0.0, %v1070
      %v1072 = vpop.f32.mrb[0].mxu0
      %v1073 = vpop.f32.mrb[0].mxu0
      %v1074 = vadd.f32 0.0, %v1073
      %v1075 = vpop.f32.mrb[0].mxu0
      %1076 = vmatprep.mubr.bf16.mxu0 0
      %1077 = vmatmul.mubr.bf16.gmra.mrb[0].mxu0 %v804
      %v1078 = vpop.f32.mrb[0].mxu0
      %v1079 = vadd.f32 0.0, %v1078
      %v1080 = vpop.f32.mrb[0].mxu0
      %v1081 = vpop.f32.mrb[0].mxu0
      %v1082 = vadd.f32 0.0, %v1081
      %v1083 = vpop.f32.mrb[0].mxu0
      %1084 = vmatprep.mubr.bf16.mxu0 0
      %1085 = vmatmul.mubr.bf16.gmra.mrb[0].mxu0 %v807
      %v1086 = vpop.f32.mrb[0].mxu0
      %v1087 = vadd.f32 0.0, %v1086
      %v1088 = vpop.f32.mrb[0].mxu0
      %v1089 = vpop.f32.mrb[0].mxu0
      %v1090 = vadd.f32 0.0, %v1089
      %v1091 = vpop.f32.mrb[0].mxu0
      %1092 = vmatprep.mubr.bf16.mxu0 0
      %1093 = vmatmul.mubr.bf16.gmra.mrb[0].mxu0 %v810
      %v1094 = vpop.f32.mrb[0].mxu0
      %v1095 = vadd.f32 0.0, %v1094
      %v1096 = vpop.f32.mrb[0].mxu0
      %v1097 = vpop.f32.mrb[0].mxu0
      %v1098 = vadd.f32 0.0, %v1097
      %v1099 = vpop.f32.mrb[0].mxu0
      %1100 = vmatprep.mubr.bf16.mxu0 0
      %1101 = vmatmul.mubr.bf16.gmra.mrb[0].mxu0 %v813
      %v1102 = vpop.f32.mrb[0].mxu0
      %v1103 = vadd.f32 0.0, %v1102
      %v1104 = vpop.f32.mrb[0].mxu0
      %v1105 = vpop.f32.mrb[0].mxu0
      %v1106 = vadd.f32 0.0, %v1105
      %v1107 = vpop.f32.mrb[0].mxu0
      %1108 = vmatprep.mubr.bf16.mxu0 0
      %1109 = vmatmul.mubr.bf16.gmra.mrb[0].mxu0 %v816
      %v1110 = vpop.f32.mrb[0].mxu0
      %v1111 = vadd.f32 0.0, %v1110
      %v1112 = vpop.f32.mrb[0].mxu0
      %v1113 = vpop.f32.mrb[0].mxu0
      %v1114 = vadd.f32 0.0, %v1113
      %v1115 = vpop.f32.mrb[0].mxu0
      %1116 = vmatprep.mubr.bf16.mxu0 0
      %1117 = vmatmul.mubr.bf16.gmra.mrb[0].mxu0 %v819
      %v1118 = vpop.f32.mrb[0].mxu0
      %v1119 = vadd.f32 0.0, %v1118
      %v1120 = vpop.f32.mrb[0].mxu0
      %v1121 = vpop.f32.mrb[0].mxu0
      %v1122 = vadd.f32 0.0, %v1121
      %v1123 = vpop.f32.mrb[0].mxu0
      %1124 = vmatprep.mubr.bf16.mxu0 0
      %1125 = vmatmul.mubr.bf16.gmra.mrb[0].mxu0 %v822
      %v1126 = vpop.f32.mrb[0].mxu0
      %v1127 = vadd.f32 0.0, %v1126
      %v1128 = vpop.f32.mrb[0].mxu0
      %v1129 = vpop.f32.mrb[0].mxu0
      %v1130 = vadd.f32 0.0, %v1129
      %v1131 = vpop.f32.mrb[0].mxu0
      %1132 = vdwg.mxu0
      %v1133 = vsel %vm721, %v409, 0
      %v1135 = vsel %vm721, %v410, 0
      %v1137 = vsel %vm721, %v411, 0
      %v1139 = vsel %vm721, %v412, 0
      %v1141 = vsel %vm721, %v413, 0
      %v1143 = vsel %vm721, %v414, 0
      %v1145 = vsel %vm721, %v415, 0
      %v1147 = vsel %vm721, %v416, 0
      %v1149 = vsel %vm721, %v417, 0
      %v1151 = vsel %vm721, %v418, 0
      %v1153 = vsel %vm721, %v419, 0
      %v1155 = vsel %vm721, %v420, 0
      %v1157 = vsel %vm721, %v421, 0
      %v1159 = vsel %vm721, %v422, 0
      %v1161 = vsel %vm721, %v423, 0
      %v1163 = vsel %vm721, %v424, 0
      %v1165 = vsel %vm721, %v425, 0
      %v1167 = vsel %vm721, %v426, 0
      %v1169 = vsel %vm721, %v427, 0
      %v1171 = vsel %vm721, %v428, 0
      %v1173 = vsel %vm721, %v429, 0
      %v1175 = vsel %vm721, %v430, 0
      %v1177 = vsel %vm721, %v431, 0
      %v1179 = vsel %vm721, %v432, 0
      %v1181 = vsel %vm721, %v433, 0
      %v1183 = vsel %vm721, %v434, 0
      %v1185 = vsel %vm721, %v435, 0
      %v1187 = vsel %vm721, %v436, 0
      %v1189 = vsel %vm721, %v437, 0
      %v1191 = vsel %vm721, %v438, 0
      %v1193 = vsel %vm721, %v439, 0
      %v1195 = vsel %vm721, %v440, 0
      %v1197 = vsel %vm721, %v441, 0
      %v1199 = vsel %vm721, %v442, 0
      %v1202 = vsel %vm824, %v267, 0
      %1204 = vmatprep.subr.bf16.mxu0 0
      %1205 = vmatpush1.bf16.msra.mxu0 %v1202
      %1206 = vmatprep.subr.bf16.mxu0 0
      %1207 = vmatpush1.bf16.msra.mxu0 0
      %1208 = vmatprep.subr.bf16.mxu0 0
      %1209 = vmatpush1.bf16.msra.mxu0 0
      %1210 = vmatprep.subr.bf16.mxu0 0
      %1211 = vmatpush1.bf16.msra.mxu0 0
      %1212 = vmatprep.subr.bf16.mxu0 0
      %1213 = vmatpush1.bf16.msra.mxu0 0
      %1214 = vmatprep.subr.bf16.mxu0 0
      %1215 = vmatpush1.bf16.msra.mxu0 0
      %1216 = vmatprep.subr.bf16.mxu0 0
      %1217 = vmatpush1.bf16.msra.mxu0 0
      %1218 = vmatprep.subr.bf16.mxu0 0
      %1219 = vmatpush1.bf16.msra.mxu0 0
      %1220 = vmatprep.subr.bf16.mxu0 0
      %1221 = vmatpush1.bf16.msra.mxu0 0
      %1222 = vmatprep.subr.bf16.mxu0 0
      %1223 = vmatpush1.bf16.msra.mxu0 0
      %1224 = vmatprep.subr.bf16.mxu0 0
      %1225 = vmatpush1.bf16.msra.mxu0 0
      %1226 = vmatprep.subr.bf16.mxu0 0
      %1227 = vmatpush1.bf16.msra.mxu0 0
      %1228 = vmatprep.subr.bf16.mxu0 0
      %1229 = vmatpush1.bf16.msra.mxu0 0
      %1230 = vmatprep.subr.bf16.mxu0 0
      %1231 = vmatpush1.bf16.msra.mxu0 0
      %1232 = vmatprep.subr.bf16.mxu0 0
      %1233 = vmatpush1.bf16.msra.mxu0 0
      %1234 = vmatprep.subr.bf16.mxu0 0
      %1235 = vmatpush1.bf16.msra.mxu0 0
      %1236 = vmatprep.mubr.bf16.mxu0 0
      %1237 = vmatmul.mubr.bf16.gmra.mrb[0].mxu0 %v1133
      %v1238 = vpop.f32.mrb[0].mxu0
      %v1239 = vadd.f32 %v863, %v1238
      %v1240 = vpop.f32.mrb[0].mxu0
      %v1241 = vpop.f32.mrb[0].mxu0
      %v1242 = vadd.f32 %v866, %v1241
      %v1243 = vpop.f32.mrb[0].mxu0
      %1244 = vmatprep.mubr.bf16.mxu0 0
      %1245 = vmatmul.mubr.bf16.gmra.mrb[0].mxu0 %v1135
      %v1246 = vpop.f32.mrb[0].mxu0
      %v1247 = vadd.f32 %v871, %v1246
      %v1248 = vpop.f32.mrb[0].mxu0
      %v1249 = vpop.f32.mrb[0].mxu0
      %v1250 = vadd.f32 %v874, %v1249
      %v1251 = vpop.f32.mrb[0].mxu0
      %1252 = vmatprep.mubr.bf16.mxu0 0
      %1253 = vmatmul.mubr.bf16.gmra.mrb[0].mxu0 %v1137
      %v1254 = vpop.f32.mrb[0].mxu0
      %v1255 = vadd.f32 %v879, %v1254
      %v1256 = vpop.f32.mrb[0].mxu0
      %v1257 = vpop.f32.mrb[0].mxu0
      %v1258 = vadd.f32 %v882, %v1257
      %v1259 = vpop.f32.mrb[0].mxu0
      %1260 = vmatprep.mubr.bf16.mxu0 0
      %1261 = vmatmul.mubr.bf16.gmra.mrb[0].mxu0 %v1139
      %v1262 = vpop.f32.mrb[0].mxu0
      %v1263 = vadd.f32 %v887, %v1262
      %v1264 = vpop.f32.mrb[0].mxu0
      %v1265 = vpop.f32.mrb[0].mxu0
      %v1266 = vadd.f32 %v890, %v1265
      %v1267 = vpop.f32.mrb[0].mxu0
      %1268 = vmatprep.mubr.bf16.mxu0 0
      %1269 = vmatmul.mubr.bf16.gmra.mrb[0].mxu0 %v1141
      %v1270 = vpop.f32.mrb[0].mxu0
      %v1271 = vadd.f32 %v895, %v1270
      %v1272 = vpop.f32.mrb[0].mxu0
      %v1273 = vpop.f32.mrb[0].mxu0
      %v1274 = vadd.f32 %v898, %v1273
      %v1275 = vpop.f32.mrb[0].mxu0
      %1276 = vmatprep.mubr.bf16.mxu0 0
      %1277 = vmatmul.mubr.bf16.gmra.mrb[0].mxu0 %v1143
      %v1278 = vpop.f32.mrb[0].mxu0
      %v1279 = vadd.f32 %v903, %v1278
      %v1280 = vpop.f32.mrb[0].mxu0
      %v1281 = vpop.f32.mrb[0].mxu0
      %v1282 = vadd.f32 %v906, %v1281
      %v1283 = vpop.f32.mrb[0].mxu0
      %1284 = vmatprep.mubr.bf16.mxu0 0
      %1285 = vmatmul.mubr.bf16.gmra.mrb[0].mxu0 %v1145
      %v1286 = vpop.f32.mrb[0].mxu0
      %v1287 = vadd.f32 %v911, %v1286
      %v1288 = vpop.f32.mrb[0].mxu0
      %v1289 = vpop.f32.mrb[0].mxu0
      %v1290 = vadd.f32 %v914, %v1289
      %v1291 = vpop.f32.mrb[0].mxu0
      %1292 = vmatprep.mubr.bf16.mxu0 0
      %1293 = vmatmul.mubr.bf16.gmra.mrb[0].mxu0 %v1147
      %v1294 = vpop.f32.mrb[0].mxu0
      %v1295 = vadd.f32 %v919, %v1294
      %v1296 = vpop.f32.mrb[0].mxu0
      %v1297 = vpop.f32.mrb[0].mxu0
      %v1298 = vadd.f32 %v922, %v1297
      %v1299 = vpop.f32.mrb[0].mxu0
      %1300 = vmatprep.mubr.bf16.mxu0 0
      %1301 = vmatmul.mubr.bf16.gmra.mrb[0].mxu0 %v1149
      %v1302 = vpop.f32.mrb[0].mxu0
      %v1303 = vadd.f32 %v927, %v1302
      %v1304 = vpop.f32.mrb[0].mxu0
      %v1305 = vpop.f32.mrb[0].mxu0
      %v1306 = vadd.f32 %v930, %v1305
      %v1307 = vpop.f32.mrb[0].mxu0
      %1308 = vmatprep.mubr.bf16.mxu0 0
      %1309 = vmatmul.mubr.bf16.gmra.mrb[0].mxu0 %v1151
      %v1310 = vpop.f32.mrb[0].mxu0
      %v1311 = vadd.f32 %v935, %v1310
      %v1312 = vpop.f32.mrb[0].mxu0
      %v1313 = vpop.f32.mrb[0].mxu0
      %v1314 = vadd.f32 %v938, %v1313
      %v1315 = vpop.f32.mrb[0].mxu0
      %1316 = vmatprep.mubr.bf16.mxu0 0
      %1317 = vmatmul.mubr.bf16.gmra.mrb[0].mxu0 %v1153
      %v1318 = vpop.f32.mrb[0].mxu0
      %v1319 = vadd.f32 %v943, %v1318
      %v1320 = vpop.f32.mrb[0].mxu0
      %v1321 = vpop.f32.mrb[0].mxu0
      %v1322 = vadd.f32 %v946, %v1321
      %v1323 = vpop.f32.mrb[0].mxu0
      %1324 = vmatprep.mubr.bf16.mxu0 0
      %1325 = vmatmul.mubr.bf16.gmra.mrb[0].mxu0 %v1155
      %v1326 = vpop.f32.mrb[0].mxu0
      %v1327 = vadd.f32 %v951, %v1326
      %v1328 = vpop.f32.mrb[0].mxu0
      %v1329 = vpop.f32.mrb[0].mxu0
      %v1330 = vadd.f32 %v954, %v1329
      %v1331 = vpop.f32.mrb[0].mxu0
      %1332 = vmatprep.mubr.bf16.mxu0 0
      %1333 = vmatmul.mubr.bf16.gmra.mrb[0].mxu0 %v1157
      %v1334 = vpop.f32.mrb[0].mxu0
      %v1335 = vadd.f32 %v959, %v1334
      %v1336 = vpop.f32.mrb[0].mxu0
      %v1337 = vpop.f32.mrb[0].mxu0
      %v1338 = vadd.f32 %v962, %v1337
      %v1339 = vpop.f32.mrb[0].mxu0
      %1340 = vmatprep.mubr.bf16.mxu0 0
      %1341 = vmatmul.mubr.bf16.gmra.mrb[0].mxu0 %v1159
      %v1342 = vpop.f32.mrb[0].mxu0
      %v1343 = vadd.f32 %v967, %v1342
      %v1344 = vpop.f32.mrb[0].mxu0
      %v1345 = vpop.f32.mrb[0].mxu0
      %v1346 = vadd.f32 %v970, %v1345
      %v1347 = vpop.f32.mrb[0].mxu0
      %1348 = vmatprep.mubr.bf16.mxu0 0
      %1349 = vmatmul.mubr.bf16.gmra.mrb[0].mxu0 %v1161
      %v1350 = vpop.f32.mrb[0].mxu0
      %v1351 = vadd.f32 %v975, %v1350
      %v1352 = vpop.f32.mrb[0].mxu0
      %v1353 = vpop.f32.mrb[0].mxu0
      %v1354 = vadd.f32 %v978, %v1353
      %v1355 = vpop.f32.mrb[0].mxu0
      %1356 = vmatprep.mubr.bf16.mxu0 0
      %1357 = vmatmul.mubr.bf16.gmra.mrb[0].mxu0 %v1163
      %v1358 = vpop.f32.mrb[0].mxu0
      %v1359 = vadd.f32 %v983, %v1358
      %v1360 = vpop.f32.mrb[0].mxu0
      %v1361 = vpop.f32.mrb[0].mxu0
      %v1362 = vadd.f32 %v986, %v1361
      %v1363 = vpop.f32.mrb[0].mxu0
      %1364 = vmatprep.mubr.bf16.mxu0 0
      %1365 = vmatmul.mubr.bf16.gmra.mrb[0].mxu0 %v1165
      %v1366 = vpop.f32.mrb[0].mxu0
      %v1367 = vadd.f32 %v991, %v1366
      %v1368 = vpop.f32.mrb[0].mxu0
      %v1369 = vpop.f32.mrb[0].mxu0
      %v1370 = vadd.f32 %v994, %v1369
      %v1371 = vpop.f32.mrb[0].mxu0
      %1372 = vmatprep.mubr.bf16.mxu0 0
      %1373 = vmatmul.mubr.bf16.gmra.mrb[0].mxu0 %v1167
      %v1374 = vpop.f32.mrb[0].mxu0
      %v1375 = vadd.f32 %v999, %v1374
      %v1376 = vpop.f32.mrb[0].mxu0
      %v1377 = vpop.f32.mrb[0].mxu0
      %v1378 = vadd.f32 %v1002, %v1377
      %v1379 = vpop.f32.mrb[0].mxu0
      %1380 = vmatprep.mubr.bf16.mxu0 0
      %1381 = vmatmul.mubr.bf16.gmra.mrb[0].mxu0 %v1169
      %v1382 = vpop.f32.mrb[0].mxu0
      %v1383 = vadd.f32 %v1007, %v1382
      %v1384 = vpop.f32.mrb[0].mxu0
      %v1385 = vpop.f32.mrb[0].mxu0
      %v1386 = vadd.f32 %v1010, %v1385
      %v1387 = vpop.f32.mrb[0].mxu0
      %1388 = vmatprep.mubr.bf16.mxu0 0
      %1389 = vmatmul.mubr.bf16.gmra.mrb[0].mxu0 %v1171
      %v1390 = vpop.f32.mrb[0].mxu0
      %v1391 = vadd.f32 %v1015, %v1390
      %v1392 = vpop.f32.mrb[0].mxu0
      %v1393 = vpop.f32.mrb[0].mxu0
      %v1394 = vadd.f32 %v1018, %v1393
      %v1395 = vpop.f32.mrb[0].mxu0
      %1396 = vmatprep.mubr.bf16.mxu0 0
      %1397 = vmatmul.mubr.bf16.gmra.mrb[0].mxu0 %v1173
      %v1398 = vpop.f32.mrb[0].mxu0
      %v1399 = vadd.f32 %v1023, %v1398
      %v1400 = vpop.f32.mrb[0].mxu0
      %v1401 = vpop.f32.mrb[0].mxu0
      %v1402 = vadd.f32 %v1026, %v1401
      %v1403 = vpop.f32.mrb[0].mxu0
      %1404 = vmatprep.mubr.bf16.mxu0 0
      %1405 = vmatmul.mubr.bf16.gmra.mrb[0].mxu0 %v1175
      %v1406 = vpop.f32.mrb[0].mxu0
      %v1407 = vadd.f32 %v1031, %v1406
      %v1408 = vpop.f32.mrb[0].mxu0
      %v1409 = vpop.f32.mrb[0].mxu0
      %v1410 = vadd.f32 %v1034, %v1409
      %v1411 = vpop.f32.mrb[0].mxu0
      %1412 = vmatprep.mubr.bf16.mxu0 0
      %1413 = vmatmul.mubr.bf16.gmra.mrb[0].mxu0 %v1177
      %v1414 = vpop.f32.mrb[0].mxu0
      %v1415 = vadd.f32 %v1039, %v1414
      %v1416 = vpop.f32.mrb[0].mxu0
      %v1417 = vpop.f32.mrb[0].mxu0
      %v1418 = vadd.f32 %v1042, %v1417
      %v1419 = vpop.f32.mrb[0].mxu0
      %1420 = vmatprep.mubr.bf16.mxu0 0
      %1421 = vmatmul.mubr.bf16.gmra.mrb[0].mxu0 %v1179
      %v1422 = vpop.f32.mrb[0].mxu0
      %v1423 = vadd.f32 %v1047, %v1422
      %v1424 = vpop.f32.mrb[0].mxu0
      %v1425 = vpop.f32.mrb[0].mxu0
      %v1426 = vadd.f32 %v1050, %v1425
      %v1427 = vpop.f32.mrb[0].mxu0
      %1428 = vmatprep.mubr.bf16.mxu0 0
      %1429 = vmatmul.mubr.bf16.gmra.mrb[0].mxu0 %v1181
      %v1430 = vpop.f32.mrb[0].mxu0
      %v1431 = vadd.f32 %v1055, %v1430
      %v1432 = vpop.f32.mrb[0].mxu0
      %v1433 = vpop.f32.mrb[0].mxu0
      %v1434 = vadd.f32 %v1058, %v1433
      %v1435 = vpop.f32.mrb[0].mxu0
      %1436 = vmatprep.mubr.bf16.mxu0 0
      %1437 = vmatmul.mubr.bf16.gmra.mrb[0].mxu0 %v1183
      %v1438 = vpop.f32.mrb[0].mxu0
      %v1439 = vadd.f32 %v1063, %v1438
      %v1440 = vpop.f32.mrb[0].mxu0
      %v1441 = vpop.f32.mrb[0].mxu0
      %v1442 = vadd.f32 %v1066, %v1441
      %v1443 = vpop.f32.mrb[0].mxu0
      %1444 = vmatprep.mubr.bf16.mxu0 0
      %1445 = vmatmul.mubr.bf16.gmra.mrb[0].mxu0 %v1185
      %v1446 = vpop.f32.mrb[0].mxu0
      %v1447 = vadd.f32 %v1071, %v1446
      %v1448 = vpop.f32.mrb[0].mxu0
      %v1449 = vpop.f32.mrb[0].mxu0
      %v1450 = vadd.f32 %v1074, %v1449
      %v1451 = vpop.f32.mrb[0].mxu0
      %1452 = vmatprep.mubr.bf16.mxu0 0
      %1453 = vmatmul.mubr.bf16.gmra.mrb[0].mxu0 %v1187
      %v1454 = vpop.f32.mrb[0].mxu0
      %v1455 = vadd.f32 %v1079, %v1454
      %v1456 = vpop.f32.mrb[0].mxu0
      %v1457 = vpop.f32.mrb[0].mxu0
      %v1458 = vadd.f32 %v1082, %v1457
      %v1459 = vpop.f32.mrb[0].mxu0
      %1460 = vmatprep.mubr.bf16.mxu0 0
      %1461 = vmatmul.mubr.bf16.gmra.mrb[0].mxu0 %v1189
      %v1462 = vpop.f32.mrb[0].mxu0
      %v1463 = vadd.f32 %v1087, %v1462
      %v1464 = vpop.f32.mrb[0].mxu0
      %v1465 = vpop.f32.mrb[0].mxu0
      %v1466 = vadd.f32 %v1090, %v1465
      %v1467 = vpop.f32.mrb[0].mxu0
      %1468 = vmatprep.mubr.bf16.mxu0 0
      %1469 = vmatmul.mubr.bf16.gmra.mrb[0].mxu0 %v1191
      %v1470 = vpop.f32.mrb[0].mxu0
      %v1471 = vadd.f32 %v1095, %v1470
      %v1472 = vpop.f32.mrb[0].mxu0
      %v1473 = vpop.f32.mrb[0].mxu0
      %v1474 = vadd.f32 %v1098, %v1473
      %v1475 = vpop.f32.mrb[0].mxu0
      %1476 = vmatprep.mubr.bf16.mxu0 0
      %1477 = vmatmul.mubr.bf16.gmra.mrb[0].mxu0 %v1193
      %v1478 = vpop.f32.mrb[0].mxu0
      %v1479 = vadd.f32 %v1103, %v1478
      %v1480 = vpop.f32.mrb[0].mxu0
      %v1481 = vpop.f32.mrb[0].mxu0
      %v1482 = vadd.f32 %v1106, %v1481
      %v1483 = vpop.f32.mrb[0].mxu0
      %1484 = vmatprep.mubr.bf16.mxu0 0
      %1485 = vmatmul.mubr.bf16.gmra.mrb[0].mxu0 %v1195
      %v1486 = vpop.f32.mrb[0].mxu0
      %v1487 = vadd.f32 %v1111, %v1486
      %v1488 = vpop.f32.mrb[0].mxu0
      %v1489 = vpop.f32.mrb[0].mxu0
      %v1490 = vadd.f32 %v1114, %v1489
      %v1491 = vpop.f32.mrb[0].mxu0
      %1492 = vmatprep.mubr.bf16.mxu0 0
      %1493 = vmatmul.mubr.bf16.gmra.mrb[0].mxu0 %v1197
      %v1494 = vpop.f32.mrb[0].mxu0
      %v1495 = vadd.f32 %v1119, %v1494
      %v1496 = vpop.f32.mrb[0].mxu0
      %v1497 = vpop.f32.mrb[0].mxu0
      %v1498 = vadd.f32 %v1122, %v1497
      %v1499 = vpop.f32.mrb[0].mxu0
      %1500 = vmatprep.mubr.bf16.mxu0 0
      %1501 = vmatmul.mubr.bf16.gmra.mrb[0].mxu0 %v1199
      %v1502 = vpop.f32.mrb[0].mxu0
      %v1503 = vadd.f32 %v1127, %v1502
      %v1504 = vpop.f32.mrb[0].mxu0
      %v1505 = vpop.f32.mrb[0].mxu0
      %v1506 = vadd.f32 %v1130, %v1505
      %v1507 = vpop.f32.mrb[0].mxu0
      %1508 = vdwg.mxu0
      %v1509 = vld [vmem:[%s192] sm:$0xe]
      %s1510 = scalar_lea.vmem %s1, 8
      %v1511 = vld [vmem:[%s1510] sm:$0xf]
      %v1513 = vunpack.c.l.b16 %v1509
      %v1514 = vpack.c.b16 %v341, %v1513
      %vm1515 = vcmask 1046528
      %v1516 = vrot.slane %v1514, 1
      %v1517 = vrot.slane %v410, 1
      %v1518 = vsel %vm1515, %v1516, %v1517
      %v1519 = vrot.slane %v411, 1
      %v1520 = vsel %vm1515, %v1517, %v1519
      %v1521 = vrot.slane %v412, 1
      %v1522 = vsel %vm1515, %v1519, %v1521
      %v1523 = vrot.slane %v413, 1
      %v1524 = vsel %vm1515, %v1521, %v1523
      %v1525 = vrot.slane %v414, 1
      %v1526 = vsel %vm1515, %v1523, %v1525
      %v1527 = vrot.slane %v415, 1
      %v1528 = vsel %vm1515, %v1525, %v1527
      %v1529 = vrot.slane %v416, 1
      %v1530 = vsel %vm1515, %v1527, %v1529
      %v1531 = vrot.slane %v417, 1
      %v1532 = vsel %vm1515, %v1529, %v1531
      %v1533 = vrot.slane %v418, 1
      %v1534 = vsel %vm1515, %v1531, %v1533
      %v1535 = vrot.slane %v419, 1
      %v1536 = vsel %vm1515, %v1533, %v1535
      %v1537 = vrot.slane %v420, 1
      %v1538 = vsel %vm1515, %v1535, %v1537
      %v1539 = vrot.slane %v421, 1
      %v1540 = vsel %vm1515, %v1537, %v1539
      %v1541 = vrot.slane %v422, 1
      %v1542 = vsel %vm1515, %v1539, %v1541
      %v1543 = vrot.slane %v423, 1
      %v1544 = vsel %vm1515, %v1541, %v1543
      %v1545 = vrot.slane %v424, 1
      %v1546 = vsel %vm1515, %v1543, %v1545
      %v1547 = vrot.slane %v425, 1
      %v1548 = vsel %vm1515, %v1545, %v1547
      %v1549 = vrot.slane %v426, 1
      %v1550 = vsel %vm1515, %v1547, %v1549
      %v1551 = vrot.slane %v427, 1
      %v1552 = vsel %vm1515, %v1549, %v1551
      %v1553 = vrot.slane %v428, 1
      %v1554 = vsel %vm1515, %v1551, %v1553
      %v1555 = vrot.slane %v429, 1
      %v1556 = vsel %vm1515, %v1553, %v1555
      %v1557 = vrot.slane %v430, 1
      %v1558 = vsel %vm1515, %v1555, %v1557
      %v1559 = vrot.slane %v431, 1
      %v1560 = vsel %vm1515, %v1557, %v1559
      %v1561 = vrot.slane %v432, 1
      %v1562 = vsel %vm1515, %v1559, %v1561
      %v1563 = vrot.slane %v433, 1
      %v1564 = vsel %vm1515, %v1561, %v1563
      %v1565 = vrot.slane %v434, 1
      %v1566 = vsel %vm1515, %v1563, %v1565
      %v1567 = vrot.slane %v435, 1
      %v1568 = vsel %vm1515, %v1565, %v1567
      %v1569 = vrot.slane %v436, 1
      %v1570 = vsel %vm1515, %v1567, %v1569
      %v1571 = vrot.slane %v437, 1
      %v1572 = vsel %vm1515, %v1569, %v1571
      %v1573 = vrot.slane %v438, 1
      %v1574 = vsel %vm1515, %v1571, %v1573
      %v1575 = vrot.slane %v439, 1
      %v1576 = vsel %vm1515, %v1573, %v1575
      %v1577 = vrot.slane %v440, 1
      %v1578 = vsel %vm1515, %v1575, %v1577
      %v1579 = vrot.slane %v441, 1
      %v1580 = vsel %vm1515, %v1577, %v1579
      %v1581 = vrot.slane %v442, 1
      %v1582 = vsel %vm1515, %v1579, %v1581
      %v1583 = vrot.slane %v443, 1
      %v1584 = vsel %vm1515, %v1581, %v1583
      %v1586 = vsel %vm721, %v1518, 0
      %v1589 = vsel %vm721, %v1520, 0
      %v1592 = vsel %vm721, %v1522, 0
      %v1595 = vsel %vm721, %v1524, 0
      %v1598 = vsel %vm721, %v1526, 0
      %v1601 = vsel %vm721, %v1528, 0
      %v1604 = vsel %vm721, %v1530, 0
      %v1607 = vsel %vm721, %v1532, 0
      %v1610 = vsel %vm721, %v1534, 0
      %v1613 = vsel %vm721, %v1536, 0
      %v1616 = vsel %vm721, %v1538, 0
      %v1619 = vsel %vm721, %v1540, 0
      %v1622 = vsel %vm721, %v1542, 0
      %v1625 = vsel %vm721, %v1544, 0
      %v1628 = vsel %vm721, %v1546, 0
      %v1631 = vsel %vm721, %v1548, 0
      %v1634 = vsel %vm721, %v1550, 0
      %v1637 = vsel %vm721, %v1552, 0
      %v1640 = vsel %vm721, %v1554, 0
      %v1643 = vsel %vm721, %v1556, 0
      %v1646 = vsel %vm721, %v1558, 0
      %v1649 = vsel %vm721, %v1560, 0
      %v1652 = vsel %vm721, %v1562, 0
      %v1655 = vsel %vm721, %v1564, 0
      %v1658 = vsel %vm721, %v1566, 0
      %v1661 = vsel %vm721, %v1568, 0
      %v1664 = vsel %vm721, %v1570, 0
      %v1667 = vsel %vm721, %v1572, 0
      %v1670 = vsel %vm721, %v1574, 0
      %v1673 = vsel %vm721, %v1576, 0
      %v1676 = vsel %vm721, %v1578, 0
      %v1679 = vsel %vm721, %v1580, 0
      %v1682 = vsel %vm721, %v1582, 0
      %v1685 = vsel %vm721, %v1584, 0
      %v1688 = vsel %vm824, %v1511, 0
      %1690 = vmatprep.subr.bf16.mxu0 0
      %1691 = vmatpush1.bf16.msra.mxu0 %v1688
      %1692 = vmatprep.subr.bf16.mxu0 0
      %1693 = vmatpush1.bf16.msra.mxu0 0
      %1694 = vmatprep.subr.bf16.mxu0 0
      %1695 = vmatpush1.bf16.msra.mxu0 0
      %1696 = vmatprep.subr.bf16.mxu0 0
      %1697 = vmatpush1.bf16.msra.mxu0 0
      %1698 = vmatprep.subr.bf16.mxu0 0
      %1699 = vmatpush1.bf16.msra.mxu0 0
      %1700 = vmatprep.subr.bf16.mxu0 0
      %1701 = vmatpush1.bf16.msra.mxu0 0
      %1702 = vmatprep.subr.bf16.mxu0 0
      %1703 = vmatpush1.bf16.msra.mxu0 0
      %1704 = vmatprep.subr.bf16.mxu0 0
      %1705 = vmatpush1.bf16.msra.mxu0 0
      %1706 = vmatprep.subr.bf16.mxu0 0
      %1707 = vmatpush1.bf16.msra.mxu0 0
      %1708 = vmatprep.subr.bf16.mxu0 0
      %1709 = vmatpush1.bf16.msra.mxu0 0
      %1710 = vmatprep.subr.bf16.mxu0 0
      %1711 = vmatpush1.bf16.msra.mxu0 0
      %1712 = vmatprep.subr.bf16.mxu0 0
      %1713 = vmatpush1.bf16.msra.mxu0 0
      %1714 = vmatprep.subr.bf16.mxu0 0
      %1715 = vmatpush1.bf16.msra.mxu0 0
      %1716 = vmatprep.subr.bf16.mxu0 0
      %1717 = vmatpush1.bf16.msra.mxu0 0
      %1718 = vmatprep.subr.bf16.mxu0 0
      %1719 = vmatpush1.bf16.msra.mxu0 0
      %1720 = vmatprep.subr.bf16.mxu0 0
      %1721 = vmatpush1.bf16.msra.mxu0 0
      %1722 = vmatprep.mubr.bf16.mxu0 0
      %1723 = vmatmul.mubr.bf16.gmra.mrb[0].mxu0 %v1586
      %v1724 = vpop.f32.mrb[0].mxu0
      %v1725 = vadd.f32 0.0, %v1724
      %v1726 = vpop.f32.mrb[0].mxu0
      %v1727 = vpop.f32.mrb[0].mxu0
      %v1728 = vadd.f32 0.0, %v1727
      %v1729 = vpop.f32.mrb[0].mxu0
      %1730 = vmatprep.mubr.bf16.mxu0 0
      %1731 = vmatmul.mubr.bf16.gmra.mrb[0].mxu0 %v1589
      %v1732 = vpop.f32.mrb[0].mxu0
      %v1733 = vadd.f32 0.0, %v1732
      %v1734 = vpop.f32.mrb[0].mxu0
      %v1735 = vpop.f32.mrb[0].mxu0
      %v1736 = vadd.f32 0.0, %v1735
      %v1737 = vpop.f32.mrb[0].mxu0
      %1738 = vmatprep.mubr.bf16.mxu0 0
      %1739 = vmatmul.mubr.bf16.gmra.mrb[0].mxu0 %v1592
      %v1740 = vpop.f32.mrb[0].mxu0
      %v1741 = vadd.f32 0.0, %v1740
      %v1742 = vpop.f32.mrb[0].mxu0
      %v1743 = vpop.f32.mrb[0].mxu0
      %v1744 = vadd.f32 0.0, %v1743
      %v1745 = vpop.f32.mrb[0].mxu0
      %1746 = vmatprep.mubr.bf16.mxu0 0
      %1747 = vmatmul.mubr.bf16.gmra.mrb[0].mxu0 %v1595
      %v1748 = vpop.f32.mrb[0].mxu0
      %v1749 = vadd.f32 0.0, %v1748
      %v1750 = vpop.f32.mrb[0].mxu0
      %v1751 = vpop.f32.mrb[0].mxu0
      %v1752 = vadd.f32 0.0, %v1751
      %v1753 = vpop.f32.mrb[0].mxu0
      %1754 = vmatprep.mubr.bf16.mxu0 0
      %1755 = vmatmul.mubr.bf16.gmra.mrb[0].mxu0 %v1598
      %v1756 = vpop.f32.mrb[0].mxu0
      %v1757 = vadd.f32 0.0, %v1756
      %v1758 = vpop.f32.mrb[0].mxu0
      %v1759 = vpop.f32.mrb[0].mxu0
      %v1760 = vadd.f32 0.0, %v1759
      %v1761 = vpop.f32.mrb[0].mxu0
      %1762 = vmatprep.mubr.bf16.mxu0 0
      %1763 = vmatmul.mubr.bf16.gmra.mrb[0].mxu0 %v1601
      %v1764 = vpop.f32.mrb[0].mxu0
      %v1765 = vadd.f32 0.0, %v1764
      %v1766 = vpop.f32.mrb[0].mxu0
      %v1767 = vpop.f32.mrb[0].mxu0
      %v1768 = vadd.f32 0.0, %v1767
      %v1769 = vpop.f32.mrb[0].mxu0
      %1770 = vmatprep.mubr.bf16.mxu0 0
      %1771 = vmatmul.mubr.bf16.gmra.mrb[0].mxu0 %v1604
      %v1772 = vpop.f32.mrb[0].mxu0
      %v1773 = vadd.f32 0.0, %v1772
      %v1774 = vpop.f32.mrb[0].mxu0
      %v1775 = vpop.f32.mrb[0].mxu0
      %v1776 = vadd.f32 0.0, %v1775
      %v1777 = vpop.f32.mrb[0].mxu0
      %1778 = vmatprep.mubr.bf16.mxu0 0
      %1779 = vmatmul.mubr.bf16.gmra.mrb[0].mxu0 %v1607
      %v1780 = vpop.f32.mrb[0].mxu0
      %v1781 = vadd.f32 0.0, %v1780
      %v1782 = vpop.f32.mrb[0].mxu0
      %v1783 = vpop.f32.mrb[0].mxu0
      %v1784 = vadd.f32 0.0, %v1783
      %v1785 = vpop.f32.mrb[0].mxu0
      %1786 = vmatprep.mubr.bf16.mxu0 0
      %1787 = vmatmul.mubr.bf16.gmra.mrb[0].mxu0 %v1610
      %v1788 = vpop.f32.mrb[0].mxu0
      %v1789 = vadd.f32 0.0, %v1788
      %v1790 = vpop.f32.mrb[0].mxu0
      %v1791 = vpop.f32.mrb[0].mxu0
      %v1792 = vadd.f32 0.0, %v1791
      %v1793 = vpop.f32.mrb[0].mxu0
      %1794 = vmatprep.mubr.bf16.mxu0 0
      %1795 = vmatmul.mubr.bf16.gmra.mrb[0].mxu0 %v1613
      %v1796 = vpop.f32.mrb[0].mxu0
      %v1797 = vadd.f32 0.0, %v1796
      %v1798 = vpop.f32.mrb[0].mxu0
      %v1799 = vpop.f32.mrb[0].mxu0
      %v1800 = vadd.f32 0.0, %v1799
      %v1801 = vpop.f32.mrb[0].mxu0
      %1802 = vmatprep.mubr.bf16.mxu0 0
      %1803 = vmatmul.mubr.bf16.gmra.mrb[0].mxu0 %v1616
      %v1804 = vpop.f32.mrb[0].mxu0
      %v1805 = vadd.f32 0.0, %v1804
      %v1806 = vpop.f32.mrb[0].mxu0
      %v1807 = vpop.f32.mrb[0].mxu0
      %v1808 = vadd.f32 0.0, %v1807
      %v1809 = vpop.f32.mrb[0].mxu0
      %1810 = vmatprep.mubr.bf16.mxu0 0
      %1811 = vmatmul.mubr.bf16.gmra.mrb[0].mxu0 %v1619
      %v1812 = vpop.f32.mrb[0].mxu0
      %v1813 = vadd.f32 0.0, %v1812
      %v1814 = vpop.f32.mrb[0].mxu0
      %v1815 = vpop.f32.mrb[0].mxu0
      %v1816 = vadd.f32 0.0, %v1815
      %v1817 = vpop.f32.mrb[0].mxu0
      %1818 = vmatprep.mubr.bf16.mxu0 0
      %1819 = vmatmul.mubr.bf16.gmra.mrb[0].mxu0 %v1622
      %v1820 = vpop.f32.mrb[0].mxu0
      %v1821 = vadd.f32 0.0, %v1820
      %v1822 = vpop.f32.mrb[0].mxu0
      %v1823 = vpop.f32.mrb[0].mxu0
      %v1824 = vadd.f32 0.0, %v1823
      %v1825 = vpop.f32.mrb[0].mxu0
      %1826 = vmatprep.mubr.bf16.mxu0 0
      %1827 = vmatmul.mubr.bf16.gmra.mrb[0].mxu0 %v1625
      %v1828 = vpop.f32.mrb[0].mxu0
      %v1829 = vadd.f32 0.0, %v1828
      %v1830 = vpop.f32.mrb[0].mxu0
      %v1831 = vpop.f32.mrb[0].mxu0
      %v1832 = vadd.f32 0.0, %v1831
      %v1833 = vpop.f32.mrb[0].mxu0
      %1834 = vmatprep.mubr.bf16.mxu0 0
      %1835 = vmatmul.mubr.bf16.gmra.mrb[0].mxu0 %v1628
      %v1836 = vpop.f32.mrb[0].mxu0
      %v1837 = vadd.f32 0.0, %v1836
      %v1838 = vpop.f32.mrb[0].mxu0
      %v1839 = vpop.f32.mrb[0].mxu0
      %v1840 = vadd.f32 0.0, %v1839
      %v1841 = vpop.f32.mrb[0].mxu0
      %1842 = vmatprep.mubr.bf16.mxu0 0
      %1843 = vmatmul.mubr.bf16.gmra.mrb[0].mxu0 %v1631
      %v1844 = vpop.f32.mrb[0].mxu0
      %v1845 = vadd.f32 0.0, %v1844
      %v1846 = vpop.f32.mrb[0].mxu0
      %v1847 = vpop.f32.mrb[0].mxu0
      %v1848 = vadd.f32 0.0, %v1847
      %v1849 = vpop.f32.mrb[0].mxu0
      %1850 = vmatprep.mubr.bf16.mxu0 0
      %1851 = vmatmul.mubr.bf16.gmra.mrb[0].mxu0 %v1634
      %v1852 = vpop.f32.mrb[0].mxu0
      %v1853 = vadd.f32 0.0, %v1852
      %v1854 = vpop.f32.mrb[0].mxu0
      %v1855 = vpop.f32.mrb[0].mxu0
      %v1856 = vadd.f32 0.0, %v1855
      %v1857 = vpop.f32.mrb[0].mxu0
      %1858 = vmatprep.mubr.bf16.mxu0 0
      %1859 = vmatmul.mubr.bf16.gmra.mrb[0].mxu0 %v1637
      %v1860 = vpop.f32.mrb[0].mxu0
      %v1861 = vadd.f32 0.0, %v1860
      %v1862 = vpop.f32.mrb[0].mxu0
      %v1863 = vpop.f32.mrb[0].mxu0
      %v1864 = vadd.f32 0.0, %v1863
      %v1865 = vpop.f32.mrb[0].mxu0
      %1866 = vmatprep.mubr.bf16.mxu0 0
      %1867 = vmatmul.mubr.bf16.gmra.mrb[0].mxu0 %v1640
      %v1868 = vpop.f32.mrb[0].mxu0
      %v1869 = vadd.f32 0.0, %v1868
      %v1870 = vpop.f32.mrb[0].mxu0
      %v1871 = vpop.f32.mrb[0].mxu0
      %v1872 = vadd.f32 0.0, %v1871
      %v1873 = vpop.f32.mrb[0].mxu0
      %1874 = vmatprep.mubr.bf16.mxu0 0
      %1875 = vmatmul.mubr.bf16.gmra.mrb[0].mxu0 %v1643
      %v1876 = vpop.f32.mrb[0].mxu0
      %v1877 = vadd.f32 0.0, %v1876
      %v1878 = vpop.f32.mrb[0].mxu0
      %v1879 = vpop.f32.mrb[0].mxu0
      %v1880 = vadd.f32 0.0, %v1879
      %v1881 = vpop.f32.mrb[0].mxu0
      %1882 = vmatprep.mubr.bf16.mxu0 0
      %1883 = vmatmul.mubr.bf16.gmra.mrb[0].mxu0 %v1646
      %v1884 = vpop.f32.mrb[0].mxu0
      %v1885 = vadd.f32 0.0, %v1884
      %v1886 = vpop.f32.mrb[0].mxu0
      %v1887 = vpop.f32.mrb[0].mxu0
      %v1888 = vadd.f32 0.0, %v1887
      %v1889 = vpop.f32.mrb[0].mxu0
      %1890 = vmatprep.mubr.bf16.mxu0 0
      %1891 = vmatmul.mubr.bf16.gmra.mrb[0].mxu0 %v1649
      %v1892 = vpop.f32.mrb[0].mxu0
      %v1893 = vadd.f32 0.0, %v1892
      %v1894 = vpop.f32.mrb[0].mxu0
      %v1895 = vpop.f32.mrb[0].mxu0
      %v1896 = vadd.f32 0.0, %v1895
      %v1897 = vpop.f32.mrb[0].mxu0
      %1898 = vmatprep.mubr.bf16.mxu0 0
      %1899 = vmatmul.mubr.bf16.gmra.mrb[0].mxu0 %v1652
      %v1900 = vpop.f32.mrb[0].mxu0
      %v1901 = vadd.f32 0.0, %v1900
      %v1902 = vpop.f32.mrb[0].mxu0
      %v1903 = vpop.f32.mrb[0].mxu0
      %v1904 = vadd.f32 0.0, %v1903
      %v1905 = vpop.f32.mrb[0].mxu0
      %1906 = vmatprep.mubr.bf16.mxu0 0
      %1907 = vmatmul.mubr.bf16.gmra.mrb[0].mxu0 %v1655
      %v1908 = vpop.f32.mrb[0].mxu0
      %v1909 = vadd.f32 0.0, %v1908
      %v1910 = vpop.f32.mrb[0].mxu0
      %v1911 = vpop.f32.mrb[0].mxu0
      %v1912 = vadd.f32 0.0, %v1911
      %v1913 = vpop.f32.mrb[0].mxu0
      %1914 = vmatprep.mubr.bf16.mxu0 0
      %1915 = vmatmul.mubr.bf16.gmra.mrb[0].mxu0 %v1658
      %v1916 = vpop.f32.mrb[0].mxu0
      %v1917 = vadd.f32 0.0, %v1916
      %v1918 = vpop.f32.mrb[0].mxu0
      %v1919 = vpop.f32.mrb[0].mxu0
      %v1920 = vadd.f32 0.0, %v1919
      %v1921 = vpop.f32.mrb[0].mxu0
      %1922 = vmatprep.mubr.bf16.mxu0 0
      %1923 = vmatmul.mubr.bf16.gmra.mrb[0].mxu0 %v1661
      %v1924 = vpop.f32.mrb[0].mxu0
      %v1925 = vadd.f32 0.0, %v1924
      %v1926 = vpop.f32.mrb[0].mxu0
      %v1927 = vpop.f32.mrb[0].mxu0
      %v1928 = vadd.f32 0.0, %v1927
      %v1929 = vpop.f32.mrb[0].mxu0
      %1930 = vmatprep.mubr.bf16.mxu0 0
      %1931 = vmatmul.mubr.bf16.gmra.mrb[0].mxu0 %v1664
      %v1932 = vpop.f32.mrb[0].mxu0
      %v1933 = vadd.f32 0.0, %v1932
      %v1934 = vpop.f32.mrb[0].mxu0
      %v1935 = vpop.f32.mrb[0].mxu0
      %v1936 = vadd.f32 0.0, %v1935
      %v1937 = vpop.f32.mrb[0].mxu0
      %1938 = vmatprep.mubr.bf16.mxu0 0
      %1939 = vmatmul.mubr.bf16.gmra.mrb[0].mxu0 %v1667
      %v1940 = vpop.f32.mrb[0].mxu0
      %v1941 = vadd.f32 0.0, %v1940
      %v1942 = vpop.f32.mrb[0].mxu0
      %v1943 = vpop.f32.mrb[0].mxu0
      %v1944 = vadd.f32 0.0, %v1943
      %v1945 = vpop.f32.mrb[0].mxu0
      %1946 = vmatprep.mubr.bf16.mxu0 0
      %1947 = vmatmul.mubr.bf16.gmra.mrb[0].mxu0 %v1670
      %v1948 = vpop.f32.mrb[0].mxu0
      %v1949 = vadd.f32 0.0, %v1948
      %v1950 = vpop.f32.mrb[0].mxu0
      %v1951 = vpop.f32.mrb[0].mxu0
      %v1952 = vadd.f32 0.0, %v1951
      %v1953 = vpop.f32.mrb[0].mxu0
      %1954 = vmatprep.mubr.bf16.mxu0 0
      %1955 = vmatmul.mubr.bf16.gmra.mrb[0].mxu0 %v1673
      %v1956 = vpop.f32.mrb[0].mxu0
      %v1957 = vadd.f32 0.0, %v1956
      %v1958 = vpop.f32.mrb[0].mxu0
      %v1959 = vpop.f32.mrb[0].mxu0
      %v1960 = vadd.f32 0.0, %v1959
      %v1961 = vpop.f32.mrb[0].mxu0
      %1962 = vmatprep.mubr.bf16.mxu0 0
      %1963 = vmatmul.mubr.bf16.gmra.mrb[0].mxu0 %v1676
      %v1964 = vpop.f32.mrb[0].mxu0
      %v1965 = vadd.f32 0.0, %v1964
      %v1966 = vpop.f32.mrb[0].mxu0
      %v1967 = vpop.f32.mrb[0].mxu0
      %v1968 = vadd.f32 0.0, %v1967
      %v1969 = vpop.f32.mrb[0].mxu0
      %1970 = vmatprep.mubr.bf16.mxu0 0
      %1971 = vmatmul.mubr.bf16.gmra.mrb[0].mxu0 %v1679
      %v1972 = vpop.f32.mrb[0].mxu0
      %v1973 = vadd.f32 0.0, %v1972
      %v1974 = vpop.f32.mrb[0].mxu0
      %v1975 = vpop.f32.mrb[0].mxu0
      %v1976 = vadd.f32 0.0, %v1975
      %v1977 = vpop.f32.mrb[0].mxu0
      %1978 = vmatprep.mubr.bf16.mxu0 0
      %1979 = vmatmul.mubr.bf16.gmra.mrb[0].mxu0 %v1682
      %v1980 = vpop.f32.mrb[0].mxu0
      %v1981 = vadd.f32 0.0, %v1980
      %v1982 = vpop.f32.mrb[0].mxu0
      %v1983 = vpop.f32.mrb[0].mxu0
      %v1984 = vadd.f32 0.0, %v1983
      %v1985 = vpop.f32.mrb[0].mxu0
      %1986 = vmatprep.mubr.bf16.mxu0 0
      %1987 = vmatmul.mubr.bf16.gmra.mrb[0].mxu0 %v1685
      %v1988 = vpop.f32.mrb[0].mxu0
      %v1989 = vadd.f32 0.0, %v1988
      %v1990 = vpop.f32.mrb[0].mxu0
      %v1991 = vpop.f32.mrb[0].mxu0
      %v1992 = vadd.f32 0.0, %v1991
      %v1993 = vpop.f32.mrb[0].mxu0
      %1994 = vdwg.mxu0
      %v1995 = vadd.f32 %v1239, %v1725
      %v1996 = vadd.f32 %v1242, %v1728
      %v1997 = vadd.f32 %v1247, %v1733
      %v1998 = vadd.f32 %v1250, %v1736
      %v1999 = vadd.f32 %v1255, %v1741
      %v2000 = vadd.f32 %v1258, %v1744
      %v2001 = vadd.f32 %v1263, %v1749
      %v2002 = vadd.f32 %v1266, %v1752
      %v2003 = vadd.f32 %v1271, %v1757
      %v2004 = vadd.f32 %v1274, %v1760
      %v2005 = vadd.f32 %v1279, %v1765
      %v2006 = vadd.f32 %v1282, %v1768
      %v2007 = vadd.f32 %v1287, %v1773
      %v2008 = vadd.f32 %v1290, %v1776
      %v2009 = vadd.f32 %v1295, %v1781
      %v2010 = vadd.f32 %v1298, %v1784
      %v2011 = vadd.f32 %v1303, %v1789
      %v2012 = vadd.f32 %v1306, %v1792
      %v2013 = vadd.f32 %v1311, %v1797
      %v2014 = vadd.f32 %v1314, %v1800
      %v2015 = vadd.f32 %v1319, %v1805
      %v2016 = vadd.f32 %v1322, %v1808
      %v2017 = vadd.f32 %v1327, %v1813
      %v2018 = vadd.f32 %v1330, %v1816
      %v2019 = vadd.f32 %v1335, %v1821
      %v2020 = vadd.f32 %v1338, %v1824
      %v2021 = vadd.f32 %v1343, %v1829
      %v2022 = vadd.f32 %v1346, %v1832
      %v2023 = vadd.f32 %v1351, %v1837
      %v2024 = vadd.f32 %v1354, %v1840
      %v2025 = vadd.f32 %v1359, %v1845
      %v2026 = vadd.f32 %v1362, %v1848
      %v2027 = vadd.f32 %v1367, %v1853
      %v2028 = vadd.f32 %v1370, %v1856
      %v2029 = vadd.f32 %v1375, %v1861
      %v2030 = vadd.f32 %v1378, %v1864
      %v2031 = vadd.f32 %v1383, %v1869
      %v2032 = vadd.f32 %v1386, %v1872
      %v2033 = vadd.f32 %v1391, %v1877
      %v2034 = vadd.f32 %v1394, %v1880
      %v2035 = vadd.f32 %v1399, %v1885
      %v2036 = vadd.f32 %v1402, %v1888
      %v2037 = vadd.f32 %v1407, %v1893
      %v2038 = vadd.f32 %v1410, %v1896
      %v2039 = vadd.f32 %v1415, %v1901
      %v2040 = vadd.f32 %v1418, %v1904
      %v2041 = vadd.f32 %v1423, %v1909
      %v2042 = vadd.f32 %v1426, %v1912
      %v2043 = vadd.f32 %v1431, %v1917
      %v2044 = vadd.f32 %v1434, %v1920
      %v2045 = vadd.f32 %v1439, %v1925
      %v2046 = vadd.f32 %v1442, %v1928
      %v2047 = vadd.f32 %v1447, %v1933
      %v2048 = vadd.f32 %v1450, %v1936
      %v2049 = vadd.f32 %v1455, %v1941
      %v2050 = vadd.f32 %v1458, %v1944
      %v2051 = vadd.f32 %v1463, %v1949
      %v2052 = vadd.f32 %v1466, %v1952
      %v2053 = vadd.f32 %v1471, %v1957
      %v2054 = vadd.f32 %v1474, %v1960
      %v2055 = vadd.f32 %v1479, %v1965
      %v2056 = vadd.f32 %v1482, %v1968
      %v2057 = vadd.f32 %v1487, %v1973
      %v2058 = vadd.f32 %v1490, %v1976
      %v2059 = vadd.f32 %v1495, %v1981
      %v2060 = vadd.f32 %v1498, %v1984
      %v2061 = vadd.f32 %v1503, %v1989
      %v2062 = vadd.f32 %v1506, %v1992
      %v2063 = vld [vmem:[%s192 + $0x10] sm:$0xe]
      %v2064 = vld [vmem:[%s192 + $0x14] sm:$0xf]
      %v2065 = vld [vmem:[%s192 + $0x18] sm:$0xf]
      %v2066 = vld [vmem:[%s192 + $0x1c] sm:$0xf]
      %v2067 = vld [vmem:[%s192 + $0x20] sm:$0xf]
      %v2068 = vld [vmem:[%s192 + $0x24] sm:$0xf]
      %v2069 = vld [vmem:[%s192 + $0x28] sm:$0xf]
      %v2070 = vld [vmem:[%s192 + $0x2c] sm:$0xf]
      %v2071 = vld [vmem:[%s192 + $0x30] sm:$0xf]
      %v2072 = vld [vmem:[%s192 + $0x34] sm:$0xf]
      %v2073 = vld [vmem:[%s192 + $0x38] sm:$0xf]
      %v2074 = vld [vmem:[%s192 + $0x3c] sm:$0xf]
      %v2075 = vld [vmem:[%s192 + $0x40] sm:$0xf]
      %v2076 = vld [vmem:[%s192 + $0x44] sm:$0xf]
      %v2077 = vld [vmem:[%s192 + $0x48] sm:$0xf]
      %v2078 = vld [vmem:[%s192 + $0x4c] sm:$0xf]
      %v2079 = vld [vmem:[%s192 + $0x50] sm:$0xf]
      %v2080 = vld [vmem:[%s192 + $0x54] sm:$0xf]
      %v2081 = vld [vmem:[%s192 + $0x58] sm:$0xf]
      %v2082 = vld [vmem:[%s192 + $0x5c] sm:$0xf]
      %v2083 = vld [vmem:[%s192 + $0x60] sm:$0xf]
      %v2084 = vld [vmem:[%s192 + $0x64] sm:$0xf]
      %v2085 = vld [vmem:[%s192 + $0x68] sm:$0xf]
      %v2086 = vld [vmem:[%s192 + $0x6c] sm:$0xf]
      %v2087 = vld [vmem:[%s192 + $0x70] sm:$0xf]
      %v2088 = vld [vmem:[%s192 + $0x74] sm:$0xf]
      %v2089 = vld [vmem:[%s192 + $0x78] sm:$0xf]
      %v2090 = vld [vmem:[%s192 + $0x7c] sm:$0xf]
      %v2091 = vld [vmem:[%s192 + $0x80] sm:$0xf]
      %v2092 = vld [vmem:[%s192 + $0x84] sm:$0xf]
      %v2093 = vld [vmem:[%s192 + $0x88] sm:$0xf]
      %v2094 = vld [vmem:[%s192 + $0x8c] sm:$0xf]
      %v2095 = vld [vmem:[%s192 + $0x90] sm:$0xf]
      %v2096 = vld [vmem:[%s192 + $0x94] sm:$0xf]
      %v2097 = vld [vmem:[%s192 + $0x98] sm:$0xf]
      %v2098 = vld [vmem:[%s192 + $0x9c] sm:$0xf]
      %v2099 = vld [vmem:[%s192 + $0xa0] sm:$0xf]
      %v2100 = vld [vmem:[%s192 + $0xa4] sm:$0xf]
      %v2101 = vld [vmem:[%s192 + $0xa8] sm:$0xf]
      %v2102 = vld [vmem:[%s192 + $0xac] sm:$0xf]
      %v2103 = vld [vmem:[%s192 + $0xb0] sm:$0xf]
      %v2104 = vld [vmem:[%s192 + $0xb4] sm:$0xf]
      %v2105 = vld [vmem:[%s192 + $0xb8] sm:$0xf]
      %v2106 = vld [vmem:[%s192 + $0xbc] sm:$0xf]
      %v2107 = vld [vmem:[%s192 + $0xc0] sm:$0xf]
      %v2108 = vld [vmem:[%s192 + $0xc4] sm:$0xf]
      %v2109 = vld [vmem:[%s192 + $0xc8] sm:$0xf]
      %v2110 = vld [vmem:[%s192 + $0xcc] sm:$0xf]
      %v2111 = vld [vmem:[%s192 + $0xd0] sm:$0xf]
      %v2112 = vld [vmem:[%s192 + $0xd4] sm:$0xf]
      %v2113 = vld [vmem:[%s192 + $0xd8] sm:$0xf]
      %v2114 = vld [vmem:[%s192 + $0xdc] sm:$0xf]
      %v2115 = vld [vmem:[%s192 + $0xe0] sm:$0xf]
      %v2116 = vld [vmem:[%s192 + $0xe4] sm:$0xf]
      %v2117 = vld [vmem:[%s192 + $0xe8] sm:$0xf]
      %v2118 = vld [vmem:[%s192 + $0xec] sm:$0xf]
      %v2119 = vld [vmem:[%s192 + $0xf0] sm:$0xf]
      %v2120 = vld [vmem:[%s192 + $0xf4] sm:$0xf]
      %v2121 = vld [vmem:[%s192 + $0xf8] sm:$0xf]
      %v2122 = vld [vmem:[%s192 + $0xfc] sm:$0xf]
      %v2123 = vld [vmem:[%s192 + $0x100] sm:$0xf]
      %v2124 = vld [vmem:[%s192 + $0x104] sm:$0xf]
      %v2125 = vld [vmem:[%s192 + $0x108] sm:$0xf]
      %v2126 = vld [vmem:[%s192 + $0x10c] sm:$0xf]
      %v2127 = vld [vmem:[%s192 + $0x110] sm:$0xf]
      %v2128 = vld [vmem:[%s192 + $0x114] sm:$0xf]
      %v2129 = vld [vmem:[%s192 + $0x118] sm:$0xf]
      %v2130 = vld [vmem:[%s192 + $0x11c] sm:$0xf]
      %v2131 = vld [vmem:[%s192 + $0x120] sm:$0x1]
      %s2132 = scalar_lea.vmem %s1, 12
      %v2133 = vld [vmem:[%s2132] sm:$0xf]
      %v2203 = vunpack.c.l.b16 %v2063
      %v2204 = vunpack.c.l.b16 %v2064
      %v2205 = vunpack.c.l.b16 %v2065
      %v2206 = vunpack.c.l.b16 %v2066
      %v2207 = vunpack.c.l.b16 %v2067
      %v2208 = vunpack.c.l.b16 %v2068
      %v2209 = vunpack.c.l.b16 %v2069
      %v2210 = vunpack.c.l.b16 %v2070
      %v2211 = vunpack.c.l.b16 %v2071
      %v2212 = vunpack.c.l.b16 %v2072
      %v2213 = vunpack.c.l.b16 %v2073
      %v2214 = vunpack.c.l.b16 %v2074
      %v2215 = vunpack.c.l.b16 %v2075
      %v2216 = vunpack.c.l.b16 %v2076
      %v2217 = vunpack.c.l.b16 %v2077
      %v2218 = vunpack.c.l.b16 %v2078
      %v2219 = vunpack.c.l.b16 %v2079
      %v2220 = vunpack.c.l.b16 %v2080
      %v2221 = vunpack.c.l.b16 %v2081
      %v2222 = vunpack.c.l.b16 %v2082
      %v2223 = vunpack.c.l.b16 %v2083
      %v2224 = vunpack.c.l.b16 %v2084
      %v2225 = vunpack.c.l.b16 %v2085
      %v2226 = vunpack.c.l.b16 %v2086
      %v2227 = vunpack.c.l.b16 %v2087
      %v2228 = vunpack.c.l.b16 %v2088
      %v2229 = vunpack.c.l.b16 %v2089
      %v2230 = vunpack.c.l.b16 %v2090
      %v2231 = vunpack.c.l.b16 %v2091
      %v2232 = vunpack.c.l.b16 %v2092
      %v2233 = vunpack.c.l.b16 %v2093
      %v2234 = vunpack.c.l.b16 %v2094
      %v2235 = vunpack.c.l.b16 %v2095
      %v2236 = vunpack.c.l.b16 %v2096
      %v2237 = vunpack.c.l.b16 %v2097
      %v2238 = vunpack.c.l.b16 %v2098
      %v2239 = vunpack.c.l.b16 %v2099
      %v2240 = vunpack.c.l.b16 %v2100
      %v2241 = vunpack.c.l.b16 %v2101
      %v2242 = vunpack.c.l.b16 %v2102
      %v2243 = vunpack.c.l.b16 %v2103
      %v2244 = vunpack.c.l.b16 %v2104
      %v2245 = vunpack.c.l.b16 %v2105
      %v2246 = vunpack.c.l.b16 %v2106
      %v2247 = vunpack.c.l.b16 %v2107
      %v2248 = vunpack.c.l.b16 %v2108
      %v2249 = vunpack.c.l.b16 %v2109
      %v2250 = vunpack.c.l.b16 %v2110
      %v2251 = vunpack.c.l.b16 %v2111
      %v2252 = vunpack.c.l.b16 %v2112
      %v2253 = vunpack.c.l.b16 %v2113
      %v2254 = vunpack.c.l.b16 %v2114
      %v2255 = vunpack.c.l.b16 %v2115
      %v2256 = vunpack.c.l.b16 %v2116
      %v2257 = vunpack.c.l.b16 %v2117
      %v2258 = vunpack.c.l.b16 %v2118
      %v2259 = vunpack.c.l.b16 %v2119
      %v2260 = vunpack.c.l.b16 %v2120
      %v2261 = vunpack.c.l.b16 %v2121
      %v2262 = vunpack.c.l.b16 %v2122
      %v2263 = vunpack.c.l.b16 %v2123
      %v2264 = vunpack.c.l.b16 %v2124
      %v2265 = vunpack.c.l.b16 %v2125
      %v2266 = vunpack.c.l.b16 %v2126
      %v2267 = vunpack.c.l.b16 %v2127
      %v2268 = vunpack.c.l.b16 %v2128
      %v2269 = vunpack.c.l.b16 %v2129
      %v2270 = vunpack.c.l.b16 %v2130
      %v2271 = vunpack.c.l.b16 %v2131
      %v2272 = vpack.c.b16 %v2204, %v2203
      %v2273 = vpack.c.b16 %v2206, %v2205
      %v2274 = vpack.c.b16 %v2208, %v2207
      %v2275 = vpack.c.b16 %v2210, %v2209
      %v2276 = vpack.c.b16 %v2212, %v2211
      %v2277 = vpack.c.b16 %v2214, %v2213
      %v2278 = vpack.c.b16 %v2216, %v2215
      %v2279 = vpack.c.b16 %v2218, %v2217
      %v2280 = vpack.c.b16 %v2220, %v2219
      %v2281 = vpack.c.b16 %v2222, %v2221
      %v2282 = vpack.c.b16 %v2224, %v2223
      %v2283 = vpack.c.b16 %v2226, %v2225
      %v2284 = vpack.c.b16 %v2228, %v2227
      %v2285 = vpack.c.b16 %v2230, %v2229
      %v2286 = vpack.c.b16 %v2232, %v2231
      %v2287 = vpack.c.b16 %v2234, %v2233
      %v2288 = vpack.c.b16 %v2236, %v2235
      %v2289 = vpack.c.b16 %v2238, %v2237
      %v2290 = vpack.c.b16 %v2240, %v2239
      %v2291 = vpack.c.b16 %v2242, %v2241
      %v2292 = vpack.c.b16 %v2244, %v2243
      %v2293 = vpack.c.b16 %v2246, %v2245
      %v2294 = vpack.c.b16 %v2248, %v2247
      %v2295 = vpack.c.b16 %v2250, %v2249
      %v2296 = vpack.c.b16 %v2252, %v2251
      %v2297 = vpack.c.b16 %v2254, %v2253
      %v2298 = vpack.c.b16 %v2256, %v2255
      %v2299 = vpack.c.b16 %v2258, %v2257
      %v2300 = vpack.c.b16 %v2260, %v2259
      %v2301 = vpack.c.b16 %v2262, %v2261
      %v2302 = vpack.c.b16 %v2264, %v2263
      %v2303 = vpack.c.b16 %v2266, %v2265
      %v2304 = vpack.c.b16 %v2268, %v2267
      %v2305 = vpack.c.b16 %v2270, %v2269
      %v2306 = vpack.c.b16 %v2271, %v2271
      %v2307 = vrot.slane %v2272, 1
      %v2308 = vrot.slane %v2273, 1
      %v2309 = vsel %vm1515, %v2307, %v2308
      %v2310 = vrot.slane %v2274, 1
      %v2311 = vsel %vm1515, %v2308, %v2310
      %v2312 = vrot.slane %v2275, 1
      %v2313 = vsel %vm1515, %v2310, %v2312
      %v2314 = vrot.slane %v2276, 1
      %v2315 = vsel %vm1515, %v2312, %v2314
      %v2316 = vrot.slane %v2277, 1
      %v2317 = vsel %vm1515, %v2314, %v2316
      %v2318 = vrot.slane %v2278, 1
      %v2319 = vsel %vm1515, %v2316, %v2318
      %v2320 = vrot.slane %v2279, 1
      %v2321 = vsel %vm1515, %v2318, %v2320
      %v2322 = vrot.slane %v2280, 1
      %v2323 = vsel %vm1515, %v2320, %v2322
      %v2324 = vrot.slane %v2281, 1
      %v2325 = vsel %vm1515, %v2322, %v2324
      %v2326 = vrot.slane %v2282, 1
      %v2327 = vsel %vm1515, %v2324, %v2326
      %v2328 = vrot.slane %v2283, 1
      %v2329 = vsel %vm1515, %v2326, %v2328
      %v2330 = vrot.slane %v2284, 1
      %v2331 = vsel %vm1515, %v2328, %v2330
      %v2332 = vrot.slane %v2285, 1
      %v2333 = vsel %vm1515, %v2330, %v2332
      %v2334 = vrot.slane %v2286, 1
      %v2335 = vsel %vm1515, %v2332, %v2334
      %v2336 = vrot.slane %v2287, 1
      %v2337 = vsel %vm1515, %v2334, %v2336
      %v2338 = vrot.slane %v2288, 1
      %v2339 = vsel %vm1515, %v2336, %v2338
      %v2340 = vrot.slane %v2289, 1
      %v2341 = vsel %vm1515, %v2338, %v2340
      %v2342 = vrot.slane %v2290, 1
      %v2343 = vsel %vm1515, %v2340, %v2342
      %v2344 = vrot.slane %v2291, 1
      %v2345 = vsel %vm1515, %v2342, %v2344
      %v2346 = vrot.slane %v2292, 1
      %v2347 = vsel %vm1515, %v2344, %v2346
      %v2348 = vrot.slane %v2293, 1
      %v2349 = vsel %vm1515, %v2346, %v2348
      %v2350 = vrot.slane %v2294, 1
      %v2351 = vsel %vm1515, %v2348, %v2350
      %v2352 = vrot.slane %v2295, 1
      %v2353 = vsel %vm1515, %v2350, %v2352
      %v2354 = vrot.slane %v2296, 1
      %v2355 = vsel %vm1515, %v2352, %v2354
      %v2356 = vrot.slane %v2297, 1
      %v2357 = vsel %vm1515, %v2354, %v2356
      %v2358 = vrot.slane %v2298, 1
      %v2359 = vsel %vm1515, %v2356, %v2358
      %v2360 = vrot.slane %v2299, 1
      %v2361 = vsel %vm1515, %v2358, %v2360
      %v2362 = vrot.slane %v2300, 1
      %v2363 = vsel %vm1515, %v2360, %v2362
      %v2364 = vrot.slane %v2301, 1
      %v2365 = vsel %vm1515, %v2362, %v2364
      %v2366 = vrot.slane %v2302, 1
      %v2367 = vsel %vm1515, %v2364, %v2366
      %v2368 = vrot.slane %v2303, 1
      %v2369 = vsel %vm1515, %v2366, %v2368
      %v2370 = vrot.slane %v2304, 1
      %v2371 = vsel %vm1515, %v2368, %v2370
      %v2372 = vrot.slane %v2305, 1
      %v2373 = vsel %vm1515, %v2370, %v2372
      %v2374 = vrot.slane %v2306, 1
      %v2375 = vsel %vm1515, %v2372, %v2374
      %v2377 = vsel %vm721, %v2309, 0
      %v2380 = vsel %vm721, %v2311, 0
      %v2383 = vsel %vm721, %v2313, 0
      %v2386 = vsel %vm721, %v2315, 0
      %v2389 = vsel %vm721, %v2317, 0
      %v2392 = vsel %vm721, %v2319, 0
      %v2395 = vsel %vm721, %v2321, 0
      %v2398 = vsel %vm721, %v2323, 0
      %v2401 = vsel %vm721, %v2325, 0
      %v2404 = vsel %vm721, %v2327, 0
      %v2407 = vsel %vm721, %v2329, 0
      %v2410 = vsel %vm721, %v2331, 0
      %v2413 = vsel %vm721, %v2333, 0
      %v2416 = vsel %vm721, %v2335, 0
      %v2419 = vsel %vm721, %v2337, 0
      %v2422 = vsel %vm721, %v2339, 0
      %v2425 = vsel %vm721, %v2341, 0
      %v2428 = vsel %vm721, %v2343, 0
      %v2431 = vsel %vm721, %v2345, 0
      %v2434 = vsel %vm721, %v2347, 0
      %v2437 = vsel %vm721, %v2349, 0
      %v2440 = vsel %vm721, %v2351, 0
      %v2443 = vsel %vm721, %v2353, 0
      %v2446 = vsel %vm721, %v2355, 0
      %v2449 = vsel %vm721, %v2357, 0
      %v2452 = vsel %vm721, %v2359, 0
      %v2455 = vsel %vm721, %v2361, 0
      %v2458 = vsel %vm721, %v2363, 0
      %v2461 = vsel %vm721, %v2365, 0
      %v2464 = vsel %vm721, %v2367, 0
      %v2467 = vsel %vm721, %v2369, 0
      %v2470 = vsel %vm721, %v2371, 0
      %v2473 = vsel %vm721, %v2373, 0
      %v2476 = vsel %vm721, %v2375, 0
      %v2479 = vsel %vm824, %v2133, 0
      %2481 = vmatprep.subr.bf16.mxu0 0
      %2482 = vmatpush1.bf16.msra.mxu0 %v2479
      %2483 = vmatprep.subr.bf16.mxu0 0
      %2484 = vmatpush1.bf16.msra.mxu0 0
      %2485 = vmatprep.subr.bf16.mxu0 0
      %2486 = vmatpush1.bf16.msra.mxu0 0
      %2487 = vmatprep.subr.bf16.mxu0 0
      %2488 = vmatpush1.bf16.msra.mxu0 0
      %2489 = vmatprep.subr.bf16.mxu0 0
      %2490 = vmatpush1.bf16.msra.mxu0 0
      %2491 = vmatprep.subr.bf16.mxu0 0
      %2492 = vmatpush1.bf16.msra.mxu0 0
      %2493 = vmatprep.subr.bf16.mxu0 0
      %2494 = vmatpush1.bf16.msra.mxu0 0
      %2495 = vmatprep.subr.bf16.mxu0 0
      %2496 = vmatpush1.bf16.msra.mxu0 0
      %2497 = vmatprep.subr.bf16.mxu0 0
      %2498 = vmatpush1.bf16.msra.mxu0 0
      %2499 = vmatprep.subr.bf16.mxu0 0
      %2500 = vmatpush1.bf16.msra.mxu0 0
      %2501 = vmatprep.subr.bf16.mxu0 0
      %2502 = vmatpush1.bf16.msra.mxu0 0
      %2503 = vmatprep.subr.bf16.mxu0 0
      %2504 = vmatpush1.bf16.msra.mxu0 0
      %2505 = vmatprep.subr.bf16.mxu0 0
      %2506 = vmatpush1.bf16.msra.mxu0 0
      %2507 = vmatprep.subr.bf16.mxu0 0
      %2508 = vmatpush1.bf16.msra.mxu0 0
      %2509 = vmatprep.subr.bf16.mxu0 0
      %2510 = vmatpush1.bf16.msra.mxu0 0
      %2511 = vmatprep.subr.bf16.mxu0 0
      %2512 = vmatpush1.bf16.msra.mxu0 0
      %2513 = vmatprep.mubr.bf16.mxu0 0
      %2514 = vmatmul.mubr.bf16.gmra.mrb[0].mxu0 %v2377
      %v2515 = vpop.f32.mrb[0].mxu0
      %v2516 = vadd.f32 0.0, %v2515
      %v2517 = vpop.f32.mrb[0].mxu0
      %v2518 = vpop.f32.mrb[0].mxu0
      %v2519 = vadd.f32 0.0, %v2518
      %v2520 = vpop.f32.mrb[0].mxu0
      %2521 = vmatprep.mubr.bf16.mxu0 0
      %2522 = vmatmul.mubr.bf16.gmra.mrb[0].mxu0 %v2380
      %v2523 = vpop.f32.mrb[0].mxu0
      %v2524 = vadd.f32 0.0, %v2523
      %v2525 = vpop.f32.mrb[0].mxu0
      %v2526 = vpop.f32.mrb[0].mxu0
      %v2527 = vadd.f32 0.0, %v2526
      %v2528 = vpop.f32.mrb[0].mxu0
      %2529 = vmatprep.mubr.bf16.mxu0 0
      %2530 = vmatmul.mubr.bf16.gmra.mrb[0].mxu0 %v2383
      %v2531 = vpop.f32.mrb[0].mxu0
      %v2532 = vadd.f32 0.0, %v2531
      %v2533 = vpop.f32.mrb[0].mxu0
      %v2534 = vpop.f32.mrb[0].mxu0
      %v2535 = vadd.f32 0.0, %v2534
      %v2536 = vpop.f32.mrb[0].mxu0
      %2537 = vmatprep.mubr.bf16.mxu0 0
      %2538 = vmatmul.mubr.bf16.gmra.mrb[0].mxu0 %v2386
      %v2539 = vpop.f32.mrb[0].mxu0
      %v2540 = vadd.f32 0.0, %v2539
      %v2541 = vpop.f32.mrb[0].mxu0
      %v2542 = vpop.f32.mrb[0].mxu0
      %v2543 = vadd.f32 0.0, %v2542
      %v2544 = vpop.f32.mrb[0].mxu0
      %2545 = vmatprep.mubr.bf16.mxu0 0
      %2546 = vmatmul.mubr.bf16.gmra.mrb[0].mxu0 %v2389
      %v2547 = vpop.f32.mrb[0].mxu0
      %v2548 = vadd.f32 0.0, %v2547
      %v2549 = vpop.f32.mrb[0].mxu0
      %v2550 = vpop.f32.mrb[0].mxu0
      %v2551 = vadd.f32 0.0, %v2550
      %v2552 = vpop.f32.mrb[0].mxu0
      %2553 = vmatprep.mubr.bf16.mxu0 0
      %2554 = vmatmul.mubr.bf16.gmra.mrb[0].mxu0 %v2392
      %v2555 = vpop.f32.mrb[0].mxu0
      %v2556 = vadd.f32 0.0, %v2555
      %v2557 = vpop.f32.mrb[0].mxu0
      %v2558 = vpop.f32.mrb[0].mxu0
      %v2559 = vadd.f32 0.0, %v2558
      %v2560 = vpop.f32.mrb[0].mxu0
      %2561 = vmatprep.mubr.bf16.mxu0 0
      %2562 = vmatmul.mubr.bf16.gmra.mrb[0].mxu0 %v2395
      %v2563 = vpop.f32.mrb[0].mxu0
      %v2564 = vadd.f32 0.0, %v2563
      %v2565 = vpop.f32.mrb[0].mxu0
      %v2566 = vpop.f32.mrb[0].mxu0
      %v2567 = vadd.f32 0.0, %v2566
      %v2568 = vpop.f32.mrb[0].mxu0
      %2569 = vmatprep.mubr.bf16.mxu0 0
      %2570 = vmatmul.mubr.bf16.gmra.mrb[0].mxu0 %v2398
      %v2571 = vpop.f32.mrb[0].mxu0
      %v2572 = vadd.f32 0.0, %v2571
      %v2573 = vpop.f32.mrb[0].mxu0
      %v2574 = vpop.f32.mrb[0].mxu0
      %v2575 = vadd.f32 0.0, %v2574
      %v2576 = vpop.f32.mrb[0].mxu0
      %2577 = vmatprep.mubr.bf16.mxu0 0
      %2578 = vmatmul.mubr.bf16.gmra.mrb[0].mxu0 %v2401
      %v2579 = vpop.f32.mrb[0].mxu0
      %v2580 = vadd.f32 0.0, %v2579
      %v2581 = vpop.f32.mrb[0].mxu0
      %v2582 = vpop.f32.mrb[0].mxu0
      %v2583 = vadd.f32 0.0, %v2582
      %v2584 = vpop.f32.mrb[0].mxu0
      %2585 = vmatprep.mubr.bf16.mxu0 0
      %2586 = vmatmul.mubr.bf16.gmra.mrb[0].mxu0 %v2404
      %v2587 = vpop.f32.mrb[0].mxu0
      %v2588 = vadd.f32 0.0, %v2587
      %v2589 = vpop.f32.mrb[0].mxu0
      %v2590 = vpop.f32.mrb[0].mxu0
      %v2591 = vadd.f32 0.0, %v2590
      %v2592 = vpop.f32.mrb[0].mxu0
      %2593 = vmatprep.mubr.bf16.mxu0 0
      %2594 = vmatmul.mubr.bf16.gmra.mrb[0].mxu0 %v2407
      %v2595 = vpop.f32.mrb[0].mxu0
      %v2596 = vadd.f32 0.0, %v2595
      %v2597 = vpop.f32.mrb[0].mxu0
      %v2598 = vpop.f32.mrb[0].mxu0
      %v2599 = vadd.f32 0.0, %v2598
      %v2600 = vpop.f32.mrb[0].mxu0
      %2601 = vmatprep.mubr.bf16.mxu0 0
      %2602 = vmatmul.mubr.bf16.gmra.mrb[0].mxu0 %v2410
      %v2603 = vpop.f32.mrb[0].mxu0
      %v2604 = vadd.f32 0.0, %v2603
      %v2605 = vpop.f32.mrb[0].mxu0
      %v2606 = vpop.f32.mrb[0].mxu0
      %v2607 = vadd.f32 0.0, %v2606
      %v2608 = vpop.f32.mrb[0].mxu0
      %2609 = vmatprep.mubr.bf16.mxu0 0
      %2610 = vmatmul.mubr.bf16.gmra.mrb[0].mxu0 %v2413
      %v2611 = vpop.f32.mrb[0].mxu0
      %v2612 = vadd.f32 0.0, %v2611
      %v2613 = vpop.f32.mrb[0].mxu0
      %v2614 = vpop.f32.mrb[0].mxu0
      %v2615 = vadd.f32 0.0, %v2614
      %v2616 = vpop.f32.mrb[0].mxu0
      %2617 = vmatprep.mubr.bf16.mxu0 0
      %2618 = vmatmul.mubr.bf16.gmra.mrb[0].mxu0 %v2416
      %v2619 = vpop.f32.mrb[0].mxu0
      %v2620 = vadd.f32 0.0, %v2619
      %v2621 = vpop.f32.mrb[0].mxu0
      %v2622 = vpop.f32.mrb[0].mxu0
      %v2623 = vadd.f32 0.0, %v2622
      %v2624 = vpop.f32.mrb[0].mxu0
      %2625 = vmatprep.mubr.bf16.mxu0 0
      %2626 = vmatmul.mubr.bf16.gmra.mrb[0].mxu0 %v2419
      %v2627 = vpop.f32.mrb[0].mxu0
      %v2628 = vadd.f32 0.0, %v2627
      %v2629 = vpop.f32.mrb[0].mxu0
      %v2630 = vpop.f32.mrb[0].mxu0
      %v2631 = vadd.f32 0.0, %v2630
      %v2632 = vpop.f32.mrb[0].mxu0
      %2633 = vmatprep.mubr.bf16.mxu0 0
      %2634 = vmatmul.mubr.bf16.gmra.mrb[0].mxu0 %v2422
      %v2635 = vpop.f32.mrb[0].mxu0
      %v2636 = vadd.f32 0.0, %v2635
      %v2637 = vpop.f32.mrb[0].mxu0
      %v2638 = vpop.f32.mrb[0].mxu0
      %v2639 = vadd.f32 0.0, %v2638
      %v2640 = vpop.f32.mrb[0].mxu0
      %2641 = vmatprep.mubr.bf16.mxu0 0
      %2642 = vmatmul.mubr.bf16.gmra.mrb[0].mxu0 %v2425
      %v2643 = vpop.f32.mrb[0].mxu0
      %v2644 = vadd.f32 0.0, %v2643
      %v2645 = vpop.f32.mrb[0].mxu0
      %v2646 = vpop.f32.mrb[0].mxu0
      %v2647 = vadd.f32 0.0, %v2646
      %v2648 = vpop.f32.mrb[0].mxu0
      %2649 = vmatprep.mubr.bf16.mxu0 0
      %2650 = vmatmul.mubr.bf16.gmra.mrb[0].mxu0 %v2428
      %v2651 = vpop.f32.mrb[0].mxu0
      %v2652 = vadd.f32 0.0, %v2651
      %v2653 = vpop.f32.mrb[0].mxu0
      %v2654 = vpop.f32.mrb[0].mxu0
      %v2655 = vadd.f32 0.0, %v2654
      %v2656 = vpop.f32.mrb[0].mxu0
      %2657 = vmatprep.mubr.bf16.mxu0 0
      %2658 = vmatmul.mubr.bf16.gmra.mrb[0].mxu0 %v2431
      %v2659 = vpop.f32.mrb[0].mxu0
      %v2660 = vadd.f32 0.0, %v2659
      %v2661 = vpop.f32.mrb[0].mxu0
      %v2662 = vpop.f32.mrb[0].mxu0
      %v2663 = vadd.f32 0.0, %v2662
      %v2664 = vpop.f32.mrb[0].mxu0
      %2665 = vmatprep.mubr.bf16.mxu0 0
      %2666 = vmatmul.mubr.bf16.gmra.mrb[0].mxu0 %v2434
      %v2667 = vpop.f32.mrb[0].mxu0
      %v2668 = vadd.f32 0.0, %v2667
      %v2669 = vpop.f32.mrb[0].mxu0
      %v2670 = vpop.f32.mrb[0].mxu0
      %v2671 = vadd.f32 0.0, %v2670
      %v2672 = vpop.f32.mrb[0].mxu0
      %2673 = vmatprep.mubr.bf16.mxu0 0
      %2674 = vmatmul.mubr.bf16.gmra.mrb[0].mxu0 %v2437
      %v2675 = vpop.f32.mrb[0].mxu0
      %v2676 = vadd.f32 0.0, %v2675
      %v2677 = vpop.f32.mrb[0].mxu0
      %v2678 = vpop.f32.mrb[0].mxu0
      %v2679 = vadd.f32 0.0, %v2678
      %v2680 = vpop.f32.mrb[0].mxu0
      %2681 = vmatprep.mubr.bf16.mxu0 0
      %2682 = vmatmul.mubr.bf16.gmra.mrb[0].mxu0 %v2440
      %v2683 = vpop.f32.mrb[0].mxu0
      %v2684 = vadd.f32 0.0, %v2683
      %v2685 = vpop.f32.mrb[0].mxu0
      %v2686 = vpop.f32.mrb[0].mxu0
      %v2687 = vadd.f32 0.0, %v2686
      %v2688 = vpop.f32.mrb[0].mxu0
      %2689 = vmatprep.mubr.bf16.mxu0 0
      %2690 = vmatmul.mubr.bf16.gmra.mrb[0].mxu0 %v2443
      %v2691 = vpop.f32.mrb[0].mxu0
      %v2692 = vadd.f32 0.0, %v2691
      %v2693 = vpop.f32.mrb[0].mxu0
      %v2694 = vpop.f32.mrb[0].mxu0
      %v2695 = vadd.f32 0.0, %v2694
      %v2696 = vpop.f32.mrb[0].mxu0
      %2697 = vmatprep.mubr.bf16.mxu0 0
      %2698 = vmatmul.mubr.bf16.gmra.mrb[0].mxu0 %v2446
      %v2699 = vpop.f32.mrb[0].mxu0
      %v2700 = vadd.f32 0.0, %v2699
      %v2701 = vpop.f32.mrb[0].mxu0
      %v2702 = vpop.f32.mrb[0].mxu0
      %v2703 = vadd.f32 0.0, %v2702
      %v2704 = vpop.f32.mrb[0].mxu0
      %2705 = vmatprep.mubr.bf16.mxu0 0
      %2706 = vmatmul.mubr.bf16.gmra.mrb[0].mxu0 %v2449
      %v2707 = vpop.f32.mrb[0].mxu0
      %v2708 = vadd.f32 0.0, %v2707
      %v2709 = vpop.f32.mrb[0].mxu0
      %v2710 = vpop.f32.mrb[0].mxu0
      %v2711 = vadd.f32 0.0, %v2710
      %v2712 = vpop.f32.mrb[0].mxu0
      %2713 = vmatprep.mubr.bf16.mxu0 0
      %2714 = vmatmul.mubr.bf16.gmra.mrb[0].mxu0 %v2452
      %v2715 = vpop.f32.mrb[0].mxu0
      %v2716 = vadd.f32 0.0, %v2715
      %v2717 = vpop.f32.mrb[0].mxu0
      %v2718 = vpop.f32.mrb[0].mxu0
      %v2719 = vadd.f32 0.0, %v2718
      %v2720 = vpop.f32.mrb[0].mxu0
      %2721 = vmatprep.mubr.bf16.mxu0 0
      %2722 = vmatmul.mubr.bf16.gmra.mrb[0].mxu0 %v2455
      %v2723 = vpop.f32.mrb[0].mxu0
      %v2724 = vadd.f32 0.0, %v2723
      %v2725 = vpop.f32.mrb[0].mxu0
      %v2726 = vpop.f32.mrb[0].mxu0
      %v2727 = vadd.f32 0.0, %v2726
      %v2728 = vpop.f32.mrb[0].mxu0
      %2729 = vmatprep.mubr.bf16.mxu0 0
      %2730 = vmatmul.mubr.bf16.gmra.mrb[0].mxu0 %v2458
      %v2731 = vpop.f32.mrb[0].mxu0
      %v2732 = vadd.f32 0.0, %v2731
      %v2733 = vpop.f32.mrb[0].mxu0
      %v2734 = vpop.f32.mrb[0].mxu0
      %v2735 = vadd.f32 0.0, %v2734
      %v2736 = vpop.f32.mrb[0].mxu0
      %2737 = vmatprep.mubr.bf16.mxu0 0
      %2738 = vmatmul.mubr.bf16.gmra.mrb[0].mxu0 %v2461
      %v2739 = vpop.f32.mrb[0].mxu0
      %v2740 = vadd.f32 0.0, %v2739
      %v2741 = vpop.f32.mrb[0].mxu0
      %v2742 = vpop.f32.mrb[0].mxu0
      %v2743 = vadd.f32 0.0, %v2742
      %v2744 = vpop.f32.mrb[0].mxu0
      %2745 = vmatprep.mubr.bf16.mxu0 0
      %2746 = vmatmul.mubr.bf16.gmra.mrb[0].mxu0 %v2464
      %v2747 = vpop.f32.mrb[0].mxu0
      %v2748 = vadd.f32 0.0, %v2747
      %v2749 = vpop.f32.mrb[0].mxu0
      %v2750 = vpop.f32.mrb[0].mxu0
      %v2751 = vadd.f32 0.0, %v2750
      %v2752 = vpop.f32.mrb[0].mxu0
      %2753 = vmatprep.mubr.bf16.mxu0 0
      %2754 = vmatmul.mubr.bf16.gmra.mrb[0].mxu0 %v2467
      %v2755 = vpop.f32.mrb[0].mxu0
      %v2756 = vadd.f32 0.0, %v2755
      %v2757 = vpop.f32.mrb[0].mxu0
      %v2758 = vpop.f32.mrb[0].mxu0
      %v2759 = vadd.f32 0.0, %v2758
      %v2760 = vpop.f32.mrb[0].mxu0
      %2761 = vmatprep.mubr.bf16.mxu0 0
      %2762 = vmatmul.mubr.bf16.gmra.mrb[0].mxu0 %v2470
      %v2763 = vpop.f32.mrb[0].mxu0
      %v2764 = vadd.f32 0.0, %v2763
      %v2765 = vpop.f32.mrb[0].mxu0
      %v2766 = vpop.f32.mrb[0].mxu0
      %v2767 = vadd.f32 0.0, %v2766
      %v2768 = vpop.f32.mrb[0].mxu0
      %2769 = vmatprep.mubr.bf16.mxu0 0
      %2770 = vmatmul.mubr.bf16.gmra.mrb[0].mxu0 %v2473
      %v2771 = vpop.f32.mrb[0].mxu0
      %v2772 = vadd.f32 0.0, %v2771
      %v2773 = vpop.f32.mrb[0].mxu0
      %v2774 = vpop.f32.mrb[0].mxu0
      %v2775 = vadd.f32 0.0, %v2774
      %v2776 = vpop.f32.mrb[0].mxu0
      %2777 = vmatprep.mubr.bf16.mxu0 0
      %2778 = vmatmul.mubr.bf16.gmra.mrb[0].mxu0 %v2476
      %v2779 = vpop.f32.mrb[0].mxu0
      %v2780 = vadd.f32 0.0, %v2779
      %v2781 = vpop.f32.mrb[0].mxu0
      %v2782 = vpop.f32.mrb[0].mxu0
      %v2783 = vadd.f32 0.0, %v2782
      %v2784 = vpop.f32.mrb[0].mxu0
      %2785 = vdwg.mxu0
      %v2786 = vadd.f32 %v1995, %v2516
      %v2787 = vadd.f32 %v1996, %v2519
      %v2788 = vadd.f32 %v1997, %v2524
      %v2789 = vadd.f32 %v1998, %v2527
      %v2790 = vadd.f32 %v1999, %v2532
      %v2791 = vadd.f32 %v2000, %v2535
      %v2792 = vadd.f32 %v2001, %v2540
      %v2793 = vadd.f32 %v2002, %v2543
      %v2794 = vadd.f32 %v2003, %v2548
      %v2795 = vadd.f32 %v2004, %v2551
      %v2796 = vadd.f32 %v2005, %v2556
      %v2797 = vadd.f32 %v2006, %v2559
      %v2798 = vadd.f32 %v2007, %v2564
      %v2799 = vadd.f32 %v2008, %v2567
      %v2800 = vadd.f32 %v2009, %v2572
      %v2801 = vadd.f32 %v2010, %v2575
      %v2802 = vadd.f32 %v2011, %v2580
      %v2803 = vadd.f32 %v2012, %v2583
      %v2804 = vadd.f32 %v2013, %v2588
      %v2805 = vadd.f32 %v2014, %v2591
      %v2806 = vadd.f32 %v2015, %v2596
      %v2807 = vadd.f32 %v2016, %v2599
      %v2808 = vadd.f32 %v2017, %v2604
      %v2809 = vadd.f32 %v2018, %v2607
      %v2810 = vadd.f32 %v2019, %v2612
      %v2811 = vadd.f32 %v2020, %v2615
      %v2812 = vadd.f32 %v2021, %v2620
      %v2813 = vadd.f32 %v2022, %v2623
      %v2814 = vadd.f32 %v2023, %v2628
      %v2815 = vadd.f32 %v2024, %v2631
      %v2816 = vadd.f32 %v2025, %v2636
      %v2817 = vadd.f32 %v2026, %v2639
      %v2818 = vadd.f32 %v2027, %v2644
      %v2819 = vadd.f32 %v2028, %v2647
      %v2820 = vadd.f32 %v2029, %v2652
      %v2821 = vadd.f32 %v2030, %v2655
      %v2822 = vadd.f32 %v2031, %v2660
      %v2823 = vadd.f32 %v2032, %v2663
      %v2824 = vadd.f32 %v2033, %v2668
      %v2825 = vadd.f32 %v2034, %v2671
      %v2826 = vadd.f32 %v2035, %v2676
      %v2827 = vadd.f32 %v2036, %v2679
      %v2828 = vadd.f32 %v2037, %v2684
      %v2829 = vadd.f32 %v2038, %v2687
      %v2830 = vadd.f32 %v2039, %v2692
      %v2831 = vadd.f32 %v2040, %v2695
      %v2832 = vadd.f32 %v2041, %v2700
      %v2833 = vadd.f32 %v2042, %v2703
      %v2834 = vadd.f32 %v2043, %v2708
      %v2835 = vadd.f32 %v2044, %v2711
      %v2836 = vadd.f32 %v2045, %v2716
      %v2837 = vadd.f32 %v2046, %v2719
      %v2838 = vadd.f32 %v2047, %v2724
      %v2839 = vadd.f32 %v2048, %v2727
      %v2840 = vadd.f32 %v2049, %v2732
      %v2841 = vadd.f32 %v2050, %v2735
      %v2842 = vadd.f32 %v2051, %v2740
      %v2843 = vadd.f32 %v2052, %v2743
      %v2844 = vadd.f32 %v2053, %v2748
      %v2845 = vadd.f32 %v2054, %v2751
      %v2846 = vadd.f32 %v2055, %v2756
      %v2847 = vadd.f32 %v2056, %v2759
      %v2848 = vadd.f32 %v2057, %v2764
      %v2849 = vadd.f32 %v2058, %v2767
      %v2850 = vadd.f32 %v2059, %v2772
      %v2851 = vadd.f32 %v2060, %v2775
      %v2852 = vadd.f32 %v2061, %v2780
      %v2853 = vadd.f32 %v2062, %v2783
      %v2854 = vld [vmem:[%s192 + $0x120] sm:$0x3]
      %s2855 = scalar_lea.vmem %s1, 16
      %v2856 = vld [vmem:[%s2855] sm:$0xf]
      %v2858 = vunpack.c.l.b16 %v2854
      %v2859 = vpack.c.b16 %v2858, %v2858
      %vm2860 = vsmask.f32 6400
      %v2862 = vshrl.u32 %v2272, 16
      %v2864 = vrot.slane %v2862, 1
      %v2865 = vshll.u32 %v2272, 16
      %v2867 = vrot.slane %v2865, 2
      %v2868 = vor.u32 %v2864, %v2867
      %v2870 = vshrl.u32 %v2273, 16
      %v2872 = vrot.slane %v2870, 1
      %v2873 = vshll.u32 %v2273, 16
      %v2875 = vrot.slane %v2873, 2
      %v2876 = vor.u32 %v2872, %v2875
      %v2877 = vsel %vm2860, %v2868, %v2876
      %v2879 = vshrl.u32 %v2274, 16
      %v2881 = vrot.slane %v2879, 1
      %v2882 = vshll.u32 %v2274, 16
      %v2884 = vrot.slane %v2882, 2
      %v2885 = vor.u32 %v2881, %v2884
      %v2886 = vsel %vm2860, %v2876, %v2885
      %v2888 = vshrl.u32 %v2275, 16
      %v2890 = vrot.slane %v2888, 1
      %v2891 = vshll.u32 %v2275, 16
      %v2893 = vrot.slane %v2891, 2
      %v2894 = vor.u32 %v2890, %v2893
      %v2895 = vsel %vm2860, %v2885, %v2894
      %v2897 = vshrl.u32 %v2276, 16
      %v2899 = vrot.slane %v2897, 1
      %v2900 = vshll.u32 %v2276, 16
      %v2902 = vrot.slane %v2900, 2
      %v2903 = vor.u32 %v2899, %v2902
      %v2904 = vsel %vm2860, %v2894, %v2903
      %v2906 = vshrl.u32 %v2277, 16
      %v2908 = vrot.slane %v2906, 1
      %v2909 = vshll.u32 %v2277, 16
      %v2911 = vrot.slane %v2909, 2
      %v2912 = vor.u32 %v2908, %v2911
      %v2913 = vsel %vm2860, %v2903, %v2912
      %v2915 = vshrl.u32 %v2278, 16
      %v2917 = vrot.slane %v2915, 1
      %v2918 = vshll.u32 %v2278, 16
      %v2920 = vrot.slane %v2918, 2
      %v2921 = vor.u32 %v2917, %v2920
      %v2922 = vsel %vm2860, %v2912, %v2921
      %v2924 = vshrl.u32 %v2279, 16
      %v2926 = vrot.slane %v2924, 1
      %v2927 = vshll.u32 %v2279, 16
      %v2929 = vrot.slane %v2927, 2
      %v2930 = vor.u32 %v2926, %v2929
      %v2931 = vsel %vm2860, %v2921, %v2930
      %v2933 = vshrl.u32 %v2280, 16
      %v2935 = vrot.slane %v2933, 1
      %v2936 = vshll.u32 %v2280, 16
      %v2938 = vrot.slane %v2936, 2
      %v2939 = vor.u32 %v2935, %v2938
      %v2940 = vsel %vm2860, %v2930, %v2939
      %v2942 = vshrl.u32 %v2281, 16
      %v2944 = vrot.slane %v2942, 1
      %v2945 = vshll.u32 %v2281, 16
      %v2947 = vrot.slane %v2945, 2
      %v2948 = vor.u32 %v2944, %v2947
      %v2949 = vsel %vm2860, %v2939, %v2948
      %v2951 = vshrl.u32 %v2282, 16
      %v2953 = vrot.slane %v2951, 1
      %v2954 = vshll.u32 %v2282, 16
      %v2956 = vrot.slane %v2954, 2
      %v2957 = vor.u32 %v2953, %v2956
      %v2958 = vsel %vm2860, %v2948, %v2957
      %v2960 = vshrl.u32 %v2283, 16
      %v2962 = vrot.slane %v2960, 1
      %v2963 = vshll.u32 %v2283, 16
      %v2965 = vrot.slane %v2963, 2
      %v2966 = vor.u32 %v2962, %v2965
      %v2967 = vsel %vm2860, %v2957, %v2966
      %v2969 = vshrl.u32 %v2284, 16
      %v2971 = vrot.slane %v2969, 1
      %v2972 = vshll.u32 %v2284, 16
      %v2974 = vrot.slane %v2972, 2
      %v2975 = vor.u32 %v2971, %v2974
      %v2976 = vsel %vm2860, %v2966, %v2975
      %v2978 = vshrl.u32 %v2285, 16
      %v2980 = vrot.slane %v2978, 1
      %v2981 = vshll.u32 %v2285, 16
      %v2983 = vrot.slane %v2981, 2
      %v2984 = vor.u32 %v2980, %v2983
      %v2985 = vsel %vm2860, %v2975, %v2984
      %v2987 = vshrl.u32 %v2286, 16
      %v2989 = vrot.slane %v2987, 1
      %v2990 = vshll.u32 %v2286, 16
      %v2992 = vrot.slane %v2990, 2
      %v2993 = vor.u32 %v2989, %v2992
      %v2994 = vsel %vm2860, %v2984, %v2993
      %v2996 = vshrl.u32 %v2287, 16
      %v2998 = vrot.slane %v2996, 1
      %v2999 = vshll.u32 %v2287, 16
      %v3001 = vrot.slane %v2999, 2
      %v3002 = vor.u32 %v2998, %v3001
      %v3003 = vsel %vm2860, %v2993, %v3002
      %v3005 = vshrl.u32 %v2288, 16
      %v3007 = vrot.slane %v3005, 1
      %v3008 = vshll.u32 %v2288, 16
      %v3010 = vrot.slane %v3008, 2
      %v3011 = vor.u32 %v3007, %v3010
      %v3012 = vsel %vm2860, %v3002, %v3011
      %v3014 = vshrl.u32 %v2289, 16
      %v3016 = vrot.slane %v3014, 1
      %v3017 = vshll.u32 %v2289, 16
      %v3019 = vrot.slane %v3017, 2
      %v3020 = vor.u32 %v3016, %v3019
      %v3021 = vsel %vm2860, %v3011, %v3020
      %v3023 = vshrl.u32 %v2290, 16
      %v3025 = vrot.slane %v3023, 1
      %v3026 = vshll.u32 %v2290, 16
      %v3028 = vrot.slane %v3026, 2
      %v3029 = vor.u32 %v3025, %v3028
      %v3030 = vsel %vm2860, %v3020, %v3029
      %v3032 = vshrl.u32 %v2291, 16
      %v3034 = vrot.slane %v3032, 1
      %v3035 = vshll.u32 %v2291, 16
      %v3037 = vrot.slane %v3035, 2
      %v3038 = vor.u32 %v3034, %v3037
      %v3039 = vsel %vm2860, %v3029, %v3038
      %v3041 = vshrl.u32 %v2292, 16
      %v3043 = vrot.slane %v3041, 1
      %v3044 = vshll.u32 %v2292, 16
      %v3046 = vrot.slane %v3044, 2
      %v3047 = vor.u32 %v3043, %v3046
      %v3048 = vsel %vm2860, %v3038, %v3047
      %v3050 = vshrl.u32 %v2293, 16
      %v3052 = vrot.slane %v3050, 1
      %v3053 = vshll.u32 %v2293, 16
      %v3055 = vrot.slane %v3053, 2
      %v3056 = vor.u32 %v3052, %v3055
      %v3057 = vsel %vm2860, %v3047, %v3056
      %v3059 = vshrl.u32 %v2294, 16
      %v3061 = vrot.slane %v3059, 1
      %v3062 = vshll.u32 %v2294, 16
      %v3064 = vrot.slane %v3062, 2
      %v3065 = vor.u32 %v3061, %v3064
      %v3066 = vsel %vm2860, %v3056, %v3065
      %v3068 = vshrl.u32 %v2295, 16
      %v3070 = vrot.slane %v3068, 1
      %v3071 = vshll.u32 %v2295, 16
      %v3073 = vrot.slane %v3071, 2
      %v3074 = vor.u32 %v3070, %v3073
      %v3075 = vsel %vm2860, %v3065, %v3074
      %v3077 = vshrl.u32 %v2296, 16
      %v3079 = vrot.slane %v3077, 1
      %v3080 = vshll.u32 %v2296, 16
      %v3082 = vrot.slane %v3080, 2
      %v3083 = vor.u32 %v3079, %v3082
      %v3084 = vsel %vm2860, %v3074, %v3083
      %v3086 = vshrl.u32 %v2297, 16
      %v3088 = vrot.slane %v3086, 1
      %v3089 = vshll.u32 %v2297, 16
      %v3091 = vrot.slane %v3089, 2
      %v3092 = vor.u32 %v3088, %v3091
      %v3093 = vsel %vm2860, %v3083, %v3092
      %v3095 = vshrl.u32 %v2298, 16
      %v3097 = vrot.slane %v3095, 1
      %v3098 = vshll.u32 %v2298, 16
      %v3100 = vrot.slane %v3098, 2
      %v3101 = vor.u32 %v3097, %v3100
      %v3102 = vsel %vm2860, %v3092, %v3101
      %v3104 = vshrl.u32 %v2299, 16
      %v3106 = vrot.slane %v3104, 1
      %v3107 = vshll.u32 %v2299, 16
      %v3109 = vrot.slane %v3107, 2
      %v3110 = vor.u32 %v3106, %v3109
      %v3111 = vsel %vm2860, %v3101, %v3110
      %v3113 = vshrl.u32 %v2300, 16
      %v3115 = vrot.slane %v3113, 1
      %v3116 = vshll.u32 %v2300, 16
      %v3118 = vrot.slane %v3116, 2
      %v3119 = vor.u32 %v3115, %v3118
      %v3120 = vsel %vm2860, %v3110, %v3119
      %v3122 = vshrl.u32 %v2301, 16
      %v3124 = vrot.slane %v3122, 1
      %v3125 = vshll.u32 %v2301, 16
      %v3127 = vrot.slane %v3125, 2
      %v3128 = vor.u32 %v3124, %v3127
      %v3129 = vsel %vm2860, %v3119, %v3128
      %v3131 = vshrl.u32 %v2302, 16
      %v3133 = vrot.slane %v3131, 1
      %v3134 = vshll.u32 %v2302, 16
      %v3136 = vrot.slane %v3134, 2
      %v3137 = vor.u32 %v3133, %v3136
      %v3138 = vsel %vm2860, %v3128, %v3137
      %v3140 = vshrl.u32 %v2303, 16
      %v3142 = vrot.slane %v3140, 1
      %v3143 = vshll.u32 %v2303, 16
      %v3145 = vrot.slane %v3143, 2
      %v3146 = vor.u32 %v3142, %v3145
      %v3147 = vsel %vm2860, %v3137, %v3146
      %v3149 = vshrl.u32 %v2304, 16
      %v3151 = vrot.slane %v3149, 1
      %v3152 = vshll.u32 %v2304, 16
      %v3154 = vrot.slane %v3152, 2
      %v3155 = vor.u32 %v3151, %v3154
      %v3156 = vsel %vm2860, %v3146, %v3155
      %v3158 = vshrl.u32 %v2305, 16
      %v3160 = vrot.slane %v3158, 1
      %v3161 = vshll.u32 %v2305, 16
      %v3163 = vrot.slane %v3161, 2
      %v3164 = vor.u32 %v3160, %v3163
      %v3165 = vsel %vm2860, %v3155, %v3164
      %v3167 = vshrl.u32 %v2859, 16
      %v3169 = vrot.slane %v3167, 1
      %v3170 = vshll.u32 %v2859, 16
      %v3172 = vrot.slane %v3170, 2
      %v3173 = vor.u32 %v3169, %v3172
      %v3174 = vsel %vm2860, %v3164, %v3173
      %v3176 = vsel %vm721, %v2877, 0
      %v3179 = vsel %vm721, %v2886, 0
      %v3182 = vsel %vm721, %v2895, 0
      %v3185 = vsel %vm721, %v2904, 0
      %v3188 = vsel %vm721, %v2913, 0
      %v3191 = vsel %vm721, %v2922, 0
      %v3194 = vsel %vm721, %v2931, 0
      %v3197 = vsel %vm721, %v2940, 0
      %v3200 = vsel %vm721, %v2949, 0
      %v3203 = vsel %vm721, %v2958, 0
      %v3206 = vsel %vm721, %v2967, 0
      %v3209 = vsel %vm721, %v2976, 0
      %v3212 = vsel %vm721, %v2985, 0
      %v3215 = vsel %vm721, %v2994, 0
      %v3218 = vsel %vm721, %v3003, 0
      %v3221 = vsel %vm721, %v3012, 0
      %v3224 = vsel %vm721, %v3021, 0
      %v3227 = vsel %vm721, %v3030, 0
      %v3230 = vsel %vm721, %v3039, 0
      %v3233 = vsel %vm721, %v3048, 0
      %v3236 = vsel %vm721, %v3057, 0
      %v3239 = vsel %vm721, %v3066, 0
      %v3242 = vsel %vm721, %v3075, 0
      %v3245 = vsel %vm721, %v3084, 0
      %v3248 = vsel %vm721, %v3093, 0
      %v3251 = vsel %vm721, %v3102, 0
      %v3254 = vsel %vm721, %v3111, 0
      %v3257 = vsel %vm721, %v3120, 0
      %v3260 = vsel %vm721, %v3129, 0
      %v3263 = vsel %vm721, %v3138, 0
      %v3266 = vsel %vm721, %v3147, 0
      %v3269 = vsel %vm721, %v3156, 0
      %v3272 = vsel %vm721, %v3165, 0
      %v3275 = vsel %vm721, %v3174, 0
      %v3278 = vsel %vm824, %v2856, 0
      %3280 = vmatprep.subr.bf16.mxu0 0
      %3281 = vmatpush1.bf16.msra.mxu0 %v3278
      %3282 = vmatprep.subr.bf16.mxu0 0
      %3283 = vmatpush1.bf16.msra.mxu0 0
      %3284 = vmatprep.subr.bf16.mxu0 0
      %3285 = vmatpush1.bf16.msra.mxu0 0
      %3286 = vmatprep.subr.bf16.mxu0 0
      %3287 = vmatpush1.bf16.msra.mxu0 0
      %3288 = vmatprep.subr.bf16.mxu0 0
      %3289 = vmatpush1.bf16.msra.mxu0 0
      %3290 = vmatprep.subr.bf16.mxu0 0
      %3291 = vmatpush1.bf16.msra.mxu0 0
      %3292 = vmatprep.subr.bf16.mxu0 0
      %3293 = vmatpush1.bf16.msra.mxu0 0
      %3294 = vmatprep.subr.bf16.mxu0 0
      %3295 = vmatpush1.bf16.msra.mxu0 0
      %3296 = vmatprep.subr.bf16.mxu0 0
      %3297 = vmatpush1.bf16.msra.mxu0 0
      %3298 = vmatprep.subr.bf16.mxu0 0
      %3299 = vmatpush1.bf16.msra.mxu0 0
      %3300 = vmatprep.subr.bf16.mxu0 0
      %3301 = vmatpush1.bf16.msra.mxu0 0
      %3302 = vmatprep.subr.bf16.mxu0 0
      %3303 = vmatpush1.bf16.msra.mxu0 0
      %3304 = vmatprep.subr.bf16.mxu0 0
      %3305 = vmatpush1.bf16.msra.mxu0 0
      %3306 = vmatprep.subr.bf16.mxu0 0
      %3307 = vmatpush1.bf16.msra.mxu0 0
      %3308 = vmatprep.subr.bf16.mxu0 0
      %3309 = vmatpush1.bf16.msra.mxu0 0
      %3310 = vmatprep.subr.bf16.mxu0 0
      %3311 = vmatpush1.bf16.msra.mxu0 0
      %3312 = vmatprep.mubr.bf16.mxu0 0
      %3313 = vmatmul.mubr.bf16.gmra.mrb[0].mxu0 %v3176
      %v3314 = vpop.f32.mrb[0].mxu0
      %v3315 = vadd.f32 0.0, %v3314
      %v3316 = vpop.f32.mrb[0].mxu0
      %v3317 = vpop.f32.mrb[0].mxu0
      %v3318 = vadd.f32 0.0, %v3317
      %v3319 = vpop.f32.mrb[0].mxu0
      %3320 = vmatprep.mubr.bf16.mxu0 0
      %3321 = vmatmul.mubr.bf16.gmra.mrb[0].mxu0 %v3179
      %v3322 = vpop.f32.mrb[0].mxu0
      %v3323 = vadd.f32 0.0, %v3322
      %v3324 = vpop.f32.mrb[0].mxu0
      %v3325 = vpop.f32.mrb[0].mxu0
      %v3326 = vadd.f32 0.0, %v3325
      %v3327 = vpop.f32.mrb[0].mxu0
      %3328 = vmatprep.mubr.bf16.mxu0 0
      %3329 = vmatmul.mubr.bf16.gmra.mrb[0].mxu0 %v3182
      %v3330 = vpop.f32.mrb[0].mxu0
      %v3331 = vadd.f32 0.0, %v3330
      %v3332 = vpop.f32.mrb[0].mxu0
      %v3333 = vpop.f32.mrb[0].mxu0
      %v3334 = vadd.f32 0.0, %v3333
      %v3335 = vpop.f32.mrb[0].mxu0
      %3336 = vmatprep.mubr.bf16.mxu0 0
      %3337 = vmatmul.mubr.bf16.gmra.mrb[0].mxu0 %v3185
      %v3338 = vpop.f32.mrb[0].mxu0
      %v3339 = vadd.f32 0.0, %v3338
      %v3340 = vpop.f32.mrb[0].mxu0
      %v3341 = vpop.f32.mrb[0].mxu0
      %v3342 = vadd.f32 0.0, %v3341
      %v3343 = vpop.f32.mrb[0].mxu0
      %3344 = vmatprep.mubr.bf16.mxu0 0
      %3345 = vmatmul.mubr.bf16.gmra.mrb[0].mxu0 %v3188
      %v3346 = vpop.f32.mrb[0].mxu0
      %v3347 = vadd.f32 0.0, %v3346
      %v3348 = vpop.f32.mrb[0].mxu0
      %v3349 = vpop.f32.mrb[0].mxu0
      %v3350 = vadd.f32 0.0, %v3349
      %v3351 = vpop.f32.mrb[0].mxu0
      %3352 = vmatprep.mubr.bf16.mxu0 0
      %3353 = vmatmul.mubr.bf16.gmra.mrb[0].mxu0 %v3191
      %v3354 = vpop.f32.mrb[0].mxu0
      %v3355 = vadd.f32 0.0, %v3354
      %v3356 = vpop.f32.mrb[0].mxu0
      %v3357 = vpop.f32.mrb[0].mxu0
      %v3358 = vadd.f32 0.0, %v3357
      %v3359 = vpop.f32.mrb[0].mxu0
      %3360 = vmatprep.mubr.bf16.mxu0 0
      %3361 = vmatmul.mubr.bf16.gmra.mrb[0].mxu0 %v3194
      %v3362 = vpop.f32.mrb[0].mxu0
      %v3363 = vadd.f32 0.0, %v3362
      %v3364 = vpop.f32.mrb[0].mxu0
      %v3365 = vpop.f32.mrb[0].mxu0
      %v3366 = vadd.f32 0.0, %v3365
      %v3367 = vpop.f32.mrb[0].mxu0
      %3368 = vmatprep.mubr.bf16.mxu0 0
      %3369 = vmatmul.mubr.bf16.gmra.mrb[0].mxu0 %v3197
      %v3370 = vpop.f32.mrb[0].mxu0
      %v3371 = vadd.f32 0.0, %v3370
      %v3372 = vpop.f32.mrb[0].mxu0
      %v3373 = vpop.f32.mrb[0].mxu0
      %v3374 = vadd.f32 0.0, %v3373
      %v3375 = vpop.f32.mrb[0].mxu0
      %3376 = vmatprep.mubr.bf16.mxu0 0
      %3377 = vmatmul.mubr.bf16.gmra.mrb[0].mxu0 %v3200
      %v3378 = vpop.f32.mrb[0].mxu0
      %v3379 = vadd.f32 0.0, %v3378
      %v3380 = vpop.f32.mrb[0].mxu0
      %v3381 = vpop.f32.mrb[0].mxu0
      %v3382 = vadd.f32 0.0, %v3381
      %v3383 = vpop.f32.mrb[0].mxu0
      %3384 = vmatprep.mubr.bf16.mxu0 0
      %3385 = vmatmul.mubr.bf16.gmra.mrb[0].mxu0 %v3203
      %v3386 = vpop.f32.mrb[0].mxu0
      %v3387 = vadd.f32 0.0, %v3386
      %v3388 = vpop.f32.mrb[0].mxu0
      %v3389 = vpop.f32.mrb[0].mxu0
      %v3390 = vadd.f32 0.0, %v3389
      %v3391 = vpop.f32.mrb[0].mxu0
      %3392 = vmatprep.mubr.bf16.mxu0 0
      %3393 = vmatmul.mubr.bf16.gmra.mrb[0].mxu0 %v3206
      %v3394 = vpop.f32.mrb[0].mxu0
      %v3395 = vadd.f32 0.0, %v3394
      %v3396 = vpop.f32.mrb[0].mxu0
      %v3397 = vpop.f32.mrb[0].mxu0
      %v3398 = vadd.f32 0.0, %v3397
      %v3399 = vpop.f32.mrb[0].mxu0
      %3400 = vmatprep.mubr.bf16.mxu0 0
      %3401 = vmatmul.mubr.bf16.gmra.mrb[0].mxu0 %v3209
      %v3402 = vpop.f32.mrb[0].mxu0
      %v3403 = vadd.f32 0.0, %v3402
      %v3404 = vpop.f32.mrb[0].mxu0
      %v3405 = vpop.f32.mrb[0].mxu0
      %v3406 = vadd.f32 0.0, %v3405
      %v3407 = vpop.f32.mrb[0].mxu0
      %3408 = vmatprep.mubr.bf16.mxu0 0
      %3409 = vmatmul.mubr.bf16.gmra.mrb[0].mxu0 %v3212
      %v3410 = vpop.f32.mrb[0].mxu0
      %v3411 = vadd.f32 0.0, %v3410
      %v3412 = vpop.f32.mrb[0].mxu0
      %v3413 = vpop.f32.mrb[0].mxu0
      %v3414 = vadd.f32 0.0, %v3413
      %v3415 = vpop.f32.mrb[0].mxu0
      %3416 = vmatprep.mubr.bf16.mxu0 0
      %3417 = vmatmul.mubr.bf16.gmra.mrb[0].mxu0 %v3215
      %v3418 = vpop.f32.mrb[0].mxu0
      %v3419 = vadd.f32 0.0, %v3418
      %v3420 = vpop.f32.mrb[0].mxu0
      %v3421 = vpop.f32.mrb[0].mxu0
      %v3422 = vadd.f32 0.0, %v3421
      %v3423 = vpop.f32.mrb[0].mxu0
      %3424 = vmatprep.mubr.bf16.mxu0 0
      %3425 = vmatmul.mubr.bf16.gmra.mrb[0].mxu0 %v3218
      %v3426 = vpop.f32.mrb[0].mxu0
      %v3427 = vadd.f32 0.0, %v3426
      %v3428 = vpop.f32.mrb[0].mxu0
      %v3429 = vpop.f32.mrb[0].mxu0
      %v3430 = vadd.f32 0.0, %v3429
      %v3431 = vpop.f32.mrb[0].mxu0
      %3432 = vmatprep.mubr.bf16.mxu0 0
      %3433 = vmatmul.mubr.bf16.gmra.mrb[0].mxu0 %v3221
      %v3434 = vpop.f32.mrb[0].mxu0
      %v3435 = vadd.f32 0.0, %v3434
      %v3436 = vpop.f32.mrb[0].mxu0
      %v3437 = vpop.f32.mrb[0].mxu0
      %v3438 = vadd.f32 0.0, %v3437
      %v3439 = vpop.f32.mrb[0].mxu0
      %3440 = vmatprep.mubr.bf16.mxu0 0
      %3441 = vmatmul.mubr.bf16.gmra.mrb[0].mxu0 %v3224
      %v3442 = vpop.f32.mrb[0].mxu0
      %v3443 = vadd.f32 0.0, %v3442
      %v3444 = vpop.f32.mrb[0].mxu0
      %v3445 = vpop.f32.mrb[0].mxu0
      %v3446 = vadd.f32 0.0, %v3445
      %v3447 = vpop.f32.mrb[0].mxu0
      %3448 = vmatprep.mubr.bf16.mxu0 0
      %3449 = vmatmul.mubr.bf16.gmra.mrb[0].mxu0 %v3227
      %v3450 = vpop.f32.mrb[0].mxu0
      %v3451 = vadd.f32 0.0, %v3450
      %v3452 = vpop.f32.mrb[0].mxu0
      %v3453 = vpop.f32.mrb[0].mxu0
      %v3454 = vadd.f32 0.0, %v3453
      %v3455 = vpop.f32.mrb[0].mxu0
      %3456 = vmatprep.mubr.bf16.mxu0 0
      %3457 = vmatmul.mubr.bf16.gmra.mrb[0].mxu0 %v3230
      %v3458 = vpop.f32.mrb[0].mxu0
      %v3459 = vadd.f32 0.0, %v3458
      %v3460 = vpop.f32.mrb[0].mxu0
      %v3461 = vpop.f32.mrb[0].mxu0
      %v3462 = vadd.f32 0.0, %v3461
      %v3463 = vpop.f32.mrb[0].mxu0
      %3464 = vmatprep.mubr.bf16.mxu0 0
      %3465 = vmatmul.mubr.bf16.gmra.mrb[0].mxu0 %v3233
      %v3466 = vpop.f32.mrb[0].mxu0
      %v3467 = vadd.f32 0.0, %v3466
      %v3468 = vpop.f32.mrb[0].mxu0
      %v3469 = vpop.f32.mrb[0].mxu0
      %v3470 = vadd.f32 0.0, %v3469
      %v3471 = vpop.f32.mrb[0].mxu0
      %3472 = vmatprep.mubr.bf16.mxu0 0
      %3473 = vmatmul.mubr.bf16.gmra.mrb[0].mxu0 %v3236
      %v3474 = vpop.f32.mrb[0].mxu0
      %v3475 = vadd.f32 0.0, %v3474
      %v3476 = vpop.f32.mrb[0].mxu0
      %v3477 = vpop.f32.mrb[0].mxu0
      %v3478 = vadd.f32 0.0, %v3477
      %v3479 = vpop.f32.mrb[0].mxu0
      %3480 = vmatprep.mubr.bf16.mxu0 0
      %3481 = vmatmul.mubr.bf16.gmra.mrb[0].mxu0 %v3239
      %v3482 = vpop.f32.mrb[0].mxu0
      %v3483 = vadd.f32 0.0, %v3482
      %v3484 = vpop.f32.mrb[0].mxu0
      %v3485 = vpop.f32.mrb[0].mxu0
      %v3486 = vadd.f32 0.0, %v3485
      %v3487 = vpop.f32.mrb[0].mxu0
      %3488 = vmatprep.mubr.bf16.mxu0 0
      %3489 = vmatmul.mubr.bf16.gmra.mrb[0].mxu0 %v3242
      %v3490 = vpop.f32.mrb[0].mxu0
      %v3491 = vadd.f32 0.0, %v3490
      %v3492 = vpop.f32.mrb[0].mxu0
      %v3493 = vpop.f32.mrb[0].mxu0
      %v3494 = vadd.f32 0.0, %v3493
      %v3495 = vpop.f32.mrb[0].mxu0
      %3496 = vmatprep.mubr.bf16.mxu0 0
      %3497 = vmatmul.mubr.bf16.gmra.mrb[0].mxu0 %v3245
      %v3498 = vpop.f32.mrb[0].mxu0
      %v3499 = vadd.f32 0.0, %v3498
      %v3500 = vpop.f32.mrb[0].mxu0
      %v3501 = vpop.f32.mrb[0].mxu0
      %v3502 = vadd.f32 0.0, %v3501
      %v3503 = vpop.f32.mrb[0].mxu0
      %3504 = vmatprep.mubr.bf16.mxu0 0
      %3505 = vmatmul.mubr.bf16.gmra.mrb[0].mxu0 %v3248
      %v3506 = vpop.f32.mrb[0].mxu0
      %v3507 = vadd.f32 0.0, %v3506
      %v3508 = vpop.f32.mrb[0].mxu0
      %v3509 = vpop.f32.mrb[0].mxu0
      %v3510 = vadd.f32 0.0, %v3509
      %v3511 = vpop.f32.mrb[0].mxu0
      %3512 = vmatprep.mubr.bf16.mxu0 0
      %3513 = vmatmul.mubr.bf16.gmra.mrb[0].mxu0 %v3251
      %v3514 = vpop.f32.mrb[0].mxu0
      %v3515 = vadd.f32 0.0, %v3514
      %v3516 = vpop.f32.mrb[0].mxu0
      %v3517 = vpop.f32.mrb[0].mxu0
      %v3518 = vadd.f32 0.0, %v3517
      %v3519 = vpop.f32.mrb[0].mxu0
      %3520 = vmatprep.mubr.bf16.mxu0 0
      %3521 = vmatmul.mubr.bf16.gmra.mrb[0].mxu0 %v3254
      %v3522 = vpop.f32.mrb[0].mxu0
      %v3523 = vadd.f32 0.0, %v3522
      %v3524 = vpop.f32.mrb[0].mxu0
      %v3525 = vpop.f32.mrb[0].mxu0
      %v3526 = vadd.f32 0.0, %v3525
      %v3527 = vpop.f32.mrb[0].mxu0
      %3528 = vmatprep.mubr.bf16.mxu0 0
      %3529 = vmatmul.mubr.bf16.gmra.mrb[0].mxu0 %v3257
      %v3530 = vpop.f32.mrb[0].mxu0
      %v3531 = vadd.f32 0.0, %v3530
      %v3532 = vpop.f32.mrb[0].mxu0
      %v3533 = vpop.f32.mrb[0].mxu0
      %v3534 = vadd.f32 0.0, %v3533
      %v3535 = vpop.f32.mrb[0].mxu0
      %3536 = vmatprep.mubr.bf16.mxu0 0
      %3537 = vmatmul.mubr.bf16.gmra.mrb[0].mxu0 %v3260
      %v3538 = vpop.f32.mrb[0].mxu0
      %v3539 = vadd.f32 0.0, %v3538
      %v3540 = vpop.f32.mrb[0].mxu0
      %v3541 = vpop.f32.mrb[0].mxu0
      %v3542 = vadd.f32 0.0, %v3541
      %v3543 = vpop.f32.mrb[0].mxu0
      %3544 = vmatprep.mubr.bf16.mxu0 0
      %3545 = vmatmul.mubr.bf16.gmra.mrb[0].mxu0 %v3263
      %v3546 = vpop.f32.mrb[0].mxu0
      %v3547 = vadd.f32 0.0, %v3546
      %v3548 = vpop.f32.mrb[0].mxu0
      %v3549 = vpop.f32.mrb[0].mxu0
      %v3550 = vadd.f32 0.0, %v3549
      %v3551 = vpop.f32.mrb[0].mxu0
      %3552 = vmatprep.mubr.bf16.mxu0 0
      %3553 = vmatmul.mubr.bf16.gmra.mrb[0].mxu0 %v3266
      %v3554 = vpop.f32.mrb[0].mxu0
      %v3555 = vadd.f32 0.0, %v3554
      %v3556 = vpop.f32.mrb[0].mxu0
      %v3557 = vpop.f32.mrb[0].mxu0
      %v3558 = vadd.f32 0.0, %v3557
      %v3559 = vpop.f32.mrb[0].mxu0
      %3560 = vmatprep.mubr.bf16.mxu0 0
      %3561 = vmatmul.mubr.bf16.gmra.mrb[0].mxu0 %v3269
      %v3562 = vpop.f32.mrb[0].mxu0
      %v3563 = vadd.f32 0.0, %v3562
      %v3564 = vpop.f32.mrb[0].mxu0
      %v3565 = vpop.f32.mrb[0].mxu0
      %v3566 = vadd.f32 0.0, %v3565
      %v3567 = vpop.f32.mrb[0].mxu0
      %3568 = vmatprep.mubr.bf16.mxu0 0
      %3569 = vmatmul.mubr.bf16.gmra.mrb[0].mxu0 %v3272
      %v3570 = vpop.f32.mrb[0].mxu0
      %v3571 = vadd.f32 0.0, %v3570
      %v3572 = vpop.f32.mrb[0].mxu0
      %v3573 = vpop.f32.mrb[0].mxu0
      %v3574 = vadd.f32 0.0, %v3573
      %v3575 = vpop.f32.mrb[0].mxu0
      %3576 = vmatprep.mubr.bf16.mxu0 0
      %3577 = vmatmul.mubr.bf16.gmra.mrb[0].mxu0 %v3275
      %v3578 = vpop.f32.mrb[0].mxu0
      %v3579 = vadd.f32 0.0, %v3578
      %v3580 = vpop.f32.mrb[0].mxu0
      %v3581 = vpop.f32.mrb[0].mxu0
      %v3582 = vadd.f32 0.0, %v3581
      %v3583 = vpop.f32.mrb[0].mxu0
      %3584 = vdwg.mxu0
      %v3585 = vadd.f32 %v2786, %v3315
      %v3586 = vadd.f32 %v2787, %v3318
      %v3587 = vadd.f32 %v2788, %v3323
      %v3588 = vadd.f32 %v2789, %v3326
      %v3589 = vadd.f32 %v2790, %v3331
      %v3590 = vadd.f32 %v2791, %v3334
      %v3591 = vadd.f32 %v2792, %v3339
      %v3592 = vadd.f32 %v2793, %v3342
      %v3593 = vadd.f32 %v2794, %v3347
      %v3594 = vadd.f32 %v2795, %v3350
      %v3595 = vadd.f32 %v2796, %v3355
      %v3596 = vadd.f32 %v2797, %v3358
      %v3597 = vadd.f32 %v2798, %v3363
      %v3598 = vadd.f32 %v2799, %v3366
      %v3599 = vadd.f32 %v2800, %v3371
      %v3600 = vadd.f32 %v2801, %v3374
      %v3601 = vadd.f32 %v2802, %v3379
      %v3602 = vadd.f32 %v2803, %v3382
      %v3603 = vadd.f32 %v2804, %v3387
      %v3604 = vadd.f32 %v2805, %v3390
      %v3605 = vadd.f32 %v2806, %v3395
      %v3606 = vadd.f32 %v2807, %v3398
      %v3607 = vadd.f32 %v2808, %v3403
      %v3608 = vadd.f32 %v2809, %v3406
      %v3609 = vadd.f32 %v2810, %v3411
      %v3610 = vadd.f32 %v2811, %v3414
      %v3611 = vadd.f32 %v2812, %v3419
      %v3612 = vadd.f32 %v2813, %v3422
      %v3613 = vadd.f32 %v2814, %v3427
      %v3614 = vadd.f32 %v2815, %v3430
      %v3615 = vadd.f32 %v2816, %v3435
      %v3616 = vadd.f32 %v2817, %v3438
      %v3617 = vadd.f32 %v2818, %v3443
      %v3618 = vadd.f32 %v2819, %v3446
      %v3619 = vadd.f32 %v2820, %v3451
      %v3620 = vadd.f32 %v2821, %v3454
      %v3621 = vadd.f32 %v2822, %v3459
      %v3622 = vadd.f32 %v2823, %v3462
      %v3623 = vadd.f32 %v2824, %v3467
      %v3624 = vadd.f32 %v2825, %v3470
      %v3625 = vadd.f32 %v2826, %v3475
      %v3626 = vadd.f32 %v2827, %v3478
      %v3627 = vadd.f32 %v2828, %v3483
      %v3628 = vadd.f32 %v2829, %v3486
      %v3629 = vadd.f32 %v2830, %v3491
      %v3630 = vadd.f32 %v2831, %v3494
      %v3631 = vadd.f32 %v2832, %v3499
      %v3632 = vadd.f32 %v2833, %v3502
      %v3633 = vadd.f32 %v2834, %v3507
      %v3634 = vadd.f32 %v2835, %v3510
      %v3635 = vadd.f32 %v2836, %v3515
      %v3636 = vadd.f32 %v2837, %v3518
      %v3637 = vadd.f32 %v2838, %v3523
      %v3638 = vadd.f32 %v2839, %v3526
      %v3639 = vadd.f32 %v2840, %v3531
      %v3640 = vadd.f32 %v2841, %v3534
      %v3641 = vadd.f32 %v2842, %v3539
      %v3642 = vadd.f32 %v2843, %v3542
      %v3643 = vadd.f32 %v2844, %v3547
      %v3644 = vadd.f32 %v2845, %v3550
      %v3645 = vadd.f32 %v2846, %v3555
      %v3646 = vadd.f32 %v2847, %v3558
      %v3647 = vadd.f32 %v2848, %v3563
      %v3648 = vadd.f32 %v2849, %v3566
      %v3649 = vadd.f32 %v2850, %v3571
      %v3650 = vadd.f32 %v2851, %v3574
      %v3651 = vadd.f32 %v2852, %v3579
      %v3652 = vadd.f32 %v2853, %v3582
      %v3653 = vld [vmem:[%s192 + $0x10] sm:$0xc]
      %s3654 = scalar_lea.vmem %s1, 20
      %v3655 = vld [vmem:[%s3654] sm:$0xf]
      %v3657 = vunpack.c.l.b16 %v3653
      %v3658 = vpack.c.b16 %v2204, %v3657
      %vm3659 = vcmask 1045504
      %v3660 = vrot.slane %v3658, 2
      %v3661 = vrot.slane %v2273, 2
      %v3662 = vsel %vm3659, %v3660, %v3661
      %v3663 = vrot.slane %v2274, 2
      %v3664 = vsel %vm3659, %v3661, %v3663
      %v3665 = vrot.slane %v2275, 2
      %v3666 = vsel %vm3659, %v3663, %v3665
      %v3667 = vrot.slane %v2276, 2
      %v3668 = vsel %vm3659, %v3665, %v3667
      %v3669 = vrot.slane %v2277, 2
      %v3670 = vsel %vm3659, %v3667, %v3669
      %v3671 = vrot.slane %v2278, 2
      %v3672 = vsel %vm3659, %v3669, %v3671
      %v3673 = vrot.slane %v2279, 2
      %v3674 = vsel %vm3659, %v3671, %v3673
      %v3675 = vrot.slane %v2280, 2
      %v3676 = vsel %vm3659, %v3673, %v3675
      %v3677 = vrot.slane %v2281, 2
      %v3678 = vsel %vm3659, %v3675, %v3677
      %v3679 = vrot.slane %v2282, 2
      %v3680 = vsel %vm3659, %v3677, %v3679
      %v3681 = vrot.slane %v2283, 2
      %v3682 = vsel %vm3659, %v3679, %v3681
      %v3683 = vrot.slane %v2284, 2
      %v3684 = vsel %vm3659, %v3681, %v3683
      %v3685 = vrot.slane %v2285, 2
      %v3686 = vsel %vm3659, %v3683, %v3685
      %v3687 = vrot.slane %v2286, 2
      %v3688 = vsel %vm3659, %v3685, %v3687
      %v3689 = vrot.slane %v2287, 2
      %v3690 = vsel %vm3659, %v3687, %v3689
      %v3691 = vrot.slane %v2288, 2
      %v3692 = vsel %vm3659, %v3689, %v3691
      %v3693 = vrot.slane %v2289, 2
      %v3694 = vsel %vm3659, %v3691, %v3693
      %v3695 = vrot.slane %v2290, 2
      %v3696 = vsel %vm3659, %v3693, %v3695
      %v3697 = vrot.slane %v2291, 2
      %v3698 = vsel %vm3659, %v3695, %v3697
      %v3699 = vrot.slane %v2292, 2
      %v3700 = vsel %vm3659, %v3697, %v3699
      %v3701 = vrot.slane %v2293, 2
      %v3702 = vsel %vm3659, %v3699, %v3701
      %v3703 = vrot.slane %v2294, 2
      %v3704 = vsel %vm3659, %v3701, %v3703
      %v3705 = vrot.slane %v2295, 2
      %v3706 = vsel %vm3659, %v3703, %v3705
      %v3707 = vrot.slane %v2296, 2
      %v3708 = vsel %vm3659, %v3705, %v3707
      %v3709 = vrot.slane %v2297, 2
      %v3710 = vsel %vm3659, %v3707, %v3709
      %v3711 = vrot.slane %v2298, 2
      %v3712 = vsel %vm3659, %v3709, %v3711
      %v3713 = vrot.slane %v2299, 2
      %v3714 = vsel %vm3659, %v3711, %v3713
      %v3715 = vrot.slane %v2300, 2
      %v3716 = vsel %vm3659, %v3713, %v3715
      %v3717 = vrot.slane %v2301, 2
      %v3718 = vsel %vm3659, %v3715, %v3717
      %v3719 = vrot.slane %v2302, 2
      %v3720 = vsel %vm3659, %v3717, %v3719
      %v3721 = vrot.slane %v2303, 2
      %v3722 = vsel %vm3659, %v3719, %v3721
      %v3723 = vrot.slane %v2304, 2
      %v3724 = vsel %vm3659, %v3721, %v3723
      %v3725 = vrot.slane %v2305, 2
      %v3726 = vsel %vm3659, %v3723, %v3725
      %v3727 = vrot.slane %v2859, 2
      %v3728 = vsel %vm3659, %v3725, %v3727
      %v3730 = vsel %vm721, %v3662, 0
      %v3733 = vsel %vm721, %v3664, 0
      %v3736 = vsel %vm721, %v3666, 0
      %v3739 = vsel %vm721, %v3668, 0
      %v3742 = vsel %vm721, %v3670, 0
      %v3745 = vsel %vm721, %v3672, 0
      %v3748 = vsel %vm721, %v3674, 0
      %v3751 = vsel %vm721, %v3676, 0
      %v3754 = vsel %vm721, %v3678, 0
      %v3757 = vsel %vm721, %v3680, 0
      %v3760 = vsel %vm721, %v3682, 0
      %v3763 = vsel %vm721, %v3684, 0
      %v3766 = vsel %vm721, %v3686, 0
      %v3769 = vsel %vm721, %v3688, 0
      %v3772 = vsel %vm721, %v3690, 0
      %v3775 = vsel %vm721, %v3692, 0
      %v3778 = vsel %vm721, %v3694, 0
      %v3781 = vsel %vm721, %v3696, 0
      %v3784 = vsel %vm721, %v3698, 0
      %v3787 = vsel %vm721, %v3700, 0
      %v3790 = vsel %vm721, %v3702, 0
      %v3793 = vsel %vm721, %v3704, 0
      %v3796 = vsel %vm721, %v3706, 0
      %v3799 = vsel %vm721, %v3708, 0
      %v3802 = vsel %vm721, %v3710, 0
      %v3805 = vsel %vm721, %v3712, 0
      %v3808 = vsel %vm721, %v3714, 0
      %v3811 = vsel %vm721, %v3716, 0
      %v3814 = vsel %vm721, %v3718, 0
      %v3817 = vsel %vm721, %v3720, 0
      %v3820 = vsel %vm721, %v3722, 0
      %v3823 = vsel %vm721, %v3724, 0
      %v3826 = vsel %vm721, %v3726, 0
      %v3829 = vsel %vm721, %v3728, 0
      %v3832 = vsel %vm824, %v3655, 0
      %3834 = vmatprep.subr.bf16.mxu0 0
      %3835 = vmatpush1.bf16.msra.mxu0 %v3832
      %3836 = vmatprep.subr.bf16.mxu0 0
      %3837 = vmatpush1.bf16.msra.mxu0 0
      %3838 = vmatprep.subr.bf16.mxu0 0
      %3839 = vmatpush1.bf16.msra.mxu0 0
      %3840 = vmatprep.subr.bf16.mxu0 0
      %3841 = vmatpush1.bf16.msra.mxu0 0
      %3842 = vmatprep.subr.bf16.mxu0 0
      %3843 = vmatpush1.bf16.msra.mxu0 0
      %3844 = vmatprep.subr.bf16.mxu0 0
      %3845 = vmatpush1.bf16.msra.mxu0 0
      %3846 = vmatprep.subr.bf16.mxu0 0
      %3847 = vmatpush1.bf16.msra.mxu0 0
      %3848 = vmatprep.subr.bf16.mxu0 0
      %3849 = vmatpush1.bf16.msra.mxu0 0
      %3850 = vmatprep.subr.bf16.mxu0 0
      %3851 = vmatpush1.bf16.msra.mxu0 0
      %3852 = vmatprep.subr.bf16.mxu0 0
      %3853 = vmatpush1.bf16.msra.mxu0 0
      %3854 = vmatprep.subr.bf16.mxu0 0
      %3855 = vmatpush1.bf16.msra.mxu0 0
      %3856 = vmatprep.subr.bf16.mxu0 0
      %3857 = vmatpush1.bf16.msra.mxu0 0
      %3858 = vmatprep.subr.bf16.mxu0 0
      %3859 = vmatpush1.bf16.msra.mxu0 0
      %3860 = vmatprep.subr.bf16.mxu0 0
      %3861 = vmatpush1.bf16.msra.mxu0 0
      %3862 = vmatprep.subr.bf16.mxu0 0
      %3863 = vmatpush1.bf16.msra.mxu0 0
      %3864 = vmatprep.subr.bf16.mxu0 0
      %3865 = vmatpush1.bf16.msra.mxu0 0
      %3866 = vmatprep.mubr.bf16.mxu0 0
      %3867 = vmatmul.mubr.bf16.gmra.mrb[0].mxu0 %v3730
      %v3868 = vpop.f32.mrb[0].mxu0
      %v3869 = vadd.f32 0.0, %v3868
      %v3870 = vpop.f32.mrb[0].mxu0
      %v3871 = vpop.f32.mrb[0].mxu0
      %v3872 = vadd.f32 0.0, %v3871
      %v3873 = vpop.f32.mrb[0].mxu0
      %3874 = vmatprep.mubr.bf16.mxu0 0
      %3875 = vmatmul.mubr.bf16.gmra.mrb[0].mxu0 %v3733
      %v3876 = vpop.f32.mrb[0].mxu0
      %v3877 = vadd.f32 0.0, %v3876
      %v3878 = vpop.f32.mrb[0].mxu0
      %v3879 = vpop.f32.mrb[0].mxu0
      %v3880 = vadd.f32 0.0, %v3879
      %v3881 = vpop.f32.mrb[0].mxu0
      %3882 = vmatprep.mubr.bf16.mxu0 0
      %3883 = vmatmul.mubr.bf16.gmra.mrb[0].mxu0 %v3736
      %v3884 = vpop.f32.mrb[0].mxu0
      %v3885 = vadd.f32 0.0, %v3884
      %v3886 = vpop.f32.mrb[0].mxu0
      %v3887 = vpop.f32.mrb[0].mxu0
      %v3888 = vadd.f32 0.0, %v3887
      %v3889 = vpop.f32.mrb[0].mxu0
      %3890 = vmatprep.mubr.bf16.mxu0 0
      %3891 = vmatmul.mubr.bf16.gmra.mrb[0].mxu0 %v3739
      %v3892 = vpop.f32.mrb[0].mxu0
      %v3893 = vadd.f32 0.0, %v3892
      %v3894 = vpop.f32.mrb[0].mxu0
      %v3895 = vpop.f32.mrb[0].mxu0
      %v3896 = vadd.f32 0.0, %v3895
      %v3897 = vpop.f32.mrb[0].mxu0
      %3898 = vmatprep.mubr.bf16.mxu0 0
      %3899 = vmatmul.mubr.bf16.gmra.mrb[0].mxu0 %v3742
      %v3900 = vpop.f32.mrb[0].mxu0
      %v3901 = vadd.f32 0.0, %v3900
      %v3902 = vpop.f32.mrb[0].mxu0
      %v3903 = vpop.f32.mrb[0].mxu0
      %v3904 = vadd.f32 0.0, %v3903
      %v3905 = vpop.f32.mrb[0].mxu0
      %3906 = vmatprep.mubr.bf16.mxu0 0
      %3907 = vmatmul.mubr.bf16.gmra.mrb[0].mxu0 %v3745
      %v3908 = vpop.f32.mrb[0].mxu0
      %v3909 = vadd.f32 0.0, %v3908
      %v3910 = vpop.f32.mrb[0].mxu0
      %v3911 = vpop.f32.mrb[0].mxu0
      %v3912 = vadd.f32 0.0, %v3911
      %v3913 = vpop.f32.mrb[0].mxu0
      %3914 = vmatprep.mubr.bf16.mxu0 0
      %3915 = vmatmul.mubr.bf16.gmra.mrb[0].mxu0 %v3748
      %v3916 = vpop.f32.mrb[0].mxu0
      %v3917 = vadd.f32 0.0, %v3916
      %v3918 = vpop.f32.mrb[0].mxu0
      %v3919 = vpop.f32.mrb[0].mxu0
      %v3920 = vadd.f32 0.0, %v3919
      %v3921 = vpop.f32.mrb[0].mxu0
      %3922 = vmatprep.mubr.bf16.mxu0 0
      %3923 = vmatmul.mubr.bf16.gmra.mrb[0].mxu0 %v3751
      %v3924 = vpop.f32.mrb[0].mxu0
      %v3925 = vadd.f32 0.0, %v3924
      %v3926 = vpop.f32.mrb[0].mxu0
      %v3927 = vpop.f32.mrb[0].mxu0
      %v3928 = vadd.f32 0.0, %v3927
      %v3929 = vpop.f32.mrb[0].mxu0
      %3930 = vmatprep.mubr.bf16.mxu0 0
      %3931 = vmatmul.mubr.bf16.gmra.mrb[0].mxu0 %v3754
      %v3932 = vpop.f32.mrb[0].mxu0
      %v3933 = vadd.f32 0.0, %v3932
      %v3934 = vpop.f32.mrb[0].mxu0
      %v3935 = vpop.f32.mrb[0].mxu0
      %v3936 = vadd.f32 0.0, %v3935
      %v3937 = vpop.f32.mrb[0].mxu0
      %3938 = vmatprep.mubr.bf16.mxu0 0
      %3939 = vmatmul.mubr.bf16.gmra.mrb[0].mxu0 %v3757
      %v3940 = vpop.f32.mrb[0].mxu0
      %v3941 = vadd.f32 0.0, %v3940
      %v3942 = vpop.f32.mrb[0].mxu0
      %v3943 = vpop.f32.mrb[0].mxu0
      %v3944 = vadd.f32 0.0, %v3943
      %v3945 = vpop.f32.mrb[0].mxu0
      %3946 = vmatprep.mubr.bf16.mxu0 0
      %3947 = vmatmul.mubr.bf16.gmra.mrb[0].mxu0 %v3760
      %v3948 = vpop.f32.mrb[0].mxu0
      %v3949 = vadd.f32 0.0, %v3948
      %v3950 = vpop.f32.mrb[0].mxu0
      %v3951 = vpop.f32.mrb[0].mxu0
      %v3952 = vadd.f32 0.0, %v3951
      %v3953 = vpop.f32.mrb[0].mxu0
      %3954 = vmatprep.mubr.bf16.mxu0 0
      %3955 = vmatmul.mubr.bf16.gmra.mrb[0].mxu0 %v3763
      %v3956 = vpop.f32.mrb[0].mxu0
      %v3957 = vadd.f32 0.0, %v3956
      %v3958 = vpop.f32.mrb[0].mxu0
      %v3959 = vpop.f32.mrb[0].mxu0
      %v3960 = vadd.f32 0.0, %v3959
      %v3961 = vpop.f32.mrb[0].mxu0
      %3962 = vmatprep.mubr.bf16.mxu0 0
      %3963 = vmatmul.mubr.bf16.gmra.mrb[0].mxu0 %v3766
      %v3964 = vpop.f32.mrb[0].mxu0
      %v3965 = vadd.f32 0.0, %v3964
      %v3966 = vpop.f32.mrb[0].mxu0
      %v3967 = vpop.f32.mrb[0].mxu0
      %v3968 = vadd.f32 0.0, %v3967
      %v3969 = vpop.f32.mrb[0].mxu0
      %3970 = vmatprep.mubr.bf16.mxu0 0
      %3971 = vmatmul.mubr.bf16.gmra.mrb[0].mxu0 %v3769
      %v3972 = vpop.f32.mrb[0].mxu0
      %v3973 = vadd.f32 0.0, %v3972
      %v3974 = vpop.f32.mrb[0].mxu0
      %v3975 = vpop.f32.mrb[0].mxu0
      %v3976 = vadd.f32 0.0, %v3975
      %v3977 = vpop.f32.mrb[0].mxu0
      %3978 = vmatprep.mubr.bf16.mxu0 0
      %3979 = vmatmul.mubr.bf16.gmra.mrb[0].mxu0 %v3772
      %v3980 = vpop.f32.mrb[0].mxu0
      %v3981 = vadd.f32 0.0, %v3980
      %v3982 = vpop.f32.mrb[0].mxu0
      %v3983 = vpop.f32.mrb[0].mxu0
      %v3984 = vadd.f32 0.0, %v3983
      %v3985 = vpop.f32.mrb[0].mxu0
      %3986 = vmatprep.mubr.bf16.mxu0 0
      %3987 = vmatmul.mubr.bf16.gmra.mrb[0].mxu0 %v3775
      %v3988 = vpop.f32.mrb[0].mxu0
      %v3989 = vadd.f32 0.0, %v3988
      %v3990 = vpop.f32.mrb[0].mxu0
      %v3991 = vpop.f32.mrb[0].mxu0
      %v3992 = vadd.f32 0.0, %v3991
      %v3993 = vpop.f32.mrb[0].mxu0
      %3994 = vmatprep.mubr.bf16.mxu0 0
      %3995 = vmatmul.mubr.bf16.gmra.mrb[0].mxu0 %v3778
      %v3996 = vpop.f32.mrb[0].mxu0
      %v3997 = vadd.f32 0.0, %v3996
      %v3998 = vpop.f32.mrb[0].mxu0
      %v3999 = vpop.f32.mrb[0].mxu0
      %v4000 = vadd.f32 0.0, %v3999
      %v4001 = vpop.f32.mrb[0].mxu0
      %4002 = vmatprep.mubr.bf16.mxu0 0
      %4003 = vmatmul.mubr.bf16.gmra.mrb[0].mxu0 %v3781
      %v4004 = vpop.f32.mrb[0].mxu0
      %v4005 = vadd.f32 0.0, %v4004
      %v4006 = vpop.f32.mrb[0].mxu0
      %v4007 = vpop.f32.mrb[0].mxu0
      %v4008 = vadd.f32 0.0, %v4007
      %v4009 = vpop.f32.mrb[0].mxu0
      %4010 = vmatprep.mubr.bf16.mxu0 0
      %4011 = vmatmul.mubr.bf16.gmra.mrb[0].mxu0 %v3784
      %v4012 = vpop.f32.mrb[0].mxu0
      %v4013 = vadd.f32 0.0, %v4012
      %v4014 = vpop.f32.mrb[0].mxu0
      %v4015 = vpop.f32.mrb[0].mxu0
      %v4016 = vadd.f32 0.0, %v4015
      %v4017 = vpop.f32.mrb[0].mxu0
      %4018 = vmatprep.mubr.bf16.mxu0 0
      %4019 = vmatmul.mubr.bf16.gmra.mrb[0].mxu0 %v3787
      %v4020 = vpop.f32.mrb[0].mxu0
      %v4021 = vadd.f32 0.0, %v4020
      %v4022 = vpop.f32.mrb[0].mxu0
      %v4023 = vpop.f32.mrb[0].mxu0
      %v4024 = vadd.f32 0.0, %v4023
      %v4025 = vpop.f32.mrb[0].mxu0
      %4026 = vmatprep.mubr.bf16.mxu0 0
      %4027 = vmatmul.mubr.bf16.gmra.mrb[0].mxu0 %v3790
      %v4028 = vpop.f32.mrb[0].mxu0
      %v4029 = vadd.f32 0.0, %v4028
      %v4030 = vpop.f32.mrb[0].mxu0
      %v4031 = vpop.f32.mrb[0].mxu0
      %v4032 = vadd.f32 0.0, %v4031
      %v4033 = vpop.f32.mrb[0].mxu0
      %4034 = vmatprep.mubr.bf16.mxu0 0
      %4035 = vmatmul.mubr.bf16.gmra.mrb[0].mxu0 %v3793
      %v4036 = vpop.f32.mrb[0].mxu0
      %v4037 = vadd.f32 0.0, %v4036
      %v4038 = vpop.f32.mrb[0].mxu0
      %v4039 = vpop.f32.mrb[0].mxu0
      %v4040 = vadd.f32 0.0, %v4039
      %v4041 = vpop.f32.mrb[0].mxu0
      %4042 = vmatprep.mubr.bf16.mxu0 0
      %4043 = vmatmul.mubr.bf16.gmra.mrb[0].mxu0 %v3796
      %v4044 = vpop.f32.mrb[0].mxu0
      %v4045 = vadd.f32 0.0, %v4044
      %v4046 = vpop.f32.mrb[0].mxu0
      %v4047 = vpop.f32.mrb[0].mxu0
      %v4048 = vadd.f32 0.0, %v4047
      %v4049 = vpop.f32.mrb[0].mxu0
      %4050 = vmatprep.mubr.bf16.mxu0 0
      %4051 = vmatmul.mubr.bf16.gmra.mrb[0].mxu0 %v3799
      %v4052 = vpop.f32.mrb[0].mxu0
      %v4053 = vadd.f32 0.0, %v4052
      %v4054 = vpop.f32.mrb[0].mxu0
      %v4055 = vpop.f32.mrb[0].mxu0
      %v4056 = vadd.f32 0.0, %v4055
      %v4057 = vpop.f32.mrb[0].mxu0
      %4058 = vmatprep.mubr.bf16.mxu0 0
      %4059 = vmatmul.mubr.bf16.gmra.mrb[0].mxu0 %v3802
      %v4060 = vpop.f32.mrb[0].mxu0
      %v4061 = vadd.f32 0.0, %v4060
      %v4062 = vpop.f32.mrb[0].mxu0
      %v4063 = vpop.f32.mrb[0].mxu0
      %v4064 = vadd.f32 0.0, %v4063
      %v4065 = vpop.f32.mrb[0].mxu0
      %4066 = vmatprep.mubr.bf16.mxu0 0
      %4067 = vmatmul.mubr.bf16.gmra.mrb[0].mxu0 %v3805
      %v4068 = vpop.f32.mrb[0].mxu0
      %v4069 = vadd.f32 0.0, %v4068
      %v4070 = vpop.f32.mrb[0].mxu0
      %v4071 = vpop.f32.mrb[0].mxu0
      %v4072 = vadd.f32 0.0, %v4071
      %v4073 = vpop.f32.mrb[0].mxu0
      %4074 = vmatprep.mubr.bf16.mxu0 0
      %4075 = vmatmul.mubr.bf16.gmra.mrb[0].mxu0 %v3808
      %v4076 = vpop.f32.mrb[0].mxu0
      %v4077 = vadd.f32 0.0, %v4076
      %v4078 = vpop.f32.mrb[0].mxu0
      %v4079 = vpop.f32.mrb[0].mxu0
      %v4080 = vadd.f32 0.0, %v4079
      %v4081 = vpop.f32.mrb[0].mxu0
      %4082 = vmatprep.mubr.bf16.mxu0 0
      %4083 = vmatmul.mubr.bf16.gmra.mrb[0].mxu0 %v3811
      %v4084 = vpop.f32.mrb[0].mxu0
      %v4085 = vadd.f32 0.0, %v4084
      %v4086 = vpop.f32.mrb[0].mxu0
      %v4087 = vpop.f32.mrb[0].mxu0
      %v4088 = vadd.f32 0.0, %v4087
      %v4089 = vpop.f32.mrb[0].mxu0
      %4090 = vmatprep.mubr.bf16.mxu0 0
      %4091 = vmatmul.mubr.bf16.gmra.mrb[0].mxu0 %v3814
      %v4092 = vpop.f32.mrb[0].mxu0
      %v4093 = vadd.f32 0.0, %v4092
      %v4094 = vpop.f32.mrb[0].mxu0
      %v4095 = vpop.f32.mrb[0].mxu0
      %v4096 = vadd.f32 0.0, %v4095
      %v4097 = vpop.f32.mrb[0].mxu0
      %4098 = vmatprep.mubr.bf16.mxu0 0
      %4099 = vmatmul.mubr.bf16.gmra.mrb[0].mxu0 %v3817
      %v4100 = vpop.f32.mrb[0].mxu0
      %v4101 = vadd.f32 0.0, %v4100
      %v4102 = vpop.f32.mrb[0].mxu0
      %v4103 = vpop.f32.mrb[0].mxu0
      %v4104 = vadd.f32 0.0, %v4103
      %v4105 = vpop.f32.mrb[0].mxu0
      %4106 = vmatprep.mubr.bf16.mxu0 0
      %4107 = vmatmul.mubr.bf16.gmra.mrb[0].mxu0 %v3820
      %v4108 = vpop.f32.mrb[0].mxu0
      %v4109 = vadd.f32 0.0, %v4108
      %v4110 = vpop.f32.mrb[0].mxu0
      %v4111 = vpop.f32.mrb[0].mxu0
      %v4112 = vadd.f32 0.0, %v4111
      %v4113 = vpop.f32.mrb[0].mxu0
      %4114 = vmatprep.mubr.bf16.mxu0 0
      %4115 = vmatmul.mubr.bf16.gmra.mrb[0].mxu0 %v3823
      %v4116 = vpop.f32.mrb[0].mxu0
      %v4117 = vadd.f32 0.0, %v4116
      %v4118 = vpop.f32.mrb[0].mxu0
      %v4119 = vpop.f32.mrb[0].mxu0
      %v4120 = vadd.f32 0.0, %v4119
      %v4121 = vpop.f32.mrb[0].mxu0
      %4122 = vmatprep.mubr.bf16.mxu0 0
      %4123 = vmatmul.mubr.bf16.gmra.mrb[0].mxu0 %v3826
      %v4124 = vpop.f32.mrb[0].mxu0
      %v4125 = vadd.f32 0.0, %v4124
      %v4126 = vpop.f32.mrb[0].mxu0
      %v4127 = vpop.f32.mrb[0].mxu0
      %v4128 = vadd.f32 0.0, %v4127
      %v4129 = vpop.f32.mrb[0].mxu0
      %4130 = vmatprep.mubr.bf16.mxu0 0
      %4131 = vmatmul.mubr.bf16.gmra.mrb[0].mxu0 %v3829
      %v4132 = vpop.f32.mrb[0].mxu0
      %v4133 = vadd.f32 0.0, %v4132
      %v4134 = vpop.f32.mrb[0].mxu0
      %v4135 = vpop.f32.mrb[0].mxu0
      %v4136 = vadd.f32 0.0, %v4135
      %v4137 = vpop.f32.mrb[0].mxu0
      %4138 = vdwg.mxu0
      %v4139 = vadd.f32 %v3585, %v3869
      %v4140 = vadd.f32 %v3586, %v3872
      %v4141 = vadd.f32 %v3587, %v3877
      %v4142 = vadd.f32 %v3588, %v3880
      %v4143 = vadd.f32 %v3589, %v3885
      %v4144 = vadd.f32 %v3590, %v3888
      %v4145 = vadd.f32 %v3591, %v3893
      %v4146 = vadd.f32 %v3592, %v3896
      %v4147 = vadd.f32 %v3593, %v3901
      %v4148 = vadd.f32 %v3594, %v3904
      %v4149 = vadd.f32 %v3595, %v3909
      %v4150 = vadd.f32 %v3596, %v3912
      %v4151 = vadd.f32 %v3597, %v3917
      %v4152 = vadd.f32 %v3598, %v3920
      %v4153 = vadd.f32 %v3599, %v3925
      %v4154 = vadd.f32 %v3600, %v3928
      %v4155 = vadd.f32 %v3601, %v3933
      %v4156 = vadd.f32 %v3602, %v3936
      %v4157 = vadd.f32 %v3603, %v3941
      %v4158 = vadd.f32 %v3604, %v3944
      %v4159 = vadd.f32 %v3605, %v3949
      %v4160 = vadd.f32 %v3606, %v3952
      %v4161 = vadd.f32 %v3607, %v3957
      %v4162 = vadd.f32 %v3608, %v3960
      %v4163 = vadd.f32 %v3609, %v3965
      %v4164 = vadd.f32 %v3610, %v3968
      %v4165 = vadd.f32 %v3611, %v3973
      %v4166 = vadd.f32 %v3612, %v3976
      %v4167 = vadd.f32 %v3613, %v3981
      %v4168 = vadd.f32 %v3614, %v3984
      %v4169 = vadd.f32 %v3615, %v3989
      %v4170 = vadd.f32 %v3616, %v3992
      %v4171 = vadd.f32 %v3617, %v3997
      %v4172 = vadd.f32 %v3618, %v4000
      %v4173 = vadd.f32 %v3619, %v4005
      %v4174 = vadd.f32 %v3620, %v4008
      %v4175 = vadd.f32 %v3621, %v4013
      %v4176 = vadd.f32 %v3622, %v4016
      %v4177 = vadd.f32 %v3623, %v4021
      %v4178 = vadd.f32 %v3624, %v4024
      %v4179 = vadd.f32 %v3625, %v4029
      %v4180 = vadd.f32 %v3626, %v4032
      %v4181 = vadd.f32 %v3627, %v4037
      %v4182 = vadd.f32 %v3628, %v4040
      %v4183 = vadd.f32 %v3629, %v4045
      %v4184 = vadd.f32 %v3630, %v4048
      %v4185 = vadd.f32 %v3631, %v4053
      %v4186 = vadd.f32 %v3632, %v4056
      %v4187 = vadd.f32 %v3633, %v4061
      %v4188 = vadd.f32 %v3634, %v4064
      %v4189 = vadd.f32 %v3635, %v4069
      %v4190 = vadd.f32 %v3636, %v4072
      %v4191 = vadd.f32 %v3637, %v4077
      %v4192 = vadd.f32 %v3638, %v4080
      %v4193 = vadd.f32 %v3639, %v4085
      %v4194 = vadd.f32 %v3640, %v4088
      %v4195 = vadd.f32 %v3641, %v4093
      %v4196 = vadd.f32 %v3642, %v4096
      %v4197 = vadd.f32 %v3643, %v4101
      %v4198 = vadd.f32 %v3644, %v4104
      %v4199 = vadd.f32 %v3645, %v4109
      %v4200 = vadd.f32 %v3646, %v4112
      %v4201 = vadd.f32 %v3647, %v4117
      %v4202 = vadd.f32 %v3648, %v4120
      %v4203 = vadd.f32 %v3649, %v4125
      %v4204 = vadd.f32 %v3650, %v4128
      %v4205 = vadd.f32 %v3651, %v4133
      %v4206 = vadd.f32 %v3652, %v4136
      %v4207 = vld [vmem:[%s192 + $0x20] sm:$0xc]
      %v4208 = vld [vmem:[%s192 + $0x24] sm:$0xf]
      %v4209 = vld [vmem:[%s192 + $0x28] sm:$0xf]
      %v4210 = vld [vmem:[%s192 + $0x2c] sm:$0xf]
      %v4211 = vld [vmem:[%s192 + $0x30] sm:$0xf]
      %v4212 = vld [vmem:[%s192 + $0x34] sm:$0xf]
      %v4213 = vld [vmem:[%s192 + $0x38] sm:$0xf]
      %v4214 = vld [vmem:[%s192 + $0x3c] sm:$0xf]
      %v4215 = vld [vmem:[%s192 + $0x40] sm:$0xf]
      %v4216 = vld [vmem:[%s192 + $0x44] sm:$0xf]
      %v4217 = vld [vmem:[%s192 + $0x48] sm:$0xf]
      %v4218 = vld [vmem:[%s192 + $0x4c] sm:$0xf]
      %v4219 = vld [vmem:[%s192 + $0x50] sm:$0xf]
      %v4220 = vld [vmem:[%s192 + $0x54] sm:$0xf]
      %v4221 = vld [vmem:[%s192 + $0x58] sm:$0xf]
      %v4222 = vld [vmem:[%s192 + $0x5c] sm:$0xf]
      %v4223 = vld [vmem:[%s192 + $0x60] sm:$0xf]
      %v4224 = vld [vmem:[%s192 + $0x64] sm:$0xf]
      %v4225 = vld [vmem:[%s192 + $0x68] sm:$0xf]
      %v4226 = vld [vmem:[%s192 + $0x6c] sm:$0xf]
      %v4227 = vld [vmem:[%s192 + $0x70] sm:$0xf]
      %v4228 = vld [vmem:[%s192 + $0x74] sm:$0xf]
      %v4229 = vld [vmem:[%s192 + $0x78] sm:$0xf]
      %v4230 = vld [vmem:[%s192 + $0x7c] sm:$0xf]
      %v4231 = vld [vmem:[%s192 + $0x80] sm:$0xf]
      %v4232 = vld [vmem:[%s192 + $0x84] sm:$0xf]
      %v4233 = vld [vmem:[%s192 + $0x88] sm:$0xf]
      %v4234 = vld [vmem:[%s192 + $0x8c] sm:$0xf]
      %v4235 = vld [vmem:[%s192 + $0x90] sm:$0xf]
      %v4236 = vld [vmem:[%s192 + $0x94] sm:$0xf]
      %v4237 = vld [vmem:[%s192 + $0x98] sm:$0xf]
      %v4238 = vld [vmem:[%s192 + $0x9c] sm:$0xf]
      %v4239 = vld [vmem:[%s192 + $0xa0] sm:$0xf]
      %v4240 = vld [vmem:[%s192 + $0xa4] sm:$0xf]
      %v4241 = vld [vmem:[%s192 + $0xa8] sm:$0xf]
      %v4242 = vld [vmem:[%s192 + $0xac] sm:$0xf]
      %v4243 = vld [vmem:[%s192 + $0xb0] sm:$0xf]
      %v4244 = vld [vmem:[%s192 + $0xb4] sm:$0xf]
      %v4245 = vld [vmem:[%s192 + $0xb8] sm:$0xf]
      %v4246 = vld [vmem:[%s192 + $0xbc] sm:$0xf]
      %v4247 = vld [vmem:[%s192 + $0xc0] sm:$0xf]
      %v4248 = vld [vmem:[%s192 + $0xc4] sm:$0xf]
      %v4249 = vld [vmem:[%s192 + $0xc8] sm:$0xf]
      %v4250 = vld [vmem:[%s192 + $0xcc] sm:$0xf]
      %v4251 = vld [vmem:[%s192 + $0xd0] sm:$0xf]
      %v4252 = vld [vmem:[%s192 + $0xd4] sm:$0xf]
      %v4253 = vld [vmem:[%s192 + $0xd8] sm:$0xf]
      %v4254 = vld [vmem:[%s192 + $0xdc] sm:$0xf]
      %v4255 = vld [vmem:[%s192 + $0xe0] sm:$0xf]
      %v4256 = vld [vmem:[%s192 + $0xe4] sm:$0xf]
      %v4257 = vld [vmem:[%s192 + $0xe8] sm:$0xf]
      %v4258 = vld [vmem:[%s192 + $0xec] sm:$0xf]
      %v4259 = vld [vmem:[%s192 + $0xf0] sm:$0xf]
      %v4260 = vld [vmem:[%s192 + $0xf4] sm:$0xf]
      %v4261 = vld [vmem:[%s192 + $0xf8] sm:$0xf]
      %v4262 = vld [vmem:[%s192 + $0xfc] sm:$0xf]
      %v4263 = vld [vmem:[%s192 + $0x100] sm:$0xf]
      %v4264 = vld [vmem:[%s192 + $0x104] sm:$0xf]
      %v4265 = vld [vmem:[%s192 + $0x108] sm:$0xf]
      %v4266 = vld [vmem:[%s192 + $0x10c] sm:$0xf]
      %v4267 = vld [vmem:[%s192 + $0x110] sm:$0xf]
      %v4268 = vld [vmem:[%s192 + $0x114] sm:$0xf]
      %v4269 = vld [vmem:[%s192 + $0x118] sm:$0xf]
      %v4270 = vld [vmem:[%s192 + $0x11c] sm:$0xf]
      %v4271 = vld [vmem:[%s192 + $0x120] sm:$0xf]
      %v4272 = vld [vmem:[%s192 + $0x124] sm:$0xf]
      %v4273 = vld [vmem:[%s192 + $0x128] sm:$0xf]
      %v4274 = vld [vmem:[%s192 + $0x12c] sm:$0xf]
      %v4275 = vld [vmem:[%s192 + $0x130] sm:$0x3]
      %s4276 = scalar_lea.vmem %s1, 24
      %v4277 = vld [vmem:[%s4276] sm:$0xf]
      %v4347 = vunpack.c.l.b16 %v4207
      %v4348 = vunpack.c.l.b16 %v4208
      %v4349 = vunpack.c.l.b16 %v4209
      %v4350 = vunpack.c.l.b16 %v4210
      %v4351 = vunpack.c.l.b16 %v4211
      %v4352 = vunpack.c.l.b16 %v4212
      %v4353 = vunpack.c.l.b16 %v4213
      %v4354 = vunpack.c.l.b16 %v4214
      %v4355 = vunpack.c.l.b16 %v4215
      %v4356 = vunpack.c.l.b16 %v4216
      %v4357 = vunpack.c.l.b16 %v4217
      %v4358 = vunpack.c.l.b16 %v4218
      %v4359 = vunpack.c.l.b16 %v4219
      %v4360 = vunpack.c.l.b16 %v4220
      %v4361 = vunpack.c.l.b16 %v4221
      %v4362 = vunpack.c.l.b16 %v4222
      %v4363 = vunpack.c.l.b16 %v4223
      %v4364 = vunpack.c.l.b16 %v4224
      %v4365 = vunpack.c.l.b16 %v4225
      %v4366 = vunpack.c.l.b16 %v4226
      %v4367 = vunpack.c.l.b16 %v4227
      %v4368 = vunpack.c.l.b16 %v4228
      %v4369 = vunpack.c.l.b16 %v4229
      %v4370 = vunpack.c.l.b16 %v4230
      %v4371 = vunpack.c.l.b16 %v4231
      %v4372 = vunpack.c.l.b16 %v4232
      %v4373 = vunpack.c.l.b16 %v4233
      %v4374 = vunpack.c.l.b16 %v4234
      %v4375 = vunpack.c.l.b16 %v4235
      %v4376 = vunpack.c.l.b16 %v4236
      %v4377 = vunpack.c.l.b16 %v4237
      %v4378 = vunpack.c.l.b16 %v4238
      %v4379 = vunpack.c.l.b16 %v4239
      %v4380 = vunpack.c.l.b16 %v4240
      %v4381 = vunpack.c.l.b16 %v4241
      %v4382 = vunpack.c.l.b16 %v4242
      %v4383 = vunpack.c.l.b16 %v4243
      %v4384 = vunpack.c.l.b16 %v4244
      %v4385 = vunpack.c.l.b16 %v4245
      %v4386 = vunpack.c.l.b16 %v4246
      %v4387 = vunpack.c.l.b16 %v4247
      %v4388 = vunpack.c.l.b16 %v4248
      %v4389 = vunpack.c.l.b16 %v4249
      %v4390 = vunpack.c.l.b16 %v4250
      %v4391 = vunpack.c.l.b16 %v4251
      %v4392 = vunpack.c.l.b16 %v4252
      %v4393 = vunpack.c.l.b16 %v4253
      %v4394 = vunpack.c.l.b16 %v4254
      %v4395 = vunpack.c.l.b16 %v4255
      %v4396 = vunpack.c.l.b16 %v4256
      %v4397 = vunpack.c.l.b16 %v4257
      %v4398 = vunpack.c.l.b16 %v4258
      %v4399 = vunpack.c.l.b16 %v4259
      %v4400 = vunpack.c.l.b16 %v4260
      %v4401 = vunpack.c.l.b16 %v4261
      %v4402 = vunpack.c.l.b16 %v4262
      %v4403 = vunpack.c.l.b16 %v4263
      %v4404 = vunpack.c.l.b16 %v4264
      %v4405 = vunpack.c.l.b16 %v4265
      %v4406 = vunpack.c.l.b16 %v4266
      %v4407 = vunpack.c.l.b16 %v4267
      %v4408 = vunpack.c.l.b16 %v4268
      %v4409 = vunpack.c.l.b16 %v4269
      %v4410 = vunpack.c.l.b16 %v4270
      %v4411 = vunpack.c.l.b16 %v4271
      %v4412 = vunpack.c.l.b16 %v4272
      %v4413 = vunpack.c.l.b16 %v4273
      %v4414 = vunpack.c.l.b16 %v4274
      %v4415 = vunpack.c.l.b16 %v4275
      %v4416 = vpack.c.b16 %v4348, %v4347
      %v4417 = vpack.c.b16 %v4350, %v4349
      %v4418 = vpack.c.b16 %v4352, %v4351
      %v4419 = vpack.c.b16 %v4354, %v4353
      %v4420 = vpack.c.b16 %v4356, %v4355
      %v4421 = vpack.c.b16 %v4358, %v4357
      %v4422 = vpack.c.b16 %v4360, %v4359
      %v4423 = vpack.c.b16 %v4362, %v4361
      %v4424 = vpack.c.b16 %v4364, %v4363
      %v4425 = vpack.c.b16 %v4366, %v4365
      %v4426 = vpack.c.b16 %v4368, %v4367
      %v4427 = vpack.c.b16 %v4370, %v4369
      %v4428 = vpack.c.b16 %v4372, %v4371
      %v4429 = vpack.c.b16 %v4374, %v4373
      %v4430 = vpack.c.b16 %v4376, %v4375
      %v4431 = vpack.c.b16 %v4378, %v4377
      %v4432 = vpack.c.b16 %v4380, %v4379
      %v4433 = vpack.c.b16 %v4382, %v4381
      %v4434 = vpack.c.b16 %v4384, %v4383
      %v4435 = vpack.c.b16 %v4386, %v4385
      %v4436 = vpack.c.b16 %v4388, %v4387
      %v4437 = vpack.c.b16 %v4390, %v4389
      %v4438 = vpack.c.b16 %v4392, %v4391
      %v4439 = vpack.c.b16 %v4394, %v4393
      %v4440 = vpack.c.b16 %v4396, %v4395
      %v4441 = vpack.c.b16 %v4398, %v4397
      %v4442 = vpack.c.b16 %v4400, %v4399
      %v4443 = vpack.c.b16 %v4402, %v4401
      %v4444 = vpack.c.b16 %v4404, %v4403
      %v4445 = vpack.c.b16 %v4406, %v4405
      %v4446 = vpack.c.b16 %v4408, %v4407
      %v4447 = vpack.c.b16 %v4410, %v4409
      %v4448 = vpack.c.b16 %v4412, %v4411
      %v4449 = vpack.c.b16 %v4414, %v4413
      %v4450 = vpack.c.b16 %v4415, %v4415
      %v4451 = vrot.slane %v4416, 2
      %v4452 = vrot.slane %v4417, 2
      %v4453 = vsel %vm3659, %v4451, %v4452
      %v4454 = vrot.slane %v4418, 2
      %v4455 = vsel %vm3659, %v4452, %v4454
      %v4456 = vrot.slane %v4419, 2
      %v4457 = vsel %vm3659, %v4454, %v4456
      %v4458 = vrot.slane %v4420, 2
      %v4459 = vsel %vm3659, %v4456, %v4458
      %v4460 = vrot.slane %v4421, 2
      %v4461 = vsel %vm3659, %v4458, %v4460
      %v4462 = vrot.slane %v4422, 2
      %v4463 = vsel %vm3659, %v4460, %v4462
      %v4464 = vrot.slane %v4423, 2
      %v4465 = vsel %vm3659, %v4462, %v4464
      %v4466 = vrot.slane %v4424, 2
      %v4467 = vsel %vm3659, %v4464, %v4466
      %v4468 = vrot.slane %v4425, 2
      %v4469 = vsel %vm3659, %v4466, %v4468
      %v4470 = vrot.slane %v4426, 2
      %v4471 = vsel %vm3659, %v4468, %v4470
      %v4472 = vrot.slane %v4427, 2
      %v4473 = vsel %vm3659, %v4470, %v4472
      %v4474 = vrot.slane %v4428, 2
      %v4475 = vsel %vm3659, %v4472, %v4474
      %v4476 = vrot.slane %v4429, 2
      %v4477 = vsel %vm3659, %v4474, %v4476
      %v4478 = vrot.slane %v4430, 2
      %v4479 = vsel %vm3659, %v4476, %v4478
      %v4480 = vrot.slane %v4431, 2
      %v4481 = vsel %vm3659, %v4478, %v4480
      %v4482 = vrot.slane %v4432, 2
      %v4483 = vsel %vm3659, %v4480, %v4482
      %v4484 = vrot.slane %v4433, 2
      %v4485 = vsel %vm3659, %v4482, %v4484
      %v4486 = vrot.slane %v4434, 2
      %v4487 = vsel %vm3659, %v4484, %v4486
      %v4488 = vrot.slane %v4435, 2
      %v4489 = vsel %vm3659, %v4486, %v4488
      %v4490 = vrot.slane %v4436, 2
      %v4491 = vsel %vm3659, %v4488, %v4490
      %v4492 = vrot.slane %v4437, 2
      %v4493 = vsel %vm3659, %v4490, %v4492
      %v4494 = vrot.slane %v4438, 2
      %v4495 = vsel %vm3659, %v4492, %v4494
      %v4496 = vrot.slane %v4439, 2
      %v4497 = vsel %vm3659, %v4494, %v4496
      %v4498 = vrot.slane %v4440, 2
      %v4499 = vsel %vm3659, %v4496, %v4498
      %v4500 = vrot.slane %v4441, 2
      %v4501 = vsel %vm3659, %v4498, %v4500
      %v4502 = vrot.slane %v4442, 2
      %v4503 = vsel %vm3659, %v4500, %v4502
      %v4504 = vrot.slane %v4443, 2
      %v4505 = vsel %vm3659, %v4502, %v4504
      %v4506 = vrot.slane %v4444, 2
      %v4507 = vsel %vm3659, %v4504, %v4506
      %v4508 = vrot.slane %v4445, 2
      %v4509 = vsel %vm3659, %v4506, %v4508
      %v4510 = vrot.slane %v4446, 2
      %v4511 = vsel %vm3659, %v4508, %v4510
      %v4512 = vrot.slane %v4447, 2
      %v4513 = vsel %vm3659, %v4510, %v4512
      %v4514 = vrot.slane %v4448, 2
      %v4515 = vsel %vm3659, %v4512, %v4514
      %v4516 = vrot.slane %v4449, 2
      %v4517 = vsel %vm3659, %v4514, %v4516
      %v4518 = vrot.slane %v4450, 2
      %v4519 = vsel %vm3659, %v4516, %v4518
      %v4521 = vsel %vm721, %v4453, 0
      %v4524 = vsel %vm721, %v4455, 0
      %v4527 = vsel %vm721, %v4457, 0
      %v4530 = vsel %vm721, %v4459, 0
      %v4533 = vsel %vm721, %v4461, 0
      %v4536 = vsel %vm721, %v4463, 0
      %v4539 = vsel %vm721, %v4465, 0
      %v4542 = vsel %vm721, %v4467, 0
      %v4545 = vsel %vm721, %v4469, 0
      %v4548 = vsel %vm721, %v4471, 0
      %v4551 = vsel %vm721, %v4473, 0
      %v4554 = vsel %vm721, %v4475, 0
      %v4557 = vsel %vm721, %v4477, 0
      %v4560 = vsel %vm721, %v4479, 0
      %v4563 = vsel %vm721, %v4481, 0
      %v4566 = vsel %vm721, %v4483, 0
      %v4569 = vsel %vm721, %v4485, 0
      %v4572 = vsel %vm721, %v4487, 0
      %v4575 = vsel %vm721, %v4489, 0
      %v4578 = vsel %vm721, %v4491, 0
      %v4581 = vsel %vm721, %v4493, 0
      %v4584 = vsel %vm721, %v4495, 0
      %v4587 = vsel %vm721, %v4497, 0
      %v4590 = vsel %vm721, %v4499, 0
      %v4593 = vsel %vm721, %v4501, 0
      %v4596 = vsel %vm721, %v4503, 0
      %v4599 = vsel %vm721, %v4505, 0
      %v4602 = vsel %vm721, %v4507, 0
      %v4605 = vsel %vm721, %v4509, 0
      %v4608 = vsel %vm721, %v4511, 0
      %v4611 = vsel %vm721, %v4513, 0
      %v4614 = vsel %vm721, %v4515, 0
      %v4617 = vsel %vm721, %v4517, 0
      %v4620 = vsel %vm721, %v4519, 0
      %v4623 = vsel %vm824, %v4277, 0
      %4625 = vmatprep.subr.bf16.mxu0 0
      %4626 = vmatpush1.bf16.msra.mxu0 %v4623
      %4627 = vmatprep.subr.bf16.mxu0 0
      %4628 = vmatpush1.bf16.msra.mxu0 0
      %4629 = vmatprep.subr.bf16.mxu0 0
      %4630 = vmatpush1.bf16.msra.mxu0 0
      %4631 = vmatprep.subr.bf16.mxu0 0
      %4632 = vmatpush1.bf16.msra.mxu0 0
      %4633 = vmatprep.subr.bf16.mxu0 0
      %4634 = vmatpush1.bf16.msra.mxu0 0
      %4635 = vmatprep.subr.bf16.mxu0 0
      %4636 = vmatpush1.bf16.msra.mxu0 0
      %4637 = vmatprep.subr.bf16.mxu0 0
      %4638 = vmatpush1.bf16.msra.mxu0 0
      %4639 = vmatprep.subr.bf16.mxu0 0
      %4640 = vmatpush1.bf16.msra.mxu0 0
      %4641 = vmatprep.subr.bf16.mxu0 0
      %4642 = vmatpush1.bf16.msra.mxu0 0
      %4643 = vmatprep.subr.bf16.mxu0 0
      %4644 = vmatpush1.bf16.msra.mxu0 0
      %4645 = vmatprep.subr.bf16.mxu0 0
      %4646 = vmatpush1.bf16.msra.mxu0 0
      %4647 = vmatprep.subr.bf16.mxu0 0
      %4648 = vmatpush1.bf16.msra.mxu0 0
      %4649 = vmatprep.subr.bf16.mxu0 0
      %4650 = vmatpush1.bf16.msra.mxu0 0
      %4651 = vmatprep.subr.bf16.mxu0 0
      %4652 = vmatpush1.bf16.msra.mxu0 0
      %4653 = vmatprep.subr.bf16.mxu0 0
      %4654 = vmatpush1.bf16.msra.mxu0 0
      %4655 = vmatprep.subr.bf16.mxu0 0
      %4656 = vmatpush1.bf16.msra.mxu0 0
      %4657 = vmatprep.mubr.bf16.mxu0 0
      %4658 = vmatmul.mubr.bf16.gmra.mrb[0].mxu0 %v4521
      %v4659 = vpop.f32.mrb[0].mxu0
      %v4660 = vadd.f32 0.0, %v4659
      %v4661 = vpop.f32.mrb[0].mxu0
      %v4662 = vpop.f32.mrb[0].mxu0
      %v4663 = vadd.f32 0.0, %v4662
      %v4664 = vpop.f32.mrb[0].mxu0
      %4665 = vmatprep.mubr.bf16.mxu0 0
      %4666 = vmatmul.mubr.bf16.gmra.mrb[0].mxu0 %v4524
      %v4667 = vpop.f32.mrb[0].mxu0
      %v4668 = vadd.f32 0.0, %v4667
      %v4669 = vpop.f32.mrb[0].mxu0
      %v4670 = vpop.f32.mrb[0].mxu0
      %v4671 = vadd.f32 0.0, %v4670
      %v4672 = vpop.f32.mrb[0].mxu0
      %4673 = vmatprep.mubr.bf16.mxu0 0
      %4674 = vmatmul.mubr.bf16.gmra.mrb[0].mxu0 %v4527
      %v4675 = vpop.f32.mrb[0].mxu0
      %v4676 = vadd.f32 0.0, %v4675
      %v4677 = vpop.f32.mrb[0].mxu0
      %v4678 = vpop.f32.mrb[0].mxu0
      %v4679 = vadd.f32 0.0, %v4678
      %v4680 = vpop.f32.mrb[0].mxu0
      %4681 = vmatprep.mubr.bf16.mxu0 0
      %4682 = vmatmul.mubr.bf16.gmra.mrb[0].mxu0 %v4530
      %v4683 = vpop.f32.mrb[0].mxu0
      %v4684 = vadd.f32 0.0, %v4683
      %v4685 = vpop.f32.mrb[0].mxu0
      %v4686 = vpop.f32.mrb[0].mxu0
      %v4687 = vadd.f32 0.0, %v4686
      %v4688 = vpop.f32.mrb[0].mxu0
      %4689 = vmatprep.mubr.bf16.mxu0 0
      %4690 = vmatmul.mubr.bf16.gmra.mrb[0].mxu0 %v4533
      %v4691 = vpop.f32.mrb[0].mxu0
      %v4692 = vadd.f32 0.0, %v4691
      %v4693 = vpop.f32.mrb[0].mxu0
      %v4694 = vpop.f32.mrb[0].mxu0
      %v4695 = vadd.f32 0.0, %v4694
      %v4696 = vpop.f32.mrb[0].mxu0
      %4697 = vmatprep.mubr.bf16.mxu0 0
      %4698 = vmatmul.mubr.bf16.gmra.mrb[0].mxu0 %v4536
      %v4699 = vpop.f32.mrb[0].mxu0
      %v4700 = vadd.f32 0.0, %v4699
      %v4701 = vpop.f32.mrb[0].mxu0
      %v4702 = vpop.f32.mrb[0].mxu0
      %v4703 = vadd.f32 0.0, %v4702
      %v4704 = vpop.f32.mrb[0].mxu0
      %4705 = vmatprep.mubr.bf16.mxu0 0
      %4706 = vmatmul.mubr.bf16.gmra.mrb[0].mxu0 %v4539
      %v4707 = vpop.f32.mrb[0].mxu0
      %v4708 = vadd.f32 0.0, %v4707
      %v4709 = vpop.f32.mrb[0].mxu0
      %v4710 = vpop.f32.mrb[0].mxu0
      %v4711 = vadd.f32 0.0, %v4710
      %v4712 = vpop.f32.mrb[0].mxu0
      %4713 = vmatprep.mubr.bf16.mxu0 0
      %4714 = vmatmul.mubr.bf16.gmra.mrb[0].mxu0 %v4542
      %v4715 = vpop.f32.mrb[0].mxu0
      %v4716 = vadd.f32 0.0, %v4715
      %v4717 = vpop.f32.mrb[0].mxu0
      %v4718 = vpop.f32.mrb[0].mxu0
      %v4719 = vadd.f32 0.0, %v4718
      %v4720 = vpop.f32.mrb[0].mxu0
      %4721 = vmatprep.mubr.bf16.mxu0 0
      %4722 = vmatmul.mubr.bf16.gmra.mrb[0].mxu0 %v4545
      %v4723 = vpop.f32.mrb[0].mxu0
      %v4724 = vadd.f32 0.0, %v4723
      %v4725 = vpop.f32.mrb[0].mxu0
      %v4726 = vpop.f32.mrb[0].mxu0
      %v4727 = vadd.f32 0.0, %v4726
      %v4728 = vpop.f32.mrb[0].mxu0
      %4729 = vmatprep.mubr.bf16.mxu0 0
      %4730 = vmatmul.mubr.bf16.gmra.mrb[0].mxu0 %v4548
      %v4731 = vpop.f32.mrb[0].mxu0
      %v4732 = vadd.f32 0.0, %v4731
      %v4733 = vpop.f32.mrb[0].mxu0
      %v4734 = vpop.f32.mrb[0].mxu0
      %v4735 = vadd.f32 0.0, %v4734
      %v4736 = vpop.f32.mrb[0].mxu0
      %4737 = vmatprep.mubr.bf16.mxu0 0
      %4738 = vmatmul.mubr.bf16.gmra.mrb[0].mxu0 %v4551
      %v4739 = vpop.f32.mrb[0].mxu0
      %v4740 = vadd.f32 0.0, %v4739
      %v4741 = vpop.f32.mrb[0].mxu0
      %v4742 = vpop.f32.mrb[0].mxu0
      %v4743 = vadd.f32 0.0, %v4742
      %v4744 = vpop.f32.mrb[0].mxu0
      %4745 = vmatprep.mubr.bf16.mxu0 0
      %4746 = vmatmul.mubr.bf16.gmra.mrb[0].mxu0 %v4554
      %v4747 = vpop.f32.mrb[0].mxu0
      %v4748 = vadd.f32 0.0, %v4747
      %v4749 = vpop.f32.mrb[0].mxu0
      %v4750 = vpop.f32.mrb[0].mxu0
      %v4751 = vadd.f32 0.0, %v4750
      %v4752 = vpop.f32.mrb[0].mxu0
      %4753 = vmatprep.mubr.bf16.mxu0 0
      %4754 = vmatmul.mubr.bf16.gmra.mrb[0].mxu0 %v4557
      %v4755 = vpop.f32.mrb[0].mxu0
      %v4756 = vadd.f32 0.0, %v4755
      %v4757 = vpop.f32.mrb[0].mxu0
      %v4758 = vpop.f32.mrb[0].mxu0
      %v4759 = vadd.f32 0.0, %v4758
      %v4760 = vpop.f32.mrb[0].mxu0
      %4761 = vmatprep.mubr.bf16.mxu0 0
      %4762 = vmatmul.mubr.bf16.gmra.mrb[0].mxu0 %v4560
      %v4763 = vpop.f32.mrb[0].mxu0
      %v4764 = vadd.f32 0.0, %v4763
      %v4765 = vpop.f32.mrb[0].mxu0
      %v4766 = vpop.f32.mrb[0].mxu0
      %v4767 = vadd.f32 0.0, %v4766
      %v4768 = vpop.f32.mrb[0].mxu0
      %4769 = vmatprep.mubr.bf16.mxu0 0
      %4770 = vmatmul.mubr.bf16.gmra.mrb[0].mxu0 %v4563
      %v4771 = vpop.f32.mrb[0].mxu0
      %v4772 = vadd.f32 0.0, %v4771
      %v4773 = vpop.f32.mrb[0].mxu0
      %v4774 = vpop.f32.mrb[0].mxu0
      %v4775 = vadd.f32 0.0, %v4774
      %v4776 = vpop.f32.mrb[0].mxu0
      %4777 = vmatprep.mubr.bf16.mxu0 0
      %4778 = vmatmul.mubr.bf16.gmra.mrb[0].mxu0 %v4566
      %v4779 = vpop.f32.mrb[0].mxu0
      %v4780 = vadd.f32 0.0, %v4779
      %v4781 = vpop.f32.mrb[0].mxu0
      %v4782 = vpop.f32.mrb[0].mxu0
      %v4783 = vadd.f32 0.0, %v4782
      %v4784 = vpop.f32.mrb[0].mxu0
      %4785 = vmatprep.mubr.bf16.mxu0 0
      %4786 = vmatmul.mubr.bf16.gmra.mrb[0].mxu0 %v4569
      %v4787 = vpop.f32.mrb[0].mxu0
      %v4788 = vadd.f32 0.0, %v4787
      %v4789 = vpop.f32.mrb[0].mxu0
      %v4790 = vpop.f32.mrb[0].mxu0
      %v4791 = vadd.f32 0.0, %v4790
      %v4792 = vpop.f32.mrb[0].mxu0
      %4793 = vmatprep.mubr.bf16.mxu0 0
      %4794 = vmatmul.mubr.bf16.gmra.mrb[0].mxu0 %v4572
      %v4795 = vpop.f32.mrb[0].mxu0
      %v4796 = vadd.f32 0.0, %v4795
      %v4797 = vpop.f32.mrb[0].mxu0
      %v4798 = vpop.f32.mrb[0].mxu0
      %v4799 = vadd.f32 0.0, %v4798
      %v4800 = vpop.f32.mrb[0].mxu0
      %4801 = vmatprep.mubr.bf16.mxu0 0
      %4802 = vmatmul.mubr.bf16.gmra.mrb[0].mxu0 %v4575
      %v4803 = vpop.f32.mrb[0].mxu0
      %v4804 = vadd.f32 0.0, %v4803
      %v4805 = vpop.f32.mrb[0].mxu0
      %v4806 = vpop.f32.mrb[0].mxu0
      %v4807 = vadd.f32 0.0, %v4806
      %v4808 = vpop.f32.mrb[0].mxu0
      %4809 = vmatprep.mubr.bf16.mxu0 0
      %4810 = vmatmul.mubr.bf16.gmra.mrb[0].mxu0 %v4578
      %v4811 = vpop.f32.mrb[0].mxu0
      %v4812 = vadd.f32 0.0, %v4811
      %v4813 = vpop.f32.mrb[0].mxu0
      %v4814 = vpop.f32.mrb[0].mxu0
      %v4815 = vadd.f32 0.0, %v4814
      %v4816 = vpop.f32.mrb[0].mxu0
      %4817 = vmatprep.mubr.bf16.mxu0 0
      %4818 = vmatmul.mubr.bf16.gmra.mrb[0].mxu0 %v4581
      %v4819 = vpop.f32.mrb[0].mxu0
      %v4820 = vadd.f32 0.0, %v4819
      %v4821 = vpop.f32.mrb[0].mxu0
      %v4822 = vpop.f32.mrb[0].mxu0
      %v4823 = vadd.f32 0.0, %v4822
      %v4824 = vpop.f32.mrb[0].mxu0
      %4825 = vmatprep.mubr.bf16.mxu0 0
      %4826 = vmatmul.mubr.bf16.gmra.mrb[0].mxu0 %v4584
      %v4827 = vpop.f32.mrb[0].mxu0
      %v4828 = vadd.f32 0.0, %v4827
      %v4829 = vpop.f32.mrb[0].mxu0
      %v4830 = vpop.f32.mrb[0].mxu0
      %v4831 = vadd.f32 0.0, %v4830
      %v4832 = vpop.f32.mrb[0].mxu0
      %4833 = vmatprep.mubr.bf16.mxu0 0
      %4834 = vmatmul.mubr.bf16.gmra.mrb[0].mxu0 %v4587
      %v4835 = vpop.f32.mrb[0].mxu0
      %v4836 = vadd.f32 0.0, %v4835
      %v4837 = vpop.f32.mrb[0].mxu0
      %v4838 = vpop.f32.mrb[0].mxu0
      %v4839 = vadd.f32 0.0, %v4838
      %v4840 = vpop.f32.mrb[0].mxu0
      %4841 = vmatprep.mubr.bf16.mxu0 0
      %4842 = vmatmul.mubr.bf16.gmra.mrb[0].mxu0 %v4590
      %v4843 = vpop.f32.mrb[0].mxu0
      %v4844 = vadd.f32 0.0, %v4843
      %v4845 = vpop.f32.mrb[0].mxu0
      %v4846 = vpop.f32.mrb[0].mxu0
      %v4847 = vadd.f32 0.0, %v4846
      %v4848 = vpop.f32.mrb[0].mxu0
      %4849 = vmatprep.mubr.bf16.mxu0 0
      %4850 = vmatmul.mubr.bf16.gmra.mrb[0].mxu0 %v4593
      %v4851 = vpop.f32.mrb[0].mxu0
      %v4852 = vadd.f32 0.0, %v4851
      %v4853 = vpop.f32.mrb[0].mxu0
      %v4854 = vpop.f32.mrb[0].mxu0
      %v4855 = vadd.f32 0.0, %v4854
      %v4856 = vpop.f32.mrb[0].mxu0
      %4857 = vmatprep.mubr.bf16.mxu0 0
      %4858 = vmatmul.mubr.bf16.gmra.mrb[0].mxu0 %v4596
      %v4859 = vpop.f32.mrb[0].mxu0
      %v4860 = vadd.f32 0.0, %v4859
      %v4861 = vpop.f32.mrb[0].mxu0
      %v4862 = vpop.f32.mrb[0].mxu0
      %v4863 = vadd.f32 0.0, %v4862
      %v4864 = vpop.f32.mrb[0].mxu0
      %4865 = vmatprep.mubr.bf16.mxu0 0
      %4866 = vmatmul.mubr.bf16.gmra.mrb[0].mxu0 %v4599
      %v4867 = vpop.f32.mrb[0].mxu0
      %v4868 = vadd.f32 0.0, %v4867
      %v4869 = vpop.f32.mrb[0].mxu0
      %v4870 = vpop.f32.mrb[0].mxu0
      %v4871 = vadd.f32 0.0, %v4870
      %v4872 = vpop.f32.mrb[0].mxu0
      %4873 = vmatprep.mubr.bf16.mxu0 0
      %4874 = vmatmul.mubr.bf16.gmra.mrb[0].mxu0 %v4602
      %v4875 = vpop.f32.mrb[0].mxu0
      %v4876 = vadd.f32 0.0, %v4875
      %v4877 = vpop.f32.mrb[0].mxu0
      %v4878 = vpop.f32.mrb[0].mxu0
      %v4879 = vadd.f32 0.0, %v4878
      %v4880 = vpop.f32.mrb[0].mxu0
      %4881 = vmatprep.mubr.bf16.mxu0 0
      %4882 = vmatmul.mubr.bf16.gmra.mrb[0].mxu0 %v4605
      %v4883 = vpop.f32.mrb[0].mxu0
      %v4884 = vadd.f32 0.0, %v4883
      %v4885 = vpop.f32.mrb[0].mxu0
      %v4886 = vpop.f32.mrb[0].mxu0
      %v4887 = vadd.f32 0.0, %v4886
      %v4888 = vpop.f32.mrb[0].mxu0
      %4889 = vmatprep.mubr.bf16.mxu0 0
      %4890 = vmatmul.mubr.bf16.gmra.mrb[0].mxu0 %v4608
      %v4891 = vpop.f32.mrb[0].mxu0
      %v4892 = vadd.f32 0.0, %v4891
      %v4893 = vpop.f32.mrb[0].mxu0
      %v4894 = vpop.f32.mrb[0].mxu0
      %v4895 = vadd.f32 0.0, %v4894
      %v4896 = vpop.f32.mrb[0].mxu0
      %4897 = vmatprep.mubr.bf16.mxu0 0
      %4898 = vmatmul.mubr.bf16.gmra.mrb[0].mxu0 %v4611
      %v4899 = vpop.f32.mrb[0].mxu0
      %v4900 = vadd.f32 0.0, %v4899
      %v4901 = vpop.f32.mrb[0].mxu0
      %v4902 = vpop.f32.mrb[0].mxu0
      %v4903 = vadd.f32 0.0, %v4902
      %v4904 = vpop.f32.mrb[0].mxu0
      %4905 = vmatprep.mubr.bf16.mxu0 0
      %4906 = vmatmul.mubr.bf16.gmra.mrb[0].mxu0 %v4614
      %v4907 = vpop.f32.mrb[0].mxu0
      %v4908 = vadd.f32 0.0, %v4907
      %v4909 = vpop.f32.mrb[0].mxu0
      %v4910 = vpop.f32.mrb[0].mxu0
      %v4911 = vadd.f32 0.0, %v4910
      %v4912 = vpop.f32.mrb[0].mxu0
      %4913 = vmatprep.mubr.bf16.mxu0 0
      %4914 = vmatmul.mubr.bf16.gmra.mrb[0].mxu0 %v4617
      %v4915 = vpop.f32.mrb[0].mxu0
      %v4916 = vadd.f32 0.0, %v4915
      %v4917 = vpop.f32.mrb[0].mxu0
      %v4918 = vpop.f32.mrb[0].mxu0
      %v4919 = vadd.f32 0.0, %v4918
      %v4920 = vpop.f32.mrb[0].mxu0
      %4921 = vmatprep.mubr.bf16.mxu0 0
      %4922 = vmatmul.mubr.bf16.gmra.mrb[0].mxu0 %v4620
      %v4923 = vpop.f32.mrb[0].mxu0
      %v4924 = vadd.f32 0.0, %v4923
      %v4925 = vpop.f32.mrb[0].mxu0
      %v4926 = vpop.f32.mrb[0].mxu0
      %v4927 = vadd.f32 0.0, %v4926
      %v4928 = vpop.f32.mrb[0].mxu0
      %4929 = vdwg.mxu0
      %v4930 = vadd.f32 %v4139, %v4660
      %v4931 = vadd.f32 %v4140, %v4663
      %v4932 = vadd.f32 %v4141, %v4668
      %v4933 = vadd.f32 %v4142, %v4671
      %v4934 = vadd.f32 %v4143, %v4676
      %v4935 = vadd.f32 %v4144, %v4679
      %v4936 = vadd.f32 %v4145, %v4684
      %v4937 = vadd.f32 %v4146, %v4687
      %v4938 = vadd.f32 %v4147, %v4692
      %v4939 = vadd.f32 %v4148, %v4695
      %v4940 = vadd.f32 %v4149, %v4700
      %v4941 = vadd.f32 %v4150, %v4703
      %v4942 = vadd.f32 %v4151, %v4708
      %v4943 = vadd.f32 %v4152, %v4711
      %v4944 = vadd.f32 %v4153, %v4716
      %v4945 = vadd.f32 %v4154, %v4719
      %v4946 = vadd.f32 %v4155, %v4724
      %v4947 = vadd.f32 %v4156, %v4727
      %v4948 = vadd.f32 %v4157, %v4732
      %v4949 = vadd.f32 %v4158, %v4735
      %v4950 = vadd.f32 %v4159, %v4740
      %v4951 = vadd.f32 %v4160, %v4743
      %v4952 = vadd.f32 %v4161, %v4748
      %v4953 = vadd.f32 %v4162, %v4751
      %v4954 = vadd.f32 %v4163, %v4756
      %v4955 = vadd.f32 %v4164, %v4759
      %v4956 = vadd.f32 %v4165, %v4764
      %v4957 = vadd.f32 %v4166, %v4767
      %v4958 = vadd.f32 %v4167, %v4772
      %v4959 = vadd.f32 %v4168, %v4775
      %v4960 = vadd.f32 %v4169, %v4780
      %v4961 = vadd.f32 %v4170, %v4783
      %v4962 = vadd.f32 %v4171, %v4788
      %v4963 = vadd.f32 %v4172, %v4791
      %v4964 = vadd.f32 %v4173, %v4796
      %v4965 = vadd.f32 %v4174, %v4799
      %v4966 = vadd.f32 %v4175, %v4804
      %v4967 = vadd.f32 %v4176, %v4807
      %v4968 = vadd.f32 %v4177, %v4812
      %v4969 = vadd.f32 %v4178, %v4815
      %v4970 = vadd.f32 %v4179, %v4820
      %v4971 = vadd.f32 %v4180, %v4823
      %v4972 = vadd.f32 %v4181, %v4828
      %v4973 = vadd.f32 %v4182, %v4831
      %v4974 = vadd.f32 %v4183, %v4836
      %v4975 = vadd.f32 %v4184, %v4839
      %v4976 = vadd.f32 %v4185, %v4844
      %v4977 = vadd.f32 %v4186, %v4847
      %v4978 = vadd.f32 %v4187, %v4852
      %v4979 = vadd.f32 %v4188, %v4855
      %v4980 = vadd.f32 %v4189, %v4860
      %v4981 = vadd.f32 %v4190, %v4863
      %v4982 = vadd.f32 %v4191, %v4868
      %v4983 = vadd.f32 %v4192, %v4871
      %v4984 = vadd.f32 %v4193, %v4876
      %v4985 = vadd.f32 %v4194, %v4879
      %v4986 = vadd.f32 %v4195, %v4884
      %v4987 = vadd.f32 %v4196, %v4887
      %v4988 = vadd.f32 %v4197, %v4892
      %v4989 = vadd.f32 %v4198, %v4895
      %v4990 = vadd.f32 %v4199, %v4900
      %v4991 = vadd.f32 %v4200, %v4903
      %v4992 = vadd.f32 %v4201, %v4908
      %v4993 = vadd.f32 %v4202, %v4911
      %v4994 = vadd.f32 %v4203, %v4916
      %v4995 = vadd.f32 %v4204, %v4919
      %v4996 = vadd.f32 %v4205, %v4924
      %v4997 = vadd.f32 %v4206, %v4927
      %v4998 = vld [vmem:[%s192 + $0x130] sm:$0x7]
      %s4999 = scalar_lea.vmem %s1, 28
      %v5000 = vld [vmem:[%s4999] sm:$0xf]
      %v5002 = vunpack.c.l.b16 %v4998
      %v5003 = vpack.c.b16 %v5002, %v5002
      %vm5004 = vsmask.f32 5376
      %v5006 = vshrl.u32 %v4416, 16
      %v5008 = vrot.slane %v5006, 2
      %v5009 = vshll.u32 %v4416, 16
      %v5011 = vrot.slane %v5009, 3
      %v5012 = vor.u32 %v5008, %v5011
      %v5014 = vshrl.u32 %v4417, 16
      %v5016 = vrot.slane %v5014, 2
      %v5017 = vshll.u32 %v4417, 16
      %v5019 = vrot.slane %v5017, 3
      %v5020 = vor.u32 %v5016, %v5019
      %v5021 = vsel %vm5004, %v5012, %v5020
      %v5023 = vshrl.u32 %v4418, 16
      %v5025 = vrot.slane %v5023, 2
      %v5026 = vshll.u32 %v4418, 16
      %v5028 = vrot.slane %v5026, 3
      %v5029 = vor.u32 %v5025, %v5028
      %v5030 = vsel %vm5004, %v5020, %v5029
      %v5032 = vshrl.u32 %v4419, 16
      %v5034 = vrot.slane %v5032, 2
      %v5035 = vshll.u32 %v4419, 16
      %v5037 = vrot.slane %v5035, 3
      %v5038 = vor.u32 %v5034, %v5037
      %v5039 = vsel %vm5004, %v5029, %v5038
      %v5041 = vshrl.u32 %v4420, 16
      %v5043 = vrot.slane %v5041, 2
      %v5044 = vshll.u32 %v4420, 16
      %v5046 = vrot.slane %v5044, 3
      %v5047 = vor.u32 %v5043, %v5046
      %v5048 = vsel %vm5004, %v5038, %v5047
      %v5050 = vshrl.u32 %v4421, 16
      %v5052 = vrot.slane %v5050, 2
      %v5053 = vshll.u32 %v4421, 16
      %v5055 = vrot.slane %v5053, 3
      %v5056 = vor.u32 %v5052, %v5055
      %v5057 = vsel %vm5004, %v5047, %v5056
      %v5059 = vshrl.u32 %v4422, 16
      %v5061 = vrot.slane %v5059, 2
      %v5062 = vshll.u32 %v4422, 16
      %v5064 = vrot.slane %v5062, 3
      %v5065 = vor.u32 %v5061, %v5064
      %v5066 = vsel %vm5004, %v5056, %v5065
      %v5068 = vshrl.u32 %v4423, 16
      %v5070 = vrot.slane %v5068, 2
      %v5071 = vshll.u32 %v4423, 16
      %v5073 = vrot.slane %v5071, 3
      %v5074 = vor.u32 %v5070, %v5073
      %v5075 = vsel %vm5004, %v5065, %v5074
      %v5077 = vshrl.u32 %v4424, 16
      %v5079 = vrot.slane %v5077, 2
      %v5080 = vshll.u32 %v4424, 16
      %v5082 = vrot.slane %v5080, 3
      %v5083 = vor.u32 %v5079, %v5082
      %v5084 = vsel %vm5004, %v5074, %v5083
      %v5086 = vshrl.u32 %v4425, 16
      %v5088 = vrot.slane %v5086, 2
      %v5089 = vshll.u32 %v4425, 16
      %v5091 = vrot.slane %v5089, 3
      %v5092 = vor.u32 %v5088, %v5091
      %v5093 = vsel %vm5004, %v5083, %v5092
      %v5095 = vshrl.u32 %v4426, 16
      %v5097 = vrot.slane %v5095, 2
      %v5098 = vshll.u32 %v4426, 16
      %v5100 = vrot.slane %v5098, 3
      %v5101 = vor.u32 %v5097, %v5100
      %v5102 = vsel %vm5004, %v5092, %v5101
      %v5104 = vshrl.u32 %v4427, 16
      %v5106 = vrot.slane %v5104, 2
      %v5107 = vshll.u32 %v4427, 16
      %v5109 = vrot.slane %v5107, 3
      %v5110 = vor.u32 %v5106, %v5109
      %v5111 = vsel %vm5004, %v5101, %v5110
      %v5113 = vshrl.u32 %v4428, 16
      %v5115 = vrot.slane %v5113, 2
      %v5116 = vshll.u32 %v4428, 16
      %v5118 = vrot.slane %v5116, 3
      %v5119 = vor.u32 %v5115, %v5118
      %v5120 = vsel %vm5004, %v5110, %v5119
      %v5122 = vshrl.u32 %v4429, 16
      %v5124 = vrot.slane %v5122, 2
      %v5125 = vshll.u32 %v4429, 16
      %v5127 = vrot.slane %v5125, 3
      %v5128 = vor.u32 %v5124, %v5127
      %v5129 = vsel %vm5004, %v5119, %v5128
      %v5131 = vshrl.u32 %v4430, 16
      %v5133 = vrot.slane %v5131, 2
      %v5134 = vshll.u32 %v4430, 16
      %v5136 = vrot.slane %v5134, 3
      %v5137 = vor.u32 %v5133, %v5136
      %v5138 = vsel %vm5004, %v5128, %v5137
      %v5140 = vshrl.u32 %v4431, 16
      %v5142 = vrot.slane %v5140, 2
      %v5143 = vshll.u32 %v4431, 16
      %v5145 = vrot.slane %v5143, 3
      %v5146 = vor.u32 %v5142, %v5145
      %v5147 = vsel %vm5004, %v5137, %v5146
      %v5149 = vshrl.u32 %v4432, 16
      %v5151 = vrot.slane %v5149, 2
      %v5152 = vshll.u32 %v4432, 16
      %v5154 = vrot.slane %v5152, 3
      %v5155 = vor.u32 %v5151, %v5154
      %v5156 = vsel %vm5004, %v5146, %v5155
      %v5158 = vshrl.u32 %v4433, 16
      %v5160 = vrot.slane %v5158, 2
      %v5161 = vshll.u32 %v4433, 16
      %v5163 = vrot.slane %v5161, 3
      %v5164 = vor.u32 %v5160, %v5163
      %v5165 = vsel %vm5004, %v5155, %v5164
      %v5167 = vshrl.u32 %v4434, 16
      %v5169 = vrot.slane %v5167, 2
      %v5170 = vshll.u32 %v4434, 16
      %v5172 = vrot.slane %v5170, 3
      %v5173 = vor.u32 %v5169, %v5172
      %v5174 = vsel %vm5004, %v5164, %v5173
      %v5176 = vshrl.u32 %v4435, 16
      %v5178 = vrot.slane %v5176, 2
      %v5179 = vshll.u32 %v4435, 16
      %v5181 = vrot.slane %v5179, 3
      %v5182 = vor.u32 %v5178, %v5181
      %v5183 = vsel %vm5004, %v5173, %v5182
      %v5185 = vshrl.u32 %v4436, 16
      %v5187 = vrot.slane %v5185, 2
      %v5188 = vshll.u32 %v4436, 16
      %v5190 = vrot.slane %v5188, 3
      %v5191 = vor.u32 %v5187, %v5190
      %v5192 = vsel %vm5004, %v5182, %v5191
      %v5194 = vshrl.u32 %v4437, 16
      %v5196 = vrot.slane %v5194, 2
      %v5197 = vshll.u32 %v4437, 16
      %v5199 = vrot.slane %v5197, 3
      %v5200 = vor.u32 %v5196, %v5199
      %v5201 = vsel %vm5004, %v5191, %v5200
      %v5203 = vshrl.u32 %v4438, 16
      %v5205 = vrot.slane %v5203, 2
      %v5206 = vshll.u32 %v4438, 16
      %v5208 = vrot.slane %v5206, 3
      %v5209 = vor.u32 %v5205, %v5208
      %v5210 = vsel %vm5004, %v5200, %v5209
      %v5212 = vshrl.u32 %v4439, 16
      %v5214 = vrot.slane %v5212, 2
      %v5215 = vshll.u32 %v4439, 16
      %v5217 = vrot.slane %v5215, 3
      %v5218 = vor.u32 %v5214, %v5217
      %v5219 = vsel %vm5004, %v5209, %v5218
      %v5221 = vshrl.u32 %v4440, 16
      %v5223 = vrot.slane %v5221, 2
      %v5224 = vshll.u32 %v4440, 16
      %v5226 = vrot.slane %v5224, 3
      %v5227 = vor.u32 %v5223, %v5226
      %v5228 = vsel %vm5004, %v5218, %v5227
      %v5230 = vshrl.u32 %v4441, 16
      %v5232 = vrot.slane %v5230, 2
      %v5233 = vshll.u32 %v4441, 16
      %v5235 = vrot.slane %v5233, 3
      %v5236 = vor.u32 %v5232, %v5235
      %v5237 = vsel %vm5004, %v5227, %v5236
      %v5239 = vshrl.u32 %v4442, 16
      %v5241 = vrot.slane %v5239, 2
      %v5242 = vshll.u32 %v4442, 16
      %v5244 = vrot.slane %v5242, 3
      %v5245 = vor.u32 %v5241, %v5244
      %v5246 = vsel %vm5004, %v5236, %v5245
      %v5248 = vshrl.u32 %v4443, 16
      %v5250 = vrot.slane %v5248, 2
      %v5251 = vshll.u32 %v4443, 16
      %v5253 = vrot.slane %v5251, 3
      %v5254 = vor.u32 %v5250, %v5253
      %v5255 = vsel %vm5004, %v5245, %v5254
      %v5257 = vshrl.u32 %v4444, 16
      %v5259 = vrot.slane %v5257, 2
      %v5260 = vshll.u32 %v4444, 16
      %v5262 = vrot.slane %v5260, 3
      %v5263 = vor.u32 %v5259, %v5262
      %v5264 = vsel %vm5004, %v5254, %v5263
      %v5266 = vshrl.u32 %v4445, 16
      %v5268 = vrot.slane %v5266, 2
      %v5269 = vshll.u32 %v4445, 16
      %v5271 = vrot.slane %v5269, 3
      %v5272 = vor.u32 %v5268, %v5271
      %v5273 = vsel %vm5004, %v5263, %v5272
      %v5275 = vshrl.u32 %v4446, 16
      %v5277 = vrot.slane %v5275, 2
      %v5278 = vshll.u32 %v4446, 16
      %v5280 = vrot.slane %v5278, 3
      %v5281 = vor.u32 %v5277, %v5280
      %v5282 = vsel %vm5004, %v5272, %v5281
      %v5284 = vshrl.u32 %v4447, 16
      %v5286 = vrot.slane %v5284, 2
      %v5287 = vshll.u32 %v4447, 16
      %v5289 = vrot.slane %v5287, 3
      %v5290 = vor.u32 %v5286, %v5289
      %v5291 = vsel %vm5004, %v5281, %v5290
      %v5293 = vshrl.u32 %v4448, 16
      %v5295 = vrot.slane %v5293, 2
      %v5296 = vshll.u32 %v4448, 16
      %v5298 = vrot.slane %v5296, 3
      %v5299 = vor.u32 %v5295, %v5298
      %v5300 = vsel %vm5004, %v5290, %v5299
      %v5302 = vshrl.u32 %v4449, 16
      %v5304 = vrot.slane %v5302, 2
      %v5305 = vshll.u32 %v4449, 16
      %v5307 = vrot.slane %v5305, 3
      %v5308 = vor.u32 %v5304, %v5307
      %v5309 = vsel %vm5004, %v5299, %v5308
      %v5311 = vshrl.u32 %v5003, 16
      %v5313 = vrot.slane %v5311, 2
      %v5314 = vshll.u32 %v5003, 16
      %v5316 = vrot.slane %v5314, 3
      %v5317 = vor.u32 %v5313, %v5316
      %v5318 = vsel %vm5004, %v5308, %v5317
      %v5320 = vsel %vm721, %v5021, 0
      %v5323 = vsel %vm721, %v5030, 0
      %v5326 = vsel %vm721, %v5039, 0
      %v5329 = vsel %vm721, %v5048, 0
      %v5332 = vsel %vm721, %v5057, 0
      %v5335 = vsel %vm721, %v5066, 0
      %v5338 = vsel %vm721, %v5075, 0
      %v5341 = vsel %vm721, %v5084, 0
      %v5344 = vsel %vm721, %v5093, 0
      %v5347 = vsel %vm721, %v5102, 0
      %v5350 = vsel %vm721, %v5111, 0
      %v5353 = vsel %vm721, %v5120, 0
      %v5356 = vsel %vm721, %v5129, 0
      %v5359 = vsel %vm721, %v5138, 0
      %v5362 = vsel %vm721, %v5147, 0
      %v5365 = vsel %vm721, %v5156, 0
      %v5368 = vsel %vm721, %v5165, 0
      %v5371 = vsel %vm721, %v5174, 0
      %v5374 = vsel %vm721, %v5183, 0
      %v5377 = vsel %vm721, %v5192, 0
      %v5380 = vsel %vm721, %v5201, 0
      %v5383 = vsel %vm721, %v5210, 0
      %v5386 = vsel %vm721, %v5219, 0
      %v5389 = vsel %vm721, %v5228, 0
      %v5392 = vsel %vm721, %v5237, 0
      %v5395 = vsel %vm721, %v5246, 0
      %v5398 = vsel %vm721, %v5255, 0
      %v5401 = vsel %vm721, %v5264, 0
      %v5404 = vsel %vm721, %v5273, 0
      %v5407 = vsel %vm721, %v5282, 0
      %v5410 = vsel %vm721, %v5291, 0
      %v5413 = vsel %vm721, %v5300, 0
      %v5416 = vsel %vm721, %v5309, 0
      %v5419 = vsel %vm721, %v5318, 0
      %v5422 = vsel %vm824, %v5000, 0
      %5424 = vmatprep.subr.bf16.mxu0 0
      %5425 = vmatpush1.bf16.msra.mxu0 %v5422
      %5426 = vmatprep.subr.bf16.mxu0 0
      %5427 = vmatpush1.bf16.msra.mxu0 0
      %5428 = vmatprep.subr.bf16.mxu0 0
      %5429 = vmatpush1.bf16.msra.mxu0 0
      %5430 = vmatprep.subr.bf16.mxu0 0
      %5431 = vmatpush1.bf16.msra.mxu0 0
      %5432 = vmatprep.subr.bf16.mxu0 0
      %5433 = vmatpush1.bf16.msra.mxu0 0
      %5434 = vmatprep.subr.bf16.mxu0 0
      %5435 = vmatpush1.bf16.msra.mxu0 0
      %5436 = vmatprep.subr.bf16.mxu0 0
      %5437 = vmatpush1.bf16.msra.mxu0 0
      %5438 = vmatprep.subr.bf16.mxu0 0
      %5439 = vmatpush1.bf16.msra.mxu0 0
      %5440 = vmatprep.subr.bf16.mxu0 0
      %5441 = vmatpush1.bf16.msra.mxu0 0
      %5442 = vmatprep.subr.bf16.mxu0 0
      %5443 = vmatpush1.bf16.msra.mxu0 0
      %5444 = vmatprep.subr.bf16.mxu0 0
      %5445 = vmatpush1.bf16.msra.mxu0 0
      %5446 = vmatprep.subr.bf16.mxu0 0
      %5447 = vmatpush1.bf16.msra.mxu0 0
      %5448 = vmatprep.subr.bf16.mxu0 0
      %5449 = vmatpush1.bf16.msra.mxu0 0
      %5450 = vmatprep.subr.bf16.mxu0 0
      %5451 = vmatpush1.bf16.msra.mxu0 0
      %5452 = vmatprep.subr.bf16.mxu0 0
      %5453 = vmatpush1.bf16.msra.mxu0 0
      %5454 = vmatprep.subr.bf16.mxu0 0
      %5455 = vmatpush1.bf16.msra.mxu0 0
      %5456 = vmatprep.mubr.bf16.mxu0 0
      %5457 = vmatmul.mubr.bf16.gmra.mrb[0].mxu0 %v5320
      %v5458 = vpop.f32.mrb[0].mxu0
      %v5459 = vadd.f32 0.0, %v5458
      %v5460 = vpop.f32.mrb[0].mxu0
      %v5461 = vpop.f32.mrb[0].mxu0
      %v5462 = vadd.f32 0.0, %v5461
      %v5463 = vpop.f32.mrb[0].mxu0
      %5464 = vmatprep.mubr.bf16.mxu0 0
      %5465 = vmatmul.mubr.bf16.gmra.mrb[0].mxu0 %v5323
      %v5466 = vpop.f32.mrb[0].mxu0
      %v5467 = vadd.f32 0.0, %v5466
      %v5468 = vpop.f32.mrb[0].mxu0
      %v5469 = vpop.f32.mrb[0].mxu0
      %v5470 = vadd.f32 0.0, %v5469
      %v5471 = vpop.f32.mrb[0].mxu0
      %5472 = vmatprep.mubr.bf16.mxu0 0
      %5473 = vmatmul.mubr.bf16.gmra.mrb[0].mxu0 %v5326
      %v5474 = vpop.f32.mrb[0].mxu0
      %v5475 = vadd.f32 0.0, %v5474
      %v5476 = vpop.f32.mrb[0].mxu0
      %v5477 = vpop.f32.mrb[0].mxu0
      %v5478 = vadd.f32 0.0, %v5477
      %v5479 = vpop.f32.mrb[0].mxu0
      %5480 = vmatprep.mubr.bf16.mxu0 0
      %5481 = vmatmul.mubr.bf16.gmra.mrb[0].mxu0 %v5329
      %v5482 = vpop.f32.mrb[0].mxu0
      %v5483 = vadd.f32 0.0, %v5482
      %v5484 = vpop.f32.mrb[0].mxu0
      %v5485 = vpop.f32.mrb[0].mxu0
      %v5486 = vadd.f32 0.0, %v5485
      %v5487 = vpop.f32.mrb[0].mxu0
      %5488 = vmatprep.mubr.bf16.mxu0 0
      %5489 = vmatmul.mubr.bf16.gmra.mrb[0].mxu0 %v5332
      %v5490 = vpop.f32.mrb[0].mxu0
      %v5491 = vadd.f32 0.0, %v5490
      %v5492 = vpop.f32.mrb[0].mxu0
      %v5493 = vpop.f32.mrb[0].mxu0
      %v5494 = vadd.f32 0.0, %v5493
      %v5495 = vpop.f32.mrb[0].mxu0
      %5496 = vmatprep.mubr.bf16.mxu0 0
      %5497 = vmatmul.mubr.bf16.gmra.mrb[0].mxu0 %v5335
      %v5498 = vpop.f32.mrb[0].mxu0
      %v5499 = vadd.f32 0.0, %v5498
      %v5500 = vpop.f32.mrb[0].mxu0
      %v5501 = vpop.f32.mrb[0].mxu0
      %v5502 = vadd.f32 0.0, %v5501
      %v5503 = vpop.f32.mrb[0].mxu0
      %5504 = vmatprep.mubr.bf16.mxu0 0
      %5505 = vmatmul.mubr.bf16.gmra.mrb[0].mxu0 %v5338
      %v5506 = vpop.f32.mrb[0].mxu0
      %v5507 = vadd.f32 0.0, %v5506
      %v5508 = vpop.f32.mrb[0].mxu0
      %v5509 = vpop.f32.mrb[0].mxu0
      %v5510 = vadd.f32 0.0, %v5509
      %v5511 = vpop.f32.mrb[0].mxu0
      %5512 = vmatprep.mubr.bf16.mxu0 0
      %5513 = vmatmul.mubr.bf16.gmra.mrb[0].mxu0 %v5341
      %v5514 = vpop.f32.mrb[0].mxu0
      %v5515 = vadd.f32 0.0, %v5514
      %v5516 = vpop.f32.mrb[0].mxu0
      %v5517 = vpop.f32.mrb[0].mxu0
      %v5518 = vadd.f32 0.0, %v5517
      %v5519 = vpop.f32.mrb[0].mxu0
      %5520 = vmatprep.mubr.bf16.mxu0 0
      %5521 = vmatmul.mubr.bf16.gmra.mrb[0].mxu0 %v5344
      %v5522 = vpop.f32.mrb[0].mxu0
      %v5523 = vadd.f32 0.0, %v5522
      %v5524 = vpop.f32.mrb[0].mxu0
      %v5525 = vpop.f32.mrb[0].mxu0
      %v5526 = vadd.f32 0.0, %v5525
      %v5527 = vpop.f32.mrb[0].mxu0
      %5528 = vmatprep.mubr.bf16.mxu0 0
      %5529 = vmatmul.mubr.bf16.gmra.mrb[0].mxu0 %v5347
      %v5530 = vpop.f32.mrb[0].mxu0
      %v5531 = vadd.f32 0.0, %v5530
      %v5532 = vpop.f32.mrb[0].mxu0
      %v5533 = vpop.f32.mrb[0].mxu0
      %v5534 = vadd.f32 0.0, %v5533
      %v5535 = vpop.f32.mrb[0].mxu0
      %5536 = vmatprep.mubr.bf16.mxu0 0
      %5537 = vmatmul.mubr.bf16.gmra.mrb[0].mxu0 %v5350
      %v5538 = vpop.f32.mrb[0].mxu0
      %v5539 = vadd.f32 0.0, %v5538
      %v5540 = vpop.f32.mrb[0].mxu0
      %v5541 = vpop.f32.mrb[0].mxu0
      %v5542 = vadd.f32 0.0, %v5541
      %v5543 = vpop.f32.mrb[0].mxu0
      %5544 = vmatprep.mubr.bf16.mxu0 0
      %5545 = vmatmul.mubr.bf16.gmra.mrb[0].mxu0 %v5353
      %v5546 = vpop.f32.mrb[0].mxu0
      %v5547 = vadd.f32 0.0, %v5546
      %v5548 = vpop.f32.mrb[0].mxu0
      %v5549 = vpop.f32.mrb[0].mxu0
      %v5550 = vadd.f32 0.0, %v5549
      %v5551 = vpop.f32.mrb[0].mxu0
      %5552 = vmatprep.mubr.bf16.mxu0 0
      %5553 = vmatmul.mubr.bf16.gmra.mrb[0].mxu0 %v5356
      %v5554 = vpop.f32.mrb[0].mxu0
      %v5555 = vadd.f32 0.0, %v5554
      %v5556 = vpop.f32.mrb[0].mxu0
      %v5557 = vpop.f32.mrb[0].mxu0
      %v5558 = vadd.f32 0.0, %v5557
      %v5559 = vpop.f32.mrb[0].mxu0
      %5560 = vmatprep.mubr.bf16.mxu0 0
      %5561 = vmatmul.mubr.bf16.gmra.mrb[0].mxu0 %v5359
      %v5562 = vpop.f32.mrb[0].mxu0
      %v5563 = vadd.f32 0.0, %v5562
      %v5564 = vpop.f32.mrb[0].mxu0
      %v5565 = vpop.f32.mrb[0].mxu0
      %v5566 = vadd.f32 0.0, %v5565
      %v5567 = vpop.f32.mrb[0].mxu0
      %5568 = vmatprep.mubr.bf16.mxu0 0
      %5569 = vmatmul.mubr.bf16.gmra.mrb[0].mxu0 %v5362
      %v5570 = vpop.f32.mrb[0].mxu0
      %v5571 = vadd.f32 0.0, %v5570
      %v5572 = vpop.f32.mrb[0].mxu0
      %v5573 = vpop.f32.mrb[0].mxu0
      %v5574 = vadd.f32 0.0, %v5573
      %v5575 = vpop.f32.mrb[0].mxu0
      %5576 = vmatprep.mubr.bf16.mxu0 0
      %5577 = vmatmul.mubr.bf16.gmra.mrb[0].mxu0 %v5365
      %v5578 = vpop.f32.mrb[0].mxu0
      %v5579 = vadd.f32 0.0, %v5578
      %v5580 = vpop.f32.mrb[0].mxu0
      %v5581 = vpop.f32.mrb[0].mxu0
      %v5582 = vadd.f32 0.0, %v5581
      %v5583 = vpop.f32.mrb[0].mxu0
      %5584 = vmatprep.mubr.bf16.mxu0 0
      %5585 = vmatmul.mubr.bf16.gmra.mrb[0].mxu0 %v5368
      %v5586 = vpop.f32.mrb[0].mxu0
      %v5587 = vadd.f32 0.0, %v5586
      %v5588 = vpop.f32.mrb[0].mxu0
      %v5589 = vpop.f32.mrb[0].mxu0
      %v5590 = vadd.f32 0.0, %v5589
      %v5591 = vpop.f32.mrb[0].mxu0
      %5592 = vmatprep.mubr.bf16.mxu0 0
      %5593 = vmatmul.mubr.bf16.gmra.mrb[0].mxu0 %v5371
      %v5594 = vpop.f32.mrb[0].mxu0
      %v5595 = vadd.f32 0.0, %v5594
      %v5596 = vpop.f32.mrb[0].mxu0
      %v5597 = vpop.f32.mrb[0].mxu0
      %v5598 = vadd.f32 0.0, %v5597
      %v5599 = vpop.f32.mrb[0].mxu0
      %5600 = vmatprep.mubr.bf16.mxu0 0
      %5601 = vmatmul.mubr.bf16.gmra.mrb[0].mxu0 %v5374
      %v5602 = vpop.f32.mrb[0].mxu0
      %v5603 = vadd.f32 0.0, %v5602
      %v5604 = vpop.f32.mrb[0].mxu0
      %v5605 = vpop.f32.mrb[0].mxu0
      %v5606 = vadd.f32 0.0, %v5605
      %v5607 = vpop.f32.mrb[0].mxu0
      %5608 = vmatprep.mubr.bf16.mxu0 0
      %5609 = vmatmul.mubr.bf16.gmra.mrb[0].mxu0 %v5377
      %v5610 = vpop.f32.mrb[0].mxu0
      %v5611 = vadd.f32 0.0, %v5610
      %v5612 = vpop.f32.mrb[0].mxu0
      %v5613 = vpop.f32.mrb[0].mxu0
      %v5614 = vadd.f32 0.0, %v5613
      %v5615 = vpop.f32.mrb[0].mxu0
      %5616 = vmatprep.mubr.bf16.mxu0 0
      %5617 = vmatmul.mubr.bf16.gmra.mrb[0].mxu0 %v5380
      %v5618 = vpop.f32.mrb[0].mxu0
      %v5619 = vadd.f32 0.0, %v5618
      %v5620 = vpop.f32.mrb[0].mxu0
      %v5621 = vpop.f32.mrb[0].mxu0
      %v5622 = vadd.f32 0.0, %v5621
      %v5623 = vpop.f32.mrb[0].mxu0
      %5624 = vmatprep.mubr.bf16.mxu0 0
      %5625 = vmatmul.mubr.bf16.gmra.mrb[0].mxu0 %v5383
      %v5626 = vpop.f32.mrb[0].mxu0
      %v5627 = vadd.f32 0.0, %v5626
      %v5628 = vpop.f32.mrb[0].mxu0
      %v5629 = vpop.f32.mrb[0].mxu0
      %v5630 = vadd.f32 0.0, %v5629
      %v5631 = vpop.f32.mrb[0].mxu0
      %5632 = vmatprep.mubr.bf16.mxu0 0
      %5633 = vmatmul.mubr.bf16.gmra.mrb[0].mxu0 %v5386
      %v5634 = vpop.f32.mrb[0].mxu0
      %v5635 = vadd.f32 0.0, %v5634
      %v5636 = vpop.f32.mrb[0].mxu0
      %v5637 = vpop.f32.mrb[0].mxu0
      %v5638 = vadd.f32 0.0, %v5637
      %v5639 = vpop.f32.mrb[0].mxu0
      %5640 = vmatprep.mubr.bf16.mxu0 0
      %5641 = vmatmul.mubr.bf16.gmra.mrb[0].mxu0 %v5389
      %v5642 = vpop.f32.mrb[0].mxu0
      %v5643 = vadd.f32 0.0, %v5642
      %v5644 = vpop.f32.mrb[0].mxu0
      %v5645 = vpop.f32.mrb[0].mxu0
      %v5646 = vadd.f32 0.0, %v5645
      %v5647 = vpop.f32.mrb[0].mxu0
      %5648 = vmatprep.mubr.bf16.mxu0 0
      %5649 = vmatmul.mubr.bf16.gmra.mrb[0].mxu0 %v5392
      %v5650 = vpop.f32.mrb[0].mxu0
      %v5651 = vadd.f32 0.0, %v5650
      %v5652 = vpop.f32.mrb[0].mxu0
      %v5653 = vpop.f32.mrb[0].mxu0
      %v5654 = vadd.f32 0.0, %v5653
      %v5655 = vpop.f32.mrb[0].mxu0
      %5656 = vmatprep.mubr.bf16.mxu0 0
      %5657 = vmatmul.mubr.bf16.gmra.mrb[0].mxu0 %v5395
      %v5658 = vpop.f32.mrb[0].mxu0
      %v5659 = vadd.f32 0.0, %v5658
      %v5660 = vpop.f32.mrb[0].mxu0
      %v5661 = vpop.f32.mrb[0].mxu0
      %v5662 = vadd.f32 0.0, %v5661
      %v5663 = vpop.f32.mrb[0].mxu0
      %5664 = vmatprep.mubr.bf16.mxu0 0
      %5665 = vmatmul.mubr.bf16.gmra.mrb[0].mxu0 %v5398
      %v5666 = vpop.f32.mrb[0].mxu0
      %v5667 = vadd.f32 0.0, %v5666
      %v5668 = vpop.f32.mrb[0].mxu0
      %v5669 = vpop.f32.mrb[0].mxu0
      %v5670 = vadd.f32 0.0, %v5669
      %v5671 = vpop.f32.mrb[0].mxu0
      %5672 = vmatprep.mubr.bf16.mxu0 0
      %5673 = vmatmul.mubr.bf16.gmra.mrb[0].mxu0 %v5401
      %v5674 = vpop.f32.mrb[0].mxu0
      %v5675 = vadd.f32 0.0, %v5674
      %v5676 = vpop.f32.mrb[0].mxu0
      %v5677 = vpop.f32.mrb[0].mxu0
      %v5678 = vadd.f32 0.0, %v5677
      %v5679 = vpop.f32.mrb[0].mxu0
      %5680 = vmatprep.mubr.bf16.mxu0 0
      %5681 = vmatmul.mubr.bf16.gmra.mrb[0].mxu0 %v5404
      %v5682 = vpop.f32.mrb[0].mxu0
      %v5683 = vadd.f32 0.0, %v5682
      %v5684 = vpop.f32.mrb[0].mxu0
      %v5685 = vpop.f32.mrb[0].mxu0
      %v5686 = vadd.f32 0.0, %v5685
      %v5687 = vpop.f32.mrb[0].mxu0
      %5688 = vmatprep.mubr.bf16.mxu0 0
      %5689 = vmatmul.mubr.bf16.gmra.mrb[0].mxu0 %v5407
      %v5690 = vpop.f32.mrb[0].mxu0
      %v5691 = vadd.f32 0.0, %v5690
      %v5692 = vpop.f32.mrb[0].mxu0
      %v5693 = vpop.f32.mrb[0].mxu0
      %v5694 = vadd.f32 0.0, %v5693
      %v5695 = vpop.f32.mrb[0].mxu0
      %5696 = vmatprep.mubr.bf16.mxu0 0
      %5697 = vmatmul.mubr.bf16.gmra.mrb[0].mxu0 %v5410
      %v5698 = vpop.f32.mrb[0].mxu0
      %v5699 = vadd.f32 0.0, %v5698
      %v5700 = vpop.f32.mrb[0].mxu0
      %v5701 = vpop.f32.mrb[0].mxu0
      %v5702 = vadd.f32 0.0, %v5701
      %v5703 = vpop.f32.mrb[0].mxu0
      %5704 = vmatprep.mubr.bf16.mxu0 0
      %5705 = vmatmul.mubr.bf16.gmra.mrb[0].mxu0 %v5413
      %v5706 = vpop.f32.mrb[0].mxu0
      %v5707 = vadd.f32 0.0, %v5706
      %v5708 = vpop.f32.mrb[0].mxu0
      %v5709 = vpop.f32.mrb[0].mxu0
      %v5710 = vadd.f32 0.0, %v5709
      %v5711 = vpop.f32.mrb[0].mxu0
      %5712 = vmatprep.mubr.bf16.mxu0 0
      %5713 = vmatmul.mubr.bf16.gmra.mrb[0].mxu0 %v5416
      %v5714 = vpop.f32.mrb[0].mxu0
      %v5715 = vadd.f32 0.0, %v5714
      %v5716 = vpop.f32.mrb[0].mxu0
      %v5717 = vpop.f32.mrb[0].mxu0
      %v5718 = vadd.f32 0.0, %v5717
      %v5719 = vpop.f32.mrb[0].mxu0
      %5720 = vmatprep.mubr.bf16.mxu0 0
      %5721 = vmatmul.mubr.bf16.gmra.mrb[0].mxu0 %v5419
      %v5722 = vpop.f32.mrb[0].mxu0
      %v5723 = vadd.f32 0.0, %v5722
      %v5724 = vpop.f32.mrb[0].mxu0
      %v5725 = vpop.f32.mrb[0].mxu0
      %v5726 = vadd.f32 0.0, %v5725
      %v5727 = vpop.f32.mrb[0].mxu0
      %5728 = vdwg.mxu0
      %v5729 = vadd.f32 %v4930, %v5459
      %v5730 = vadd.f32 %v4931, %v5462
      %v5731 = vadd.f32 %v4932, %v5467
      %v5732 = vadd.f32 %v4933, %v5470
      %v5733 = vadd.f32 %v4934, %v5475
      %v5734 = vadd.f32 %v4935, %v5478
      %v5735 = vadd.f32 %v4936, %v5483
      %v5736 = vadd.f32 %v4937, %v5486
      %v5737 = vadd.f32 %v4938, %v5491
      %v5738 = vadd.f32 %v4939, %v5494
      %v5739 = vadd.f32 %v4940, %v5499
      %v5740 = vadd.f32 %v4941, %v5502
      %v5741 = vadd.f32 %v4942, %v5507
      %v5742 = vadd.f32 %v4943, %v5510
      %v5743 = vadd.f32 %v4944, %v5515
      %v5744 = vadd.f32 %v4945, %v5518
      %v5745 = vadd.f32 %v4946, %v5523
      %v5746 = vadd.f32 %v4947, %v5526
      %v5747 = vadd.f32 %v4948, %v5531
      %v5748 = vadd.f32 %v4949, %v5534
      %v5749 = vadd.f32 %v4950, %v5539
      %v5750 = vadd.f32 %v4951, %v5542
      %v5751 = vadd.f32 %v4952, %v5547
      %v5752 = vadd.f32 %v4953, %v5550
      %v5753 = vadd.f32 %v4954, %v5555
      %v5754 = vadd.f32 %v4955, %v5558
      %v5755 = vadd.f32 %v4956, %v5563
      %v5756 = vadd.f32 %v4957, %v5566
      %v5757 = vadd.f32 %v4958, %v5571
      %v5758 = vadd.f32 %v4959, %v5574
      %v5759 = vadd.f32 %v4960, %v5579
      %v5760 = vadd.f32 %v4961, %v5582
      %v5761 = vadd.f32 %v4962, %v5587
      %v5762 = vadd.f32 %v4963, %v5590
      %v5763 = vadd.f32 %v4964, %v5595
      %v5764 = vadd.f32 %v4965, %v5598
      %v5765 = vadd.f32 %v4966, %v5603
      %v5766 = vadd.f32 %v4967, %v5606
      %v5767 = vadd.f32 %v4968, %v5611
      %v5768 = vadd.f32 %v4969, %v5614
      %v5769 = vadd.f32 %v4970, %v5619
      %v5770 = vadd.f32 %v4971, %v5622
      %v5771 = vadd.f32 %v4972, %v5627
      %v5772 = vadd.f32 %v4973, %v5630
      %v5773 = vadd.f32 %v4974, %v5635
      %v5774 = vadd.f32 %v4975, %v5638
      %v5775 = vadd.f32 %v4976, %v5643
      %v5776 = vadd.f32 %v4977, %v5646
      %v5777 = vadd.f32 %v4978, %v5651
      %v5778 = vadd.f32 %v4979, %v5654
      %v5779 = vadd.f32 %v4980, %v5659
      %v5780 = vadd.f32 %v4981, %v5662
      %v5781 = vadd.f32 %v4982, %v5667
      %v5782 = vadd.f32 %v4983, %v5670
      %v5783 = vadd.f32 %v4984, %v5675
      %v5784 = vadd.f32 %v4985, %v5678
      %v5785 = vadd.f32 %v4986, %v5683
      %v5786 = vadd.f32 %v4987, %v5686
      %v5787 = vadd.f32 %v4988, %v5691
      %v5788 = vadd.f32 %v4989, %v5694
      %v5789 = vadd.f32 %v4990, %v5699
      %v5790 = vadd.f32 %v4991, %v5702
      %v5791 = vadd.f32 %v4992, %v5707
      %v5792 = vadd.f32 %v4993, %v5710
      %v5793 = vadd.f32 %v4994, %v5715
      %v5794 = vadd.f32 %v4995, %v5718
      %v5795 = vadd.f32 %v4996, %v5723
      %v5796 = vadd.f32 %v4997, %v5726
      %v5797 = vld [vmem:[%s192 + $0x20] sm:$0x8]
      %s5798 = scalar_lea.vmem %s1, 32
      %v5799 = vld [vmem:[%s5798] sm:$0xf]
      %v5801 = vunpack.c.l.b16 %v5797
      %v5802 = vpack.c.b16 %v4348, %v5801
      %vm5803 = vcmask 1044480
      %v5804 = vrot.slane %v5802, 3
      %v5805 = vrot.slane %v4417, 3
      %v5806 = vsel %vm5803, %v5804, %v5805
      %v5807 = vrot.slane %v4418, 3
      %v5808 = vsel %vm5803, %v5805, %v5807
      %v5809 = vrot.slane %v4419, 3
      %v5810 = vsel %vm5803, %v5807, %v5809
      %v5811 = vrot.slane %v4420, 3
      %v5812 = vsel %vm5803, %v5809, %v5811
      %v5813 = vrot.slane %v4421, 3
      %v5814 = vsel %vm5803, %v5811, %v5813
      %v5815 = vrot.slane %v4422, 3
      %v5816 = vsel %vm5803, %v5813, %v5815
      %v5817 = vrot.slane %v4423, 3
      %v5818 = vsel %vm5803, %v5815, %v5817
      %v5819 = vrot.slane %v4424, 3
      %v5820 = vsel %vm5803, %v5817, %v5819
      %v5821 = vrot.slane %v4425, 3
      %v5822 = vsel %vm5803, %v5819, %v5821
      %v5823 = vrot.slane %v4426, 3
      %v5824 = vsel %vm5803, %v5821, %v5823
      %v5825 = vrot.slane %v4427, 3
      %v5826 = vsel %vm5803, %v5823, %v5825
      %v5827 = vrot.slane %v4428, 3
      %v5828 = vsel %vm5803, %v5825, %v5827
      %v5829 = vrot.slane %v4429, 3
      %v5830 = vsel %vm5803, %v5827, %v5829
      %v5831 = vrot.slane %v4430, 3
      %v5832 = vsel %vm5803, %v5829, %v5831
      %v5833 = vrot.slane %v4431, 3
      %v5834 = vsel %vm5803, %v5831, %v5833
      %v5835 = vrot.slane %v4432, 3
      %v5836 = vsel %vm5803, %v5833, %v5835
      %v5837 = vrot.slane %v4433, 3
      %v5838 = vsel %vm5803, %v5835, %v5837
      %v5839 = vrot.slane %v4434, 3
      %v5840 = vsel %vm5803, %v5837, %v5839
      %v5841 = vrot.slane %v4435, 3
      %v5842 = vsel %vm5803, %v5839, %v5841
      %v5843 = vrot.slane %v4436, 3
      %v5844 = vsel %vm5803, %v5841, %v5843
      %v5845 = vrot.slane %v4437, 3
      %v5846 = vsel %vm5803, %v5843, %v5845
      %v5847 = vrot.slane %v4438, 3
      %v5848 = vsel %vm5803, %v5845, %v5847
      %v5849 = vrot.slane %v4439, 3
      %v5850 = vsel %vm5803, %v5847, %v5849
      %v5851 = vrot.slane %v4440, 3
      %v5852 = vsel %vm5803, %v5849, %v5851
      %v5853 = vrot.slane %v4441, 3
      %v5854 = vsel %vm5803, %v5851, %v5853
      %v5855 = vrot.slane %v4442, 3
      %v5856 = vsel %vm5803, %v5853, %v5855
      %v5857 = vrot.slane %v4443, 3
      %v5858 = vsel %vm5803, %v5855, %v5857
      %v5859 = vrot.slane %v4444, 3
      %v5860 = vsel %vm5803, %v5857, %v5859
      %v5861 = vrot.slane %v4445, 3
      %v5862 = vsel %vm5803, %v5859, %v5861
      %v5863 = vrot.slane %v4446, 3
      %v5864 = vsel %vm5803, %v5861, %v5863
      %v5865 = vrot.slane %v4447, 3
      %v5866 = vsel %vm5803, %v5863, %v5865
      %v5867 = vrot.slane %v4448, 3
      %v5868 = vsel %vm5803, %v5865, %v5867
      %v5869 = vrot.slane %v4449, 3
      %v5870 = vsel %vm5803, %v5867, %v5869
      %v5871 = vrot.slane %v5003, 3
      %v5872 = vsel %vm5803, %v5869, %v5871
      %v5874 = vsel %vm721, %v5806, 0
      %v5877 = vsel %vm721, %v5808, 0
      %v5880 = vsel %vm721, %v5810, 0
      %v5883 = vsel %vm721, %v5812, 0
      %v5886 = vsel %vm721, %v5814, 0
      %v5889 = vsel %vm721, %v5816, 0
      %v5892 = vsel %vm721, %v5818, 0
      %v5895 = vsel %vm721, %v5820, 0
      %v5898 = vsel %vm721, %v5822, 0
      %v5901 = vsel %vm721, %v5824, 0
      %v5904 = vsel %vm721, %v5826, 0
      %v5907 = vsel %vm721, %v5828, 0
      %v5910 = vsel %vm721, %v5830, 0
      %v5913 = vsel %vm721, %v5832, 0
      %v5916 = vsel %vm721, %v5834, 0
      %v5919 = vsel %vm721, %v5836, 0
      %v5922 = vsel %vm721, %v5838, 0
      %v5925 = vsel %vm721, %v5840, 0
      %v5928 = vsel %vm721, %v5842, 0
      %v5931 = vsel %vm721, %v5844, 0
      %v5934 = vsel %vm721, %v5846, 0
      %v5937 = vsel %vm721, %v5848, 0
      %v5940 = vsel %vm721, %v5850, 0
      %v5943 = vsel %vm721, %v5852, 0
      %v5946 = vsel %vm721, %v5854, 0
      %v5949 = vsel %vm721, %v5856, 0
      %v5952 = vsel %vm721, %v5858, 0
      %v5955 = vsel %vm721, %v5860, 0
      %v5958 = vsel %vm721, %v5862, 0
      %v5961 = vsel %vm721, %v5864, 0
      %v5964 = vsel %vm721, %v5866, 0
      %v5967 = vsel %vm721, %v5868, 0
      %v5970 = vsel %vm721, %v5870, 0
      %v5973 = vsel %vm721, %v5872, 0
      %v5976 = vsel %vm824, %v5799, 0
      %5978 = vmatprep.subr.bf16.mxu0 0
      %5979 = vmatpush1.bf16.msra.mxu0 %v5976
      %5980 = vmatprep.subr.bf16.mxu0 0
      %5981 = vmatpush1.bf16.msra.mxu0 0
      %5982 = vmatprep.subr.bf16.mxu0 0
      %5983 = vmatpush1.bf16.msra.mxu0 0
      %5984 = vmatprep.subr.bf16.mxu0 0
      %5985 = vmatpush1.bf16.msra.mxu0 0
      %5986 = vmatprep.subr.bf16.mxu0 0
      %5987 = vmatpush1.bf16.msra.mxu0 0
      %5988 = vmatprep.subr.bf16.mxu0 0
      %5989 = vmatpush1.bf16.msra.mxu0 0
      %5990 = vmatprep.subr.bf16.mxu0 0
      %5991 = vmatpush1.bf16.msra.mxu0 0
      %5992 = vmatprep.subr.bf16.mxu0 0
      %5993 = vmatpush1.bf16.msra.mxu0 0
      %5994 = vmatprep.subr.bf16.mxu0 0
      %5995 = vmatpush1.bf16.msra.mxu0 0
      %5996 = vmatprep.subr.bf16.mxu0 0
      %5997 = vmatpush1.bf16.msra.mxu0 0
      %5998 = vmatprep.subr.bf16.mxu0 0
      %5999 = vmatpush1.bf16.msra.mxu0 0
      %6000 = vmatprep.subr.bf16.mxu0 0
      %6001 = vmatpush1.bf16.msra.mxu0 0
      %6002 = vmatprep.subr.bf16.mxu0 0
      %6003 = vmatpush1.bf16.msra.mxu0 0
      %6004 = vmatprep.subr.bf16.mxu0 0
      %6005 = vmatpush1.bf16.msra.mxu0 0
      %6006 = vmatprep.subr.bf16.mxu0 0
      %6007 = vmatpush1.bf16.msra.mxu0 0
      %6008 = vmatprep.subr.bf16.mxu0 0
      %6009 = vmatpush1.bf16.msra.mxu0 0
      %6010 = vmatprep.mubr.bf16.mxu0 0
      %6011 = vmatmul.mubr.bf16.gmra.mrb[0].mxu0 %v5874
      %v6012 = vpop.f32.mrb[0].mxu0
      %v6013 = vadd.f32 0.0, %v6012
      %v6014 = vpop.f32.mrb[0].mxu0
      %v6015 = vpop.f32.mrb[0].mxu0
      %v6016 = vadd.f32 0.0, %v6015
      %v6017 = vpop.f32.mrb[0].mxu0
      %6018 = vmatprep.mubr.bf16.mxu0 0
      %6019 = vmatmul.mubr.bf16.gmra.mrb[0].mxu0 %v5877
      %v6020 = vpop.f32.mrb[0].mxu0
      %v6021 = vadd.f32 0.0, %v6020
      %v6022 = vpop.f32.mrb[0].mxu0
      %v6023 = vpop.f32.mrb[0].mxu0
      %v6024 = vadd.f32 0.0, %v6023
      %v6025 = vpop.f32.mrb[0].mxu0
      %6026 = vmatprep.mubr.bf16.mxu0 0
      %6027 = vmatmul.mubr.bf16.gmra.mrb[0].mxu0 %v5880
      %v6028 = vpop.f32.mrb[0].mxu0
      %v6029 = vadd.f32 0.0, %v6028
      %v6030 = vpop.f32.mrb[0].mxu0
      %v6031 = vpop.f32.mrb[0].mxu0
      %v6032 = vadd.f32 0.0, %v6031
      %v6033 = vpop.f32.mrb[0].mxu0
      %6034 = vmatprep.mubr.bf16.mxu0 0
      %6035 = vmatmul.mubr.bf16.gmra.mrb[0].mxu0 %v5883
      %v6036 = vpop.f32.mrb[0].mxu0
      %v6037 = vadd.f32 0.0, %v6036
      %v6038 = vpop.f32.mrb[0].mxu0
      %v6039 = vpop.f32.mrb[0].mxu0
      %v6040 = vadd.f32 0.0, %v6039
      %v6041 = vpop.f32.mrb[0].mxu0
      %6042 = vmatprep.mubr.bf16.mxu0 0
      %6043 = vmatmul.mubr.bf16.gmra.mrb[0].mxu0 %v5886
      %v6044 = vpop.f32.mrb[0].mxu0
      %v6045 = vadd.f32 0.0, %v6044
      %v6046 = vpop.f32.mrb[0].mxu0
      %v6047 = vpop.f32.mrb[0].mxu0
      %v6048 = vadd.f32 0.0, %v6047
      %v6049 = vpop.f32.mrb[0].mxu0
      %6050 = vmatprep.mubr.bf16.mxu0 0
      %6051 = vmatmul.mubr.bf16.gmra.mrb[0].mxu0 %v5889
      %v6052 = vpop.f32.mrb[0].mxu0
      %v6053 = vadd.f32 0.0, %v6052
      %v6054 = vpop.f32.mrb[0].mxu0
      %v6055 = vpop.f32.mrb[0].mxu0
      %v6056 = vadd.f32 0.0, %v6055
      %v6057 = vpop.f32.mrb[0].mxu0
      %6058 = vmatprep.mubr.bf16.mxu0 0
      %6059 = vmatmul.mubr.bf16.gmra.mrb[0].mxu0 %v5892
      %v6060 = vpop.f32.mrb[0].mxu0
      %v6061 = vadd.f32 0.0, %v6060
      %v6062 = vpop.f32.mrb[0].mxu0
      %v6063 = vpop.f32.mrb[0].mxu0
      %v6064 = vadd.f32 0.0, %v6063
      %v6065 = vpop.f32.mrb[0].mxu0
      %6066 = vmatprep.mubr.bf16.mxu0 0
      %6067 = vmatmul.mubr.bf16.gmra.mrb[0].mxu0 %v5895
      %v6068 = vpop.f32.mrb[0].mxu0
      %v6069 = vadd.f32 0.0, %v6068
      %v6070 = vpop.f32.mrb[0].mxu0
      %v6071 = vpop.f32.mrb[0].mxu0
      %v6072 = vadd.f32 0.0, %v6071
      %v6073 = vpop.f32.mrb[0].mxu0
      %6074 = vmatprep.mubr.bf16.mxu0 0
      %6075 = vmatmul.mubr.bf16.gmra.mrb[0].mxu0 %v5898
      %v6076 = vpop.f32.mrb[0].mxu0
      %v6077 = vadd.f32 0.0, %v6076
      %v6078 = vpop.f32.mrb[0].mxu0
      %v6079 = vpop.f32.mrb[0].mxu0
      %v6080 = vadd.f32 0.0, %v6079
      %v6081 = vpop.f32.mrb[0].mxu0
      %6082 = vmatprep.mubr.bf16.mxu0 0
      %6083 = vmatmul.mubr.bf16.gmra.mrb[0].mxu0 %v5901
      %v6084 = vpop.f32.mrb[0].mxu0
      %v6085 = vadd.f32 0.0, %v6084
      %v6086 = vpop.f32.mrb[0].mxu0
      %v6087 = vpop.f32.mrb[0].mxu0
      %v6088 = vadd.f32 0.0, %v6087
      %v6089 = vpop.f32.mrb[0].mxu0
      %6090 = vmatprep.mubr.bf16.mxu0 0
      %6091 = vmatmul.mubr.bf16.gmra.mrb[0].mxu0 %v5904
      %v6092 = vpop.f32.mrb[0].mxu0
      %v6093 = vadd.f32 0.0, %v6092
      %v6094 = vpop.f32.mrb[0].mxu0
      %v6095 = vpop.f32.mrb[0].mxu0
      %v6096 = vadd.f32 0.0, %v6095
      %v6097 = vpop.f32.mrb[0].mxu0
      %6098 = vmatprep.mubr.bf16.mxu0 0
      %6099 = vmatmul.mubr.bf16.gmra.mrb[0].mxu0 %v5907
      %v6100 = vpop.f32.mrb[0].mxu0
      %v6101 = vadd.f32 0.0, %v6100
      %v6102 = vpop.f32.mrb[0].mxu0
      %v6103 = vpop.f32.mrb[0].mxu0
      %v6104 = vadd.f32 0.0, %v6103
      %v6105 = vpop.f32.mrb[0].mxu0
      %6106 = vmatprep.mubr.bf16.mxu0 0
      %6107 = vmatmul.mubr.bf16.gmra.mrb[0].mxu0 %v5910
      %v6108 = vpop.f32.mrb[0].mxu0
      %v6109 = vadd.f32 0.0, %v6108
      %v6110 = vpop.f32.mrb[0].mxu0
      %v6111 = vpop.f32.mrb[0].mxu0
      %v6112 = vadd.f32 0.0, %v6111
      %v6113 = vpop.f32.mrb[0].mxu0
      %6114 = vmatprep.mubr.bf16.mxu0 0
      %6115 = vmatmul.mubr.bf16.gmra.mrb[0].mxu0 %v5913
      %v6116 = vpop.f32.mrb[0].mxu0
      %v6117 = vadd.f32 0.0, %v6116
      %v6118 = vpop.f32.mrb[0].mxu0
      %v6119 = vpop.f32.mrb[0].mxu0
      %v6120 = vadd.f32 0.0, %v6119
      %v6121 = vpop.f32.mrb[0].mxu0
      %6122 = vmatprep.mubr.bf16.mxu0 0
      %6123 = vmatmul.mubr.bf16.gmra.mrb[0].mxu0 %v5916
      %v6124 = vpop.f32.mrb[0].mxu0
      %v6125 = vadd.f32 0.0, %v6124
      %v6126 = vpop.f32.mrb[0].mxu0
      %v6127 = vpop.f32.mrb[0].mxu0
      %v6128 = vadd.f32 0.0, %v6127
      %v6129 = vpop.f32.mrb[0].mxu0
      %6130 = vmatprep.mubr.bf16.mxu0 0
      %6131 = vmatmul.mubr.bf16.gmra.mrb[0].mxu0 %v5919
      %v6132 = vpop.f32.mrb[0].mxu0
      %v6133 = vadd.f32 0.0, %v6132
      %v6134 = vpop.f32.mrb[0].mxu0
      %v6135 = vpop.f32.mrb[0].mxu0
      %v6136 = vadd.f32 0.0, %v6135
      %v6137 = vpop.f32.mrb[0].mxu0
      %6138 = vmatprep.mubr.bf16.mxu0 0
      %6139 = vmatmul.mubr.bf16.gmra.mrb[0].mxu0 %v5922
      %v6140 = vpop.f32.mrb[0].mxu0
      %v6141 = vadd.f32 0.0, %v6140
      %v6142 = vpop.f32.mrb[0].mxu0
      %v6143 = vpop.f32.mrb[0].mxu0
      %v6144 = vadd.f32 0.0, %v6143
      %v6145 = vpop.f32.mrb[0].mxu0
      %6146 = vmatprep.mubr.bf16.mxu0 0
      %6147 = vmatmul.mubr.bf16.gmra.mrb[0].mxu0 %v5925
      %v6148 = vpop.f32.mrb[0].mxu0
      %v6149 = vadd.f32 0.0, %v6148
      %v6150 = vpop.f32.mrb[0].mxu0
      %v6151 = vpop.f32.mrb[0].mxu0
      %v6152 = vadd.f32 0.0, %v6151
      %v6153 = vpop.f32.mrb[0].mxu0
      %6154 = vmatprep.mubr.bf16.mxu0 0
      %6155 = vmatmul.mubr.bf16.gmra.mrb[0].mxu0 %v5928
      %v6156 = vpop.f32.mrb[0].mxu0
      %v6157 = vadd.f32 0.0, %v6156
      %v6158 = vpop.f32.mrb[0].mxu0
      %v6159 = vpop.f32.mrb[0].mxu0
      %v6160 = vadd.f32 0.0, %v6159
      %v6161 = vpop.f32.mrb[0].mxu0
      %6162 = vmatprep.mubr.bf16.mxu0 0
      %6163 = vmatmul.mubr.bf16.gmra.mrb[0].mxu0 %v5931
      %v6164 = vpop.f32.mrb[0].mxu0
      %v6165 = vadd.f32 0.0, %v6164
      %v6166 = vpop.f32.mrb[0].mxu0
      %v6167 = vpop.f32.mrb[0].mxu0
      %v6168 = vadd.f32 0.0, %v6167
      %v6169 = vpop.f32.mrb[0].mxu0
      %6170 = vmatprep.mubr.bf16.mxu0 0
      %6171 = vmatmul.mubr.bf16.gmra.mrb[0].mxu0 %v5934
      %v6172 = vpop.f32.mrb[0].mxu0
      %v6173 = vadd.f32 0.0, %v6172
      %v6174 = vpop.f32.mrb[0].mxu0
      %v6175 = vpop.f32.mrb[0].mxu0
      %v6176 = vadd.f32 0.0, %v6175
      %v6177 = vpop.f32.mrb[0].mxu0
      %6178 = vmatprep.mubr.bf16.mxu0 0
      %6179 = vmatmul.mubr.bf16.gmra.mrb[0].mxu0 %v5937
      %v6180 = vpop.f32.mrb[0].mxu0
      %v6181 = vadd.f32 0.0, %v6180
      %v6182 = vpop.f32.mrb[0].mxu0
      %v6183 = vpop.f32.mrb[0].mxu0
      %v6184 = vadd.f32 0.0, %v6183
      %v6185 = vpop.f32.mrb[0].mxu0
      %6186 = vmatprep.mubr.bf16.mxu0 0
      %6187 = vmatmul.mubr.bf16.gmra.mrb[0].mxu0 %v5940
      %v6188 = vpop.f32.mrb[0].mxu0
      %v6189 = vadd.f32 0.0, %v6188
      %v6190 = vpop.f32.mrb[0].mxu0
      %v6191 = vpop.f32.mrb[0].mxu0
      %v6192 = vadd.f32 0.0, %v6191
      %v6193 = vpop.f32.mrb[0].mxu0
      %6194 = vmatprep.mubr.bf16.mxu0 0
      %6195 = vmatmul.mubr.bf16.gmra.mrb[0].mxu0 %v5943
      %v6196 = vpop.f32.mrb[0].mxu0
      %v6197 = vadd.f32 0.0, %v6196
      %v6198 = vpop.f32.mrb[0].mxu0
      %v6199 = vpop.f32.mrb[0].mxu0
      %v6200 = vadd.f32 0.0, %v6199
      %v6201 = vpop.f32.mrb[0].mxu0
      %6202 = vmatprep.mubr.bf16.mxu0 0
      %6203 = vmatmul.mubr.bf16.gmra.mrb[0].mxu0 %v5946
      %v6204 = vpop.f32.mrb[0].mxu0
      %v6205 = vadd.f32 0.0, %v6204
      %v6206 = vpop.f32.mrb[0].mxu0
      %v6207 = vpop.f32.mrb[0].mxu0
      %v6208 = vadd.f32 0.0, %v6207
      %v6209 = vpop.f32.mrb[0].mxu0
      %6210 = vmatprep.mubr.bf16.mxu0 0
      %6211 = vmatmul.mubr.bf16.gmra.mrb[0].mxu0 %v5949
      %v6212 = vpop.f32.mrb[0].mxu0
      %v6213 = vadd.f32 0.0, %v6212
      %v6214 = vpop.f32.mrb[0].mxu0
      %v6215 = vpop.f32.mrb[0].mxu0
      %v6216 = vadd.f32 0.0, %v6215
      %v6217 = vpop.f32.mrb[0].mxu0
      %6218 = vmatprep.mubr.bf16.mxu0 0
      %6219 = vmatmul.mubr.bf16.gmra.mrb[0].mxu0 %v5952
      %v6220 = vpop.f32.mrb[0].mxu0
      %v6221 = vadd.f32 0.0, %v6220
      %v6222 = vpop.f32.mrb[0].mxu0
      %v6223 = vpop.f32.mrb[0].mxu0
      %v6224 = vadd.f32 0.0, %v6223
      %v6225 = vpop.f32.mrb[0].mxu0
      %6226 = vmatprep.mubr.bf16.mxu0 0
      %6227 = vmatmul.mubr.bf16.gmra.mrb[0].mxu0 %v5955
      %v6228 = vpop.f32.mrb[0].mxu0
      %v6229 = vadd.f32 0.0, %v6228
      %v6230 = vpop.f32.mrb[0].mxu0
      %v6231 = vpop.f32.mrb[0].mxu0
      %v6232 = vadd.f32 0.0, %v6231
      %v6233 = vpop.f32.mrb[0].mxu0
      %6234 = vmatprep.mubr.bf16.mxu0 0
      %6235 = vmatmul.mubr.bf16.gmra.mrb[0].mxu0 %v5958
      %v6236 = vpop.f32.mrb[0].mxu0
      %v6237 = vadd.f32 0.0, %v6236
      %v6238 = vpop.f32.mrb[0].mxu0
      %v6239 = vpop.f32.mrb[0].mxu0
      %v6240 = vadd.f32 0.0, %v6239
      %v6241 = vpop.f32.mrb[0].mxu0
      %6242 = vmatprep.mubr.bf16.mxu0 0
      %6243 = vmatmul.mubr.bf16.gmra.mrb[0].mxu0 %v5961
      %v6244 = vpop.f32.mrb[0].mxu0
      %v6245 = vadd.f32 0.0, %v6244
      %v6246 = vpop.f32.mrb[0].mxu0
      %v6247 = vpop.f32.mrb[0].mxu0
      %v6248 = vadd.f32 0.0, %v6247
      %v6249 = vpop.f32.mrb[0].mxu0
      %6250 = vmatprep.mubr.bf16.mxu0 0
      %6251 = vmatmul.mubr.bf16.gmra.mrb[0].mxu0 %v5964
      %v6252 = vpop.f32.mrb[0].mxu0
      %v6253 = vadd.f32 0.0, %v6252
      %v6254 = vpop.f32.mrb[0].mxu0
      %v6255 = vpop.f32.mrb[0].mxu0
      %v6256 = vadd.f32 0.0, %v6255
      %v6257 = vpop.f32.mrb[0].mxu0
      %6258 = vmatprep.mubr.bf16.mxu0 0
      %6259 = vmatmul.mubr.bf16.gmra.mrb[0].mxu0 %v5967
      %v6260 = vpop.f32.mrb[0].mxu0
      %v6261 = vadd.f32 0.0, %v6260
      %v6262 = vpop.f32.mrb[0].mxu0
      %v6263 = vpop.f32.mrb[0].mxu0
      %v6264 = vadd.f32 0.0, %v6263
      %v6265 = vpop.f32.mrb[0].mxu0
      %6266 = vmatprep.mubr.bf16.mxu0 0
      %6267 = vmatmul.mubr.bf16.gmra.mrb[0].mxu0 %v5970
      %v6268 = vpop.f32.mrb[0].mxu0
      %v6269 = vadd.f32 0.0, %v6268
      %v6270 = vpop.f32.mrb[0].mxu0
      %v6271 = vpop.f32.mrb[0].mxu0
      %v6272 = vadd.f32 0.0, %v6271
      %v6273 = vpop.f32.mrb[0].mxu0
      %6274 = vmatprep.mubr.bf16.mxu0 0
      %6275 = vmatmul.mubr.bf16.gmra.mrb[0].mxu0 %v5973
      %v6276 = vpop.f32.mrb[0].mxu0
      %v6277 = vadd.f32 0.0, %v6276
      %v6278 = vpop.f32.mrb[0].mxu0
      %v6279 = vpop.f32.mrb[0].mxu0
      %v6280 = vadd.f32 0.0, %v6279
      %v6281 = vpop.f32.mrb[0].mxu0
      %6282 = vdwg.mxu0
      %v6283 = vadd.f32 %v5729, %v6013
      %v6284 = vadd.f32 %v5730, %v6016
      %v6285 = vadd.f32 %v5731, %v6021
      %v6286 = vadd.f32 %v5732, %v6024
      %v6287 = vadd.f32 %v5733, %v6029
      %v6288 = vadd.f32 %v5734, %v6032
      %v6289 = vadd.f32 %v5735, %v6037
      %v6290 = vadd.f32 %v5736, %v6040
      %v6291 = vadd.f32 %v5737, %v6045
      %v6292 = vadd.f32 %v5738, %v6048
      %v6293 = vadd.f32 %v5739, %v6053
      %v6294 = vadd.f32 %v5740, %v6056
      %v6295 = vadd.f32 %v5741, %v6061
      %v6296 = vadd.f32 %v5742, %v6064
      %v6297 = vadd.f32 %v5743, %v6069
      %v6298 = vadd.f32 %v5744, %v6072
      %v6299 = vadd.f32 %v5745, %v6077
      %v6300 = vadd.f32 %v5746, %v6080
      %v6301 = vadd.f32 %v5747, %v6085
      %v6302 = vadd.f32 %v5748, %v6088
      %v6303 = vadd.f32 %v5749, %v6093
      %v6304 = vadd.f32 %v5750, %v6096
      %v6305 = vadd.f32 %v5751, %v6101
      %v6306 = vadd.f32 %v5752, %v6104
      %v6307 = vadd.f32 %v5753, %v6109
      %v6308 = vadd.f32 %v5754, %v6112
      %v6309 = vadd.f32 %v5755, %v6117
      %v6310 = vadd.f32 %v5756, %v6120
      %v6311 = vadd.f32 %v5757, %v6125
      %v6312 = vadd.f32 %v5758, %v6128
      %v6313 = vadd.f32 %v5759, %v6133
      %v6314 = vadd.f32 %v5760, %v6136
      %v6315 = vadd.f32 %v5761, %v6141
      %v6316 = vadd.f32 %v5762, %v6144
      %v6317 = vadd.f32 %v5763, %v6149
      %v6318 = vadd.f32 %v5764, %v6152
      %v6319 = vadd.f32 %v5765, %v6157
      %v6320 = vadd.f32 %v5766, %v6160
      %v6321 = vadd.f32 %v5767, %v6165
      %v6322 = vadd.f32 %v5768, %v6168
      %v6323 = vadd.f32 %v5769, %v6173
      %v6324 = vadd.f32 %v5770, %v6176
      %v6325 = vadd.f32 %v5771, %v6181
      %v6326 = vadd.f32 %v5772, %v6184
      %v6327 = vadd.f32 %v5773, %v6189
      %v6328 = vadd.f32 %v5774, %v6192
      %v6329 = vadd.f32 %v5775, %v6197
      %v6330 = vadd.f32 %v5776, %v6200
      %v6331 = vadd.f32 %v5777, %v6205
      %v6332 = vadd.f32 %v5778, %v6208
      %v6333 = vadd.f32 %v5779, %v6213
      %v6334 = vadd.f32 %v5780, %v6216
      %v6335 = vadd.f32 %v5781, %v6221
      %v6336 = vadd.f32 %v5782, %v6224
      %v6337 = vadd.f32 %v5783, %v6229
      %v6338 = vadd.f32 %v5784, %v6232
      %v6339 = vadd.f32 %v5785, %v6237
      %v6340 = vadd.f32 %v5786, %v6240
      %v6341 = vadd.f32 %v5787, %v6245
      %v6342 = vadd.f32 %v5788, %v6248
      %v6343 = vadd.f32 %v5789, %v6253
      %v6344 = vadd.f32 %v5790, %v6256
      %v6345 = vadd.f32 %v5791, %v6261
      %v6346 = vadd.f32 %v5792, %v6264
      %v6347 = vadd.f32 %v5793, %v6269
      %v6348 = vadd.f32 %v5794, %v6272
      %v6349 = vadd.f32 %v5795, %v6277
      %v6350 = vadd.f32 %v5796, %v6280
      %v6351 = vld [vmem:[%s2] sm:$0x1]
      %v6353 = vlaneseq
      %v6354 = vshrl.u32 %v6353, 7
      %v6355 = vsub.s32 0, %v6354
      %v6356 = vrot.slane %v6351, %v6355
      %v6358 = vmul.f32 %v6283, %v6356
      %v6359 = vmul.f32 %v6284, %v6356
      %v6360 = vmul.f32 %v6285, %v6356
      %v6361 = vmul.f32 %v6286, %v6356
      %v6362 = vmul.f32 %v6287, %v6356
      %v6363 = vmul.f32 %v6288, %v6356
      %v6364 = vmul.f32 %v6289, %v6356
      %v6365 = vmul.f32 %v6290, %v6356
      %v6366 = vmul.f32 %v6291, %v6356
      %v6367 = vmul.f32 %v6292, %v6356
      %v6368 = vmul.f32 %v6293, %v6356
      %v6369 = vmul.f32 %v6294, %v6356
      %v6370 = vmul.f32 %v6295, %v6356
      %v6371 = vmul.f32 %v6296, %v6356
      %v6372 = vmul.f32 %v6297, %v6356
      %v6373 = vmul.f32 %v6298, %v6356
      %v6374 = vmul.f32 %v6299, %v6356
      %v6375 = vmul.f32 %v6300, %v6356
      %v6376 = vmul.f32 %v6301, %v6356
      %v6377 = vmul.f32 %v6302, %v6356
      %v6378 = vmul.f32 %v6303, %v6356
      %v6379 = vmul.f32 %v6304, %v6356
      %v6380 = vmul.f32 %v6305, %v6356
      %v6381 = vmul.f32 %v6306, %v6356
      %v6382 = vmul.f32 %v6307, %v6356
      %v6383 = vmul.f32 %v6308, %v6356
      %v6384 = vmul.f32 %v6309, %v6356
      %v6385 = vmul.f32 %v6310, %v6356
      %v6386 = vmul.f32 %v6311, %v6356
      %v6387 = vmul.f32 %v6312, %v6356
      %v6388 = vmul.f32 %v6313, %v6356
      %v6389 = vmul.f32 %v6314, %v6356
      %v6390 = vmul.f32 %v6315, %v6356
      %v6391 = vmul.f32 %v6316, %v6356
      %v6392 = vmul.f32 %v6317, %v6356
      %v6393 = vmul.f32 %v6318, %v6356
      %v6394 = vmul.f32 %v6319, %v6356
      %v6395 = vmul.f32 %v6320, %v6356
      %v6396 = vmul.f32 %v6321, %v6356
      %v6397 = vmul.f32 %v6322, %v6356
      %v6398 = vmul.f32 %v6323, %v6356
      %v6399 = vmul.f32 %v6324, %v6356
      %v6400 = vmul.f32 %v6325, %v6356
      %v6401 = vmul.f32 %v6326, %v6356
      %v6402 = vmul.f32 %v6327, %v6356
      %v6403 = vmul.f32 %v6328, %v6356
      %v6404 = vmul.f32 %v6329, %v6356
      %v6405 = vmul.f32 %v6330, %v6356
      %v6406 = vmul.f32 %v6331, %v6356
      %v6407 = vmul.f32 %v6332, %v6356
      %v6408 = vmul.f32 %v6333, %v6356
      %v6409 = vmul.f32 %v6334, %v6356
      %v6410 = vmul.f32 %v6335, %v6356
      %v6411 = vmul.f32 %v6336, %v6356
      %v6412 = vmul.f32 %v6337, %v6356
      %v6413 = vmul.f32 %v6338, %v6356
      %v6414 = vmul.f32 %v6339, %v6356
      %v6415 = vmul.f32 %v6340, %v6356
      %v6416 = vmul.f32 %v6341, %v6356
      %v6417 = vmul.f32 %v6342, %v6356
      %v6418 = vmul.f32 %v6343, %v6356
      %v6419 = vmul.f32 %v6344, %v6356
      %v6420 = vmul.f32 %v6345, %v6356
      %v6421 = vmul.f32 %v6346, %v6356
      %v6422 = vmul.f32 %v6347, %v6356
      %v6423 = vmul.f32 %v6348, %v6356
      %v6424 = vmul.f32 %v6349, %v6356
      %v6425 = vmul.f32 %v6350, %v6356
      %v6426 = vld [vmem:[%s3] sm:$0x1]
      %v6428 = vlaneseq
      %v6429 = vshrl.u32 %v6428, 7
      %v6430 = vsub.s32 0, %v6429
      %v6431 = vrot.slane %v6426, %v6430
      %v6433 = vadd.f32 %v6358, %v6431
      %v6434 = vadd.f32 %v6359, %v6431
      %v6435 = vadd.f32 %v6360, %v6431
      %v6436 = vadd.f32 %v6361, %v6431
      %v6437 = vadd.f32 %v6362, %v6431
      %v6438 = vadd.f32 %v6363, %v6431
      %v6439 = vadd.f32 %v6364, %v6431
      %v6440 = vadd.f32 %v6365, %v6431
      %v6441 = vadd.f32 %v6366, %v6431
      %v6442 = vadd.f32 %v6367, %v6431
      %v6443 = vadd.f32 %v6368, %v6431
      %v6444 = vadd.f32 %v6369, %v6431
      %v6445 = vadd.f32 %v6370, %v6431
      %v6446 = vadd.f32 %v6371, %v6431
      %v6447 = vadd.f32 %v6372, %v6431
      %v6448 = vadd.f32 %v6373, %v6431
      %v6449 = vadd.f32 %v6374, %v6431
      %v6450 = vadd.f32 %v6375, %v6431
      %v6451 = vadd.f32 %v6376, %v6431
      %v6452 = vadd.f32 %v6377, %v6431
      %v6453 = vadd.f32 %v6378, %v6431
      %v6454 = vadd.f32 %v6379, %v6431
      %v6455 = vadd.f32 %v6380, %v6431
      %v6456 = vadd.f32 %v6381, %v6431
      %v6457 = vadd.f32 %v6382, %v6431
      %v6458 = vadd.f32 %v6383, %v6431
      %v6459 = vadd.f32 %v6384, %v6431
      %v6460 = vadd.f32 %v6385, %v6431
      %v6461 = vadd.f32 %v6386, %v6431
      %v6462 = vadd.f32 %v6387, %v6431
      %v6463 = vadd.f32 %v6388, %v6431
      %v6464 = vadd.f32 %v6389, %v6431
      %v6465 = vadd.f32 %v6390, %v6431
      %v6466 = vadd.f32 %v6391, %v6431
      %v6467 = vadd.f32 %v6392, %v6431
      %v6468 = vadd.f32 %v6393, %v6431
      %v6469 = vadd.f32 %v6394, %v6431
      %v6470 = vadd.f32 %v6395, %v6431
      %v6471 = vadd.f32 %v6396, %v6431
      %v6472 = vadd.f32 %v6397, %v6431
      %v6473 = vadd.f32 %v6398, %v6431
      %v6474 = vadd.f32 %v6399, %v6431
      %v6475 = vadd.f32 %v6400, %v6431
      %v6476 = vadd.f32 %v6401, %v6431
      %v6477 = vadd.f32 %v6402, %v6431
      %v6478 = vadd.f32 %v6403, %v6431
      %v6479 = vadd.f32 %v6404, %v6431
      %v6480 = vadd.f32 %v6405, %v6431
      %v6481 = vadd.f32 %v6406, %v6431
      %v6482 = vadd.f32 %v6407, %v6431
      %v6483 = vadd.f32 %v6408, %v6431
      %v6484 = vadd.f32 %v6409, %v6431
      %v6485 = vadd.f32 %v6410, %v6431
      %v6486 = vadd.f32 %v6411, %v6431
      %v6487 = vadd.f32 %v6412, %v6431
      %v6488 = vadd.f32 %v6413, %v6431
      %v6489 = vadd.f32 %v6414, %v6431
      %v6490 = vadd.f32 %v6415, %v6431
      %v6491 = vadd.f32 %v6416, %v6431
      %v6492 = vadd.f32 %v6417, %v6431
      %v6493 = vadd.f32 %v6418, %v6431
      %v6494 = vadd.f32 %v6419, %v6431
      %v6495 = vadd.f32 %v6420, %v6431
      %v6496 = vadd.f32 %v6421, %v6431
      %v6497 = vadd.f32 %v6422, %v6431
      %v6498 = vadd.f32 %v6423, %v6431
      %v6499 = vadd.f32 %v6424, %v6431
      %v6500 = vadd.f32 %v6425, %v6431
      %v6501 = vmax.f32 %v6433, 0.0
      %v6502 = vmax.f32 %v6434, 0.0
      %v6503 = vmax.f32 %v6435, 0.0
      %v6504 = vmax.f32 %v6436, 0.0
      %v6505 = vmax.f32 %v6437, 0.0
      %v6506 = vmax.f32 %v6438, 0.0
      %v6507 = vmax.f32 %v6439, 0.0
      %v6508 = vmax.f32 %v6440, 0.0
      %v6509 = vmax.f32 %v6441, 0.0
      %v6510 = vmax.f32 %v6442, 0.0
      %v6511 = vmax.f32 %v6443, 0.0
      %v6512 = vmax.f32 %v6444, 0.0
      %v6513 = vmax.f32 %v6445, 0.0
      %v6514 = vmax.f32 %v6446, 0.0
      %v6515 = vmax.f32 %v6447, 0.0
      %v6516 = vmax.f32 %v6448, 0.0
      %v6517 = vmax.f32 %v6449, 0.0
      %v6518 = vmax.f32 %v6450, 0.0
      %v6519 = vmax.f32 %v6451, 0.0
      %v6520 = vmax.f32 %v6452, 0.0
      %v6521 = vmax.f32 %v6453, 0.0
      %v6522 = vmax.f32 %v6454, 0.0
      %v6523 = vmax.f32 %v6455, 0.0
      %v6524 = vmax.f32 %v6456, 0.0
      %v6525 = vmax.f32 %v6457, 0.0
      %v6526 = vmax.f32 %v6458, 0.0
      %v6527 = vmax.f32 %v6459, 0.0
      %v6528 = vmax.f32 %v6460, 0.0
      %v6529 = vmax.f32 %v6461, 0.0
      %v6530 = vmax.f32 %v6462, 0.0
      %v6531 = vmax.f32 %v6463, 0.0
      %v6532 = vmax.f32 %v6464, 0.0
      %v6533 = vmax.f32 %v6465, 0.0
      %v6534 = vmax.f32 %v6466, 0.0
      %v6535 = vmax.f32 %v6467, 0.0
      %v6536 = vmax.f32 %v6468, 0.0
      %v6537 = vmax.f32 %v6469, 0.0
      %v6538 = vmax.f32 %v6470, 0.0
      %v6539 = vmax.f32 %v6471, 0.0
      %v6540 = vmax.f32 %v6472, 0.0
      %v6541 = vmax.f32 %v6473, 0.0
      %v6542 = vmax.f32 %v6474, 0.0
      %v6543 = vmax.f32 %v6475, 0.0
      %v6544 = vmax.f32 %v6476, 0.0
      %v6545 = vmax.f32 %v6477, 0.0
      %v6546 = vmax.f32 %v6478, 0.0
      %v6547 = vmax.f32 %v6479, 0.0
      %v6548 = vmax.f32 %v6480, 0.0
      %v6549 = vmax.f32 %v6481, 0.0
      %v6550 = vmax.f32 %v6482, 0.0
      %v6551 = vmax.f32 %v6483, 0.0
      %v6552 = vmax.f32 %v6484, 0.0
      %v6553 = vmax.f32 %v6485, 0.0
      %v6554 = vmax.f32 %v6486, 0.0
      %v6555 = vmax.f32 %v6487, 0.0
      %v6556 = vmax.f32 %v6488, 0.0
      %v6557 = vmax.f32 %v6489, 0.0
      %v6558 = vmax.f32 %v6490, 0.0
      %v6559 = vmax.f32 %v6491, 0.0
      %v6560 = vmax.f32 %v6492, 0.0
      %v6561 = vmax.f32 %v6493, 0.0
      %v6562 = vmax.f32 %v6494, 0.0
      %v6563 = vmax.f32 %v6495, 0.0
      %v6564 = vmax.f32 %v6496, 0.0
      %v6565 = vmax.f32 %v6497, 0.0
      %v6566 = vmax.f32 %v6498, 0.0
      %v6567 = vmax.f32 %v6499, 0.0
      %v6568 = vmax.f32 %v6500, 0.0
      %6569 = vst [vmem:[%s197] sm:$0xff] %v6501
      %6570 = vst [vmem:[%s197 + $0x8] sm:$0xff] %v6502
      %6571 = vst [vmem:[%s197 + $0x10] sm:$0xff] %v6503
      %6572 = vst [vmem:[%s197 + $0x18] sm:$0xff] %v6504
      %6573 = vst [vmem:[%s197 + $0x20] sm:$0xff] %v6505
      %6574 = vst [vmem:[%s197 + $0x28] sm:$0xff] %v6506
      %6575 = vst [vmem:[%s197 + $0x30] sm:$0xff] %v6507
      %6576 = vst [vmem:[%s197 + $0x38] sm:$0xff] %v6508
      %6577 = vst [vmem:[%s197 + $0x40] sm:$0xff] %v6509
      %6578 = vst [vmem:[%s197 + $0x48] sm:$0xff] %v6510
      %6579 = vst [vmem:[%s197 + $0x50] sm:$0xff] %v6511
      %6580 = vst [vmem:[%s197 + $0x58] sm:$0xff] %v6512
      %6581 = vst [vmem:[%s197 + $0x60] sm:$0xff] %v6513
      %6582 = vst [vmem:[%s197 + $0x68] sm:$0xff] %v6514
      %6583 = vst [vmem:[%s197 + $0x70] sm:$0xff] %v6515
      %6584 = vst [vmem:[%s197 + $0x78] sm:$0xff] %v6516
      %6585 = vst [vmem:[%s197 + $0x80] sm:$0xff] %v6517
      %6586 = vst [vmem:[%s197 + $0x88] sm:$0xff] %v6518
      %6587 = vst [vmem:[%s197 + $0x90] sm:$0xff] %v6519
      %6588 = vst [vmem:[%s197 + $0x98] sm:$0xff] %v6520
      %6589 = vst [vmem:[%s197 + $0xa0] sm:$0xff] %v6521
      %6590 = vst [vmem:[%s197 + $0xa8] sm:$0xff] %v6522
      %6591 = vst [vmem:[%s197 + $0xb0] sm:$0xff] %v6523
      %6592 = vst [vmem:[%s197 + $0xb8] sm:$0xff] %v6524
      %6593 = vst [vmem:[%s197 + $0xc0] sm:$0xff] %v6525
      %6594 = vst [vmem:[%s197 + $0xc8] sm:$0xff] %v6526
      %6595 = vst [vmem:[%s197 + $0xd0] sm:$0xff] %v6527
      %6596 = vst [vmem:[%s197 + $0xd8] sm:$0xff] %v6528
      %6597 = vst [vmem:[%s197 + $0xe0] sm:$0xff] %v6529
      %6598 = vst [vmem:[%s197 + $0xe8] sm:$0xff] %v6530
      %6599 = vst [vmem:[%s197 + $0xf0] sm:$0xff] %v6531
      %6600 = vst [vmem:[%s197 + $0xf8] sm:$0xff] %v6532
      %6601 = vst [vmem:[%s197 + $0x100] sm:$0xff] %v6533
      %6602 = vst [vmem:[%s197 + $0x108] sm:$0xff] %v6534
      %6603 = vst [vmem:[%s197 + $0x110] sm:$0xff] %v6535
      %6604 = vst [vmem:[%s197 + $0x118] sm:$0xff] %v6536
      %6605 = vst [vmem:[%s197 + $0x120] sm:$0xff] %v6537
      %6606 = vst [vmem:[%s197 + $0x128] sm:$0xff] %v6538
      %6607 = vst [vmem:[%s197 + $0x130] sm:$0xff] %v6539
      %6608 = vst [vmem:[%s197 + $0x138] sm:$0xff] %v6540
      %6609 = vst [vmem:[%s197 + $0x140] sm:$0xff] %v6541
      %6610 = vst [vmem:[%s197 + $0x148] sm:$0xff] %v6542
      %6611 = vst [vmem:[%s197 + $0x150] sm:$0xff] %v6543
      %6612 = vst [vmem:[%s197 + $0x158] sm:$0xff] %v6544
      %6613 = vst [vmem:[%s197 + $0x160] sm:$0xff] %v6545
      %6614 = vst [vmem:[%s197 + $0x168] sm:$0xff] %v6546
      %6615 = vst [vmem:[%s197 + $0x170] sm:$0xff] %v6547
      %6616 = vst [vmem:[%s197 + $0x178] sm:$0xff] %v6548
      %6617 = vst [vmem:[%s197 + $0x180] sm:$0xff] %v6549
      %6618 = vst [vmem:[%s197 + $0x188] sm:$0xff] %v6550
      %6619 = vst [vmem:[%s197 + $0x190] sm:$0xff] %v6551
      %6620 = vst [vmem:[%s197 + $0x198] sm:$0xff] %v6552
      %6621 = vst [vmem:[%s197 + $0x1a0] sm:$0xff] %v6553
      %6622 = vst [vmem:[%s197 + $0x1a8] sm:$0xff] %v6554
      %6623 = vst [vmem:[%s197 + $0x1b0] sm:$0xff] %v6555
      %6624 = vst [vmem:[%s197 + $0x1b8] sm:$0xff] %v6556
      %6625 = vst [vmem:[%s197 + $0x1c0] sm:$0xff] %v6557
      %6626 = vst [vmem:[%s197 + $0x1c8] sm:$0xff] %v6558
      %6627 = vst [vmem:[%s197 + $0x1d0] sm:$0xff] %v6559
      %6628 = vst [vmem:[%s197 + $0x1d8] sm:$0xff] %v6560
      %6629 = vst [vmem:[%s197 + $0x1e0] sm:$0xff] %v6561
      %6630 = vst [vmem:[%s197 + $0x1e8] sm:$0xff] %v6562
      %6631 = vst [vmem:[%s197 + $0x1f0] sm:$0xff] %v6563
      %6632 = vst [vmem:[%s197 + $0x1f8] sm:$0xff] %v6564
      %6633 = vst [vmem:[%s197 + $0x200] sm:$0xff] %v6565
      %6634 = vst [vmem:[%s197 + $0x208] sm:$0xff] %v6566
      %6635 = vst [vmem:[%s197 + $0x210] sm:$0xff] %v6567
      %6636 = vst [vmem:[%s197 + $0x218] sm:$0xff] %v6568
      %p6637 = scmp.lt.s32.totalorder %s15, 3
      %s6638 = scalar_select %p6637, %s15, 3
      %s6639 = smul.addr %s6638, 68
      %s6640 = smul.addr %s6639, 8
      %s6641 = scalar_lea.vmem %s4, %s6640
      // Predicated region
      $region37: #{deconv_block.3} parent=35 // pred_check
        %p6642 = pneg %p122
      $region38: #{deconv_block.3} parent=35 // pred_check_branch
        %6644 = sbr.rel (%p6642) target = $region40
      $region39: #{deconv_block.3} parent=35 // pred_region
        _
      $region40: #{deconv_block.3} parent=35 // pred_fallthru
        _
    $region36: #{deconv_block.3} parent=5 // pred_fallthru
      _
    %p6645 = scmp.le.s32.totalorder 2, %s10
    // Predicated region
    $region41: #{deconv_block.3} parent=5 // pred_check
      %p6646 = pneg %p6645
    $region42: #{deconv_block.3} parent=5 // pred_check_branch
      %6648 = sbr.rel (%p6646) target = $region44
    $region43: #{deconv_block.3} parent=5 // pred_region
      %s6649 = ssub.s32 %s10, 2
      // Predicated region
      $region45: #{deconv_block.3} parent=43 // pred_check
        %p6650 = pneg %p128
      $region46: #{deconv_block.3} parent=43 // pred_check_branch
        %6652 = sbr.rel (%p6650) target = $region48
      $region47: #{deconv_block.3} parent=43 // pred_region
        %p6653 = scmp.lt.s32.totalorder %s16, 3
        %s6654 = scalar_select %p6653, %s16, 3
        %s6655 = smul.addr %s6654, 68
        %s6656 = smul.addr %s6655, 8
        %s6657 = scalar_lea.vmem %s4, %s6656
      $region48: #{deconv_block.3} parent=43 // pred_fallthru
        _
    $region44: #{deconv_block.3} parent=5 // pred_fallthru
      _
  $region6: #{deconv_block.3} parent=0 // loop_footer
    %s14 = sadd.s32 1, %s10
  $region7: #{deconv_block.3} parent=0 // loop_footer_branch
    %9 = sbr.rel target = $region3
  $region8: #{deconv_block.3} parent=0 // loop_exit
    _

// kernel: deconv_block.2
$region0: #{deconv_block.2}
  #allocation0 [shape = 'u32[]', space=smem, size = 0x4, offset = 0x4, fixed_abs, tag = 'smem constant byte address 0x4 - core index']
  #allocation1 [shape = 'u32[144,128]{1,0:T(1,128)}', space=vmem, size = 0x12000, scoped, tag = 'internal scratch']
  %s0 = inlined_call_operand.vmem [shape: bf16[4,614,8], index: 0, kind: input, shape index: {}]
  %s1 = inlined_call_operand.vmem [shape: bf16[9,8,128], index: 1, kind: input, shape index: {}]
  %s2 = inlined_call_operand.vmem [shape: f32[544,1], index: 2, kind: input, shape index: {}]
  %s3 = inlined_call_operand.vmem [shape: f32[4,2,128], index: 3, kind: output, shape index: {}]
  %s4 = sld [smem:[#allocation0]]
  $region45: #{deconv_block.2} parent=0
    _
  %s6 = ssub.s32 1, %s4
  %s7 = scalar_select 0, %s6, %s4
  loop: start=0, step=1, limit=6
  $region2: #{deconv_block.2} parent=0 // loop_pre_header
    _
  $region3: #{deconv_block.2} parent=0 // loop_header
    %s9 = sphi 0, %s13
    %p10 = scmp.ge.s32.totalorder %s9, 6
    %s19 = sphi 0, %s21
    %s22 = sphi 0, %s19
    %s23 = sphi 0, %s22
    %s39 = sphi 0, %s23
    %s43 = sphi 0, %s43
    %s45 = sphi 0, %s43
    %s46 = sphi 0, %s45
    %s60 = sphi 0, %s46
    %s64 = sphi 0, %s64
    %s66 = sphi 0, %s64
    %s67 = sphi 0, %s66
    %s81 = sphi 0, %s67
    %s87 = sphi 0, %s89
    %s90 = sphi 0, %s87
    %s91 = sphi 0, %s90
    %s107 = sphi 0, %s91
  $region4: #{deconv_block.2} parent=0 // loop_header_branch
    %12 = sbr.rel (%p10) target = $region8
  $region5: #{deconv_block.2} parent=0 // loop_body
    %s14 = ssub.s32 %s9, 1
    %s15 = ssub.s32 %s9, 2
    %s16 = sadd.s32 %s9, 1
    %s17 = ssub.s32 %s9, %s16
    %p18 = scmp.eq.s32.totalorder %s17, 0
    %s20 = sadd.s32 %s19, 1
    %s21 = scalar_select %p18, %s19, %s20
    %p24 = pneg %p18
    %p25 = scmp.eq.s32.totalorder %s9, 3
    %p26 = por %p24, %p25
    %p27 = scmp.ne.s32.totalorder %s19, %s22
    %p28 = scmp.eq.s32.totalorder %s9, 0
    %p29 = por %p27, %p28
    %p30 = scmp.ne.s32.totalorder %s19, %s22
    %p31 = scmp.eq.s32.totalorder %s14, 3
    %p32 = por %p30, %p31
    %p33 = scmp.ne.s32.totalorder %s22, %s23
    %p34 = scmp.eq.s32.totalorder %s14, 0
    %p35 = por %p33, %p34
    %p36 = scmp.ne.s32.totalorder %s22, %s23
    %p37 = scmp.eq.s32.totalorder %s15, 3
    %p38 = por %p36, %p37
    %p40 = scmp.ne.s32.totalorder %s23, %s39
    %p41 = scmp.eq.s32.totalorder %s15, 0
    %p42 = por %p40, %p41
    %s44 = sadd.s32 %s43, 1
    %p47 = scmp.eq.s32.totalorder %s9, 3
    %p48 = scmp.ne.s32.totalorder %s43, %s45
    %p49 = scmp.eq.s32.totalorder %s9, 0
    %p50 = por %p48, %p49
    %p51 = scmp.ne.s32.totalorder %s43, %s45
    %p52 = scmp.eq.s32.totalorder %s14, 3
    %p53 = por %p51, %p52
    %p54 = scmp.ne.s32.totalorder %s45, %s46
    %p55 = scmp.eq.s32.totalorder %s14, 0
    %p56 = por %p54, %p55
    %p57 = scmp.ne.s32.totalorder %s45, %s46
    %p58 = scmp.eq.s32.totalorder %s15, 3
    %p59 = por %p57, %p58
    %p61 = scmp.ne.s32.totalorder %s46, %s60
    %p62 = scmp.eq.s32.totalorder %s15, 0
    %p63 = por %p61, %p62
    %s65 = sadd.s32 %s64, 1
    %p68 = scmp.eq.s32.totalorder %s9, 3
    %p69 = scmp.ne.s32.totalorder %s64, %s66
    %p70 = scmp.eq.s32.totalorder %s9, 0
    %p71 = por %p69, %p70
    %p72 = scmp.ne.s32.totalorder %s64, %s66
    %p73 = scmp.eq.s32.totalorder %s14, 3
    %p74 = por %p72, %p73
    %p75 = scmp.ne.s32.totalorder %s66, %s67
    %p76 = scmp.eq.s32.totalorder %s14, 0
    %p77 = por %p75, %p76
    %p78 = scmp.ne.s32.totalorder %s66, %s67
    %p79 = scmp.eq.s32.totalorder %s15, 3
    %p80 = por %p78, %p79
    %p82 = scmp.ne.s32.totalorder %s67, %s81
    %p83 = scmp.eq.s32.totalorder %s15, 0
    %p84 = por %p82, %p83
    %s85 = ssub.s32 %s9, %s16
    %p86 = scmp.eq.s32.totalorder %s85, 0
    %s88 = sadd.s32 %s87, 1
    %s89 = scalar_select %p86, %s87, %s88
    %p92 = pneg %p86
    %p93 = scmp.eq.s32.totalorder %s9, 3
    %p94 = por %p92, %p93
    %p95 = scmp.ne.s32.totalorder %s87, %s90
    %p96 = scmp.eq.s32.totalorder %s9, 0
    %p97 = por %p95, %p96
    %p98 = scmp.ne.s32.totalorder %s87, %s90
    %p99 = scmp.eq.s32.totalorder %s14, 3
    %p100 = por %p98, %p99
    %p101 = scmp.ne.s32.totalorder %s90, %s91
    %p102 = scmp.eq.s32.totalorder %s14, 0
    %p103 = por %p101, %p102
    %p104 = scmp.ne.s32.totalorder %s90, %s91
    %p105 = scmp.eq.s32.totalorder %s15, 3
    %p106 = por %p104, %p105
    %p108 = scmp.ne.s32.totalorder %s91, %s107
    %p109 = scmp.eq.s32.totalorder %s15, 0
    %p110 = por %p108, %p109
    %p111 = scmp.le.s32.totalorder 1, %s9
    %p112 = scmp.lt.s32.totalorder %s9, 5
    %p113 = pnand %p111, %p112
    %p114 = pneg %p113
    // Predicated region
    $region9: #{deconv_block.2} parent=5 // pred_check
      _
    $region10: #{deconv_block.2} parent=5 // pred_check_branch
      %116 = sbr.rel (%p113) target = $region12
    $region11: #{deconv_block.2} parent=5 // pred_region
      %s117 = ssub.s32 %s9, 1
      // Predicated region
      $region13: #{deconv_block.2} parent=11 // pred_check
        %p118 = pneg %p56
      $region14: #{deconv_block.2} parent=11 // pred_check_branch
        %120 = sbr.rel (%p118) target = $region16
      $region15: #{deconv_block.2} parent=11 // pred_region
        _
      $region16: #{deconv_block.2} parent=11 // pred_fallthru
        _
      // Predicated region
      $region17: #{deconv_block.2} parent=11 // pred_check
        %p121 = pneg %p77
      $region18: #{deconv_block.2} parent=11 // pred_check_branch
        %123 = sbr.rel (%p121) target = $region20
      $region19: #{deconv_block.2} parent=11 // pred_region
        _
      $region20: #{deconv_block.2} parent=11 // pred_fallthru
        _
    $region12: #{deconv_block.2} parent=5 // pred_fallthru
      _
    %p124 = scmp.lt.s32.totalorder %s9, 4
    // Predicated region
    $region21: #{deconv_block.2} parent=5 // pred_check
      %p125 = pneg %p124
    $region22: #{deconv_block.2} parent=5 // pred_check_branch
      %127 = sbr.rel (%p125) target = $region24
    $region23: #{deconv_block.2} parent=5 // pred_region
      // Predicated region
      $region25: #{deconv_block.2} parent=23 // pred_check
        %p128 = pneg %p29
      $region26: #{deconv_block.2} parent=23 // pred_check_branch
        %130 = sbr.rel (%p128) target = $region28
      $region27: #{deconv_block.2} parent=23 // pred_region
        %p131 = scmp.lt.s32.totalorder %s9, 3
        %s132 = scalar_select %p131, %s9, 3
        %s133 = smul.addr %s132, 77
        %s134 = smul.addr %s133, 4
        %s135 = scalar_lea.vmem %s0, %s134
      $region28: #{deconv_block.2} parent=23 // pred_fallthru
        _
    $region24: #{deconv_block.2} parent=5 // pred_fallthru
      _
    %p136 = scmp.le.s32.totalorder 1, %s9
    %p137 = scmp.lt.s32.totalorder %s9, 5
    %p138 = pnand %p136, %p137
    %p139 = pneg %p138
    // Predicated region
    $region29: #{deconv_block.2} parent=5 // pred_check
      _
    $region30: #{deconv_block.2} parent=5 // pred_check_branch
      %141 = sbr.rel (%p138) target = $region32
    $region31: #{deconv_block.2} parent=5 // pred_region
      %s142 = ssub.s32 %s9, 1
      %p143 = scmp.lt.s32.totalorder %s14, 3
      %s144 = scalar_select %p143, %s14, 3
      %s145 = smul.addr %s144, 77
      %s146 = smul.addr %s145, 4
      %s147 = scalar_lea.vmem %s0, %s146
      %p148 = pneg %p35
      %p149 = pneg %p32
      %p150 = pneg %p56
      %p151 = pneg %p53
      %p152 = pneg %p77
      %p153 = pneg %p74
      %p154 = pneg %p103
      %p155 = pneg %p100
      %p156 = scmp.lt.s32.totalorder %s14, 3
      %s157 = scalar_select %p156, %s14, 3
      %s158 = smul.addr %s157, 2
      %s159 = scalar_lea.vmem %s3, %s158
      %p160 = scmp.lt.s32.totalorder %s14, 3
      %s161 = scalar_select %p160, %s14, 3
      %s162 = smul.addr %s161, 77
      %s163 = smul.addr %s162, 4
      %s164 = scalar_lea.vmem %s0, %s163
      %p165 = scmp.lt.s32.totalorder %s14, 3
      %s166 = scalar_select %p165, %s14, 3
      %s167 = smul.addr %s166, 2
      %s168 = scalar_lea.vmem %s3, %s167
      %v170 = vld [vmem:[%s164] sm:$0xf]
      %v171 = vld [vmem:[%s164 + $0x4] sm:$0xf]
      %v172 = vld [vmem:[%s164 + $0x8] sm:$0xf]
      %v173 = vld [vmem:[%s164 + $0xc] sm:$0xf]
      %v174 = vld [vmem:[%s164 + $0x10] sm:$0xf]
      %v175 = vld [vmem:[%s164 + $0x14] sm:$0xf]
      %v176 = vld [vmem:[%s164 + $0x18] sm:$0xf]
      %v177 = vld [vmem:[%s164 + $0x1c] sm:$0xf]
      %v178 = vld [vmem:[%s164 + $0x20] sm:$0xf]
      %v179 = vld [vmem:[%s164 + $0x24] sm:$0xf]
      %v180 = vld [vmem:[%s164 + $0x28] sm:$0xf]
      %v181 = vld [vmem:[%s164 + $0x2c] sm:$0xf]
      %v182 = vld [vmem:[%s164 + $0x30] sm:$0xf]
      %v183 = vld [vmem:[%s164 + $0x34] sm:$0xf]
      %v184 = vld [vmem:[%s164 + $0x38] sm:$0xf]
      %v185 = vld [vmem:[%s164 + $0x3c] sm:$0xf]
      %v186 = vld [vmem:[%s164 + $0x40] sm:$0xf]
      %v187 = vld [vmem:[%s164 + $0x44] sm:$0xf]
      %v188 = vld [vmem:[%s164 + $0x48] sm:$0xf]
      %v189 = vld [vmem:[%s164 + $0x4c] sm:$0xf]
      %v190 = vld [vmem:[%s164 + $0x50] sm:$0xf]
      %v191 = vld [vmem:[%s164 + $0x54] sm:$0xf]
      %v192 = vld [vmem:[%s164 + $0x58] sm:$0xf]
      %v193 = vld [vmem:[%s164 + $0x5c] sm:$0xf]
      %v194 = vld [vmem:[%s164 + $0x60] sm:$0xf]
      %v195 = vld [vmem:[%s164 + $0x64] sm:$0xf]
      %v196 = vld [vmem:[%s164 + $0x68] sm:$0xf]
      %v197 = vld [vmem:[%s164 + $0x6c] sm:$0xf]
      %v198 = vld [vmem:[%s164 + $0x70] sm:$0xf]
      %v199 = vld [vmem:[%s164 + $0x74] sm:$0xf]
      %v200 = vld [vmem:[%s164 + $0x78] sm:$0xf]
      %v201 = vld [vmem:[%s164 + $0x7c] sm:$0xf]
      %v202 = vld [vmem:[%s164 + $0x80] sm:$0xf]
      %v203 = vld [vmem:[%s164 + $0x84] sm:$0xf]
      %v204 = vld [vmem:[%s164 + $0x88] sm:$0xf]
      %v205 = vld [vmem:[%s164 + $0x8c] sm:$0xf]
      %v206 = vld [vmem:[%s164 + $0x90] sm:$0xf]
      %v207 = vld [vmem:[%s164 + $0x94] sm:$0xf]
      %v208 = vld [vmem:[%s164 + $0x98] sm:$0xf]
      %v209 = vld [vmem:[%s164 + $0x9c] sm:$0xf]
      %v210 = vld [vmem:[%s164 + $0xa0] sm:$0xf]
      %v211 = vld [vmem:[%s164 + $0xa4] sm:$0xf]
      %v212 = vld [vmem:[%s164 + $0xa8] sm:$0xf]
      %v213 = vld [vmem:[%s164 + $0xac] sm:$0xf]
      %v214 = vld [vmem:[%s164 + $0xb0] sm:$0xf]
      %v215 = vld [vmem:[%s164 + $0xb4] sm:$0xf]
      %v216 = vld [vmem:[%s164 + $0xb8] sm:$0xf]
      %v217 = vld [vmem:[%s164 + $0xbc] sm:$0xf]
      %v218 = vld [vmem:[%s164 + $0xc0] sm:$0xf]
      %v219 = vld [vmem:[%s164 + $0xc4] sm:$0xf]
      %v220 = vld [vmem:[%s164 + $0xc8] sm:$0xf]
      %v221 = vld [vmem:[%s164 + $0xcc] sm:$0xf]
      %v222 = vld [vmem:[%s164 + $0xd0] sm:$0xf]
      %v223 = vld [vmem:[%s164 + $0xd4] sm:$0xf]
      %v224 = vld [vmem:[%s164 + $0xd8] sm:$0xf]
      %v225 = vld [vmem:[%s164 + $0xdc] sm:$0xf]
      %v226 = vld [vmem:[%s164 + $0xe0] sm:$0xf]
      %v227 = vld [vmem:[%s164 + $0xe4] sm:$0xf]
      %v228 = vld [vmem:[%s164 + $0xe8] sm:$0xf]
      %v229 = vld [vmem:[%s164 + $0xec] sm:$0xf]
      %v230 = vld [vmem:[%s164 + $0xf0] sm:$0xf]
      %v231 = vld [vmem:[%s164 + $0xf4] sm:$0xf]
      %v232 = vld [vmem:[%s164 + $0xf8] sm:$0xf]
      %v233 = vld [vmem:[%s164 + $0xfc] sm:$0xf]
      %v234 = vld [vmem:[%s164 + $0x100] sm:$0xf]
      %v235 = vld [vmem:[%s164 + $0x104] sm:$0xf]
      %v236 = vld [vmem:[%s164 + $0x108] sm:$0xf]
      %v237 = vld [vmem:[%s164 + $0x10c] sm:$0xf]
      %v238 = vld [vmem:[%s1] sm:$0xf]
      %v239 = vld [vmem:[%s164 + $0x110] sm:$0x1]
      %s240 = scalar_lea.vmem %s1, 4
      %v241 = vld [vmem:[%s240] sm:$0xf]
      %v311 = vunpack.c.l.b16 %v170
      %v312 = vunpack.c.l.b16 %v171
      %v313 = vunpack.c.l.b16 %v172
      %v314 = vunpack.c.l.b16 %v173
      %v315 = vunpack.c.l.b16 %v174
      %v316 = vunpack.c.l.b16 %v175
      %v317 = vunpack.c.l.b16 %v176
      %v318 = vunpack.c.l.b16 %v177
      %v319 = vunpack.c.l.b16 %v178
      %v320 = vunpack.c.l.b16 %v179
      %v321 = vunpack.c.l.b16 %v180
      %v322 = vunpack.c.l.b16 %v181
      %v323 = vunpack.c.l.b16 %v182
      %v324 = vunpack.c.l.b16 %v183
      %v325 = vunpack.c.l.b16 %v184
      %v326 = vunpack.c.l.b16 %v185
      %v327 = vunpack.c.l.b16 %v186
      %v328 = vunpack.c.l.b16 %v187
      %v329 = vunpack.c.l.b16 %v188
      %v330 = vunpack.c.l.b16 %v189
      %v331 = vunpack.c.l.b16 %v190
      %v332 = vunpack.c.l.b16 %v191
      %v333 = vunpack.c.l.b16 %v192
      %v334 = vunpack.c.l.b16 %v193
      %v335 = vunpack.c.l.b16 %v194
      %v336 = vunpack.c.l.b16 %v195
      %v337 = vunpack.c.l.b16 %v196
      %v338 = vunpack.c.l.b16 %v197
      %v339 = vunpack.c.l.b16 %v198
      %v340 = vunpack.c.l.b16 %v199
      %v341 = vunpack.c.l.b16 %v200
      %v342 = vunpack.c.l.b16 %v201
      %v343 = vunpack.c.l.b16 %v202
      %v344 = vunpack.c.l.b16 %v203
      %v345 = vunpack.c.l.b16 %v204
      %v346 = vunpack.c.l.b16 %v205
      %v347 = vunpack.c.l.b16 %v206
      %v348 = vunpack.c.l.b16 %v207
      %v349 = vunpack.c.l.b16 %v208
      %v350 = vunpack.c.l.b16 %v209
      %v351 = vunpack.c.l.b16 %v210
      %v352 = vunpack.c.l.b16 %v211
      %v353 = vunpack.c.l.b16 %v212
      %v354 = vunpack.c.l.b16 %v213
      %v355 = vunpack.c.l.b16 %v214
      %v356 = vunpack.c.l.b16 %v215
      %v357 = vunpack.c.l.b16 %v216
      %v358 = vunpack.c.l.b16 %v217
      %v359 = vunpack.c.l.b16 %v218
      %v360 = vunpack.c.l.b16 %v219
      %v361 = vunpack.c.l.b16 %v220
      %v362 = vunpack.c.l.b16 %v221
      %v363 = vunpack.c.l.b16 %v222
      %v364 = vunpack.c.l.b16 %v223
      %v365 = vunpack.c.l.b16 %v224
      %v366 = vunpack.c.l.b16 %v225
      %v367 = vunpack.c.l.b16 %v226
      %v368 = vunpack.c.l.b16 %v227
      %v369 = vunpack.c.l.b16 %v228
      %v370 = vunpack.c.l.b16 %v229
      %v371 = vunpack.c.l.b16 %v230
      %v372 = vunpack.c.l.b16 %v231
      %v373 = vunpack.c.l.b16 %v232
      %v374 = vunpack.c.l.b16 %v233
      %v375 = vunpack.c.l.b16 %v234
      %v376 = vunpack.c.l.b16 %v235
      %v377 = vunpack.c.l.b16 %v236
      %v378 = vunpack.c.l.b16 %v237
      %v379 = vunpack.c.l.b16 %v239
      %v380 = vpack.c.b16 %v312, %v311
      %v381 = vpack.c.b16 %v314, %v313
      %v382 = vpack.c.b16 %v316, %v315
      %v383 = vpack.c.b16 %v318, %v317
      %v384 = vpack.c.b16 %v320, %v319
      %v385 = vpack.c.b16 %v322, %v321
      %v386 = vpack.c.b16 %v324, %v323
      %v387 = vpack.c.b16 %v326, %v325
      %v388 = vpack.c.b16 %v328, %v327
      %v389 = vpack.c.b16 %v330, %v329
      %v390 = vpack.c.b16 %v332, %v331
      %v391 = vpack.c.b16 %v334, %v333
      %v392 = vpack.c.b16 %v336, %v335
      %v393 = vpack.c.b16 %v338, %v337
      %v394 = vpack.c.b16 %v340, %v339
      %v395 = vpack.c.b16 %v342, %v341
      %v396 = vpack.c.b16 %v344, %v343
      %v397 = vpack.c.b16 %v346, %v345
      %v398 = vpack.c.b16 %v348, %v347
      %v399 = vpack.c.b16 %v350, %v349
      %v400 = vpack.c.b16 %v352, %v351
      %v401 = vpack.c.b16 %v354, %v353
      %v402 = vpack.c.b16 %v356, %v355
      %v403 = vpack.c.b16 %v358, %v357
      %v404 = vpack.c.b16 %v360, %v359
      %v405 = vpack.c.b16 %v362, %v361
      %v406 = vpack.c.b16 %v364, %v363
      %v407 = vpack.c.b16 %v366, %v365
      %v408 = vpack.c.b16 %v368, %v367
      %v409 = vpack.c.b16 %v370, %v369
      %v410 = vpack.c.b16 %v372, %v371
      %v411 = vpack.c.b16 %v374, %v373
      %v412 = vpack.c.b16 %v376, %v375
      %v413 = vpack.c.b16 %v378, %v377
      %v414 = vpack.c.b16 %v379, %v379
      %vm415 = vsmask.f32 7424
      %v417 = vshrl.u32 %v380, 16
      %v419 = vshll.u32 %v380, 16
      %v421 = vrot.slane %v419, 1
      %v422 = vor.u32 %v417, %v421
      %v424 = vshll.u32 %v381, 16
      %v426 = vrot.slane %v424, 1
      %v427 = vsel %vm415, %v422, %v426
      %v428 = vshrl.u32 %v381, 16
      %v430 = vor.u32 %v428, %v426
      %v432 = vshll.u32 %v382, 16
      %v434 = vrot.slane %v432, 1
      %v435 = vsel %vm415, %v430, %v434
      %v436 = vshrl.u32 %v382, 16
      %v438 = vor.u32 %v436, %v434
      %v440 = vshll.u32 %v383, 16
      %v442 = vrot.slane %v440, 1
      %v443 = vsel %vm415, %v438, %v442
      %v444 = vshrl.u32 %v383, 16
      %v446 = vor.u32 %v444, %v442
      %v448 = vshll.u32 %v384, 16
      %v450 = vrot.slane %v448, 1
      %v451 = vsel %vm415, %v446, %v450
      %v452 = vshrl.u32 %v384, 16
      %v454 = vor.u32 %v452, %v450
      %v456 = vshll.u32 %v385, 16
      %v458 = vrot.slane %v456, 1
      %v459 = vsel %vm415, %v454, %v458
      %v460 = vshrl.u32 %v385, 16
      %v462 = vor.u32 %v460, %v458
      %v464 = vshll.u32 %v386, 16
      %v466 = vrot.slane %v464, 1
      %v467 = vsel %vm415, %v462, %v466
      %v468 = vshrl.u32 %v386, 16
      %v470 = vor.u32 %v468, %v466
      %v472 = vshll.u32 %v387, 16
      %v474 = vrot.slane %v472, 1
      %v475 = vsel %vm415, %v470, %v474
      %v476 = vshrl.u32 %v387, 16
      %v478 = vor.u32 %v476, %v474
      %v480 = vshll.u32 %v388, 16
      %v482 = vrot.slane %v480, 1
      %v483 = vsel %vm415, %v478, %v482
      %v484 = vshrl.u32 %v388, 16
      %v486 = vor.u32 %v484, %v482
      %v488 = vshll.u32 %v389, 16
      %v490 = vrot.slane %v488, 1
      %v491 = vsel %vm415, %v486, %v490
      %v492 = vshrl.u32 %v389, 16
      %v494 = vor.u32 %v492, %v490
      %v496 = vshll.u32 %v390, 16
      %v498 = vrot.slane %v496, 1
      %v499 = vsel %vm415, %v494, %v498
      %v500 = vshrl.u32 %v390, 16
      %v502 = vor.u32 %v500, %v498
      %v504 = vshll.u32 %v391, 16
      %v506 = vrot.slane %v504, 1
      %v507 = vsel %vm415, %v502, %v506
      %v508 = vshrl.u32 %v391, 16
      %v510 = vor.u32 %v508, %v506
      %v512 = vshll.u32 %v392, 16
      %v514 = vrot.slane %v512, 1
      %v515 = vsel %vm415, %v510, %v514
      %v516 = vshrl.u32 %v392, 16
      %v518 = vor.u32 %v516, %v514
      %v520 = vshll.u32 %v393, 16
      %v522 = vrot.slane %v520, 1
      %v523 = vsel %vm415, %v518, %v522
      %v524 = vshrl.u32 %v393, 16
      %v526 = vor.u32 %v524, %v522
      %v528 = vshll.u32 %v394, 16
      %v530 = vrot.slane %v528, 1
      %v531 = vsel %vm415, %v526, %v530
      %v532 = vshrl.u32 %v394, 16
      %v534 = vor.u32 %v532, %v530
      %v536 = vshll.u32 %v395, 16
      %v538 = vrot.slane %v536, 1
      %v539 = vsel %vm415, %v534, %v538
      %v540 = vshrl.u32 %v395, 16
      %v542 = vor.u32 %v540, %v538
      %v544 = vshll.u32 %v396, 16
      %v546 = vrot.slane %v544, 1
      %v547 = vsel %vm415, %v542, %v546
      %v548 = vshrl.u32 %v396, 16
      %v550 = vor.u32 %v548, %v546
      %v552 = vshll.u32 %v397, 16
      %v554 = vrot.slane %v552, 1
      %v555 = vsel %vm415, %v550, %v554
      %v556 = vshrl.u32 %v397, 16
      %v558 = vor.u32 %v556, %v554
      %v560 = vshll.u32 %v398, 16
      %v562 = vrot.slane %v560, 1
      %v563 = vsel %vm415, %v558, %v562
      %v564 = vshrl.u32 %v398, 16
      %v566 = vor.u32 %v564, %v562
      %v568 = vshll.u32 %v399, 16
      %v570 = vrot.slane %v568, 1
      %v571 = vsel %vm415, %v566, %v570
      %v572 = vshrl.u32 %v399, 16
      %v574 = vor.u32 %v572, %v570
      %v576 = vshll.u32 %v400, 16
      %v578 = vrot.slane %v576, 1
      %v579 = vsel %vm415, %v574, %v578
      %v580 = vshrl.u32 %v400, 16
      %v582 = vor.u32 %v580, %v578
      %v584 = vshll.u32 %v401, 16
      %v586 = vrot.slane %v584, 1
      %v587 = vsel %vm415, %v582, %v586
      %v588 = vshrl.u32 %v401, 16
      %v590 = vor.u32 %v588, %v586
      %v592 = vshll.u32 %v402, 16
      %v594 = vrot.slane %v592, 1
      %v595 = vsel %vm415, %v590, %v594
      %v596 = vshrl.u32 %v402, 16
      %v598 = vor.u32 %v596, %v594
      %v600 = vshll.u32 %v403, 16
      %v602 = vrot.slane %v600, 1
      %v603 = vsel %vm415, %v598, %v602
      %v604 = vshrl.u32 %v403, 16
      %v606 = vor.u32 %v604, %v602
      %v608 = vshll.u32 %v404, 16
      %v610 = vrot.slane %v608, 1
      %v611 = vsel %vm415, %v606, %v610
      %v612 = vshrl.u32 %v404, 16
      %v614 = vor.u32 %v612, %v610
      %v616 = vshll.u32 %v405, 16
      %v618 = vrot.slane %v616, 1
      %v619 = vsel %vm415, %v614, %v618
      %v620 = vshrl.u32 %v405, 16
      %v622 = vor.u32 %v620, %v618
      %v624 = vshll.u32 %v406, 16
      %v626 = vrot.slane %v624, 1
      %v627 = vsel %vm415, %v622, %v626
      %v628 = vshrl.u32 %v406, 16
      %v630 = vor.u32 %v628, %v626
      %v632 = vshll.u32 %v407, 16
      %v634 = vrot.slane %v632, 1
      %v635 = vsel %vm415, %v630, %v634
      %v636 = vshrl.u32 %v407, 16
      %v638 = vor.u32 %v636, %v634
      %v640 = vshll.u32 %v408, 16
      %v642 = vrot.slane %v640, 1
      %v643 = vsel %vm415, %v638, %v642
      %v644 = vshrl.u32 %v408, 16
      %v646 = vor.u32 %v644, %v642
      %v648 = vshll.u32 %v409, 16
      %v650 = vrot.slane %v648, 1
      %v651 = vsel %vm415, %v646, %v650
      %v652 = vshrl.u32 %v409, 16
      %v654 = vor.u32 %v652, %v650
      %v656 = vshll.u32 %v410, 16
      %v658 = vrot.slane %v656, 1
      %v659 = vsel %vm415, %v654, %v658
      %v660 = vshrl.u32 %v410, 16
      %v662 = vor.u32 %v660, %v658
      %v664 = vshll.u32 %v411, 16
      %v666 = vrot.slane %v664, 1
      %v667 = vsel %vm415, %v662, %v666
      %v668 = vshrl.u32 %v411, 16
      %v670 = vor.u32 %v668, %v666
      %v672 = vshll.u32 %v412, 16
      %v674 = vrot.slane %v672, 1
      %v675 = vsel %vm415, %v670, %v674
      %v676 = vshrl.u32 %v412, 16
      %v678 = vor.u32 %v676, %v674
      %v680 = vshll.u32 %v413, 16
      %v682 = vrot.slane %v680, 1
      %v683 = vsel %vm415, %v678, %v682
      %v684 = vshrl.u32 %v413, 16
      %v686 = vor.u32 %v684, %v682
      %v688 = vshll.u32 %v414, 16
      %v690 = vrot.slane %v688, 1
      %v691 = vsel %vm415, %v686, %v690
      %vm692 = vcmask 64512
      %v694 = vsel %vm692, %v427, 0
      %v697 = vsel %vm692, %v435, 0
      %v700 = vsel %vm692, %v443, 0
      %v703 = vsel %vm692, %v451, 0
      %v706 = vsel %vm692, %v459, 0
      %v709 = vsel %vm692, %v467, 0
      %v712 = vsel %vm692, %v475, 0
      %v715 = vsel %vm692, %v483, 0
      %v718 = vsel %vm692, %v491, 0
      %v721 = vsel %vm692, %v499, 0
      %v724 = vsel %vm692, %v507, 0
      %v727 = vsel %vm692, %v515, 0
      %v730 = vsel %vm692, %v523, 0
      %v733 = vsel %vm692, %v531, 0
      %v736 = vsel %vm692, %v539, 0
      %v739 = vsel %vm692, %v547, 0
      %v742 = vsel %vm692, %v555, 0
      %v745 = vsel %vm692, %v563, 0
      %v748 = vsel %vm692, %v571, 0
      %v751 = vsel %vm692, %v579, 0
      %v754 = vsel %vm692, %v587, 0
      %v757 = vsel %vm692, %v595, 0
      %v760 = vsel %vm692, %v603, 0
      %v763 = vsel %vm692, %v611, 0
      %v766 = vsel %vm692, %v619, 0
      %v769 = vsel %vm692, %v627, 0
      %v772 = vsel %vm692, %v635, 0
      %v775 = vsel %vm692, %v643, 0
      %v778 = vsel %vm692, %v651, 0
      %v781 = vsel %vm692, %v659, 0
      %v784 = vsel %vm692, %v667, 0
      %v787 = vsel %vm692, %v675, 0
      %v790 = vsel %vm692, %v683, 0
      %v793 = vsel %vm692, %v691, 0
      %vm795 = vcmask 1043456
      %v797 = vsel %vm795, %v241, 0
      %799 = vmatprep.subr.bf16.mxu0 0
      %800 = vmatpush1.bf16.msra.mxu0 %v797
      %801 = vmatprep.subr.bf16.mxu0 0
      %802 = vmatpush1.bf16.msra.mxu0 0
      %803 = vmatprep.subr.bf16.mxu0 0
      %804 = vmatpush1.bf16.msra.mxu0 0
      %805 = vmatprep.subr.bf16.mxu0 0
      %806 = vmatpush1.bf16.msra.mxu0 0
      %807 = vmatprep.subr.bf16.mxu0 0
      %808 = vmatpush1.bf16.msra.mxu0 0
      %809 = vmatprep.subr.bf16.mxu0 0
      %810 = vmatpush1.bf16.msra.mxu0 0
      %811 = vmatprep.subr.bf16.mxu0 0
      %812 = vmatpush1.bf16.msra.mxu0 0
      %813 = vmatprep.subr.bf16.mxu0 0
      %814 = vmatpush1.bf16.msra.mxu0 0
      %815 = vmatprep.subr.bf16.mxu0 0
      %816 = vmatpush1.bf16.msra.mxu0 0
      %817 = vmatprep.subr.bf16.mxu0 0
      %818 = vmatpush1.bf16.msra.mxu0 0
      %819 = vmatprep.subr.bf16.mxu0 0
      %820 = vmatpush1.bf16.msra.mxu0 0
      %821 = vmatprep.subr.bf16.mxu0 0
      %822 = vmatpush1.bf16.msra.mxu0 0
      %823 = vmatprep.subr.bf16.mxu0 0
      %824 = vmatpush1.bf16.msra.mxu0 0
      %825 = vmatprep.subr.bf16.mxu0 0
      %826 = vmatpush1.bf16.msra.mxu0 0
      %827 = vmatprep.subr.bf16.mxu0 0
      %828 = vmatpush1.bf16.msra.mxu0 0
      %829 = vmatprep.subr.bf16.mxu0 0
      %830 = vmatpush1.bf16.msra.mxu0 0
      %831 = vmatprep.mubr.bf16.mxu0 0
      %832 = vmatmul.mubr.bf16.gmra.mrb[0].mxu0 %v694
      %v833 = vpop.f32.mrb[0].mxu0
      %v834 = vadd.f32 0.0, %v833
      %v835 = vpop.f32.mrb[0].mxu0
      %v836 = vpop.f32.mrb[0].mxu0
      %v837 = vadd.f32 0.0, %v836
      %v838 = vpop.f32.mrb[0].mxu0
      %839 = vmatprep.mubr.bf16.mxu0 0
      %840 = vmatmul.mubr.bf16.gmra.mrb[0].mxu0 %v697
      %v841 = vpop.f32.mrb[0].mxu0
      %v842 = vadd.f32 0.0, %v841
      %v843 = vpop.f32.mrb[0].mxu0
      %v844 = vpop.f32.mrb[0].mxu0
      %v845 = vadd.f32 0.0, %v844
      %v846 = vpop.f32.mrb[0].mxu0
      %847 = vmatprep.mubr.bf16.mxu0 0
      %848 = vmatmul.mubr.bf16.gmra.mrb[0].mxu0 %v700
      %v849 = vpop.f32.mrb[0].mxu0
      %v850 = vadd.f32 0.0, %v849
      %v851 = vpop.f32.mrb[0].mxu0
      %v852 = vpop.f32.mrb[0].mxu0
      %v853 = vadd.f32 0.0, %v852
      %v854 = vpop.f32.mrb[0].mxu0
      %855 = vmatprep.mubr.bf16.mxu0 0
      %856 = vmatmul.mubr.bf16.gmra.mrb[0].mxu0 %v703
      %v857 = vpop.f32.mrb[0].mxu0
      %v858 = vadd.f32 0.0, %v857
      %v859 = vpop.f32.mrb[0].mxu0
      %v860 = vpop.f32.mrb[0].mxu0
      %v861 = vadd.f32 0.0, %v860
      %v862 = vpop.f32.mrb[0].mxu0
      %863 = vmatprep.mubr.bf16.mxu0 0
      %864 = vmatmul.mubr.bf16.gmra.mrb[0].mxu0 %v706
      %v865 = vpop.f32.mrb[0].mxu0
      %v866 = vadd.f32 0.0, %v865
      %v867 = vpop.f32.mrb[0].mxu0
      %v868 = vpop.f32.mrb[0].mxu0
      %v869 = vadd.f32 0.0, %v868
      %v870 = vpop.f32.mrb[0].mxu0
      %871 = vmatprep.mubr.bf16.mxu0 0
      %872 = vmatmul.mubr.bf16.gmra.mrb[0].mxu0 %v709
      %v873 = vpop.f32.mrb[0].mxu0
      %v874 = vadd.f32 0.0, %v873
      %v875 = vpop.f32.mrb[0].mxu0
      %v876 = vpop.f32.mrb[0].mxu0
      %v877 = vadd.f32 0.0, %v876
      %v878 = vpop.f32.mrb[0].mxu0
      %879 = vmatprep.mubr.bf16.mxu0 0
      %880 = vmatmul.mubr.bf16.gmra.mrb[0].mxu0 %v712
      %v881 = vpop.f32.mrb[0].mxu0
      %v882 = vadd.f32 0.0, %v881
      %v883 = vpop.f32.mrb[0].mxu0
      %v884 = vpop.f32.mrb[0].mxu0
      %v885 = vadd.f32 0.0, %v884
      %v886 = vpop.f32.mrb[0].mxu0
      %887 = vmatprep.mubr.bf16.mxu0 0
      %888 = vmatmul.mubr.bf16.gmra.mrb[0].mxu0 %v715
      %v889 = vpop.f32.mrb[0].mxu0
      %v890 = vadd.f32 0.0, %v889
      %v891 = vpop.f32.mrb[0].mxu0
      %v892 = vpop.f32.mrb[0].mxu0
      %v893 = vadd.f32 0.0, %v892
      %v894 = vpop.f32.mrb[0].mxu0
      %895 = vmatprep.mubr.bf16.mxu0 0
      %896 = vmatmul.mubr.bf16.gmra.mrb[0].mxu0 %v718
      %v897 = vpop.f32.mrb[0].mxu0
      %v898 = vadd.f32 0.0, %v897
      %v899 = vpop.f32.mrb[0].mxu0
      %v900 = vpop.f32.mrb[0].mxu0
      %v901 = vadd.f32 0.0, %v900
      %v902 = vpop.f32.mrb[0].mxu0
      %903 = vmatprep.mubr.bf16.mxu0 0
      %904 = vmatmul.mubr.bf16.gmra.mrb[0].mxu0 %v721
      %v905 = vpop.f32.mrb[0].mxu0
      %v906 = vadd.f32 0.0, %v905
      %v907 = vpop.f32.mrb[0].mxu0
      %v908 = vpop.f32.mrb[0].mxu0
      %v909 = vadd.f32 0.0, %v908
      %v910 = vpop.f32.mrb[0].mxu0
      %911 = vmatprep.mubr.bf16.mxu0 0
      %912 = vmatmul.mubr.bf16.gmra.mrb[0].mxu0 %v724
      %v913 = vpop.f32.mrb[0].mxu0
      %v914 = vadd.f32 0.0, %v913
      %v915 = vpop.f32.mrb[0].mxu0
      %v916 = vpop.f32.mrb[0].mxu0
      %v917 = vadd.f32 0.0, %v916
      %v918 = vpop.f32.mrb[0].mxu0
      %919 = vmatprep.mubr.bf16.mxu0 0
      %920 = vmatmul.mubr.bf16.gmra.mrb[0].mxu0 %v727
      %v921 = vpop.f32.mrb[0].mxu0
      %v922 = vadd.f32 0.0, %v921
      %v923 = vpop.f32.mrb[0].mxu0
      %v924 = vpop.f32.mrb[0].mxu0
      %v925 = vadd.f32 0.0, %v924
      %v926 = vpop.f32.mrb[0].mxu0
      %927 = vmatprep.mubr.bf16.mxu0 0
      %928 = vmatmul.mubr.bf16.gmra.mrb[0].mxu0 %v730
      %v929 = vpop.f32.mrb[0].mxu0
      %v930 = vadd.f32 0.0, %v929
      %v931 = vpop.f32.mrb[0].mxu0
      %v932 = vpop.f32.mrb[0].mxu0
      %v933 = vadd.f32 0.0, %v932
      %v934 = vpop.f32.mrb[0].mxu0
      %935 = vmatprep.mubr.bf16.mxu0 0
      %936 = vmatmul.mubr.bf16.gmra.mrb[0].mxu0 %v733
      %v937 = vpop.f32.mrb[0].mxu0
      %v938 = vadd.f32 0.0, %v937
      %v939 = vpop.f32.mrb[0].mxu0
      %v940 = vpop.f32.mrb[0].mxu0
      %v941 = vadd.f32 0.0, %v940
      %v942 = vpop.f32.mrb[0].mxu0
      %943 = vmatprep.mubr.bf16.mxu0 0
      %944 = vmatmul.mubr.bf16.gmra.mrb[0].mxu0 %v736
      %v945 = vpop.f32.mrb[0].mxu0
      %v946 = vadd.f32 0.0, %v945
      %v947 = vpop.f32.mrb[0].mxu0
      %v948 = vpop.f32.mrb[0].mxu0
      %v949 = vadd.f32 0.0, %v948
      %v950 = vpop.f32.mrb[0].mxu0
      %951 = vmatprep.mubr.bf16.mxu0 0
      %952 = vmatmul.mubr.bf16.gmra.mrb[0].mxu0 %v739
      %v953 = vpop.f32.mrb[0].mxu0
      %v954 = vadd.f32 0.0, %v953
      %v955 = vpop.f32.mrb[0].mxu0
      %v956 = vpop.f32.mrb[0].mxu0
      %v957 = vadd.f32 0.0, %v956
      %v958 = vpop.f32.mrb[0].mxu0
      %959 = vmatprep.mubr.bf16.mxu0 0
      %960 = vmatmul.mubr.bf16.gmra.mrb[0].mxu0 %v742
      %v961 = vpop.f32.mrb[0].mxu0
      %v962 = vadd.f32 0.0, %v961
      %v963 = vpop.f32.mrb[0].mxu0
      %v964 = vpop.f32.mrb[0].mxu0
      %v965 = vadd.f32 0.0, %v964
      %v966 = vpop.f32.mrb[0].mxu0
      %967 = vmatprep.mubr.bf16.mxu0 0
      %968 = vmatmul.mubr.bf16.gmra.mrb[0].mxu0 %v745
      %v969 = vpop.f32.mrb[0].mxu0
      %v970 = vadd.f32 0.0, %v969
      %v971 = vpop.f32.mrb[0].mxu0
      %v972 = vpop.f32.mrb[0].mxu0
      %v973 = vadd.f32 0.0, %v972
      %v974 = vpop.f32.mrb[0].mxu0
      %975 = vmatprep.mubr.bf16.mxu0 0
      %976 = vmatmul.mubr.bf16.gmra.mrb[0].mxu0 %v748
      %v977 = vpop.f32.mrb[0].mxu0
      %v978 = vadd.f32 0.0, %v977
      %v979 = vpop.f32.mrb[0].mxu0
      %v980 = vpop.f32.mrb[0].mxu0
      %v981 = vadd.f32 0.0, %v980
      %v982 = vpop.f32.mrb[0].mxu0
      %983 = vmatprep.mubr.bf16.mxu0 0
      %984 = vmatmul.mubr.bf16.gmra.mrb[0].mxu0 %v751
      %v985 = vpop.f32.mrb[0].mxu0
      %v986 = vadd.f32 0.0, %v985
      %v987 = vpop.f32.mrb[0].mxu0
      %v988 = vpop.f32.mrb[0].mxu0
      %v989 = vadd.f32 0.0, %v988
      %v990 = vpop.f32.mrb[0].mxu0
      %991 = vmatprep.mubr.bf16.mxu0 0
      %992 = vmatmul.mubr.bf16.gmra.mrb[0].mxu0 %v754
      %v993 = vpop.f32.mrb[0].mxu0
      %v994 = vadd.f32 0.0, %v993
      %v995 = vpop.f32.mrb[0].mxu0
      %v996 = vpop.f32.mrb[0].mxu0
      %v997 = vadd.f32 0.0, %v996
      %v998 = vpop.f32.mrb[0].mxu0
      %999 = vmatprep.mubr.bf16.mxu0 0
      %1000 = vmatmul.mubr.bf16.gmra.mrb[0].mxu0 %v757
      %v1001 = vpop.f32.mrb[0].mxu0
      %v1002 = vadd.f32 0.0, %v1001
      %v1003 = vpop.f32.mrb[0].mxu0
      %v1004 = vpop.f32.mrb[0].mxu0
      %v1005 = vadd.f32 0.0, %v1004
      %v1006 = vpop.f32.mrb[0].mxu0
      %1007 = vmatprep.mubr.bf16.mxu0 0
      %1008 = vmatmul.mubr.bf16.gmra.mrb[0].mxu0 %v760
      %v1009 = vpop.f32.mrb[0].mxu0
      %v1010 = vadd.f32 0.0, %v1009
      %v1011 = vpop.f32.mrb[0].mxu0
      %v1012 = vpop.f32.mrb[0].mxu0
      %v1013 = vadd.f32 0.0, %v1012
      %v1014 = vpop.f32.mrb[0].mxu0
      %1015 = vmatprep.mubr.bf16.mxu0 0
      %1016 = vmatmul.mubr.bf16.gmra.mrb[0].mxu0 %v763
      %v1017 = vpop.f32.mrb[0].mxu0
      %v1018 = vadd.f32 0.0, %v1017
      %v1019 = vpop.f32.mrb[0].mxu0
      %v1020 = vpop.f32.mrb[0].mxu0
      %v1021 = vadd.f32 0.0, %v1020
      %v1022 = vpop.f32.mrb[0].mxu0
      %1023 = vmatprep.mubr.bf16.mxu0 0
      %1024 = vmatmul.mubr.bf16.gmra.mrb[0].mxu0 %v766
      %v1025 = vpop.f32.mrb[0].mxu0
      %v1026 = vadd.f32 0.0, %v1025
      %v1027 = vpop.f32.mrb[0].mxu0
      %v1028 = vpop.f32.mrb[0].mxu0
      %v1029 = vadd.f32 0.0, %v1028
      %v1030 = vpop.f32.mrb[0].mxu0
      %1031 = vmatprep.mubr.bf16.mxu0 0
      %1032 = vmatmul.mubr.bf16.gmra.mrb[0].mxu0 %v769
      %v1033 = vpop.f32.mrb[0].mxu0
      %v1034 = vadd.f32 0.0, %v1033
      %v1035 = vpop.f32.mrb[0].mxu0
      %v1036 = vpop.f32.mrb[0].mxu0
      %v1037 = vadd.f32 0.0, %v1036
      %v1038 = vpop.f32.mrb[0].mxu0
      %1039 = vmatprep.mubr.bf16.mxu0 0
      %1040 = vmatmul.mubr.bf16.gmra.mrb[0].mxu0 %v772
      %v1041 = vpop.f32.mrb[0].mxu0
      %v1042 = vadd.f32 0.0, %v1041
      %v1043 = vpop.f32.mrb[0].mxu0
      %v1044 = vpop.f32.mrb[0].mxu0
      %v1045 = vadd.f32 0.0, %v1044
      %v1046 = vpop.f32.mrb[0].mxu0
      %1047 = vmatprep.mubr.bf16.mxu0 0
      %1048 = vmatmul.mubr.bf16.gmra.mrb[0].mxu0 %v775
      %v1049 = vpop.f32.mrb[0].mxu0
      %v1050 = vadd.f32 0.0, %v1049
      %v1051 = vpop.f32.mrb[0].mxu0
      %v1052 = vpop.f32.mrb[0].mxu0
      %v1053 = vadd.f32 0.0, %v1052
      %v1054 = vpop.f32.mrb[0].mxu0
      %1055 = vmatprep.mubr.bf16.mxu0 0
      %1056 = vmatmul.mubr.bf16.gmra.mrb[0].mxu0 %v778
      %v1057 = vpop.f32.mrb[0].mxu0
      %v1058 = vadd.f32 0.0, %v1057
      %v1059 = vpop.f32.mrb[0].mxu0
      %v1060 = vpop.f32.mrb[0].mxu0
      %v1061 = vadd.f32 0.0, %v1060
      %v1062 = vpop.f32.mrb[0].mxu0
      %1063 = vmatprep.mubr.bf16.mxu0 0
      %1064 = vmatmul.mubr.bf16.gmra.mrb[0].mxu0 %v781
      %v1065 = vpop.f32.mrb[0].mxu0
      %v1066 = vadd.f32 0.0, %v1065
      %v1067 = vpop.f32.mrb[0].mxu0
      %v1068 = vpop.f32.mrb[0].mxu0
      %v1069 = vadd.f32 0.0, %v1068
      %v1070 = vpop.f32.mrb[0].mxu0
      %1071 = vmatprep.mubr.bf16.mxu0 0
      %1072 = vmatmul.mubr.bf16.gmra.mrb[0].mxu0 %v784
      %v1073 = vpop.f32.mrb[0].mxu0
      %v1074 = vadd.f32 0.0, %v1073
      %v1075 = vpop.f32.mrb[0].mxu0
      %v1076 = vpop.f32.mrb[0].mxu0
      %v1077 = vadd.f32 0.0, %v1076
      %v1078 = vpop.f32.mrb[0].mxu0
      %1079 = vmatprep.mubr.bf16.mxu0 0
      %1080 = vmatmul.mubr.bf16.gmra.mrb[0].mxu0 %v787
      %v1081 = vpop.f32.mrb[0].mxu0
      %v1082 = vadd.f32 0.0, %v1081
      %v1083 = vpop.f32.mrb[0].mxu0
      %v1084 = vpop.f32.mrb[0].mxu0
      %v1085 = vadd.f32 0.0, %v1084
      %v1086 = vpop.f32.mrb[0].mxu0
      %1087 = vmatprep.mubr.bf16.mxu0 0
      %1088 = vmatmul.mubr.bf16.gmra.mrb[0].mxu0 %v790
      %v1089 = vpop.f32.mrb[0].mxu0
      %v1090 = vadd.f32 0.0, %v1089
      %v1091 = vpop.f32.mrb[0].mxu0
      %v1092 = vpop.f32.mrb[0].mxu0
      %v1093 = vadd.f32 0.0, %v1092
      %v1094 = vpop.f32.mrb[0].mxu0
      %1095 = vmatprep.mubr.bf16.mxu0 0
      %1096 = vmatmul.mubr.bf16.gmra.mrb[0].mxu0 %v793
      %v1097 = vpop.f32.mrb[0].mxu0
      %v1098 = vadd.f32 0.0, %v1097
      %v1099 = vpop.f32.mrb[0].mxu0
      %v1100 = vpop.f32.mrb[0].mxu0
      %v1101 = vadd.f32 0.0, %v1100
      %v1102 = vpop.f32.mrb[0].mxu0
      %1103 = vdwg.mxu0
      %v1104 = vsel %vm692, %v380, 0
      %v1106 = vsel %vm692, %v381, 0
      %v1108 = vsel %vm692, %v382, 0
      %v1110 = vsel %vm692, %v383, 0
      %v1112 = vsel %vm692, %v384, 0
      %v1114 = vsel %vm692, %v385, 0
      %v1116 = vsel %vm692, %v386, 0
      %v1118 = vsel %vm692, %v387, 0
      %v1120 = vsel %vm692, %v388, 0
      %v1122 = vsel %vm692, %v389, 0
      %v1124 = vsel %vm692, %v390, 0
      %v1126 = vsel %vm692, %v391, 0
      %v1128 = vsel %vm692, %v392, 0
      %v1130 = vsel %vm692, %v393, 0
      %v1132 = vsel %vm692, %v394, 0
      %v1134 = vsel %vm692, %v395, 0
      %v1136 = vsel %vm692, %v396, 0
      %v1138 = vsel %vm692, %v397, 0
      %v1140 = vsel %vm692, %v398, 0
      %v1142 = vsel %vm692, %v399, 0
      %v1144 = vsel %vm692, %v400, 0
      %v1146 = vsel %vm692, %v401, 0
      %v1148 = vsel %vm692, %v402, 0
      %v1150 = vsel %vm692, %v403, 0
      %v1152 = vsel %vm692, %v404, 0
      %v1154 = vsel %vm692, %v405, 0
      %v1156 = vsel %vm692, %v406, 0
      %v1158 = vsel %vm692, %v407, 0
      %v1160 = vsel %vm692, %v408, 0
      %v1162 = vsel %vm692, %v409, 0
      %v1164 = vsel %vm692, %v410, 0
      %v1166 = vsel %vm692, %v411, 0
      %v1168 = vsel %vm692, %v412, 0
      %v1170 = vsel %vm692, %v413, 0
      %v1173 = vsel %vm795, %v238, 0
      %1175 = vmatprep.subr.bf16.mxu0 0
      %1176 = vmatpush1.bf16.msra.mxu0 %v1173
      %1177 = vmatprep.subr.bf16.mxu0 0
      %1178 = vmatpush1.bf16.msra.mxu0 0
      %1179 = vmatprep.subr.bf16.mxu0 0
      %1180 = vmatpush1.bf16.msra.mxu0 0
      %1181 = vmatprep.subr.bf16.mxu0 0
      %1182 = vmatpush1.bf16.msra.mxu0 0
      %1183 = vmatprep.subr.bf16.mxu0 0
      %1184 = vmatpush1.bf16.msra.mxu0 0
      %1185 = vmatprep.subr.bf16.mxu0 0
      %1186 = vmatpush1.bf16.msra.mxu0 0
      %1187 = vmatprep.subr.bf16.mxu0 0
      %1188 = vmatpush1.bf16.msra.mxu0 0
      %1189 = vmatprep.subr.bf16.mxu0 0
      %1190 = vmatpush1.bf16.msra.mxu0 0
      %1191 = vmatprep.subr.bf16.mxu0 0
      %1192 = vmatpush1.bf16.msra.mxu0 0
      %1193 = vmatprep.subr.bf16.mxu0 0
      %1194 = vmatpush1.bf16.msra.mxu0 0
      %1195 = vmatprep.subr.bf16.mxu0 0
      %1196 = vmatpush1.bf16.msra.mxu0 0
      %1197 = vmatprep.subr.bf16.mxu0 0
      %1198 = vmatpush1.bf16.msra.mxu0 0
      %1199 = vmatprep.subr.bf16.mxu0 0
      %1200 = vmatpush1.bf16.msra.mxu0 0
      %1201 = vmatprep.subr.bf16.mxu0 0
      %1202 = vmatpush1.bf16.msra.mxu0 0
      %1203 = vmatprep.subr.bf16.mxu0 0
      %1204 = vmatpush1.bf16.msra.mxu0 0
      %1205 = vmatprep.subr.bf16.mxu0 0
      %1206 = vmatpush1.bf16.msra.mxu0 0
      %1207 = vmatprep.mubr.bf16.mxu0 0
      %1208 = vmatmul.mubr.bf16.gmra.mrb[0].mxu0 %v1104
      %v1209 = vpop.f32.mrb[0].mxu0
      %v1210 = vadd.f32 %v834, %v1209
      %v1211 = vpop.f32.mrb[0].mxu0
      %v1212 = vpop.f32.mrb[0].mxu0
      %v1213 = vadd.f32 %v837, %v1212
      %v1214 = vpop.f32.mrb[0].mxu0
      %1215 = vmatprep.mubr.bf16.mxu0 0
      %1216 = vmatmul.mubr.bf16.gmra.mrb[0].mxu0 %v1106
      %v1217 = vpop.f32.mrb[0].mxu0
      %v1218 = vadd.f32 %v842, %v1217
      %v1219 = vpop.f32.mrb[0].mxu0
      %v1220 = vpop.f32.mrb[0].mxu0
      %v1221 = vadd.f32 %v845, %v1220
      %v1222 = vpop.f32.mrb[0].mxu0
      %1223 = vmatprep.mubr.bf16.mxu0 0
      %1224 = vmatmul.mubr.bf16.gmra.mrb[0].mxu0 %v1108
      %v1225 = vpop.f32.mrb[0].mxu0
      %v1226 = vadd.f32 %v850, %v1225
      %v1227 = vpop.f32.mrb[0].mxu0
      %v1228 = vpop.f32.mrb[0].mxu0
      %v1229 = vadd.f32 %v853, %v1228
      %v1230 = vpop.f32.mrb[0].mxu0
      %1231 = vmatprep.mubr.bf16.mxu0 0
      %1232 = vmatmul.mubr.bf16.gmra.mrb[0].mxu0 %v1110
      %v1233 = vpop.f32.mrb[0].mxu0
      %v1234 = vadd.f32 %v858, %v1233
      %v1235 = vpop.f32.mrb[0].mxu0
      %v1236 = vpop.f32.mrb[0].mxu0
      %v1237 = vadd.f32 %v861, %v1236
      %v1238 = vpop.f32.mrb[0].mxu0
      %1239 = vmatprep.mubr.bf16.mxu0 0
      %1240 = vmatmul.mubr.bf16.gmra.mrb[0].mxu0 %v1112
      %v1241 = vpop.f32.mrb[0].mxu0
      %v1242 = vadd.f32 %v866, %v1241
      %v1243 = vpop.f32.mrb[0].mxu0
      %v1244 = vpop.f32.mrb[0].mxu0
      %v1245 = vadd.f32 %v869, %v1244
      %v1246 = vpop.f32.mrb[0].mxu0
      %1247 = vmatprep.mubr.bf16.mxu0 0
      %1248 = vmatmul.mubr.bf16.gmra.mrb[0].mxu0 %v1114
      %v1249 = vpop.f32.mrb[0].mxu0
      %v1250 = vadd.f32 %v874, %v1249
      %v1251 = vpop.f32.mrb[0].mxu0
      %v1252 = vpop.f32.mrb[0].mxu0
      %v1253 = vadd.f32 %v877, %v1252
      %v1254 = vpop.f32.mrb[0].mxu0
      %1255 = vmatprep.mubr.bf16.mxu0 0
      %1256 = vmatmul.mubr.bf16.gmra.mrb[0].mxu0 %v1116
      %v1257 = vpop.f32.mrb[0].mxu0
      %v1258 = vadd.f32 %v882, %v1257
      %v1259 = vpop.f32.mrb[0].mxu0
      %v1260 = vpop.f32.mrb[0].mxu0
      %v1261 = vadd.f32 %v885, %v1260
      %v1262 = vpop.f32.mrb[0].mxu0
      %1263 = vmatprep.mubr.bf16.mxu0 0
      %1264 = vmatmul.mubr.bf16.gmra.mrb[0].mxu0 %v1118
      %v1265 = vpop.f32.mrb[0].mxu0
      %v1266 = vadd.f32 %v890, %v1265
      %v1267 = vpop.f32.mrb[0].mxu0
      %v1268 = vpop.f32.mrb[0].mxu0
      %v1269 = vadd.f32 %v893, %v1268
      %v1270 = vpop.f32.mrb[0].mxu0
      %1271 = vmatprep.mubr.bf16.mxu0 0
      %1272 = vmatmul.mubr.bf16.gmra.mrb[0].mxu0 %v1120
      %v1273 = vpop.f32.mrb[0].mxu0
      %v1274 = vadd.f32 %v898, %v1273
      %v1275 = vpop.f32.mrb[0].mxu0
      %v1276 = vpop.f32.mrb[0].mxu0
      %v1277 = vadd.f32 %v901, %v1276
      %v1278 = vpop.f32.mrb[0].mxu0
      %1279 = vmatprep.mubr.bf16.mxu0 0
      %1280 = vmatmul.mubr.bf16.gmra.mrb[0].mxu0 %v1122
      %v1281 = vpop.f32.mrb[0].mxu0
      %v1282 = vadd.f32 %v906, %v1281
      %v1283 = vpop.f32.mrb[0].mxu0
      %v1284 = vpop.f32.mrb[0].mxu0
      %v1285 = vadd.f32 %v909, %v1284
      %v1286 = vpop.f32.mrb[0].mxu0
      %1287 = vmatprep.mubr.bf16.mxu0 0
      %1288 = vmatmul.mubr.bf16.gmra.mrb[0].mxu0 %v1124
      %v1289 = vpop.f32.mrb[0].mxu0
      %v1290 = vadd.f32 %v914, %v1289
      %v1291 = vpop.f32.mrb[0].mxu0
      %v1292 = vpop.f32.mrb[0].mxu0
      %v1293 = vadd.f32 %v917, %v1292
      %v1294 = vpop.f32.mrb[0].mxu0
      %1295 = vmatprep.mubr.bf16.mxu0 0
      %1296 = vmatmul.mubr.bf16.gmra.mrb[0].mxu0 %v1126
      %v1297 = vpop.f32.mrb[0].mxu0
      %v1298 = vadd.f32 %v922, %v1297
      %v1299 = vpop.f32.mrb[0].mxu0
      %v1300 = vpop.f32.mrb[0].mxu0
      %v1301 = vadd.f32 %v925, %v1300
      %v1302 = vpop.f32.mrb[0].mxu0
      %1303 = vmatprep.mubr.bf16.mxu0 0
      %1304 = vmatmul.mubr.bf16.gmra.mrb[0].mxu0 %v1128
      %v1305 = vpop.f32.mrb[0].mxu0
      %v1306 = vadd.f32 %v930, %v1305
      %v1307 = vpop.f32.mrb[0].mxu0
      %v1308 = vpop.f32.mrb[0].mxu0
      %v1309 = vadd.f32 %v933, %v1308
      %v1310 = vpop.f32.mrb[0].mxu0
      %1311 = vmatprep.mubr.bf16.mxu0 0
      %1312 = vmatmul.mubr.bf16.gmra.mrb[0].mxu0 %v1130
      %v1313 = vpop.f32.mrb[0].mxu0
      %v1314 = vadd.f32 %v938, %v1313
      %v1315 = vpop.f32.mrb[0].mxu0
      %v1316 = vpop.f32.mrb[0].mxu0
      %v1317 = vadd.f32 %v941, %v1316
      %v1318 = vpop.f32.mrb[0].mxu0
      %1319 = vmatprep.mubr.bf16.mxu0 0
      %1320 = vmatmul.mubr.bf16.gmra.mrb[0].mxu0 %v1132
      %v1321 = vpop.f32.mrb[0].mxu0
      %v1322 = vadd.f32 %v946, %v1321
      %v1323 = vpop.f32.mrb[0].mxu0
      %v1324 = vpop.f32.mrb[0].mxu0
      %v1325 = vadd.f32 %v949, %v1324
      %v1326 = vpop.f32.mrb[0].mxu0
      %1327 = vmatprep.mubr.bf16.mxu0 0
      %1328 = vmatmul.mubr.bf16.gmra.mrb[0].mxu0 %v1134
      %v1329 = vpop.f32.mrb[0].mxu0
      %v1330 = vadd.f32 %v954, %v1329
      %v1331 = vpop.f32.mrb[0].mxu0
      %v1332 = vpop.f32.mrb[0].mxu0
      %v1333 = vadd.f32 %v957, %v1332
      %v1334 = vpop.f32.mrb[0].mxu0
      %1335 = vmatprep.mubr.bf16.mxu0 0
      %1336 = vmatmul.mubr.bf16.gmra.mrb[0].mxu0 %v1136
      %v1337 = vpop.f32.mrb[0].mxu0
      %v1338 = vadd.f32 %v962, %v1337
      %v1339 = vpop.f32.mrb[0].mxu0
      %v1340 = vpop.f32.mrb[0].mxu0
      %v1341 = vadd.f32 %v965, %v1340
      %v1342 = vpop.f32.mrb[0].mxu0
      %1343 = vmatprep.mubr.bf16.mxu0 0
      %1344 = vmatmul.mubr.bf16.gmra.mrb[0].mxu0 %v1138
      %v1345 = vpop.f32.mrb[0].mxu0
      %v1346 = vadd.f32 %v970, %v1345
      %v1347 = vpop.f32.mrb[0].mxu0
      %v1348 = vpop.f32.mrb[0].mxu0
      %v1349 = vadd.f32 %v973, %v1348
      %v1350 = vpop.f32.mrb[0].mxu0
      %1351 = vmatprep.mubr.bf16.mxu0 0
      %1352 = vmatmul.mubr.bf16.gmra.mrb[0].mxu0 %v1140
      %v1353 = vpop.f32.mrb[0].mxu0
      %v1354 = vadd.f32 %v978, %v1353
      %v1355 = vpop.f32.mrb[0].mxu0
      %v1356 = vpop.f32.mrb[0].mxu0
      %v1357 = vadd.f32 %v981, %v1356
      %v1358 = vpop.f32.mrb[0].mxu0
      %1359 = vmatprep.mubr.bf16.mxu0 0
      %1360 = vmatmul.mubr.bf16.gmra.mrb[0].mxu0 %v1142
      %v1361 = vpop.f32.mrb[0].mxu0
      %v1362 = vadd.f32 %v986, %v1361
      %v1363 = vpop.f32.mrb[0].mxu0
      %v1364 = vpop.f32.mrb[0].mxu0
      %v1365 = vadd.f32 %v989, %v1364
      %v1366 = vpop.f32.mrb[0].mxu0
      %1367 = vmatprep.mubr.bf16.mxu0 0
      %1368 = vmatmul.mubr.bf16.gmra.mrb[0].mxu0 %v1144
      %v1369 = vpop.f32.mrb[0].mxu0
      %v1370 = vadd.f32 %v994, %v1369
      %v1371 = vpop.f32.mrb[0].mxu0
      %v1372 = vpop.f32.mrb[0].mxu0
      %v1373 = vadd.f32 %v997, %v1372
      %v1374 = vpop.f32.mrb[0].mxu0
      %1375 = vmatprep.mubr.bf16.mxu0 0
      %1376 = vmatmul.mubr.bf16.gmra.mrb[0].mxu0 %v1146
      %v1377 = vpop.f32.mrb[0].mxu0
      %v1378 = vadd.f32 %v1002, %v1377
      %v1379 = vpop.f32.mrb[0].mxu0
      %v1380 = vpop.f32.mrb[0].mxu0
      %v1381 = vadd.f32 %v1005, %v1380
      %v1382 = vpop.f32.mrb[0].mxu0
      %1383 = vmatprep.mubr.bf16.mxu0 0
      %1384 = vmatmul.mubr.bf16.gmra.mrb[0].mxu0 %v1148
      %v1385 = vpop.f32.mrb[0].mxu0
      %v1386 = vadd.f32 %v1010, %v1385
      %v1387 = vpop.f32.mrb[0].mxu0
      %v1388 = vpop.f32.mrb[0].mxu0
      %v1389 = vadd.f32 %v1013, %v1388
      %v1390 = vpop.f32.mrb[0].mxu0
      %1391 = vmatprep.mubr.bf16.mxu0 0
      %1392 = vmatmul.mubr.bf16.gmra.mrb[0].mxu0 %v1150
      %v1393 = vpop.f32.mrb[0].mxu0
      %v1394 = vadd.f32 %v1018, %v1393
      %v1395 = vpop.f32.mrb[0].mxu0
      %v1396 = vpop.f32.mrb[0].mxu0
      %v1397 = vadd.f32 %v1021, %v1396
      %v1398 = vpop.f32.mrb[0].mxu0
      %1399 = vmatprep.mubr.bf16.mxu0 0
      %1400 = vmatmul.mubr.bf16.gmra.mrb[0].mxu0 %v1152
      %v1401 = vpop.f32.mrb[0].mxu0
      %v1402 = vadd.f32 %v1026, %v1401
      %v1403 = vpop.f32.mrb[0].mxu0
      %v1404 = vpop.f32.mrb[0].mxu0
      %v1405 = vadd.f32 %v1029, %v1404
      %v1406 = vpop.f32.mrb[0].mxu0
      %1407 = vmatprep.mubr.bf16.mxu0 0
      %1408 = vmatmul.mubr.bf16.gmra.mrb[0].mxu0 %v1154
      %v1409 = vpop.f32.mrb[0].mxu0
      %v1410 = vadd.f32 %v1034, %v1409
      %v1411 = vpop.f32.mrb[0].mxu0
      %v1412 = vpop.f32.mrb[0].mxu0
      %v1413 = vadd.f32 %v1037, %v1412
      %v1414 = vpop.f32.mrb[0].mxu0
      %1415 = vmatprep.mubr.bf16.mxu0 0
      %1416 = vmatmul.mubr.bf16.gmra.mrb[0].mxu0 %v1156
      %v1417 = vpop.f32.mrb[0].mxu0
      %v1418 = vadd.f32 %v1042, %v1417
      %v1419 = vpop.f32.mrb[0].mxu0
      %v1420 = vpop.f32.mrb[0].mxu0
      %v1421 = vadd.f32 %v1045, %v1420
      %v1422 = vpop.f32.mrb[0].mxu0
      %1423 = vmatprep.mubr.bf16.mxu0 0
      %1424 = vmatmul.mubr.bf16.gmra.mrb[0].mxu0 %v1158
      %v1425 = vpop.f32.mrb[0].mxu0
      %v1426 = vadd.f32 %v1050, %v1425
      %v1427 = vpop.f32.mrb[0].mxu0
      %v1428 = vpop.f32.mrb[0].mxu0
      %v1429 = vadd.f32 %v1053, %v1428
      %v1430 = vpop.f32.mrb[0].mxu0
      %1431 = vmatprep.mubr.bf16.mxu0 0
      %1432 = vmatmul.mubr.bf16.gmra.mrb[0].mxu0 %v1160
      %v1433 = vpop.f32.mrb[0].mxu0
      %v1434 = vadd.f32 %v1058, %v1433
      %v1435 = vpop.f32.mrb[0].mxu0
      %v1436 = vpop.f32.mrb[0].mxu0
      %v1437 = vadd.f32 %v1061, %v1436
      %v1438 = vpop.f32.mrb[0].mxu0
      %1439 = vmatprep.mubr.bf16.mxu0 0
      %1440 = vmatmul.mubr.bf16.gmra.mrb[0].mxu0 %v1162
      %v1441 = vpop.f32.mrb[0].mxu0
      %v1442 = vadd.f32 %v1066, %v1441
      %v1443 = vpop.f32.mrb[0].mxu0
      %v1444 = vpop.f32.mrb[0].mxu0
      %v1445 = vadd.f32 %v1069, %v1444
      %v1446 = vpop.f32.mrb[0].mxu0
      %1447 = vmatprep.mubr.bf16.mxu0 0
      %1448 = vmatmul.mubr.bf16.gmra.mrb[0].mxu0 %v1164
      %v1449 = vpop.f32.mrb[0].mxu0
      %v1450 = vadd.f32 %v1074, %v1449
      %v1451 = vpop.f32.mrb[0].mxu0
      %v1452 = vpop.f32.mrb[0].mxu0
      %v1453 = vadd.f32 %v1077, %v1452
      %v1454 = vpop.f32.mrb[0].mxu0
      %1455 = vmatprep.mubr.bf16.mxu0 0
      %1456 = vmatmul.mubr.bf16.gmra.mrb[0].mxu0 %v1166
      %v1457 = vpop.f32.mrb[0].mxu0
      %v1458 = vadd.f32 %v1082, %v1457
      %v1459 = vpop.f32.mrb[0].mxu0
      %v1460 = vpop.f32.mrb[0].mxu0
      %v1461 = vadd.f32 %v1085, %v1460
      %v1462 = vpop.f32.mrb[0].mxu0
      %1463 = vmatprep.mubr.bf16.mxu0 0
      %1464 = vmatmul.mubr.bf16.gmra.mrb[0].mxu0 %v1168
      %v1465 = vpop.f32.mrb[0].mxu0
      %v1466 = vadd.f32 %v1090, %v1465
      %v1467 = vpop.f32.mrb[0].mxu0
      %v1468 = vpop.f32.mrb[0].mxu0
      %v1469 = vadd.f32 %v1093, %v1468
      %v1470 = vpop.f32.mrb[0].mxu0
      %1471 = vmatprep.mubr.bf16.mxu0 0
      %1472 = vmatmul.mubr.bf16.gmra.mrb[0].mxu0 %v1170
      %v1473 = vpop.f32.mrb[0].mxu0
      %v1474 = vadd.f32 %v1098, %v1473
      %v1475 = vpop.f32.mrb[0].mxu0
      %v1476 = vpop.f32.mrb[0].mxu0
      %v1477 = vadd.f32 %v1101, %v1476
      %v1478 = vpop.f32.mrb[0].mxu0
      %1479 = vdwg.mxu0
      %v1480 = vld [vmem:[%s164] sm:$0xe]
      %s1481 = scalar_lea.vmem %s1, 8
      %v1482 = vld [vmem:[%s1481] sm:$0xf]
      %v1484 = vunpack.c.l.b16 %v1480
      %v1485 = vpack.c.b16 %v312, %v1484
      %vm1486 = vcmask 1046528
      %v1487 = vrot.slane %v1485, 1
      %v1488 = vrot.slane %v381, 1
      %v1489 = vsel %vm1486, %v1487, %v1488
      %v1490 = vrot.slane %v382, 1
      %v1491 = vsel %vm1486, %v1488, %v1490
      %v1492 = vrot.slane %v383, 1
      %v1493 = vsel %vm1486, %v1490, %v1492
      %v1494 = vrot.slane %v384, 1
      %v1495 = vsel %vm1486, %v1492, %v1494
      %v1496 = vrot.slane %v385, 1
      %v1497 = vsel %vm1486, %v1494, %v1496
      %v1498 = vrot.slane %v386, 1
      %v1499 = vsel %vm1486, %v1496, %v1498
      %v1500 = vrot.slane %v387, 1
      %v1501 = vsel %vm1486, %v1498, %v1500
      %v1502 = vrot.slane %v388, 1
      %v1503 = vsel %vm1486, %v1500, %v1502
      %v1504 = vrot.slane %v389, 1
      %v1505 = vsel %vm1486, %v1502, %v1504
      %v1506 = vrot.slane %v390, 1
      %v1507 = vsel %vm1486, %v1504, %v1506
      %v1508 = vrot.slane %v391, 1
      %v1509 = vsel %vm1486, %v1506, %v1508
      %v1510 = vrot.slane %v392, 1
      %v1511 = vsel %vm1486, %v1508, %v1510
      %v1512 = vrot.slane %v393, 1
      %v1513 = vsel %vm1486, %v1510, %v1512
      %v1514 = vrot.slane %v394, 1
      %v1515 = vsel %vm1486, %v1512, %v1514
      %v1516 = vrot.slane %v395, 1
      %v1517 = vsel %vm1486, %v1514, %v1516
      %v1518 = vrot.slane %v396, 1
      %v1519 = vsel %vm1486, %v1516, %v1518
      %v1520 = vrot.slane %v397, 1
      %v1521 = vsel %vm1486, %v1518, %v1520
      %v1522 = vrot.slane %v398, 1
      %v1523 = vsel %vm1486, %v1520, %v1522
      %v1524 = vrot.slane %v399, 1
      %v1525 = vsel %vm1486, %v1522, %v1524
      %v1526 = vrot.slane %v400, 1
      %v1527 = vsel %vm1486, %v1524, %v1526
      %v1528 = vrot.slane %v401, 1
      %v1529 = vsel %vm1486, %v1526, %v1528
      %v1530 = vrot.slane %v402, 1
      %v1531 = vsel %vm1486, %v1528, %v1530
      %v1532 = vrot.slane %v403, 1
      %v1533 = vsel %vm1486, %v1530, %v1532
      %v1534 = vrot.slane %v404, 1
      %v1535 = vsel %vm1486, %v1532, %v1534
      %v1536 = vrot.slane %v405, 1
      %v1537 = vsel %vm1486, %v1534, %v1536
      %v1538 = vrot.slane %v406, 1
      %v1539 = vsel %vm1486, %v1536, %v1538
      %v1540 = vrot.slane %v407, 1
      %v1541 = vsel %vm1486, %v1538, %v1540
      %v1542 = vrot.slane %v408, 1
      %v1543 = vsel %vm1486, %v1540, %v1542
      %v1544 = vrot.slane %v409, 1
      %v1545 = vsel %vm1486, %v1542, %v1544
      %v1546 = vrot.slane %v410, 1
      %v1547 = vsel %vm1486, %v1544, %v1546
      %v1548 = vrot.slane %v411, 1
      %v1549 = vsel %vm1486, %v1546, %v1548
      %v1550 = vrot.slane %v412, 1
      %v1551 = vsel %vm1486, %v1548, %v1550
      %v1552 = vrot.slane %v413, 1
      %v1553 = vsel %vm1486, %v1550, %v1552
      %v1554 = vrot.slane %v414, 1
      %v1555 = vsel %vm1486, %v1552, %v1554
      %v1557 = vsel %vm692, %v1489, 0
      %v1560 = vsel %vm692, %v1491, 0
      %v1563 = vsel %vm692, %v1493, 0
      %v1566 = vsel %vm692, %v1495, 0
      %v1569 = vsel %vm692, %v1497, 0
      %v1572 = vsel %vm692, %v1499, 0
      %v1575 = vsel %vm692, %v1501, 0
      %v1578 = vsel %vm692, %v1503, 0
      %v1581 = vsel %vm692, %v1505, 0
      %v1584 = vsel %vm692, %v1507, 0
      %v1587 = vsel %vm692, %v1509, 0
      %v1590 = vsel %vm692, %v1511, 0
      %v1593 = vsel %vm692, %v1513, 0
      %v1596 = vsel %vm692, %v1515, 0
      %v1599 = vsel %vm692, %v1517, 0
      %v1602 = vsel %vm692, %v1519, 0
      %v1605 = vsel %vm692, %v1521, 0
      %v1608 = vsel %vm692, %v1523, 0
      %v1611 = vsel %vm692, %v1525, 0
      %v1614 = vsel %vm692, %v1527, 0
      %v1617 = vsel %vm692, %v1529, 0
      %v1620 = vsel %vm692, %v1531, 0
      %v1623 = vsel %vm692, %v1533, 0
      %v1626 = vsel %vm692, %v1535, 0
      %v1629 = vsel %vm692, %v1537, 0
      %v1632 = vsel %vm692, %v1539, 0
      %v1635 = vsel %vm692, %v1541, 0
      %v1638 = vsel %vm692, %v1543, 0
      %v1641 = vsel %vm692, %v1545, 0
      %v1644 = vsel %vm692, %v1547, 0
      %v1647 = vsel %vm692, %v1549, 0
      %v1650 = vsel %vm692, %v1551, 0
      %v1653 = vsel %vm692, %v1553, 0
      %v1656 = vsel %vm692, %v1555, 0
      %v1659 = vsel %vm795, %v1482, 0
      %1661 = vmatprep.subr.bf16.mxu0 0
      %1662 = vmatpush1.bf16.msra.mxu0 %v1659
      %1663 = vmatprep.subr.bf16.mxu0 0
      %1664 = vmatpush1.bf16.msra.mxu0 0
      %1665 = vmatprep.subr.bf16.mxu0 0
      %1666 = vmatpush1.bf16.msra.mxu0 0
      %1667 = vmatprep.subr.bf16.mxu0 0
      %1668 = vmatpush1.bf16.msra.mxu0 0
      %1669 = vmatprep.subr.bf16.mxu0 0
      %1670 = vmatpush1.bf16.msra.mxu0 0
      %1671 = vmatprep.subr.bf16.mxu0 0
      %1672 = vmatpush1.bf16.msra.mxu0 0
      %1673 = vmatprep.subr.bf16.mxu0 0
      %1674 = vmatpush1.bf16.msra.mxu0 0
      %1675 = vmatprep.subr.bf16.mxu0 0
      %1676 = vmatpush1.bf16.msra.mxu0 0
      %1677 = vmatprep.subr.bf16.mxu0 0
      %1678 = vmatpush1.bf16.msra.mxu0 0
      %1679 = vmatprep.subr.bf16.mxu0 0
      %1680 = vmatpush1.bf16.msra.mxu0 0
      %1681 = vmatprep.subr.bf16.mxu0 0
      %1682 = vmatpush1.bf16.msra.mxu0 0
      %1683 = vmatprep.subr.bf16.mxu0 0
      %1684 = vmatpush1.bf16.msra.mxu0 0
      %1685 = vmatprep.subr.bf16.mxu0 0
      %1686 = vmatpush1.bf16.msra.mxu0 0
      %1687 = vmatprep.subr.bf16.mxu0 0
      %1688 = vmatpush1.bf16.msra.mxu0 0
      %1689 = vmatprep.subr.bf16.mxu0 0
      %1690 = vmatpush1.bf16.msra.mxu0 0
      %1691 = vmatprep.subr.bf16.mxu0 0
      %1692 = vmatpush1.bf16.msra.mxu0 0
      %1693 = vmatprep.mubr.bf16.mxu0 0
      %1694 = vmatmul.mubr.bf16.gmra.mrb[0].mxu0 %v1557
      %v1695 = vpop.f32.mrb[0].mxu0
      %v1696 = vadd.f32 0.0, %v1695
      %v1697 = vpop.f32.mrb[0].mxu0
      %v1698 = vpop.f32.mrb[0].mxu0
      %v1699 = vadd.f32 0.0, %v1698
      %v1700 = vpop.f32.mrb[0].mxu0
      %1701 = vmatprep.mubr.bf16.mxu0 0
      %1702 = vmatmul.mubr.bf16.gmra.mrb[0].mxu0 %v1560
      %v1703 = vpop.f32.mrb[0].mxu0
      %v1704 = vadd.f32 0.0, %v1703
      %v1705 = vpop.f32.mrb[0].mxu0
      %v1706 = vpop.f32.mrb[0].mxu0
      %v1707 = vadd.f32 0.0, %v1706
      %v1708 = vpop.f32.mrb[0].mxu0
      %1709 = vmatprep.mubr.bf16.mxu0 0
      %1710 = vmatmul.mubr.bf16.gmra.mrb[0].mxu0 %v1563
      %v1711 = vpop.f32.mrb[0].mxu0
      %v1712 = vadd.f32 0.0, %v1711
      %v1713 = vpop.f32.mrb[0].mxu0
      %v1714 = vpop.f32.mrb[0].mxu0
      %v1715 = vadd.f32 0.0, %v1714
      %v1716 = vpop.f32.mrb[0].mxu0
      %1717 = vmatprep.mubr.bf16.mxu0 0
      %1718 = vmatmul.mubr.bf16.gmra.mrb[0].mxu0 %v1566
      %v1719 = vpop.f32.mrb[0].mxu0
      %v1720 = vadd.f32 0.0, %v1719
      %v1721 = vpop.f32.mrb[0].mxu0
      %v1722 = vpop.f32.mrb[0].mxu0
      %v1723 = vadd.f32 0.0, %v1722
      %v1724 = vpop.f32.mrb[0].mxu0
      %1725 = vmatprep.mubr.bf16.mxu0 0
      %1726 = vmatmul.mubr.bf16.gmra.mrb[0].mxu0 %v1569
      %v1727 = vpop.f32.mrb[0].mxu0
      %v1728 = vadd.f32 0.0, %v1727
      %v1729 = vpop.f32.mrb[0].mxu0
      %v1730 = vpop.f32.mrb[0].mxu0
      %v1731 = vadd.f32 0.0, %v1730
      %v1732 = vpop.f32.mrb[0].mxu0
      %1733 = vmatprep.mubr.bf16.mxu0 0
      %1734 = vmatmul.mubr.bf16.gmra.mrb[0].mxu0 %v1572
      %v1735 = vpop.f32.mrb[0].mxu0
      %v1736 = vadd.f32 0.0, %v1735
      %v1737 = vpop.f32.mrb[0].mxu0
      %v1738 = vpop.f32.mrb[0].mxu0
      %v1739 = vadd.f32 0.0, %v1738
      %v1740 = vpop.f32.mrb[0].mxu0
      %1741 = vmatprep.mubr.bf16.mxu0 0
      %1742 = vmatmul.mubr.bf16.gmra.mrb[0].mxu0 %v1575
      %v1743 = vpop.f32.mrb[0].mxu0
      %v1744 = vadd.f32 0.0, %v1743
      %v1745 = vpop.f32.mrb[0].mxu0
      %v1746 = vpop.f32.mrb[0].mxu0
      %v1747 = vadd.f32 0.0, %v1746
      %v1748 = vpop.f32.mrb[0].mxu0
      %1749 = vmatprep.mubr.bf16.mxu0 0
      %1750 = vmatmul.mubr.bf16.gmra.mrb[0].mxu0 %v1578
      %v1751 = vpop.f32.mrb[0].mxu0
      %v1752 = vadd.f32 0.0, %v1751
      %v1753 = vpop.f32.mrb[0].mxu0
      %v1754 = vpop.f32.mrb[0].mxu0
      %v1755 = vadd.f32 0.0, %v1754
      %v1756 = vpop.f32.mrb[0].mxu0
      %1757 = vmatprep.mubr.bf16.mxu0 0
      %1758 = vmatmul.mubr.bf16.gmra.mrb[0].mxu0 %v1581
      %v1759 = vpop.f32.mrb[0].mxu0
      %v1760 = vadd.f32 0.0, %v1759
      %v1761 = vpop.f32.mrb[0].mxu0
      %v1762 = vpop.f32.mrb[0].mxu0
      %v1763 = vadd.f32 0.0, %v1762
      %v1764 = vpop.f32.mrb[0].mxu0
      %1765 = vmatprep.mubr.bf16.mxu0 0
      %1766 = vmatmul.mubr.bf16.gmra.mrb[0].mxu0 %v1584
      %v1767 = vpop.f32.mrb[0].mxu0
      %v1768 = vadd.f32 0.0, %v1767
      %v1769 = vpop.f32.mrb[0].mxu0
      %v1770 = vpop.f32.mrb[0].mxu0
      %v1771 = vadd.f32 0.0, %v1770
      %v1772 = vpop.f32.mrb[0].mxu0
      %1773 = vmatprep.mubr.bf16.mxu0 0
      %1774 = vmatmul.mubr.bf16.gmra.mrb[0].mxu0 %v1587
      %v1775 = vpop.f32.mrb[0].mxu0
      %v1776 = vadd.f32 0.0, %v1775
      %v1777 = vpop.f32.mrb[0].mxu0
      %v1778 = vpop.f32.mrb[0].mxu0
      %v1779 = vadd.f32 0.0, %v1778
      %v1780 = vpop.f32.mrb[0].mxu0
      %1781 = vmatprep.mubr.bf16.mxu0 0
      %1782 = vmatmul.mubr.bf16.gmra.mrb[0].mxu0 %v1590
      %v1783 = vpop.f32.mrb[0].mxu0
      %v1784 = vadd.f32 0.0, %v1783
      %v1785 = vpop.f32.mrb[0].mxu0
      %v1786 = vpop.f32.mrb[0].mxu0
      %v1787 = vadd.f32 0.0, %v1786
      %v1788 = vpop.f32.mrb[0].mxu0
      %1789 = vmatprep.mubr.bf16.mxu0 0
      %1790 = vmatmul.mubr.bf16.gmra.mrb[0].mxu0 %v1593
      %v1791 = vpop.f32.mrb[0].mxu0
      %v1792 = vadd.f32 0.0, %v1791
      %v1793 = vpop.f32.mrb[0].mxu0
      %v1794 = vpop.f32.mrb[0].mxu0
      %v1795 = vadd.f32 0.0, %v1794
      %v1796 = vpop.f32.mrb[0].mxu0
      %1797 = vmatprep.mubr.bf16.mxu0 0
      %1798 = vmatmul.mubr.bf16.gmra.mrb[0].mxu0 %v1596
      %v1799 = vpop.f32.mrb[0].mxu0
      %v1800 = vadd.f32 0.0, %v1799
      %v1801 = vpop.f32.mrb[0].mxu0
      %v1802 = vpop.f32.mrb[0].mxu0
      %v1803 = vadd.f32 0.0, %v1802
      %v1804 = vpop.f32.mrb[0].mxu0
      %1805 = vmatprep.mubr.bf16.mxu0 0
      %1806 = vmatmul.mubr.bf16.gmra.mrb[0].mxu0 %v1599
      %v1807 = vpop.f32.mrb[0].mxu0
      %v1808 = vadd.f32 0.0, %v1807
      %v1809 = vpop.f32.mrb[0].mxu0
      %v1810 = vpop.f32.mrb[0].mxu0
      %v1811 = vadd.f32 0.0, %v1810
      %v1812 = vpop.f32.mrb[0].mxu0
      %1813 = vmatprep.mubr.bf16.mxu0 0
      %1814 = vmatmul.mubr.bf16.gmra.mrb[0].mxu0 %v1602
      %v1815 = vpop.f32.mrb[0].mxu0
      %v1816 = vadd.f32 0.0, %v1815
      %v1817 = vpop.f32.mrb[0].mxu0
      %v1818 = vpop.f32.mrb[0].mxu0
      %v1819 = vadd.f32 0.0, %v1818
      %v1820 = vpop.f32.mrb[0].mxu0
      %1821 = vmatprep.mubr.bf16.mxu0 0
      %1822 = vmatmul.mubr.bf16.gmra.mrb[0].mxu0 %v1605
      %v1823 = vpop.f32.mrb[0].mxu0
      %v1824 = vadd.f32 0.0, %v1823
      %v1825 = vpop.f32.mrb[0].mxu0
      %v1826 = vpop.f32.mrb[0].mxu0
      %v1827 = vadd.f32 0.0, %v1826
      %v1828 = vpop.f32.mrb[0].mxu0
      %1829 = vmatprep.mubr.bf16.mxu0 0
      %1830 = vmatmul.mubr.bf16.gmra.mrb[0].mxu0 %v1608
      %v1831 = vpop.f32.mrb[0].mxu0
      %v1832 = vadd.f32 0.0, %v1831
      %v1833 = vpop.f32.mrb[0].mxu0
      %v1834 = vpop.f32.mrb[0].mxu0
      %v1835 = vadd.f32 0.0, %v1834
      %v1836 = vpop.f32.mrb[0].mxu0
      %1837 = vmatprep.mubr.bf16.mxu0 0
      %1838 = vmatmul.mubr.bf16.gmra.mrb[0].mxu0 %v1611
      %v1839 = vpop.f32.mrb[0].mxu0
      %v1840 = vadd.f32 0.0, %v1839
      %v1841 = vpop.f32.mrb[0].mxu0
      %v1842 = vpop.f32.mrb[0].mxu0
      %v1843 = vadd.f32 0.0, %v1842
      %v1844 = vpop.f32.mrb[0].mxu0
      %1845 = vmatprep.mubr.bf16.mxu0 0
      %1846 = vmatmul.mubr.bf16.gmra.mrb[0].mxu0 %v1614
      %v1847 = vpop.f32.mrb[0].mxu0
      %v1848 = vadd.f32 0.0, %v1847
      %v1849 = vpop.f32.mrb[0].mxu0
      %v1850 = vpop.f32.mrb[0].mxu0
      %v1851 = vadd.f32 0.0, %v1850
      %v1852 = vpop.f32.mrb[0].mxu0
      %1853 = vmatprep.mubr.bf16.mxu0 0
      %1854 = vmatmul.mubr.bf16.gmra.mrb[0].mxu0 %v1617
      %v1855 = vpop.f32.mrb[0].mxu0
      %v1856 = vadd.f32 0.0, %v1855
      %v1857 = vpop.f32.mrb[0].mxu0
      %v1858 = vpop.f32.mrb[0].mxu0
      %v1859 = vadd.f32 0.0, %v1858
      %v1860 = vpop.f32.mrb[0].mxu0
      %1861 = vmatprep.mubr.bf16.mxu0 0
      %1862 = vmatmul.mubr.bf16.gmra.mrb[0].mxu0 %v1620
      %v1863 = vpop.f32.mrb[0].mxu0
      %v1864 = vadd.f32 0.0, %v1863
      %v1865 = vpop.f32.mrb[0].mxu0
      %v1866 = vpop.f32.mrb[0].mxu0
      %v1867 = vadd.f32 0.0, %v1866
      %v1868 = vpop.f32.mrb[0].mxu0
      %1869 = vmatprep.mubr.bf16.mxu0 0
      %1870 = vmatmul.mubr.bf16.gmra.mrb[0].mxu0 %v1623
      %v1871 = vpop.f32.mrb[0].mxu0
      %v1872 = vadd.f32 0.0, %v1871
      %v1873 = vpop.f32.mrb[0].mxu0
      %v1874 = vpop.f32.mrb[0].mxu0
      %v1875 = vadd.f32 0.0, %v1874
      %v1876 = vpop.f32.mrb[0].mxu0
      %1877 = vmatprep.mubr.bf16.mxu0 0
      %1878 = vmatmul.mubr.bf16.gmra.mrb[0].mxu0 %v1626
      %v1879 = vpop.f32.mrb[0].mxu0
      %v1880 = vadd.f32 0.0, %v1879
      %v1881 = vpop.f32.mrb[0].mxu0
      %v1882 = vpop.f32.mrb[0].mxu0
      %v1883 = vadd.f32 0.0, %v1882
      %v1884 = vpop.f32.mrb[0].mxu0
      %1885 = vmatprep.mubr.bf16.mxu0 0
      %1886 = vmatmul.mubr.bf16.gmra.mrb[0].mxu0 %v1629
      %v1887 = vpop.f32.mrb[0].mxu0
      %v1888 = vadd.f32 0.0, %v1887
      %v1889 = vpop.f32.mrb[0].mxu0
      %v1890 = vpop.f32.mrb[0].mxu0
      %v1891 = vadd.f32 0.0, %v1890
      %v1892 = vpop.f32.mrb[0].mxu0
      %1893 = vmatprep.mubr.bf16.mxu0 0
      %1894 = vmatmul.mubr.bf16.gmra.mrb[0].mxu0 %v1632
      %v1895 = vpop.f32.mrb[0].mxu0
      %v1896 = vadd.f32 0.0, %v1895
      %v1897 = vpop.f32.mrb[0].mxu0
      %v1898 = vpop.f32.mrb[0].mxu0
      %v1899 = vadd.f32 0.0, %v1898
      %v1900 = vpop.f32.mrb[0].mxu0
      %1901 = vmatprep.mubr.bf16.mxu0 0
      %1902 = vmatmul.mubr.bf16.gmra.mrb[0].mxu0 %v1635
      %v1903 = vpop.f32.mrb[0].mxu0
      %v1904 = vadd.f32 0.0, %v1903
      %v1905 = vpop.f32.mrb[0].mxu0
      %v1906 = vpop.f32.mrb[0].mxu0
      %v1907 = vadd.f32 0.0, %v1906
      %v1908 = vpop.f32.mrb[0].mxu0
      %1909 = vmatprep.mubr.bf16.mxu0 0
      %1910 = vmatmul.mubr.bf16.gmra.mrb[0].mxu0 %v1638
      %v1911 = vpop.f32.mrb[0].mxu0
      %v1912 = vadd.f32 0.0, %v1911
      %v1913 = vpop.f32.mrb[0].mxu0
      %v1914 = vpop.f32.mrb[0].mxu0
      %v1915 = vadd.f32 0.0, %v1914
      %v1916 = vpop.f32.mrb[0].mxu0
      %1917 = vmatprep.mubr.bf16.mxu0 0
      %1918 = vmatmul.mubr.bf16.gmra.mrb[0].mxu0 %v1641
      %v1919 = vpop.f32.mrb[0].mxu0
      %v1920 = vadd.f32 0.0, %v1919
      %v1921 = vpop.f32.mrb[0].mxu0
      %v1922 = vpop.f32.mrb[0].mxu0
      %v1923 = vadd.f32 0.0, %v1922
      %v1924 = vpop.f32.mrb[0].mxu0
      %1925 = vmatprep.mubr.bf16.mxu0 0
      %1926 = vmatmul.mubr.bf16.gmra.mrb[0].mxu0 %v1644
      %v1927 = vpop.f32.mrb[0].mxu0
      %v1928 = vadd.f32 0.0, %v1927
      %v1929 = vpop.f32.mrb[0].mxu0
      %v1930 = vpop.f32.mrb[0].mxu0
      %v1931 = vadd.f32 0.0, %v1930
      %v1932 = vpop.f32.mrb[0].mxu0
      %1933 = vmatprep.mubr.bf16.mxu0 0
      %1934 = vmatmul.mubr.bf16.gmra.mrb[0].mxu0 %v1647
      %v1935 = vpop.f32.mrb[0].mxu0
      %v1936 = vadd.f32 0.0, %v1935
      %v1937 = vpop.f32.mrb[0].mxu0
      %v1938 = vpop.f32.mrb[0].mxu0
      %v1939 = vadd.f32 0.0, %v1938
      %v1940 = vpop.f32.mrb[0].mxu0
      %1941 = vmatprep.mubr.bf16.mxu0 0
      %1942 = vmatmul.mubr.bf16.gmra.mrb[0].mxu0 %v1650
      %v1943 = vpop.f32.mrb[0].mxu0
      %v1944 = vadd.f32 0.0, %v1943
      %v1945 = vpop.f32.mrb[0].mxu0
      %v1946 = vpop.f32.mrb[0].mxu0
      %v1947 = vadd.f32 0.0, %v1946
      %v1948 = vpop.f32.mrb[0].mxu0
      %1949 = vmatprep.mubr.bf16.mxu0 0
      %1950 = vmatmul.mubr.bf16.gmra.mrb[0].mxu0 %v1653
      %v1951 = vpop.f32.mrb[0].mxu0
      %v1952 = vadd.f32 0.0, %v1951
      %v1953 = vpop.f32.mrb[0].mxu0
      %v1954 = vpop.f32.mrb[0].mxu0
      %v1955 = vadd.f32 0.0, %v1954
      %v1956 = vpop.f32.mrb[0].mxu0
      %1957 = vmatprep.mubr.bf16.mxu0 0
      %1958 = vmatmul.mubr.bf16.gmra.mrb[0].mxu0 %v1656
      %v1959 = vpop.f32.mrb[0].mxu0
      %v1960 = vadd.f32 0.0, %v1959
      %v1961 = vpop.f32.mrb[0].mxu0
      %v1962 = vpop.f32.mrb[0].mxu0
      %v1963 = vadd.f32 0.0, %v1962
      %v1964 = vpop.f32.mrb[0].mxu0
      %1965 = vdwg.mxu0
      %v1966 = vadd.f32 %v1210, %v1696
      %v1967 = vadd.f32 %v1213, %v1699
      %v1968 = vadd.f32 %v1218, %v1704
      %v1969 = vadd.f32 %v1221, %v1707
      %v1970 = vadd.f32 %v1226, %v1712
      %v1971 = vadd.f32 %v1229, %v1715
      %v1972 = vadd.f32 %v1234, %v1720
      %v1973 = vadd.f32 %v1237, %v1723
      %v1974 = vadd.f32 %v1242, %v1728
      %v1975 = vadd.f32 %v1245, %v1731
      %v1976 = vadd.f32 %v1250, %v1736
      %v1977 = vadd.f32 %v1253, %v1739
      %v1978 = vadd.f32 %v1258, %v1744
      %v1979 = vadd.f32 %v1261, %v1747
      %v1980 = vadd.f32 %v1266, %v1752
      %v1981 = vadd.f32 %v1269, %v1755
      %v1982 = vadd.f32 %v1274, %v1760
      %v1983 = vadd.f32 %v1277, %v1763
      %v1984 = vadd.f32 %v1282, %v1768
      %v1985 = vadd.f32 %v1285, %v1771
      %v1986 = vadd.f32 %v1290, %v1776
      %v1987 = vadd.f32 %v1293, %v1779
      %v1988 = vadd.f32 %v1298, %v1784
      %v1989 = vadd.f32 %v1301, %v1787
      %v1990 = vadd.f32 %v1306, %v1792
      %v1991 = vadd.f32 %v1309, %v1795
      %v1992 = vadd.f32 %v1314, %v1800
      %v1993 = vadd.f32 %v1317, %v1803
      %v1994 = vadd.f32 %v1322, %v1808
      %v1995 = vadd.f32 %v1325, %v1811
      %v1996 = vadd.f32 %v1330, %v1816
      %v1997 = vadd.f32 %v1333, %v1819
      %v1998 = vadd.f32 %v1338, %v1824
      %v1999 = vadd.f32 %v1341, %v1827
      %v2000 = vadd.f32 %v1346, %v1832
      %v2001 = vadd.f32 %v1349, %v1835
      %v2002 = vadd.f32 %v1354, %v1840
      %v2003 = vadd.f32 %v1357, %v1843
      %v2004 = vadd.f32 %v1362, %v1848
      %v2005 = vadd.f32 %v1365, %v1851
      %v2006 = vadd.f32 %v1370, %v1856
      %v2007 = vadd.f32 %v1373, %v1859
      %v2008 = vadd.f32 %v1378, %v1864
      %v2009 = vadd.f32 %v1381, %v1867
      %v2010 = vadd.f32 %v1386, %v1872
      %v2011 = vadd.f32 %v1389, %v1875
      %v2012 = vadd.f32 %v1394, %v1880
      %v2013 = vadd.f32 %v1397, %v1883
      %v2014 = vadd.f32 %v1402, %v1888
      %v2015 = vadd.f32 %v1405, %v1891
      %v2016 = vadd.f32 %v1410, %v1896
      %v2017 = vadd.f32 %v1413, %v1899
      %v2018 = vadd.f32 %v1418, %v1904
      %v2019 = vadd.f32 %v1421, %v1907
      %v2020 = vadd.f32 %v1426, %v1912
      %v2021 = vadd.f32 %v1429, %v1915
      %v2022 = vadd.f32 %v1434, %v1920
      %v2023 = vadd.f32 %v1437, %v1923
      %v2024 = vadd.f32 %v1442, %v1928
      %v2025 = vadd.f32 %v1445, %v1931
      %v2026 = vadd.f32 %v1450, %v1936
      %v2027 = vadd.f32 %v1453, %v1939
      %v2028 = vadd.f32 %v1458, %v1944
      %v2029 = vadd.f32 %v1461, %v1947
      %v2030 = vadd.f32 %v1466, %v1952
      %v2031 = vadd.f32 %v1469, %v1955
      %v2032 = vadd.f32 %v1474, %v1960
      %v2033 = vadd.f32 %v1477, %v1963
      %v2034 = vld [vmem:[%s164 + $0x10] sm:$0xe]
      %v2035 = vld [vmem:[%s164 + $0x14] sm:$0xf]
      %v2036 = vld [vmem:[%s164 + $0x18] sm:$0xf]
      %v2037 = vld [vmem:[%s164 + $0x1c] sm:$0xf]
      %v2038 = vld [vmem:[%s164 + $0x20] sm:$0xf]
      %v2039 = vld [vmem:[%s164 + $0x24] sm:$0xf]
      %v2040 = vld [vmem:[%s164 + $0x28] sm:$0xf]
      %v2041 = vld [vmem:[%s164 + $0x2c] sm:$0xf]
      %v2042 = vld [vmem:[%s164 + $0x30] sm:$0xf]
      %v2043 = vld [vmem:[%s164 + $0x34] sm:$0xf]
      %v2044 = vld [vmem:[%s164 + $0x38] sm:$0xf]
      %v2045 = vld [vmem:[%s164 + $0x3c] sm:$0xf]
      %v2046 = vld [vmem:[%s164 + $0x40] sm:$0xf]
      %v2047 = vld [vmem:[%s164 + $0x44] sm:$0xf]
      %v2048 = vld [vmem:[%s164 + $0x48] sm:$0xf]
      %v2049 = vld [vmem:[%s164 + $0x4c] sm:$0xf]
      %v2050 = vld [vmem:[%s164 + $0x50] sm:$0xf]
      %v2051 = vld [vmem:[%s164 + $0x54] sm:$0xf]
      %v2052 = vld [vmem:[%s164 + $0x58] sm:$0xf]
      %v2053 = vld [vmem:[%s164 + $0x5c] sm:$0xf]
      %v2054 = vld [vmem:[%s164 + $0x60] sm:$0xf]
      %v2055 = vld [vmem:[%s164 + $0x64] sm:$0xf]
      %v2056 = vld [vmem:[%s164 + $0x68] sm:$0xf]
      %v2057 = vld [vmem:[%s164 + $0x6c] sm:$0xf]
      %v2058 = vld [vmem:[%s164 + $0x70] sm:$0xf]
      %v2059 = vld [vmem:[%s164 + $0x74] sm:$0xf]
      %v2060 = vld [vmem:[%s164 + $0x78] sm:$0xf]
      %v2061 = vld [vmem:[%s164 + $0x7c] sm:$0xf]
      %v2062 = vld [vmem:[%s164 + $0x80] sm:$0xf]
      %v2063 = vld [vmem:[%s164 + $0x84] sm:$0xf]
      %v2064 = vld [vmem:[%s164 + $0x88] sm:$0xf]
      %v2065 = vld [vmem:[%s164 + $0x8c] sm:$0xf]
      %v2066 = vld [vmem:[%s164 + $0x90] sm:$0xf]
      %v2067 = vld [vmem:[%s164 + $0x94] sm:$0xf]
      %v2068 = vld [vmem:[%s164 + $0x98] sm:$0xf]
      %v2069 = vld [vmem:[%s164 + $0x9c] sm:$0xf]
      %v2070 = vld [vmem:[%s164 + $0xa0] sm:$0xf]
      %v2071 = vld [vmem:[%s164 + $0xa4] sm:$0xf]
      %v2072 = vld [vmem:[%s164 + $0xa8] sm:$0xf]
      %v2073 = vld [vmem:[%s164 + $0xac] sm:$0xf]
      %v2074 = vld [vmem:[%s164 + $0xb0] sm:$0xf]
      %v2075 = vld [vmem:[%s164 + $0xb4] sm:$0xf]
      %v2076 = vld [vmem:[%s164 + $0xb8] sm:$0xf]
      %v2077 = vld [vmem:[%s164 + $0xbc] sm:$0xf]
      %v2078 = vld [vmem:[%s164 + $0xc0] sm:$0xf]
      %v2079 = vld [vmem:[%s164 + $0xc4] sm:$0xf]
      %v2080 = vld [vmem:[%s164 + $0xc8] sm:$0xf]
      %v2081 = vld [vmem:[%s164 + $0xcc] sm:$0xf]
      %v2082 = vld [vmem:[%s164 + $0xd0] sm:$0xf]
      %v2083 = vld [vmem:[%s164 + $0xd4] sm:$0xf]
      %v2084 = vld [vmem:[%s164 + $0xd8] sm:$0xf]
      %v2085 = vld [vmem:[%s164 + $0xdc] sm:$0xf]
      %v2086 = vld [vmem:[%s164 + $0xe0] sm:$0xf]
      %v2087 = vld [vmem:[%s164 + $0xe4] sm:$0xf]
      %v2088 = vld [vmem:[%s164 + $0xe8] sm:$0xf]
      %v2089 = vld [vmem:[%s164 + $0xec] sm:$0xf]
      %v2090 = vld [vmem:[%s164 + $0xf0] sm:$0xf]
      %v2091 = vld [vmem:[%s164 + $0xf4] sm:$0xf]
      %v2092 = vld [vmem:[%s164 + $0xf8] sm:$0xf]
      %v2093 = vld [vmem:[%s164 + $0xfc] sm:$0xf]
      %v2094 = vld [vmem:[%s164 + $0x100] sm:$0xf]
      %v2095 = vld [vmem:[%s164 + $0x104] sm:$0xf]
      %v2096 = vld [vmem:[%s164 + $0x108] sm:$0xf]
      %v2097 = vld [vmem:[%s164 + $0x10c] sm:$0xf]
      %v2098 = vld [vmem:[%s164 + $0x110] sm:$0xf]
      %v2099 = vld [vmem:[%s164 + $0x114] sm:$0xf]
      %v2100 = vld [vmem:[%s164 + $0x118] sm:$0xf]
      %v2101 = vld [vmem:[%s164 + $0x11c] sm:$0xf]
      %v2102 = vld [vmem:[%s164 + $0x120] sm:$0x1]
      %s2103 = scalar_lea.vmem %s1, 12
      %v2104 = vld [vmem:[%s2103] sm:$0xf]
      %v2174 = vunpack.c.l.b16 %v2034
      %v2175 = vunpack.c.l.b16 %v2035
      %v2176 = vunpack.c.l.b16 %v2036
      %v2177 = vunpack.c.l.b16 %v2037
      %v2178 = vunpack.c.l.b16 %v2038
      %v2179 = vunpack.c.l.b16 %v2039
      %v2180 = vunpack.c.l.b16 %v2040
      %v2181 = vunpack.c.l.b16 %v2041
      %v2182 = vunpack.c.l.b16 %v2042
      %v2183 = vunpack.c.l.b16 %v2043
      %v2184 = vunpack.c.l.b16 %v2044
      %v2185 = vunpack.c.l.b16 %v2045
      %v2186 = vunpack.c.l.b16 %v2046
      %v2187 = vunpack.c.l.b16 %v2047
      %v2188 = vunpack.c.l.b16 %v2048
      %v2189 = vunpack.c.l.b16 %v2049
      %v2190 = vunpack.c.l.b16 %v2050
      %v2191 = vunpack.c.l.b16 %v2051
      %v2192 = vunpack.c.l.b16 %v2052
      %v2193 = vunpack.c.l.b16 %v2053
      %v2194 = vunpack.c.l.b16 %v2054
      %v2195 = vunpack.c.l.b16 %v2055
      %v2196 = vunpack.c.l.b16 %v2056
      %v2197 = vunpack.c.l.b16 %v2057
      %v2198 = vunpack.c.l.b16 %v2058
      %v2199 = vunpack.c.l.b16 %v2059
      %v2200 = vunpack.c.l.b16 %v2060
      %v2201 = vunpack.c.l.b16 %v2061
      %v2202 = vunpack.c.l.b16 %v2062
      %v2203 = vunpack.c.l.b16 %v2063
      %v2204 = vunpack.c.l.b16 %v2064
      %v2205 = vunpack.c.l.b16 %v2065
      %v2206 = vunpack.c.l.b16 %v2066
      %v2207 = vunpack.c.l.b16 %v2067
      %v2208 = vunpack.c.l.b16 %v2068
      %v2209 = vunpack.c.l.b16 %v2069
      %v2210 = vunpack.c.l.b16 %v2070
      %v2211 = vunpack.c.l.b16 %v2071
      %v2212 = vunpack.c.l.b16 %v2072
      %v2213 = vunpack.c.l.b16 %v2073
      %v2214 = vunpack.c.l.b16 %v2074
      %v2215 = vunpack.c.l.b16 %v2075
      %v2216 = vunpack.c.l.b16 %v2076
      %v2217 = vunpack.c.l.b16 %v2077
      %v2218 = vunpack.c.l.b16 %v2078
      %v2219 = vunpack.c.l.b16 %v2079
      %v2220 = vunpack.c.l.b16 %v2080
      %v2221 = vunpack.c.l.b16 %v2081
      %v2222 = vunpack.c.l.b16 %v2082
      %v2223 = vunpack.c.l.b16 %v2083
      %v2224 = vunpack.c.l.b16 %v2084
      %v2225 = vunpack.c.l.b16 %v2085
      %v2226 = vunpack.c.l.b16 %v2086
      %v2227 = vunpack.c.l.b16 %v2087
      %v2228 = vunpack.c.l.b16 %v2088
      %v2229 = vunpack.c.l.b16 %v2089
      %v2230 = vunpack.c.l.b16 %v2090
      %v2231 = vunpack.c.l.b16 %v2091
      %v2232 = vunpack.c.l.b16 %v2092
      %v2233 = vunpack.c.l.b16 %v2093
      %v2234 = vunpack.c.l.b16 %v2094
      %v2235 = vunpack.c.l.b16 %v2095
      %v2236 = vunpack.c.l.b16 %v2096
      %v2237 = vunpack.c.l.b16 %v2097
      %v2238 = vunpack.c.l.b16 %v2098
      %v2239 = vunpack.c.l.b16 %v2099
      %v2240 = vunpack.c.l.b16 %v2100
      %v2241 = vunpack.c.l.b16 %v2101
      %v2242 = vunpack.c.l.b16 %v2102
      %v2243 = vpack.c.b16 %v2175, %v2174
      %v2244 = vpack.c.b16 %v2177, %v2176
      %v2245 = vpack.c.b16 %v2179, %v2178
      %v2246 = vpack.c.b16 %v2181, %v2180
      %v2247 = vpack.c.b16 %v2183, %v2182
      %v2248 = vpack.c.b16 %v2185, %v2184
      %v2249 = vpack.c.b16 %v2187, %v2186
      %v2250 = vpack.c.b16 %v2189, %v2188
      %v2251 = vpack.c.b16 %v2191, %v2190
      %v2252 = vpack.c.b16 %v2193, %v2192
      %v2253 = vpack.c.b16 %v2195, %v2194
      %v2254 = vpack.c.b16 %v2197, %v2196
      %v2255 = vpack.c.b16 %v2199, %v2198
      %v2256 = vpack.c.b16 %v2201, %v2200
      %v2257 = vpack.c.b16 %v2203, %v2202
      %v2258 = vpack.c.b16 %v2205, %v2204
      %v2259 = vpack.c.b16 %v2207, %v2206
      %v2260 = vpack.c.b16 %v2209, %v2208
      %v2261 = vpack.c.b16 %v2211, %v2210
      %v2262 = vpack.c.b16 %v2213, %v2212
      %v2263 = vpack.c.b16 %v2215, %v2214
      %v2264 = vpack.c.b16 %v2217, %v2216
      %v2265 = vpack.c.b16 %v2219, %v2218
      %v2266 = vpack.c.b16 %v2221, %v2220
      %v2267 = vpack.c.b16 %v2223, %v2222
      %v2268 = vpack.c.b16 %v2225, %v2224
      %v2269 = vpack.c.b16 %v2227, %v2226
      %v2270 = vpack.c.b16 %v2229, %v2228
      %v2271 = vpack.c.b16 %v2231, %v2230
      %v2272 = vpack.c.b16 %v2233, %v2232
      %v2273 = vpack.c.b16 %v2235, %v2234
      %v2274 = vpack.c.b16 %v2237, %v2236
      %v2275 = vpack.c.b16 %v2239, %v2238
      %v2276 = vpack.c.b16 %v2241, %v2240
      %v2277 = vpack.c.b16 %v2242, %v2242
      %v2278 = vrot.slane %v2243, 1
      %v2279 = vrot.slane %v2244, 1
      %v2280 = vsel %vm1486, %v2278, %v2279
      %v2281 = vrot.slane %v2245, 1
      %v2282 = vsel %vm1486, %v2279, %v2281
      %v2283 = vrot.slane %v2246, 1
      %v2284 = vsel %vm1486, %v2281, %v2283
      %v2285 = vrot.slane %v2247, 1
      %v2286 = vsel %vm1486, %v2283, %v2285
      %v2287 = vrot.slane %v2248, 1
      %v2288 = vsel %vm1486, %v2285, %v2287
      %v2289 = vrot.slane %v2249, 1
      %v2290 = vsel %vm1486, %v2287, %v2289
      %v2291 = vrot.slane %v2250, 1
      %v2292 = vsel %vm1486, %v2289, %v2291
      %v2293 = vrot.slane %v2251, 1
      %v2294 = vsel %vm1486, %v2291, %v2293
      %v2295 = vrot.slane %v2252, 1
      %v2296 = vsel %vm1486, %v2293, %v2295
      %v2297 = vrot.slane %v2253, 1
      %v2298 = vsel %vm1486, %v2295, %v2297
      %v2299 = vrot.slane %v2254, 1
      %v2300 = vsel %vm1486, %v2297, %v2299
      %v2301 = vrot.slane %v2255, 1
      %v2302 = vsel %vm1486, %v2299, %v2301
      %v2303 = vrot.slane %v2256, 1
      %v2304 = vsel %vm1486, %v2301, %v2303
      %v2305 = vrot.slane %v2257, 1
      %v2306 = vsel %vm1486, %v2303, %v2305
      %v2307 = vrot.slane %v2258, 1
      %v2308 = vsel %vm1486, %v2305, %v2307
      %v2309 = vrot.slane %v2259, 1
      %v2310 = vsel %vm1486, %v2307, %v2309
      %v2311 = vrot.slane %v2260, 1
      %v2312 = vsel %vm1486, %v2309, %v2311
      %v2313 = vrot.slane %v2261, 1
      %v2314 = vsel %vm1486, %v2311, %v2313
      %v2315 = vrot.slane %v2262, 1
      %v2316 = vsel %vm1486, %v2313, %v2315
      %v2317 = vrot.slane %v2263, 1
      %v2318 = vsel %vm1486, %v2315, %v2317
      %v2319 = vrot.slane %v2264, 1
      %v2320 = vsel %vm1486, %v2317, %v2319
      %v2321 = vrot.slane %v2265, 1
      %v2322 = vsel %vm1486, %v2319, %v2321
      %v2323 = vrot.slane %v2266, 1
      %v2324 = vsel %vm1486, %v2321, %v2323
      %v2325 = vrot.slane %v2267, 1
      %v2326 = vsel %vm1486, %v2323, %v2325
      %v2327 = vrot.slane %v2268, 1
      %v2328 = vsel %vm1486, %v2325, %v2327
      %v2329 = vrot.slane %v2269, 1
      %v2330 = vsel %vm1486, %v2327, %v2329
      %v2331 = vrot.slane %v2270, 1
      %v2332 = vsel %vm1486, %v2329, %v2331
      %v2333 = vrot.slane %v2271, 1
      %v2334 = vsel %vm1486, %v2331, %v2333
      %v2335 = vrot.slane %v2272, 1
      %v2336 = vsel %vm1486, %v2333, %v2335
      %v2337 = vrot.slane %v2273, 1
      %v2338 = vsel %vm1486, %v2335, %v2337
      %v2339 = vrot.slane %v2274, 1
      %v2340 = vsel %vm1486, %v2337, %v2339
      %v2341 = vrot.slane %v2275, 1
      %v2342 = vsel %vm1486, %v2339, %v2341
      %v2343 = vrot.slane %v2276, 1
      %v2344 = vsel %vm1486, %v2341, %v2343
      %v2345 = vrot.slane %v2277, 1
      %v2346 = vsel %vm1486, %v2343, %v2345
      %v2348 = vsel %vm692, %v2280, 0
      %v2351 = vsel %vm692, %v2282, 0
      %v2354 = vsel %vm692, %v2284, 0
      %v2357 = vsel %vm692, %v2286, 0
      %v2360 = vsel %vm692, %v2288, 0
      %v2363 = vsel %vm692, %v2290, 0
      %v2366 = vsel %vm692, %v2292, 0
      %v2369 = vsel %vm692, %v2294, 0
      %v2372 = vsel %vm692, %v2296, 0
      %v2375 = vsel %vm692, %v2298, 0
      %v2378 = vsel %vm692, %v2300, 0
      %v2381 = vsel %vm692, %v2302, 0
      %v2384 = vsel %vm692, %v2304, 0
      %v2387 = vsel %vm692, %v2306, 0
      %v2390 = vsel %vm692, %v2308, 0
      %v2393 = vsel %vm692, %v2310, 0
      %v2396 = vsel %vm692, %v2312, 0
      %v2399 = vsel %vm692, %v2314, 0
      %v2402 = vsel %vm692, %v2316, 0
      %v2405 = vsel %vm692, %v2318, 0
      %v2408 = vsel %vm692, %v2320, 0
      %v2411 = vsel %vm692, %v2322, 0
      %v2414 = vsel %vm692, %v2324, 0
      %v2417 = vsel %vm692, %v2326, 0
      %v2420 = vsel %vm692, %v2328, 0
      %v2423 = vsel %vm692, %v2330, 0
      %v2426 = vsel %vm692, %v2332, 0
      %v2429 = vsel %vm692, %v2334, 0
      %v2432 = vsel %vm692, %v2336, 0
      %v2435 = vsel %vm692, %v2338, 0
      %v2438 = vsel %vm692, %v2340, 0
      %v2441 = vsel %vm692, %v2342, 0
      %v2444 = vsel %vm692, %v2344, 0
      %v2447 = vsel %vm692, %v2346, 0
      %v2450 = vsel %vm795, %v2104, 0
      %2452 = vmatprep.subr.bf16.mxu0 0
      %2453 = vmatpush1.bf16.msra.mxu0 %v2450
      %2454 = vmatprep.subr.bf16.mxu0 0
      %2455 = vmatpush1.bf16.msra.mxu0 0
      %2456 = vmatprep.subr.bf16.mxu0 0
      %2457 = vmatpush1.bf16.msra.mxu0 0
      %2458 = vmatprep.subr.bf16.mxu0 0
      %2459 = vmatpush1.bf16.msra.mxu0 0
      %2460 = vmatprep.subr.bf16.mxu0 0
      %2461 = vmatpush1.bf16.msra.mxu0 0
      %2462 = vmatprep.subr.bf16.mxu0 0
      %2463 = vmatpush1.bf16.msra.mxu0 0
      %2464 = vmatprep.subr.bf16.mxu0 0
      %2465 = vmatpush1.bf16.msra.mxu0 0
      %2466 = vmatprep.subr.bf16.mxu0 0
      %2467 = vmatpush1.bf16.msra.mxu0 0
      %2468 = vmatprep.subr.bf16.mxu0 0
      %2469 = vmatpush1.bf16.msra.mxu0 0
      %2470 = vmatprep.subr.bf16.mxu0 0
      %2471 = vmatpush1.bf16.msra.mxu0 0
      %2472 = vmatprep.subr.bf16.mxu0 0
      %2473 = vmatpush1.bf16.msra.mxu0 0
      %2474 = vmatprep.subr.bf16.mxu0 0
      %2475 = vmatpush1.bf16.msra.mxu0 0
      %2476 = vmatprep.subr.bf16.mxu0 0
      %2477 = vmatpush1.bf16.msra.mxu0 0
      %2478 = vmatprep.subr.bf16.mxu0 0
      %2479 = vmatpush1.bf16.msra.mxu0 0
      %2480 = vmatprep.subr.bf16.mxu0 0
      %2481 = vmatpush1.bf16.msra.mxu0 0
      %2482 = vmatprep.subr.bf16.mxu0 0
      %2483 = vmatpush1.bf16.msra.mxu0 0
      %2484 = vmatprep.mubr.bf16.mxu0 0
      %2485 = vmatmul.mubr.bf16.gmra.mrb[0].mxu0 %v2348
      %v2486 = vpop.f32.mrb[0].mxu0
      %v2487 = vadd.f32 0.0, %v2486
      %v2488 = vpop.f32.mrb[0].mxu0
      %v2489 = vpop.f32.mrb[0].mxu0
      %v2490 = vadd.f32 0.0, %v2489
      %v2491 = vpop.f32.mrb[0].mxu0
      %2492 = vmatprep.mubr.bf16.mxu0 0
      %2493 = vmatmul.mubr.bf16.gmra.mrb[0].mxu0 %v2351
      %v2494 = vpop.f32.mrb[0].mxu0
      %v2495 = vadd.f32 0.0, %v2494
      %v2496 = vpop.f32.mrb[0].mxu0
      %v2497 = vpop.f32.mrb[0].mxu0
      %v2498 = vadd.f32 0.0, %v2497
      %v2499 = vpop.f32.mrb[0].mxu0
      %2500 = vmatprep.mubr.bf16.mxu0 0
      %2501 = vmatmul.mubr.bf16.gmra.mrb[0].mxu0 %v2354
      %v2502 = vpop.f32.mrb[0].mxu0
      %v2503 = vadd.f32 0.0, %v2502
      %v2504 = vpop.f32.mrb[0].mxu0
      %v2505 = vpop.f32.mrb[0].mxu0
      %v2506 = vadd.f32 0.0, %v2505
      %v2507 = vpop.f32.mrb[0].mxu0
      %2508 = vmatprep.mubr.bf16.mxu0 0
      %2509 = vmatmul.mubr.bf16.gmra.mrb[0].mxu0 %v2357
      %v2510 = vpop.f32.mrb[0].mxu0
      %v2511 = vadd.f32 0.0, %v2510
      %v2512 = vpop.f32.mrb[0].mxu0
      %v2513 = vpop.f32.mrb[0].mxu0
      %v2514 = vadd.f32 0.0, %v2513
      %v2515 = vpop.f32.mrb[0].mxu0
      %2516 = vmatprep.mubr.bf16.mxu0 0
      %2517 = vmatmul.mubr.bf16.gmra.mrb[0].mxu0 %v2360
      %v2518 = vpop.f32.mrb[0].mxu0
      %v2519 = vadd.f32 0.0, %v2518
      %v2520 = vpop.f32.mrb[0].mxu0
      %v2521 = vpop.f32.mrb[0].mxu0
      %v2522 = vadd.f32 0.0, %v2521
      %v2523 = vpop.f32.mrb[0].mxu0
      %2524 = vmatprep.mubr.bf16.mxu0 0
      %2525 = vmatmul.mubr.bf16.gmra.mrb[0].mxu0 %v2363
      %v2526 = vpop.f32.mrb[0].mxu0
      %v2527 = vadd.f32 0.0, %v2526
      %v2528 = vpop.f32.mrb[0].mxu0
      %v2529 = vpop.f32.mrb[0].mxu0
      %v2530 = vadd.f32 0.0, %v2529
      %v2531 = vpop.f32.mrb[0].mxu0
      %2532 = vmatprep.mubr.bf16.mxu0 0
      %2533 = vmatmul.mubr.bf16.gmra.mrb[0].mxu0 %v2366
      %v2534 = vpop.f32.mrb[0].mxu0
      %v2535 = vadd.f32 0.0, %v2534
      %v2536 = vpop.f32.mrb[0].mxu0
      %v2537 = vpop.f32.mrb[0].mxu0
      %v2538 = vadd.f32 0.0, %v2537
      %v2539 = vpop.f32.mrb[0].mxu0
      %2540 = vmatprep.mubr.bf16.mxu0 0
      %2541 = vmatmul.mubr.bf16.gmra.mrb[0].mxu0 %v2369
      %v2542 = vpop.f32.mrb[0].mxu0
      %v2543 = vadd.f32 0.0, %v2542
      %v2544 = vpop.f32.mrb[0].mxu0
      %v2545 = vpop.f32.mrb[0].mxu0
      %v2546 = vadd.f32 0.0, %v2545
      %v2547 = vpop.f32.mrb[0].mxu0
      %2548 = vmatprep.mubr.bf16.mxu0 0
      %2549 = vmatmul.mubr.bf16.gmra.mrb[0].mxu0 %v2372
      %v2550 = vpop.f32.mrb[0].mxu0
      %v2551 = vadd.f32 0.0, %v2550
      %v2552 = vpop.f32.mrb[0].mxu0
      %v2553 = vpop.f32.mrb[0].mxu0
      %v2554 = vadd.f32 0.0, %v2553
      %v2555 = vpop.f32.mrb[0].mxu0
      %2556 = vmatprep.mubr.bf16.mxu0 0
      %2557 = vmatmul.mubr.bf16.gmra.mrb[0].mxu0 %v2375
      %v2558 = vpop.f32.mrb[0].mxu0
      %v2559 = vadd.f32 0.0, %v2558
      %v2560 = vpop.f32.mrb[0].mxu0
      %v2561 = vpop.f32.mrb[0].mxu0
      %v2562 = vadd.f32 0.0, %v2561
      %v2563 = vpop.f32.mrb[0].mxu0
      %2564 = vmatprep.mubr.bf16.mxu0 0
      %2565 = vmatmul.mubr.bf16.gmra.mrb[0].mxu0 %v2378
      %v2566 = vpop.f32.mrb[0].mxu0
      %v2567 = vadd.f32 0.0, %v2566
      %v2568 = vpop.f32.mrb[0].mxu0
      %v2569 = vpop.f32.mrb[0].mxu0
      %v2570 = vadd.f32 0.0, %v2569
      %v2571 = vpop.f32.mrb[0].mxu0
      %2572 = vmatprep.mubr.bf16.mxu0 0
      %2573 = vmatmul.mubr.bf16.gmra.mrb[0].mxu0 %v2381
      %v2574 = vpop.f32.mrb[0].mxu0
      %v2575 = vadd.f32 0.0, %v2574
      %v2576 = vpop.f32.mrb[0].mxu0
      %v2577 = vpop.f32.mrb[0].mxu0
      %v2578 = vadd.f32 0.0, %v2577
      %v2579 = vpop.f32.mrb[0].mxu0
      %2580 = vmatprep.mubr.bf16.mxu0 0
      %2581 = vmatmul.mubr.bf16.gmra.mrb[0].mxu0 %v2384
      %v2582 = vpop.f32.mrb[0].mxu0
      %v2583 = vadd.f32 0.0, %v2582
      %v2584 = vpop.f32.mrb[0].mxu0
      %v2585 = vpop.f32.mrb[0].mxu0
      %v2586 = vadd.f32 0.0, %v2585
      %v2587 = vpop.f32.mrb[0].mxu0
      %2588 = vmatprep.mubr.bf16.mxu0 0
      %2589 = vmatmul.mubr.bf16.gmra.mrb[0].mxu0 %v2387
      %v2590 = vpop.f32.mrb[0].mxu0
      %v2591 = vadd.f32 0.0, %v2590
      %v2592 = vpop.f32.mrb[0].mxu0
      %v2593 = vpop.f32.mrb[0].mxu0
      %v2594 = vadd.f32 0.0, %v2593
      %v2595 = vpop.f32.mrb[0].mxu0
      %2596 = vmatprep.mubr.bf16.mxu0 0
      %2597 = vmatmul.mubr.bf16.gmra.mrb[0].mxu0 %v2390
      %v2598 = vpop.f32.mrb[0].mxu0
      %v2599 = vadd.f32 0.0, %v2598
      %v2600 = vpop.f32.mrb[0].mxu0
      %v2601 = vpop.f32.mrb[0].mxu0
      %v2602 = vadd.f32 0.0, %v2601
      %v2603 = vpop.f32.mrb[0].mxu0
      %2604 = vmatprep.mubr.bf16.mxu0 0
      %2605 = vmatmul.mubr.bf16.gmra.mrb[0].mxu0 %v2393
      %v2606 = vpop.f32.mrb[0].mxu0
      %v2607 = vadd.f32 0.0, %v2606
      %v2608 = vpop.f32.mrb[0].mxu0
      %v2609 = vpop.f32.mrb[0].mxu0
      %v2610 = vadd.f32 0.0, %v2609
      %v2611 = vpop.f32.mrb[0].mxu0
      %2612 = vmatprep.mubr.bf16.mxu0 0
      %2613 = vmatmul.mubr.bf16.gmra.mrb[0].mxu0 %v2396
      %v2614 = vpop.f32.mrb[0].mxu0
      %v2615 = vadd.f32 0.0, %v2614
      %v2616 = vpop.f32.mrb[0].mxu0
      %v2617 = vpop.f32.mrb[0].mxu0
      %v2618 = vadd.f32 0.0, %v2617
      %v2619 = vpop.f32.mrb[0].mxu0
      %2620 = vmatprep.mubr.bf16.mxu0 0
      %2621 = vmatmul.mubr.bf16.gmra.mrb[0].mxu0 %v2399
      %v2622 = vpop.f32.mrb[0].mxu0
      %v2623 = vadd.f32 0.0, %v2622
      %v2624 = vpop.f32.mrb[0].mxu0
      %v2625 = vpop.f32.mrb[0].mxu0
      %v2626 = vadd.f32 0.0, %v2625
      %v2627 = vpop.f32.mrb[0].mxu0
      %2628 = vmatprep.mubr.bf16.mxu0 0
      %2629 = vmatmul.mubr.bf16.gmra.mrb[0].mxu0 %v2402
      %v2630 = vpop.f32.mrb[0].mxu0
      %v2631 = vadd.f32 0.0, %v2630
      %v2632 = vpop.f32.mrb[0].mxu0
      %v2633 = vpop.f32.mrb[0].mxu0
      %v2634 = vadd.f32 0.0, %v2633
      %v2635 = vpop.f32.mrb[0].mxu0
      %2636 = vmatprep.mubr.bf16.mxu0 0
      %2637 = vmatmul.mubr.bf16.gmra.mrb[0].mxu0 %v2405
      %v2638 = vpop.f32.mrb[0].mxu0
      %v2639 = vadd.f32 0.0, %v2638
      %v2640 = vpop.f32.mrb[0].mxu0
      %v2641 = vpop.f32.mrb[0].mxu0
      %v2642 = vadd.f32 0.0, %v2641
      %v2643 = vpop.f32.mrb[0].mxu0
      %2644 = vmatprep.mubr.bf16.mxu0 0
      %2645 = vmatmul.mubr.bf16.gmra.mrb[0].mxu0 %v2408
      %v2646 = vpop.f32.mrb[0].mxu0
      %v2647 = vadd.f32 0.0, %v2646
      %v2648 = vpop.f32.mrb[0].mxu0
      %v2649 = vpop.f32.mrb[0].mxu0
      %v2650 = vadd.f32 0.0, %v2649
      %v2651 = vpop.f32.mrb[0].mxu0
      %2652 = vmatprep.mubr.bf16.mxu0 0
      %2653 = vmatmul.mubr.bf16.gmra.mrb[0].mxu0 %v2411
      %v2654 = vpop.f32.mrb[0].mxu0
      %v2655 = vadd.f32 0.0, %v2654
      %v2656 = vpop.f32.mrb[0].mxu0
      %v2657 = vpop.f32.mrb[0].mxu0
      %v2658 = vadd.f32 0.0, %v2657
      %v2659 = vpop.f32.mrb[0].mxu0
      %2660 = vmatprep.mubr.bf16.mxu0 0
      %2661 = vmatmul.mubr.bf16.gmra.mrb[0].mxu0 %v2414
      %v2662 = vpop.f32.mrb[0].mxu0
      %v2663 = vadd.f32 0.0, %v2662
      %v2664 = vpop.f32.mrb[0].mxu0
      %v2665 = vpop.f32.mrb[0].mxu0
      %v2666 = vadd.f32 0.0, %v2665
      %v2667 = vpop.f32.mrb[0].mxu0
      %2668 = vmatprep.mubr.bf16.mxu0 0
      %2669 = vmatmul.mubr.bf16.gmra.mrb[0].mxu0 %v2417
      %v2670 = vpop.f32.mrb[0].mxu0
      %v2671 = vadd.f32 0.0, %v2670
      %v2672 = vpop.f32.mrb[0].mxu0
      %v2673 = vpop.f32.mrb[0].mxu0
      %v2674 = vadd.f32 0.0, %v2673
      %v2675 = vpop.f32.mrb[0].mxu0
      %2676 = vmatprep.mubr.bf16.mxu0 0
      %2677 = vmatmul.mubr.bf16.gmra.mrb[0].mxu0 %v2420
      %v2678 = vpop.f32.mrb[0].mxu0
      %v2679 = vadd.f32 0.0, %v2678
      %v2680 = vpop.f32.mrb[0].mxu0
      %v2681 = vpop.f32.mrb[0].mxu0
      %v2682 = vadd.f32 0.0, %v2681
      %v2683 = vpop.f32.mrb[0].mxu0
      %2684 = vmatprep.mubr.bf16.mxu0 0
      %2685 = vmatmul.mubr.bf16.gmra.mrb[0].mxu0 %v2423
      %v2686 = vpop.f32.mrb[0].mxu0
      %v2687 = vadd.f32 0.0, %v2686
      %v2688 = vpop.f32.mrb[0].mxu0
      %v2689 = vpop.f32.mrb[0].mxu0
      %v2690 = vadd.f32 0.0, %v2689
      %v2691 = vpop.f32.mrb[0].mxu0
      %2692 = vmatprep.mubr.bf16.mxu0 0
      %2693 = vmatmul.mubr.bf16.gmra.mrb[0].mxu0 %v2426
      %v2694 = vpop.f32.mrb[0].mxu0
      %v2695 = vadd.f32 0.0, %v2694
      %v2696 = vpop.f32.mrb[0].mxu0
      %v2697 = vpop.f32.mrb[0].mxu0
      %v2698 = vadd.f32 0.0, %v2697
      %v2699 = vpop.f32.mrb[0].mxu0
      %2700 = vmatprep.mubr.bf16.mxu0 0
      %2701 = vmatmul.mubr.bf16.gmra.mrb[0].mxu0 %v2429
      %v2702 = vpop.f32.mrb[0].mxu0
      %v2703 = vadd.f32 0.0, %v2702
      %v2704 = vpop.f32.mrb[0].mxu0
      %v2705 = vpop.f32.mrb[0].mxu0
      %v2706 = vadd.f32 0.0, %v2705
      %v2707 = vpop.f32.mrb[0].mxu0
      %2708 = vmatprep.mubr.bf16.mxu0 0
      %2709 = vmatmul.mubr.bf16.gmra.mrb[0].mxu0 %v2432
      %v2710 = vpop.f32.mrb[0].mxu0
      %v2711 = vadd.f32 0.0, %v2710
      %v2712 = vpop.f32.mrb[0].mxu0
      %v2713 = vpop.f32.mrb[0].mxu0
      %v2714 = vadd.f32 0.0, %v2713
      %v2715 = vpop.f32.mrb[0].mxu0
      %2716 = vmatprep.mubr.bf16.mxu0 0
      %2717 = vmatmul.mubr.bf16.gmra.mrb[0].mxu0 %v2435
      %v2718 = vpop.f32.mrb[0].mxu0
      %v2719 = vadd.f32 0.0, %v2718
      %v2720 = vpop.f32.mrb[0].mxu0
      %v2721 = vpop.f32.mrb[0].mxu0
      %v2722 = vadd.f32 0.0, %v2721
      %v2723 = vpop.f32.mrb[0].mxu0
      %2724 = vmatprep.mubr.bf16.mxu0 0
      %2725 = vmatmul.mubr.bf16.gmra.mrb[0].mxu0 %v2438
      %v2726 = vpop.f32.mrb[0].mxu0
      %v2727 = vadd.f32 0.0, %v2726
      %v2728 = vpop.f32.mrb[0].mxu0
      %v2729 = vpop.f32.mrb[0].mxu0
      %v2730 = vadd.f32 0.0, %v2729
      %v2731 = vpop.f32.mrb[0].mxu0
      %2732 = vmatprep.mubr.bf16.mxu0 0
      %2733 = vmatmul.mubr.bf16.gmra.mrb[0].mxu0 %v2441
      %v2734 = vpop.f32.mrb[0].mxu0
      %v2735 = vadd.f32 0.0, %v2734
      %v2736 = vpop.f32.mrb[0].mxu0
      %v2737 = vpop.f32.mrb[0].mxu0
      %v2738 = vadd.f32 0.0, %v2737
      %v2739 = vpop.f32.mrb[0].mxu0
      %2740 = vmatprep.mubr.bf16.mxu0 0
      %2741 = vmatmul.mubr.bf16.gmra.mrb[0].mxu0 %v2444
      %v2742 = vpop.f32.mrb[0].mxu0
      %v2743 = vadd.f32 0.0, %v2742
      %v2744 = vpop.f32.mrb[0].mxu0
      %v2745 = vpop.f32.mrb[0].mxu0
      %v2746 = vadd.f32 0.0, %v2745
      %v2747 = vpop.f32.mrb[0].mxu0
      %2748 = vmatprep.mubr.bf16.mxu0 0
      %2749 = vmatmul.mubr.bf16.gmra.mrb[0].mxu0 %v2447
      %v2750 = vpop.f32.mrb[0].mxu0
      %v2751 = vadd.f32 0.0, %v2750
      %v2752 = vpop.f32.mrb[0].mxu0
      %v2753 = vpop.f32.mrb[0].mxu0
      %v2754 = vadd.f32 0.0, %v2753
      %v2755 = vpop.f32.mrb[0].mxu0
      %2756 = vdwg.mxu0
      %v2757 = vadd.f32 %v1966, %v2487
      %v2758 = vadd.f32 %v1967, %v2490
      %v2759 = vadd.f32 %v1968, %v2495
      %v2760 = vadd.f32 %v1969, %v2498
      %v2761 = vadd.f32 %v1970, %v2503
      %v2762 = vadd.f32 %v1971, %v2506
      %v2763 = vadd.f32 %v1972, %v2511
      %v2764 = vadd.f32 %v1973, %v2514
      %v2765 = vadd.f32 %v1974, %v2519
      %v2766 = vadd.f32 %v1975, %v2522
      %v2767 = vadd.f32 %v1976, %v2527
      %v2768 = vadd.f32 %v1977, %v2530
      %v2769 = vadd.f32 %v1978, %v2535
      %v2770 = vadd.f32 %v1979, %v2538
      %v2771 = vadd.f32 %v1980, %v2543
      %v2772 = vadd.f32 %v1981, %v2546
      %v2773 = vadd.f32 %v1982, %v2551
      %v2774 = vadd.f32 %v1983, %v2554
      %v2775 = vadd.f32 %v1984, %v2559
      %v2776 = vadd.f32 %v1985, %v2562
      %v2777 = vadd.f32 %v1986, %v2567
      %v2778 = vadd.f32 %v1987, %v2570
      %v2779 = vadd.f32 %v1988, %v2575
      %v2780 = vadd.f32 %v1989, %v2578
      %v2781 = vadd.f32 %v1990, %v2583
      %v2782 = vadd.f32 %v1991, %v2586
      %v2783 = vadd.f32 %v1992, %v2591
      %v2784 = vadd.f32 %v1993, %v2594
      %v2785 = vadd.f32 %v1994, %v2599
      %v2786 = vadd.f32 %v1995, %v2602
      %v2787 = vadd.f32 %v1996, %v2607
      %v2788 = vadd.f32 %v1997, %v2610
      %v2789 = vadd.f32 %v1998, %v2615
      %v2790 = vadd.f32 %v1999, %v2618
      %v2791 = vadd.f32 %v2000, %v2623
      %v2792 = vadd.f32 %v2001, %v2626
      %v2793 = vadd.f32 %v2002, %v2631
      %v2794 = vadd.f32 %v2003, %v2634
      %v2795 = vadd.f32 %v2004, %v2639
      %v2796 = vadd.f32 %v2005, %v2642
      %v2797 = vadd.f32 %v2006, %v2647
      %v2798 = vadd.f32 %v2007, %v2650
      %v2799 = vadd.f32 %v2008, %v2655
      %v2800 = vadd.f32 %v2009, %v2658
      %v2801 = vadd.f32 %v2010, %v2663
      %v2802 = vadd.f32 %v2011, %v2666
      %v2803 = vadd.f32 %v2012, %v2671
      %v2804 = vadd.f32 %v2013, %v2674
      %v2805 = vadd.f32 %v2014, %v2679
      %v2806 = vadd.f32 %v2015, %v2682
      %v2807 = vadd.f32 %v2016, %v2687
      %v2808 = vadd.f32 %v2017, %v2690
      %v2809 = vadd.f32 %v2018, %v2695
      %v2810 = vadd.f32 %v2019, %v2698
      %v2811 = vadd.f32 %v2020, %v2703
      %v2812 = vadd.f32 %v2021, %v2706
      %v2813 = vadd.f32 %v2022, %v2711
      %v2814 = vadd.f32 %v2023, %v2714
      %v2815 = vadd.f32 %v2024, %v2719
      %v2816 = vadd.f32 %v2025, %v2722
      %v2817 = vadd.f32 %v2026, %v2727
      %v2818 = vadd.f32 %v2027, %v2730
      %v2819 = vadd.f32 %v2028, %v2735
      %v2820 = vadd.f32 %v2029, %v2738
      %v2821 = vadd.f32 %v2030, %v2743
      %v2822 = vadd.f32 %v2031, %v2746
      %v2823 = vadd.f32 %v2032, %v2751
      %v2824 = vadd.f32 %v2033, %v2754
      %v2825 = vld [vmem:[%s164 + $0x120] sm:$0x3]
      %s2826 = scalar_lea.vmem %s1, 16
      %v2827 = vld [vmem:[%s2826] sm:$0xf]
      %v2829 = vunpack.c.l.b16 %v2825
      %v2830 = vpack.c.b16 %v2829, %v2829
      %vm2831 = vsmask.f32 6400
      %v2833 = vshrl.u32 %v2243, 16
      %v2835 = vrot.slane %v2833, 1
      %v2836 = vshll.u32 %v2243, 16
      %v2838 = vrot.slane %v2836, 2
      %v2839 = vor.u32 %v2835, %v2838
      %v2841 = vshrl.u32 %v2244, 16
      %v2843 = vrot.slane %v2841, 1
      %v2844 = vshll.u32 %v2244, 16
      %v2846 = vrot.slane %v2844, 2
      %v2847 = vor.u32 %v2843, %v2846
      %v2848 = vsel %vm2831, %v2839, %v2847
      %v2850 = vshrl.u32 %v2245, 16
      %v2852 = vrot.slane %v2850, 1
      %v2853 = vshll.u32 %v2245, 16
      %v2855 = vrot.slane %v2853, 2
      %v2856 = vor.u32 %v2852, %v2855
      %v2857 = vsel %vm2831, %v2847, %v2856
      %v2859 = vshrl.u32 %v2246, 16
      %v2861 = vrot.slane %v2859, 1
      %v2862 = vshll.u32 %v2246, 16
      %v2864 = vrot.slane %v2862, 2
      %v2865 = vor.u32 %v2861, %v2864
      %v2866 = vsel %vm2831, %v2856, %v2865
      %v2868 = vshrl.u32 %v2247, 16
      %v2870 = vrot.slane %v2868, 1
      %v2871 = vshll.u32 %v2247, 16
      %v2873 = vrot.slane %v2871, 2
      %v2874 = vor.u32 %v2870, %v2873
      %v2875 = vsel %vm2831, %v2865, %v2874
      %v2877 = vshrl.u32 %v2248, 16
      %v2879 = vrot.slane %v2877, 1
      %v2880 = vshll.u32 %v2248, 16
      %v2882 = vrot.slane %v2880, 2
      %v2883 = vor.u32 %v2879, %v2882
      %v2884 = vsel %vm2831, %v2874, %v2883
      %v2886 = vshrl.u32 %v2249, 16
      %v2888 = vrot.slane %v2886, 1
      %v2889 = vshll.u32 %v2249, 16
      %v2891 = vrot.slane %v2889, 2
      %v2892 = vor.u32 %v2888, %v2891
      %v2893 = vsel %vm2831, %v2883, %v2892
      %v2895 = vshrl.u32 %v2250, 16
      %v2897 = vrot.slane %v2895, 1
      %v2898 = vshll.u32 %v2250, 16
      %v2900 = vrot.slane %v2898, 2
      %v2901 = vor.u32 %v2897, %v2900
      %v2902 = vsel %vm2831, %v2892, %v2901
      %v2904 = vshrl.u32 %v2251, 16
      %v2906 = vrot.slane %v2904, 1
      %v2907 = vshll.u32 %v2251, 16
      %v2909 = vrot.slane %v2907, 2
      %v2910 = vor.u32 %v2906, %v2909
      %v2911 = vsel %vm2831, %v2901, %v2910
      %v2913 = vshrl.u32 %v2252, 16
      %v2915 = vrot.slane %v2913, 1
      %v2916 = vshll.u32 %v2252, 16
      %v2918 = vrot.slane %v2916, 2
      %v2919 = vor.u32 %v2915, %v2918
      %v2920 = vsel %vm2831, %v2910, %v2919
      %v2922 = vshrl.u32 %v2253, 16
      %v2924 = vrot.slane %v2922, 1
      %v2925 = vshll.u32 %v2253, 16
      %v2927 = vrot.slane %v2925, 2
      %v2928 = vor.u32 %v2924, %v2927
      %v2929 = vsel %vm2831, %v2919, %v2928
      %v2931 = vshrl.u32 %v2254, 16
      %v2933 = vrot.slane %v2931, 1
      %v2934 = vshll.u32 %v2254, 16
      %v2936 = vrot.slane %v2934, 2
      %v2937 = vor.u32 %v2933, %v2936
      %v2938 = vsel %vm2831, %v2928, %v2937
      %v2940 = vshrl.u32 %v2255, 16
      %v2942 = vrot.slane %v2940, 1
      %v2943 = vshll.u32 %v2255, 16
      %v2945 = vrot.slane %v2943, 2
      %v2946 = vor.u32 %v2942, %v2945
      %v2947 = vsel %vm2831, %v2937, %v2946
      %v2949 = vshrl.u32 %v2256, 16
      %v2951 = vrot.slane %v2949, 1
      %v2952 = vshll.u32 %v2256, 16
      %v2954 = vrot.slane %v2952, 2
      %v2955 = vor.u32 %v2951, %v2954
      %v2956 = vsel %vm2831, %v2946, %v2955
      %v2958 = vshrl.u32 %v2257, 16
      %v2960 = vrot.slane %v2958, 1
      %v2961 = vshll.u32 %v2257, 16
      %v2963 = vrot.slane %v2961, 2
      %v2964 = vor.u32 %v2960, %v2963
      %v2965 = vsel %vm2831, %v2955, %v2964
      %v2967 = vshrl.u32 %v2258, 16
      %v2969 = vrot.slane %v2967, 1
      %v2970 = vshll.u32 %v2258, 16
      %v2972 = vrot.slane %v2970, 2
      %v2973 = vor.u32 %v2969, %v2972
      %v2974 = vsel %vm2831, %v2964, %v2973
      %v2976 = vshrl.u32 %v2259, 16
      %v2978 = vrot.slane %v2976, 1
      %v2979 = vshll.u32 %v2259, 16
      %v2981 = vrot.slane %v2979, 2
      %v2982 = vor.u32 %v2978, %v2981
      %v2983 = vsel %vm2831, %v2973, %v2982
      %v2985 = vshrl.u32 %v2260, 16
      %v2987 = vrot.slane %v2985, 1
      %v2988 = vshll.u32 %v2260, 16
      %v2990 = vrot.slane %v2988, 2
      %v2991 = vor.u32 %v2987, %v2990
      %v2992 = vsel %vm2831, %v2982, %v2991
      %v2994 = vshrl.u32 %v2261, 16
      %v2996 = vrot.slane %v2994, 1
      %v2997 = vshll.u32 %v2261, 16
      %v2999 = vrot.slane %v2997, 2
      %v3000 = vor.u32 %v2996, %v2999
      %v3001 = vsel %vm2831, %v2991, %v3000
      %v3003 = vshrl.u32 %v2262, 16
      %v3005 = vrot.slane %v3003, 1
      %v3006 = vshll.u32 %v2262, 16
      %v3008 = vrot.slane %v3006, 2
      %v3009 = vor.u32 %v3005, %v3008
      %v3010 = vsel %vm2831, %v3000, %v3009
      %v3012 = vshrl.u32 %v2263, 16
      %v3014 = vrot.slane %v3012, 1
      %v3015 = vshll.u32 %v2263, 16
      %v3017 = vrot.slane %v3015, 2
      %v3018 = vor.u32 %v3014, %v3017
      %v3019 = vsel %vm2831, %v3009, %v3018
      %v3021 = vshrl.u32 %v2264, 16
      %v3023 = vrot.slane %v3021, 1
      %v3024 = vshll.u32 %v2264, 16
      %v3026 = vrot.slane %v3024, 2
      %v3027 = vor.u32 %v3023, %v3026
      %v3028 = vsel %vm2831, %v3018, %v3027
      %v3030 = vshrl.u32 %v2265, 16
      %v3032 = vrot.slane %v3030, 1
      %v3033 = vshll.u32 %v2265, 16
      %v3035 = vrot.slane %v3033, 2
      %v3036 = vor.u32 %v3032, %v3035
      %v3037 = vsel %vm2831, %v3027, %v3036
      %v3039 = vshrl.u32 %v2266, 16
      %v3041 = vrot.slane %v3039, 1
      %v3042 = vshll.u32 %v2266, 16
      %v3044 = vrot.slane %v3042, 2
      %v3045 = vor.u32 %v3041, %v3044
      %v3046 = vsel %vm2831, %v3036, %v3045
      %v3048 = vshrl.u32 %v2267, 16
      %v3050 = vrot.slane %v3048, 1
      %v3051 = vshll.u32 %v2267, 16
      %v3053 = vrot.slane %v3051, 2
      %v3054 = vor.u32 %v3050, %v3053
      %v3055 = vsel %vm2831, %v3045, %v3054
      %v3057 = vshrl.u32 %v2268, 16
      %v3059 = vrot.slane %v3057, 1
      %v3060 = vshll.u32 %v2268, 16
      %v3062 = vrot.slane %v3060, 2
      %v3063 = vor.u32 %v3059, %v3062
      %v3064 = vsel %vm2831, %v3054, %v3063
      %v3066 = vshrl.u32 %v2269, 16
      %v3068 = vrot.slane %v3066, 1
      %v3069 = vshll.u32 %v2269, 16
      %v3071 = vrot.slane %v3069, 2
      %v3072 = vor.u32 %v3068, %v3071
      %v3073 = vsel %vm2831, %v3063, %v3072
      %v3075 = vshrl.u32 %v2270, 16
      %v3077 = vrot.slane %v3075, 1
      %v3078 = vshll.u32 %v2270, 16
      %v3080 = vrot.slane %v3078, 2
      %v3081 = vor.u32 %v3077, %v3080
      %v3082 = vsel %vm2831, %v3072, %v3081
      %v3084 = vshrl.u32 %v2271, 16
      %v3086 = vrot.slane %v3084, 1
      %v3087 = vshll.u32 %v2271, 16
      %v3089 = vrot.slane %v3087, 2
      %v3090 = vor.u32 %v3086, %v3089
      %v3091 = vsel %vm2831, %v3081, %v3090
      %v3093 = vshrl.u32 %v2272, 16
      %v3095 = vrot.slane %v3093, 1
      %v3096 = vshll.u32 %v2272, 16
      %v3098 = vrot.slane %v3096, 2
      %v3099 = vor.u32 %v3095, %v3098
      %v3100 = vsel %vm2831, %v3090, %v3099
      %v3102 = vshrl.u32 %v2273, 16
      %v3104 = vrot.slane %v3102, 1
      %v3105 = vshll.u32 %v2273, 16
      %v3107 = vrot.slane %v3105, 2
      %v3108 = vor.u32 %v3104, %v3107
      %v3109 = vsel %vm2831, %v3099, %v3108
      %v3111 = vshrl.u32 %v2274, 16
      %v3113 = vrot.slane %v3111, 1
      %v3114 = vshll.u32 %v2274, 16
      %v3116 = vrot.slane %v3114, 2
      %v3117 = vor.u32 %v3113, %v3116
      %v3118 = vsel %vm2831, %v3108, %v3117
      %v3120 = vshrl.u32 %v2275, 16
      %v3122 = vrot.slane %v3120, 1
      %v3123 = vshll.u32 %v2275, 16
      %v3125 = vrot.slane %v3123, 2
      %v3126 = vor.u32 %v3122, %v3125
      %v3127 = vsel %vm2831, %v3117, %v3126
      %v3129 = vshrl.u32 %v2276, 16
      %v3131 = vrot.slane %v3129, 1
      %v3132 = vshll.u32 %v2276, 16
      %v3134 = vrot.slane %v3132, 2
      %v3135 = vor.u32 %v3131, %v3134
      %v3136 = vsel %vm2831, %v3126, %v3135
      %v3138 = vshrl.u32 %v2830, 16
      %v3140 = vrot.slane %v3138, 1
      %v3141 = vshll.u32 %v2830, 16
      %v3143 = vrot.slane %v3141, 2
      %v3144 = vor.u32 %v3140, %v3143
      %v3145 = vsel %vm2831, %v3135, %v3144
      %v3147 = vsel %vm692, %v2848, 0
      %v3150 = vsel %vm692, %v2857, 0
      %v3153 = vsel %vm692, %v2866, 0
      %v3156 = vsel %vm692, %v2875, 0
      %v3159 = vsel %vm692, %v2884, 0
      %v3162 = vsel %vm692, %v2893, 0
      %v3165 = vsel %vm692, %v2902, 0
      %v3168 = vsel %vm692, %v2911, 0
      %v3171 = vsel %vm692, %v2920, 0
      %v3174 = vsel %vm692, %v2929, 0
      %v3177 = vsel %vm692, %v2938, 0
      %v3180 = vsel %vm692, %v2947, 0
      %v3183 = vsel %vm692, %v2956, 0
      %v3186 = vsel %vm692, %v2965, 0
      %v3189 = vsel %vm692, %v2974, 0
      %v3192 = vsel %vm692, %v2983, 0
      %v3195 = vsel %vm692, %v2992, 0
      %v3198 = vsel %vm692, %v3001, 0
      %v3201 = vsel %vm692, %v3010, 0
      %v3204 = vsel %vm692, %v3019, 0
      %v3207 = vsel %vm692, %v3028, 0
      %v3210 = vsel %vm692, %v3037, 0
      %v3213 = vsel %vm692, %v3046, 0
      %v3216 = vsel %vm692, %v3055, 0
      %v3219 = vsel %vm692, %v3064, 0
      %v3222 = vsel %vm692, %v3073, 0
      %v3225 = vsel %vm692, %v3082, 0
      %v3228 = vsel %vm692, %v3091, 0
      %v3231 = vsel %vm692, %v3100, 0
      %v3234 = vsel %vm692, %v3109, 0
      %v3237 = vsel %vm692, %v3118, 0
      %v3240 = vsel %vm692, %v3127, 0
      %v3243 = vsel %vm692, %v3136, 0
      %v3246 = vsel %vm692, %v3145, 0
      %v3249 = vsel %vm795, %v2827, 0
      %3251 = vmatprep.subr.bf16.mxu0 0
      %3252 = vmatpush1.bf16.msra.mxu0 %v3249
      %3253 = vmatprep.subr.bf16.mxu0 0
      %3254 = vmatpush1.bf16.msra.mxu0 0
      %3255 = vmatprep.subr.bf16.mxu0 0
      %3256 = vmatpush1.bf16.msra.mxu0 0
      %3257 = vmatprep.subr.bf16.mxu0 0
      %3258 = vmatpush1.bf16.msra.mxu0 0
      %3259 = vmatprep.subr.bf16.mxu0 0
      %3260 = vmatpush1.bf16.msra.mxu0 0
      %3261 = vmatprep.subr.bf16.mxu0 0
      %3262 = vmatpush1.bf16.msra.mxu0 0
      %3263 = vmatprep.subr.bf16.mxu0 0
      %3264 = vmatpush1.bf16.msra.mxu0 0
      %3265 = vmatprep.subr.bf16.mxu0 0
      %3266 = vmatpush1.bf16.msra.mxu0 0
      %3267 = vmatprep.subr.bf16.mxu0 0
      %3268 = vmatpush1.bf16.msra.mxu0 0
      %3269 = vmatprep.subr.bf16.mxu0 0
      %3270 = vmatpush1.bf16.msra.mxu0 0
      %3271 = vmatprep.subr.bf16.mxu0 0
      %3272 = vmatpush1.bf16.msra.mxu0 0
      %3273 = vmatprep.subr.bf16.mxu0 0
      %3274 = vmatpush1.bf16.msra.mxu0 0
      %3275 = vmatprep.subr.bf16.mxu0 0
      %3276 = vmatpush1.bf16.msra.mxu0 0
      %3277 = vmatprep.subr.bf16.mxu0 0
      %3278 = vmatpush1.bf16.msra.mxu0 0
      %3279 = vmatprep.subr.bf16.mxu0 0
      %3280 = vmatpush1.bf16.msra.mxu0 0
      %3281 = vmatprep.subr.bf16.mxu0 0
      %3282 = vmatpush1.bf16.msra.mxu0 0
      %3283 = vmatprep.mubr.bf16.mxu0 0
      %3284 = vmatmul.mubr.bf16.gmra.mrb[0].mxu0 %v3147
      %v3285 = vpop.f32.mrb[0].mxu0
      %v3286 = vadd.f32 0.0, %v3285
      %v3287 = vpop.f32.mrb[0].mxu0
      %v3288 = vpop.f32.mrb[0].mxu0
      %v3289 = vadd.f32 0.0, %v3288
      %v3290 = vpop.f32.mrb[0].mxu0
      %3291 = vmatprep.mubr.bf16.mxu0 0
      %3292 = vmatmul.mubr.bf16.gmra.mrb[0].mxu0 %v3150
      %v3293 = vpop.f32.mrb[0].mxu0
      %v3294 = vadd.f32 0.0, %v3293
      %v3295 = vpop.f32.mrb[0].mxu0
      %v3296 = vpop.f32.mrb[0].mxu0
      %v3297 = vadd.f32 0.0, %v3296
      %v3298 = vpop.f32.mrb[0].mxu0
      %3299 = vmatprep.mubr.bf16.mxu0 0
      %3300 = vmatmul.mubr.bf16.gmra.mrb[0].mxu0 %v3153
      %v3301 = vpop.f32.mrb[0].mxu0
      %v3302 = vadd.f32 0.0, %v3301
      %v3303 = vpop.f32.mrb[0].mxu0
      %v3304 = vpop.f32.mrb[0].mxu0
      %v3305 = vadd.f32 0.0, %v3304
      %v3306 = vpop.f32.mrb[0].mxu0
      %3307 = vmatprep.mubr.bf16.mxu0 0
      %3308 = vmatmul.mubr.bf16.gmra.mrb[0].mxu0 %v3156
      %v3309 = vpop.f32.mrb[0].mxu0
      %v3310 = vadd.f32 0.0, %v3309
      %v3311 = vpop.f32.mrb[0].mxu0
      %v3312 = vpop.f32.mrb[0].mxu0
      %v3313 = vadd.f32 0.0, %v3312
      %v3314 = vpop.f32.mrb[0].mxu0
      %3315 = vmatprep.mubr.bf16.mxu0 0
      %3316 = vmatmul.mubr.bf16.gmra.mrb[0].mxu0 %v3159
      %v3317 = vpop.f32.mrb[0].mxu0
      %v3318 = vadd.f32 0.0, %v3317
      %v3319 = vpop.f32.mrb[0].mxu0
      %v3320 = vpop.f32.mrb[0].mxu0
      %v3321 = vadd.f32 0.0, %v3320
      %v3322 = vpop.f32.mrb[0].mxu0
      %3323 = vmatprep.mubr.bf16.mxu0 0
      %3324 = vmatmul.mubr.bf16.gmra.mrb[0].mxu0 %v3162
      %v3325 = vpop.f32.mrb[0].mxu0
      %v3326 = vadd.f32 0.0, %v3325
      %v3327 = vpop.f32.mrb[0].mxu0
      %v3328 = vpop.f32.mrb[0].mxu0
      %v3329 = vadd.f32 0.0, %v3328
      %v3330 = vpop.f32.mrb[0].mxu0
      %3331 = vmatprep.mubr.bf16.mxu0 0
      %3332 = vmatmul.mubr.bf16.gmra.mrb[0].mxu0 %v3165
      %v3333 = vpop.f32.mrb[0].mxu0
      %v3334 = vadd.f32 0.0, %v3333
      %v3335 = vpop.f32.mrb[0].mxu0
      %v3336 = vpop.f32.mrb[0].mxu0
      %v3337 = vadd.f32 0.0, %v3336
      %v3338 = vpop.f32.mrb[0].mxu0
      %3339 = vmatprep.mubr.bf16.mxu0 0
      %3340 = vmatmul.mubr.bf16.gmra.mrb[0].mxu0 %v3168
      %v3341 = vpop.f32.mrb[0].mxu0
      %v3342 = vadd.f32 0.0, %v3341
      %v3343 = vpop.f32.mrb[0].mxu0
      %v3344 = vpop.f32.mrb[0].mxu0
      %v3345 = vadd.f32 0.0, %v3344
      %v3346 = vpop.f32.mrb[0].mxu0
      %3347 = vmatprep.mubr.bf16.mxu0 0
      %3348 = vmatmul.mubr.bf16.gmra.mrb[0].mxu0 %v3171
      %v3349 = vpop.f32.mrb[0].mxu0
      %v3350 = vadd.f32 0.0, %v3349
      %v3351 = vpop.f32.mrb[0].mxu0
      %v3352 = vpop.f32.mrb[0].mxu0
      %v3353 = vadd.f32 0.0, %v3352
      %v3354 = vpop.f32.mrb[0].mxu0
      %3355 = vmatprep.mubr.bf16.mxu0 0
      %3356 = vmatmul.mubr.bf16.gmra.mrb[0].mxu0 %v3174
      %v3357 = vpop.f32.mrb[0].mxu0
      %v3358 = vadd.f32 0.0, %v3357
      %v3359 = vpop.f32.mrb[0].mxu0
      %v3360 = vpop.f32.mrb[0].mxu0
      %v3361 = vadd.f32 0.0, %v3360
      %v3362 = vpop.f32.mrb[0].mxu0
      %3363 = vmatprep.mubr.bf16.mxu0 0
      %3364 = vmatmul.mubr.bf16.gmra.mrb[0].mxu0 %v3177
      %v3365 = vpop.f32.mrb[0].mxu0
      %v3366 = vadd.f32 0.0, %v3365
      %v3367 = vpop.f32.mrb[0].mxu0
      %v3368 = vpop.f32.mrb[0].mxu0
      %v3369 = vadd.f32 0.0, %v3368
      %v3370 = vpop.f32.mrb[0].mxu0
      %3371 = vmatprep.mubr.bf16.mxu0 0
      %3372 = vmatmul.mubr.bf16.gmra.mrb[0].mxu0 %v3180
      %v3373 = vpop.f32.mrb[0].mxu0
      %v3374 = vadd.f32 0.0, %v3373
      %v3375 = vpop.f32.mrb[0].mxu0
      %v3376 = vpop.f32.mrb[0].mxu0
      %v3377 = vadd.f32 0.0, %v3376
      %v3378 = vpop.f32.mrb[0].mxu0
      %3379 = vmatprep.mubr.bf16.mxu0 0
      %3380 = vmatmul.mubr.bf16.gmra.mrb[0].mxu0 %v3183
      %v3381 = vpop.f32.mrb[0].mxu0
      %v3382 = vadd.f32 0.0, %v3381
      %v3383 = vpop.f32.mrb[0].mxu0
      %v3384 = vpop.f32.mrb[0].mxu0
      %v3385 = vadd.f32 0.0, %v3384
      %v3386 = vpop.f32.mrb[0].mxu0
      %3387 = vmatprep.mubr.bf16.mxu0 0
      %3388 = vmatmul.mubr.bf16.gmra.mrb[0].mxu0 %v3186
      %v3389 = vpop.f32.mrb[0].mxu0
      %v3390 = vadd.f32 0.0, %v3389
      %v3391 = vpop.f32.mrb[0].mxu0
      %v3392 = vpop.f32.mrb[0].mxu0
      %v3393 = vadd.f32 0.0, %v3392
      %v3394 = vpop.f32.mrb[0].mxu0
      %3395 = vmatprep.mubr.bf16.mxu0 0
      %3396 = vmatmul.mubr.bf16.gmra.mrb[0].mxu0 %v3189
      %v3397 = vpop.f32.mrb[0].mxu0
      %v3398 = vadd.f32 0.0, %v3397
      %v3399 = vpop.f32.mrb[0].mxu0
      %v3400 = vpop.f32.mrb[0].mxu0
      %v3401 = vadd.f32 0.0, %v3400
      %v3402 = vpop.f32.mrb[0].mxu0
      %3403 = vmatprep.mubr.bf16.mxu0 0
      %3404 = vmatmul.mubr.bf16.gmra.mrb[0].mxu0 %v3192
      %v3405 = vpop.f32.mrb[0].mxu0
      %v3406 = vadd.f32 0.0, %v3405
      %v3407 = vpop.f32.mrb[0].mxu0
      %v3408 = vpop.f32.mrb[0].mxu0
      %v3409 = vadd.f32 0.0, %v3408
      %v3410 = vpop.f32.mrb[0].mxu0
      %3411 = vmatprep.mubr.bf16.mxu0 0
      %3412 = vmatmul.mubr.bf16.gmra.mrb[0].mxu0 %v3195
      %v3413 = vpop.f32.mrb[0].mxu0
      %v3414 = vadd.f32 0.0, %v3413
      %v3415 = vpop.f32.mrb[0].mxu0
      %v3416 = vpop.f32.mrb[0].mxu0
      %v3417 = vadd.f32 0.0, %v3416
      %v3418 = vpop.f32.mrb[0].mxu0
      %3419 = vmatprep.mubr.bf16.mxu0 0
      %3420 = vmatmul.mubr.bf16.gmra.mrb[0].mxu0 %v3198
      %v3421 = vpop.f32.mrb[0].mxu0
      %v3422 = vadd.f32 0.0, %v3421
      %v3423 = vpop.f32.mrb[0].mxu0
      %v3424 = vpop.f32.mrb[0].mxu0
      %v3425 = vadd.f32 0.0, %v3424
      %v3426 = vpop.f32.mrb[0].mxu0
      %3427 = vmatprep.mubr.bf16.mxu0 0
      %3428 = vmatmul.mubr.bf16.gmra.mrb[0].mxu0 %v3201
      %v3429 = vpop.f32.mrb[0].mxu0
      %v3430 = vadd.f32 0.0, %v3429
      %v3431 = vpop.f32.mrb[0].mxu0
      %v3432 = vpop.f32.mrb[0].mxu0
      %v3433 = vadd.f32 0.0, %v3432
      %v3434 = vpop.f32.mrb[0].mxu0
      %3435 = vmatprep.mubr.bf16.mxu0 0
      %3436 = vmatmul.mubr.bf16.gmra.mrb[0].mxu0 %v3204
      %v3437 = vpop.f32.mrb[0].mxu0
      %v3438 = vadd.f32 0.0, %v3437
      %v3439 = vpop.f32.mrb[0].mxu0
      %v3440 = vpop.f32.mrb[0].mxu0
      %v3441 = vadd.f32 0.0, %v3440
      %v3442 = vpop.f32.mrb[0].mxu0
      %3443 = vmatprep.mubr.bf16.mxu0 0
      %3444 = vmatmul.mubr.bf16.gmra.mrb[0].mxu0 %v3207
      %v3445 = vpop.f32.mrb[0].mxu0
      %v3446 = vadd.f32 0.0, %v3445
      %v3447 = vpop.f32.mrb[0].mxu0
      %v3448 = vpop.f32.mrb[0].mxu0
      %v3449 = vadd.f32 0.0, %v3448
      %v3450 = vpop.f32.mrb[0].mxu0
      %3451 = vmatprep.mubr.bf16.mxu0 0
      %3452 = vmatmul.mubr.bf16.gmra.mrb[0].mxu0 %v3210
      %v3453 = vpop.f32.mrb[0].mxu0
      %v3454 = vadd.f32 0.0, %v3453
      %v3455 = vpop.f32.mrb[0].mxu0
      %v3456 = vpop.f32.mrb[0].mxu0
      %v3457 = vadd.f32 0.0, %v3456
      %v3458 = vpop.f32.mrb[0].mxu0
      %3459 = vmatprep.mubr.bf16.mxu0 0
      %3460 = vmatmul.mubr.bf16.gmra.mrb[0].mxu0 %v3213
      %v3461 = vpop.f32.mrb[0].mxu0
      %v3462 = vadd.f32 0.0, %v3461
      %v3463 = vpop.f32.mrb[0].mxu0
      %v3464 = vpop.f32.mrb[0].mxu0
      %v3465 = vadd.f32 0.0, %v3464
      %v3466 = vpop.f32.mrb[0].mxu0
      %3467 = vmatprep.mubr.bf16.mxu0 0
      %3468 = vmatmul.mubr.bf16.gmra.mrb[0].mxu0 %v3216
      %v3469 = vpop.f32.mrb[0].mxu0
      %v3470 = vadd.f32 0.0, %v3469
      %v3471 = vpop.f32.mrb[0].mxu0
      %v3472 = vpop.f32.mrb[0].mxu0
      %v3473 = vadd.f32 0.0, %v3472
      %v3474 = vpop.f32.mrb[0].mxu0
      %3475 = vmatprep.mubr.bf16.mxu0 0
      %3476 = vmatmul.mubr.bf16.gmra.mrb[0].mxu0 %v3219
      %v3477 = vpop.f32.mrb[0].mxu0
      %v3478 = vadd.f32 0.0, %v3477
      %v3479 = vpop.f32.mrb[0].mxu0
      %v3480 = vpop.f32.mrb[0].mxu0
      %v3481 = vadd.f32 0.0, %v3480
      %v3482 = vpop.f32.mrb[0].mxu0
      %3483 = vmatprep.mubr.bf16.mxu0 0
      %3484 = vmatmul.mubr.bf16.gmra.mrb[0].mxu0 %v3222
      %v3485 = vpop.f32.mrb[0].mxu0
      %v3486 = vadd.f32 0.0, %v3485
      %v3487 = vpop.f32.mrb[0].mxu0
      %v3488 = vpop.f32.mrb[0].mxu0
      %v3489 = vadd.f32 0.0, %v3488
      %v3490 = vpop.f32.mrb[0].mxu0
      %3491 = vmatprep.mubr.bf16.mxu0 0
      %3492 = vmatmul.mubr.bf16.gmra.mrb[0].mxu0 %v3225
      %v3493 = vpop.f32.mrb[0].mxu0
      %v3494 = vadd.f32 0.0, %v3493
      %v3495 = vpop.f32.mrb[0].mxu0
      %v3496 = vpop.f32.mrb[0].mxu0
      %v3497 = vadd.f32 0.0, %v3496
      %v3498 = vpop.f32.mrb[0].mxu0
      %3499 = vmatprep.mubr.bf16.mxu0 0
      %3500 = vmatmul.mubr.bf16.gmra.mrb[0].mxu0 %v3228
      %v3501 = vpop.f32.mrb[0].mxu0
      %v3502 = vadd.f32 0.0, %v3501
      %v3503 = vpop.f32.mrb[0].mxu0
      %v3504 = vpop.f32.mrb[0].mxu0
      %v3505 = vadd.f32 0.0, %v3504
      %v3506 = vpop.f32.mrb[0].mxu0
      %3507 = vmatprep.mubr.bf16.mxu0 0
      %3508 = vmatmul.mubr.bf16.gmra.mrb[0].mxu0 %v3231
      %v3509 = vpop.f32.mrb[0].mxu0
      %v3510 = vadd.f32 0.0, %v3509
      %v3511 = vpop.f32.mrb[0].mxu0
      %v3512 = vpop.f32.mrb[0].mxu0
      %v3513 = vadd.f32 0.0, %v3512
      %v3514 = vpop.f32.mrb[0].mxu0
      %3515 = vmatprep.mubr.bf16.mxu0 0
      %3516 = vmatmul.mubr.bf16.gmra.mrb[0].mxu0 %v3234
      %v3517 = vpop.f32.mrb[0].mxu0
      %v3518 = vadd.f32 0.0, %v3517
      %v3519 = vpop.f32.mrb[0].mxu0
      %v3520 = vpop.f32.mrb[0].mxu0
      %v3521 = vadd.f32 0.0, %v3520
      %v3522 = vpop.f32.mrb[0].mxu0
      %3523 = vmatprep.mubr.bf16.mxu0 0
      %3524 = vmatmul.mubr.bf16.gmra.mrb[0].mxu0 %v3237
      %v3525 = vpop.f32.mrb[0].mxu0
      %v3526 = vadd.f32 0.0, %v3525
      %v3527 = vpop.f32.mrb[0].mxu0
      %v3528 = vpop.f32.mrb[0].mxu0
      %v3529 = vadd.f32 0.0, %v3528
      %v3530 = vpop.f32.mrb[0].mxu0
      %3531 = vmatprep.mubr.bf16.mxu0 0
      %3532 = vmatmul.mubr.bf16.gmra.mrb[0].mxu0 %v3240
      %v3533 = vpop.f32.mrb[0].mxu0
      %v3534 = vadd.f32 0.0, %v3533
      %v3535 = vpop.f32.mrb[0].mxu0
      %v3536 = vpop.f32.mrb[0].mxu0
      %v3537 = vadd.f32 0.0, %v3536
      %v3538 = vpop.f32.mrb[0].mxu0
      %3539 = vmatprep.mubr.bf16.mxu0 0
      %3540 = vmatmul.mubr.bf16.gmra.mrb[0].mxu0 %v3243
      %v3541 = vpop.f32.mrb[0].mxu0
      %v3542 = vadd.f32 0.0, %v3541
      %v3543 = vpop.f32.mrb[0].mxu0
      %v3544 = vpop.f32.mrb[0].mxu0
      %v3545 = vadd.f32 0.0, %v3544
      %v3546 = vpop.f32.mrb[0].mxu0
      %3547 = vmatprep.mubr.bf16.mxu0 0
      %3548 = vmatmul.mubr.bf16.gmra.mrb[0].mxu0 %v3246
      %v3549 = vpop.f32.mrb[0].mxu0
      %v3550 = vadd.f32 0.0, %v3549
      %v3551 = vpop.f32.mrb[0].mxu0
      %v3552 = vpop.f32.mrb[0].mxu0
      %v3553 = vadd.f32 0.0, %v3552
      %v3554 = vpop.f32.mrb[0].mxu0
      %3555 = vdwg.mxu0
      %v3556 = vadd.f32 %v2757, %v3286
      %v3557 = vadd.f32 %v2758, %v3289
      %v3558 = vadd.f32 %v2759, %v3294
      %v3559 = vadd.f32 %v2760, %v3297
      %v3560 = vadd.f32 %v2761, %v3302
      %v3561 = vadd.f32 %v2762, %v3305
      %v3562 = vadd.f32 %v2763, %v3310
      %v3563 = vadd.f32 %v2764, %v3313
      %v3564 = vadd.f32 %v2765, %v3318
      %v3565 = vadd.f32 %v2766, %v3321
      %v3566 = vadd.f32 %v2767, %v3326
      %v3567 = vadd.f32 %v2768, %v3329
      %v3568 = vadd.f32 %v2769, %v3334
      %v3569 = vadd.f32 %v2770, %v3337
      %v3570 = vadd.f32 %v2771, %v3342
      %v3571 = vadd.f32 %v2772, %v3345
      %v3572 = vadd.f32 %v2773, %v3350
      %v3573 = vadd.f32 %v2774, %v3353
      %v3574 = vadd.f32 %v2775, %v3358
      %v3575 = vadd.f32 %v2776, %v3361
      %v3576 = vadd.f32 %v2777, %v3366
      %v3577 = vadd.f32 %v2778, %v3369
      %v3578 = vadd.f32 %v2779, %v3374
      %v3579 = vadd.f32 %v2780, %v3377
      %v3580 = vadd.f32 %v2781, %v3382
      %v3581 = vadd.f32 %v2782, %v3385
      %v3582 = vadd.f32 %v2783, %v3390
      %v3583 = vadd.f32 %v2784, %v3393
      %v3584 = vadd.f32 %v2785, %v3398
      %v3585 = vadd.f32 %v2786, %v3401
      %v3586 = vadd.f32 %v2787, %v3406
      %v3587 = vadd.f32 %v2788, %v3409
      %v3588 = vadd.f32 %v2789, %v3414
      %v3589 = vadd.f32 %v2790, %v3417
      %v3590 = vadd.f32 %v2791, %v3422
      %v3591 = vadd.f32 %v2792, %v3425
      %v3592 = vadd.f32 %v2793, %v3430
      %v3593 = vadd.f32 %v2794, %v3433
      %v3594 = vadd.f32 %v2795, %v3438
      %v3595 = vadd.f32 %v2796, %v3441
      %v3596 = vadd.f32 %v2797, %v3446
      %v3597 = vadd.f32 %v2798, %v3449
      %v3598 = vadd.f32 %v2799, %v3454
      %v3599 = vadd.f32 %v2800, %v3457
      %v3600 = vadd.f32 %v2801, %v3462
      %v3601 = vadd.f32 %v2802, %v3465
      %v3602 = vadd.f32 %v2803, %v3470
      %v3603 = vadd.f32 %v2804, %v3473
      %v3604 = vadd.f32 %v2805, %v3478
      %v3605 = vadd.f32 %v2806, %v3481
      %v3606 = vadd.f32 %v2807, %v3486
      %v3607 = vadd.f32 %v2808, %v3489
      %v3608 = vadd.f32 %v2809, %v3494
      %v3609 = vadd.f32 %v2810, %v3497
      %v3610 = vadd.f32 %v2811, %v3502
      %v3611 = vadd.f32 %v2812, %v3505
      %v3612 = vadd.f32 %v2813, %v3510
      %v3613 = vadd.f32 %v2814, %v3513
      %v3614 = vadd.f32 %v2815, %v3518
      %v3615 = vadd.f32 %v2816, %v3521
      %v3616 = vadd.f32 %v2817, %v3526
      %v3617 = vadd.f32 %v2818, %v3529
      %v3618 = vadd.f32 %v2819, %v3534
      %v3619 = vadd.f32 %v2820, %v3537
      %v3620 = vadd.f32 %v2821, %v3542
      %v3621 = vadd.f32 %v2822, %v3545
      %v3622 = vadd.f32 %v2823, %v3550
      %v3623 = vadd.f32 %v2824, %v3553
      %v3624 = vld [vmem:[%s164 + $0x10] sm:$0xc]
      %s3625 = scalar_lea.vmem %s1, 20
      %v3626 = vld [vmem:[%s3625] sm:$0xf]
      %v3628 = vunpack.c.l.b16 %v3624
      %v3629 = vpack.c.b16 %v2175, %v3628
      %vm3630 = vcmask 1045504
      %v3631 = vrot.slane %v3629, 2
      %v3632 = vrot.slane %v2244, 2
      %v3633 = vsel %vm3630, %v3631, %v3632
      %v3634 = vrot.slane %v2245, 2
      %v3635 = vsel %vm3630, %v3632, %v3634
      %v3636 = vrot.slane %v2246, 2
      %v3637 = vsel %vm3630, %v3634, %v3636
      %v3638 = vrot.slane %v2247, 2
      %v3639 = vsel %vm3630, %v3636, %v3638
      %v3640 = vrot.slane %v2248, 2
      %v3641 = vsel %vm3630, %v3638, %v3640
      %v3642 = vrot.slane %v2249, 2
      %v3643 = vsel %vm3630, %v3640, %v3642
      %v3644 = vrot.slane %v2250, 2
      %v3645 = vsel %vm3630, %v3642, %v3644
      %v3646 = vrot.slane %v2251, 2
      %v3647 = vsel %vm3630, %v3644, %v3646
      %v3648 = vrot.slane %v2252, 2
      %v3649 = vsel %vm3630, %v3646, %v3648
      %v3650 = vrot.slane %v2253, 2
      %v3651 = vsel %vm3630, %v3648, %v3650
      %v3652 = vrot.slane %v2254, 2
      %v3653 = vsel %vm3630, %v3650, %v3652
      %v3654 = vrot.slane %v2255, 2
      %v3655 = vsel %vm3630, %v3652, %v3654
      %v3656 = vrot.slane %v2256, 2
      %v3657 = vsel %vm3630, %v3654, %v3656
      %v3658 = vrot.slane %v2257, 2
      %v3659 = vsel %vm3630, %v3656, %v3658
      %v3660 = vrot.slane %v2258, 2
      %v3661 = vsel %vm3630, %v3658, %v3660
      %v3662 = vrot.slane %v2259, 2
      %v3663 = vsel %vm3630, %v3660, %v3662
      %v3664 = vrot.slane %v2260, 2
      %v3665 = vsel %vm3630, %v3662, %v3664
      %v3666 = vrot.slane %v2261, 2
      %v3667 = vsel %vm3630, %v3664, %v3666
      %v3668 = vrot.slane %v2262, 2
      %v3669 = vsel %vm3630, %v3666, %v3668
      %v3670 = vrot.slane %v2263, 2
      %v3671 = vsel %vm3630, %v3668, %v3670
      %v3672 = vrot.slane %v2264, 2
      %v3673 = vsel %vm3630, %v3670, %v3672
      %v3674 = vrot.slane %v2265, 2
      %v3675 = vsel %vm3630, %v3672, %v3674
      %v3676 = vrot.slane %v2266, 2
      %v3677 = vsel %vm3630, %v3674, %v3676
      %v3678 = vrot.slane %v2267, 2
      %v3679 = vsel %vm3630, %v3676, %v3678
      %v3680 = vrot.slane %v2268, 2
      %v3681 = vsel %vm3630, %v3678, %v3680
      %v3682 = vrot.slane %v2269, 2
      %v3683 = vsel %vm3630, %v3680, %v3682
      %v3684 = vrot.slane %v2270, 2
      %v3685 = vsel %vm3630, %v3682, %v3684
      %v3686 = vrot.slane %v2271, 2
      %v3687 = vsel %vm3630, %v3684, %v3686
      %v3688 = vrot.slane %v2272, 2
      %v3689 = vsel %vm3630, %v3686, %v3688
      %v3690 = vrot.slane %v2273, 2
      %v3691 = vsel %vm3630, %v3688, %v3690
      %v3692 = vrot.slane %v2274, 2
      %v3693 = vsel %vm3630, %v3690, %v3692
      %v3694 = vrot.slane %v2275, 2
      %v3695 = vsel %vm3630, %v3692, %v3694
      %v3696 = vrot.slane %v2276, 2
      %v3697 = vsel %vm3630, %v3694, %v3696
      %v3698 = vrot.slane %v2830, 2
      %v3699 = vsel %vm3630, %v3696, %v3698
      %v3701 = vsel %vm692, %v3633, 0
      %v3704 = vsel %vm692, %v3635, 0
      %v3707 = vsel %vm692, %v3637, 0
      %v3710 = vsel %vm692, %v3639, 0
      %v3713 = vsel %vm692, %v3641, 0
      %v3716 = vsel %vm692, %v3643, 0
      %v3719 = vsel %vm692, %v3645, 0
      %v3722 = vsel %vm692, %v3647, 0
      %v3725 = vsel %vm692, %v3649, 0
      %v3728 = vsel %vm692, %v3651, 0
      %v3731 = vsel %vm692, %v3653, 0
      %v3734 = vsel %vm692, %v3655, 0
      %v3737 = vsel %vm692, %v3657, 0
      %v3740 = vsel %vm692, %v3659, 0
      %v3743 = vsel %vm692, %v3661, 0
      %v3746 = vsel %vm692, %v3663, 0
      %v3749 = vsel %vm692, %v3665, 0
      %v3752 = vsel %vm692, %v3667, 0
      %v3755 = vsel %vm692, %v3669, 0
      %v3758 = vsel %vm692, %v3671, 0
      %v3761 = vsel %vm692, %v3673, 0
      %v3764 = vsel %vm692, %v3675, 0
      %v3767 = vsel %vm692, %v3677, 0
      %v3770 = vsel %vm692, %v3679, 0
      %v3773 = vsel %vm692, %v3681, 0
      %v3776 = vsel %vm692, %v3683, 0
      %v3779 = vsel %vm692, %v3685, 0
      %v3782 = vsel %vm692, %v3687, 0
      %v3785 = vsel %vm692, %v3689, 0
      %v3788 = vsel %vm692, %v3691, 0
      %v3791 = vsel %vm692, %v3693, 0
      %v3794 = vsel %vm692, %v3695, 0
      %v3797 = vsel %vm692, %v3697, 0
      %v3800 = vsel %vm692, %v3699, 0
      %v3803 = vsel %vm795, %v3626, 0
      %3805 = vmatprep.subr.bf16.mxu0 0
      %3806 = vmatpush1.bf16.msra.mxu0 %v3803
      %3807 = vmatprep.subr.bf16.mxu0 0
      %3808 = vmatpush1.bf16.msra.mxu0 0
      %3809 = vmatprep.subr.bf16.mxu0 0
      %3810 = vmatpush1.bf16.msra.mxu0 0
      %3811 = vmatprep.subr.bf16.mxu0 0
      %3812 = vmatpush1.bf16.msra.mxu0 0
      %3813 = vmatprep.subr.bf16.mxu0 0
      %3814 = vmatpush1.bf16.msra.mxu0 0
      %3815 = vmatprep.subr.bf16.mxu0 0
      %3816 = vmatpush1.bf16.msra.mxu0 0
      %3817 = vmatprep.subr.bf16.mxu0 0
      %3818 = vmatpush1.bf16.msra.mxu0 0
      %3819 = vmatprep.subr.bf16.mxu0 0
      %3820 = vmatpush1.bf16.msra.mxu0 0
      %3821 = vmatprep.subr.bf16.mxu0 0
      %3822 = vmatpush1.bf16.msra.mxu0 0
      %3823 = vmatprep.subr.bf16.mxu0 0
      %3824 = vmatpush1.bf16.msra.mxu0 0
      %3825 = vmatprep.subr.bf16.mxu0 0
      %3826 = vmatpush1.bf16.msra.mxu0 0
      %3827 = vmatprep.subr.bf16.mxu0 0
      %3828 = vmatpush1.bf16.msra.mxu0 0
      %3829 = vmatprep.subr.bf16.mxu0 0
      %3830 = vmatpush1.bf16.msra.mxu0 0
      %3831 = vmatprep.subr.bf16.mxu0 0
      %3832 = vmatpush1.bf16.msra.mxu0 0
      %3833 = vmatprep.subr.bf16.mxu0 0
      %3834 = vmatpush1.bf16.msra.mxu0 0
      %3835 = vmatprep.subr.bf16.mxu0 0
      %3836 = vmatpush1.bf16.msra.mxu0 0
      %3837 = vmatprep.mubr.bf16.mxu0 0
      %3838 = vmatmul.mubr.bf16.gmra.mrb[0].mxu0 %v3701
      %v3839 = vpop.f32.mrb[0].mxu0
      %v3840 = vadd.f32 0.0, %v3839
      %v3841 = vpop.f32.mrb[0].mxu0
      %v3842 = vpop.f32.mrb[0].mxu0
      %v3843 = vadd.f32 0.0, %v3842
      %v3844 = vpop.f32.mrb[0].mxu0
      %3845 = vmatprep.mubr.bf16.mxu0 0
      %3846 = vmatmul.mubr.bf16.gmra.mrb[0].mxu0 %v3704
      %v3847 = vpop.f32.mrb[0].mxu0
      %v3848 = vadd.f32 0.0, %v3847
      %v3849 = vpop.f32.mrb[0].mxu0
      %v3850 = vpop.f32.mrb[0].mxu0
      %v3851 = vadd.f32 0.0, %v3850
      %v3852 = vpop.f32.mrb[0].mxu0
      %3853 = vmatprep.mubr.bf16.mxu0 0
      %3854 = vmatmul.mubr.bf16.gmra.mrb[0].mxu0 %v3707
      %v3855 = vpop.f32.mrb[0].mxu0
      %v3856 = vadd.f32 0.0, %v3855
      %v3857 = vpop.f32.mrb[0].mxu0
      %v3858 = vpop.f32.mrb[0].mxu0
      %v3859 = vadd.f32 0.0, %v3858
      %v3860 = vpop.f32.mrb[0].mxu0
      %3861 = vmatprep.mubr.bf16.mxu0 0
      %3862 = vmatmul.mubr.bf16.gmra.mrb[0].mxu0 %v3710
      %v3863 = vpop.f32.mrb[0].mxu0
      %v3864 = vadd.f32 0.0, %v3863
      %v3865 = vpop.f32.mrb[0].mxu0
      %v3866 = vpop.f32.mrb[0].mxu0
      %v3867 = vadd.f32 0.0, %v3866
      %v3868 = vpop.f32.mrb[0].mxu0
      %3869 = vmatprep.mubr.bf16.mxu0 0
      %3870 = vmatmul.mubr.bf16.gmra.mrb[0].mxu0 %v3713
      %v3871 = vpop.f32.mrb[0].mxu0
      %v3872 = vadd.f32 0.0, %v3871
      %v3873 = vpop.f32.mrb[0].mxu0
      %v3874 = vpop.f32.mrb[0].mxu0
      %v3875 = vadd.f32 0.0, %v3874
      %v3876 = vpop.f32.mrb[0].mxu0
      %3877 = vmatprep.mubr.bf16.mxu0 0
      %3878 = vmatmul.mubr.bf16.gmra.mrb[0].mxu0 %v3716
      %v3879 = vpop.f32.mrb[0].mxu0
      %v3880 = vadd.f32 0.0, %v3879
      %v3881 = vpop.f32.mrb[0].mxu0
      %v3882 = vpop.f32.mrb[0].mxu0
      %v3883 = vadd.f32 0.0, %v3882
      %v3884 = vpop.f32.mrb[0].mxu0
      %3885 = vmatprep.mubr.bf16.mxu0 0
      %3886 = vmatmul.mubr.bf16.gmra.mrb[0].mxu0 %v3719
      %v3887 = vpop.f32.mrb[0].mxu0
      %v3888 = vadd.f32 0.0, %v3887
      %v3889 = vpop.f32.mrb[0].mxu0
      %v3890 = vpop.f32.mrb[0].mxu0
      %v3891 = vadd.f32 0.0, %v3890
      %v3892 = vpop.f32.mrb[0].mxu0
      %3893 = vmatprep.mubr.bf16.mxu0 0
      %3894 = vmatmul.mubr.bf16.gmra.mrb[0].mxu0 %v3722
      %v3895 = vpop.f32.mrb[0].mxu0
      %v3896 = vadd.f32 0.0, %v3895
      %v3897 = vpop.f32.mrb[0].mxu0
      %v3898 = vpop.f32.mrb[0].mxu0
      %v3899 = vadd.f32 0.0, %v3898
      %v3900 = vpop.f32.mrb[0].mxu0
      %3901 = vmatprep.mubr.bf16.mxu0 0
      %3902 = vmatmul.mubr.bf16.gmra.mrb[0].mxu0 %v3725
      %v3903 = vpop.f32.mrb[0].mxu0
      %v3904 = vadd.f32 0.0, %v3903
      %v3905 = vpop.f32.mrb[0].mxu0
      %v3906 = vpop.f32.mrb[0].mxu0
      %v3907 = vadd.f32 0.0, %v3906
      %v3908 = vpop.f32.mrb[0].mxu0
      %3909 = vmatprep.mubr.bf16.mxu0 0
      %3910 = vmatmul.mubr.bf16.gmra.mrb[0].mxu0 %v3728
      %v3911 = vpop.f32.mrb[0].mxu0
      %v3912 = vadd.f32 0.0, %v3911
      %v3913 = vpop.f32.mrb[0].mxu0
      %v3914 = vpop.f32.mrb[0].mxu0
      %v3915 = vadd.f32 0.0, %v3914
      %v3916 = vpop.f32.mrb[0].mxu0
      %3917 = vmatprep.mubr.bf16.mxu0 0
      %3918 = vmatmul.mubr.bf16.gmra.mrb[0].mxu0 %v3731
      %v3919 = vpop.f32.mrb[0].mxu0
      %v3920 = vadd.f32 0.0, %v3919
      %v3921 = vpop.f32.mrb[0].mxu0
      %v3922 = vpop.f32.mrb[0].mxu0
      %v3923 = vadd.f32 0.0, %v3922
      %v3924 = vpop.f32.mrb[0].mxu0
      %3925 = vmatprep.mubr.bf16.mxu0 0
      %3926 = vmatmul.mubr.bf16.gmra.mrb[0].mxu0 %v3734
      %v3927 = vpop.f32.mrb[0].mxu0
      %v3928 = vadd.f32 0.0, %v3927
      %v3929 = vpop.f32.mrb[0].mxu0
      %v3930 = vpop.f32.mrb[0].mxu0
      %v3931 = vadd.f32 0.0, %v3930
      %v3932 = vpop.f32.mrb[0].mxu0
      %3933 = vmatprep.mubr.bf16.mxu0 0
      %3934 = vmatmul.mubr.bf16.gmra.mrb[0].mxu0 %v3737
      %v3935 = vpop.f32.mrb[0].mxu0
      %v3936 = vadd.f32 0.0, %v3935
      %v3937 = vpop.f32.mrb[0].mxu0
      %v3938 = vpop.f32.mrb[0].mxu0
      %v3939 = vadd.f32 0.0, %v3938
      %v3940 = vpop.f32.mrb[0].mxu0
      %3941 = vmatprep.mubr.bf16.mxu0 0
      %3942 = vmatmul.mubr.bf16.gmra.mrb[0].mxu0 %v3740
      %v3943 = vpop.f32.mrb[0].mxu0
      %v3944 = vadd.f32 0.0, %v3943
      %v3945 = vpop.f32.mrb[0].mxu0
      %v3946 = vpop.f32.mrb[0].mxu0
      %v3947 = vadd.f32 0.0, %v3946
      %v3948 = vpop.f32.mrb[0].mxu0
      %3949 = vmatprep.mubr.bf16.mxu0 0
      %3950 = vmatmul.mubr.bf16.gmra.mrb[0].mxu0 %v3743
      %v3951 = vpop.f32.mrb[0].mxu0
      %v3952 = vadd.f32 0.0, %v3951
      %v3953 = vpop.f32.mrb[0].mxu0
      %v3954 = vpop.f32.mrb[0].mxu0
      %v3955 = vadd.f32 0.0, %v3954
      %v3956 = vpop.f32.mrb[0].mxu0
      %3957 = vmatprep.mubr.bf16.mxu0 0
      %3958 = vmatmul.mubr.bf16.gmra.mrb[0].mxu0 %v3746
      %v3959 = vpop.f32.mrb[0].mxu0
      %v3960 = vadd.f32 0.0, %v3959
      %v3961 = vpop.f32.mrb[0].mxu0
      %v3962 = vpop.f32.mrb[0].mxu0
      %v3963 = vadd.f32 0.0, %v3962
      %v3964 = vpop.f32.mrb[0].mxu0
      %3965 = vmatprep.mubr.bf16.mxu0 0
      %3966 = vmatmul.mubr.bf16.gmra.mrb[0].mxu0 %v3749
      %v3967 = vpop.f32.mrb[0].mxu0
      %v3968 = vadd.f32 0.0, %v3967
      %v3969 = vpop.f32.mrb[0].mxu0
      %v3970 = vpop.f32.mrb[0].mxu0
      %v3971 = vadd.f32 0.0, %v3970
      %v3972 = vpop.f32.mrb[0].mxu0
      %3973 = vmatprep.mubr.bf16.mxu0 0
      %3974 = vmatmul.mubr.bf16.gmra.mrb[0].mxu0 %v3752
      %v3975 = vpop.f32.mrb[0].mxu0
      %v3976 = vadd.f32 0.0, %v3975
      %v3977 = vpop.f32.mrb[0].mxu0
      %v3978 = vpop.f32.mrb[0].mxu0
      %v3979 = vadd.f32 0.0, %v3978
      %v3980 = vpop.f32.mrb[0].mxu0
      %3981 = vmatprep.mubr.bf16.mxu0 0
      %3982 = vmatmul.mubr.bf16.gmra.mrb[0].mxu0 %v3755
      %v3983 = vpop.f32.mrb[0].mxu0
      %v3984 = vadd.f32 0.0, %v3983
      %v3985 = vpop.f32.mrb[0].mxu0
      %v3986 = vpop.f32.mrb[0].mxu0
      %v3987 = vadd.f32 0.0, %v3986
      %v3988 = vpop.f32.mrb[0].mxu0
      %3989 = vmatprep.mubr.bf16.mxu0 0
      %3990 = vmatmul.mubr.bf16.gmra.mrb[0].mxu0 %v3758
      %v3991 = vpop.f32.mrb[0].mxu0
      %v3992 = vadd.f32 0.0, %v3991
      %v3993 = vpop.f32.mrb[0].mxu0
      %v3994 = vpop.f32.mrb[0].mxu0
      %v3995 = vadd.f32 0.0, %v3994
      %v3996 = vpop.f32.mrb[0].mxu0
      %3997 = vmatprep.mubr.bf16.mxu0 0
      %3998 = vmatmul.mubr.bf16.gmra.mrb[0].mxu0 %v3761
      %v3999 = vpop.f32.mrb[0].mxu0
      %v4000 = vadd.f32 0.0, %v3999
      %v4001 = vpop.f32.mrb[0].mxu0
      %v4002 = vpop.f32.mrb[0].mxu0
      %v4003 = vadd.f32 0.0, %v4002
      %v4004 = vpop.f32.mrb[0].mxu0
      %4005 = vmatprep.mubr.bf16.mxu0 0
      %4006 = vmatmul.mubr.bf16.gmra.mrb[0].mxu0 %v3764
      %v4007 = vpop.f32.mrb[0].mxu0
      %v4008 = vadd.f32 0.0, %v4007
      %v4009 = vpop.f32.mrb[0].mxu0
      %v4010 = vpop.f32.mrb[0].mxu0
      %v4011 = vadd.f32 0.0, %v4010
      %v4012 = vpop.f32.mrb[0].mxu0
      %4013 = vmatprep.mubr.bf16.mxu0 0
      %4014 = vmatmul.mubr.bf16.gmra.mrb[0].mxu0 %v3767
      %v4015 = vpop.f32.mrb[0].mxu0
      %v4016 = vadd.f32 0.0, %v4015
      %v4017 = vpop.f32.mrb[0].mxu0
      %v4018 = vpop.f32.mrb[0].mxu0
      %v4019 = vadd.f32 0.0, %v4018
      %v4020 = vpop.f32.mrb[0].mxu0
      %4021 = vmatprep.mubr.bf16.mxu0 0
      %4022 = vmatmul.mubr.bf16.gmra.mrb[0].mxu0 %v3770
      %v4023 = vpop.f32.mrb[0].mxu0
      %v4024 = vadd.f32 0.0, %v4023
      %v4025 = vpop.f32.mrb[0].mxu0
      %v4026 = vpop.f32.mrb[0].mxu0
      %v4027 = vadd.f32 0.0, %v4026
      %v4028 = vpop.f32.mrb[0].mxu0
      %4029 = vmatprep.mubr.bf16.mxu0 0
      %4030 = vmatmul.mubr.bf16.gmra.mrb[0].mxu0 %v3773
      %v4031 = vpop.f32.mrb[0].mxu0
      %v4032 = vadd.f32 0.0, %v4031
      %v4033 = vpop.f32.mrb[0].mxu0
      %v4034 = vpop.f32.mrb[0].mxu0
      %v4035 = vadd.f32 0.0, %v4034
      %v4036 = vpop.f32.mrb[0].mxu0
      %4037 = vmatprep.mubr.bf16.mxu0 0
      %4038 = vmatmul.mubr.bf16.gmra.mrb[0].mxu0 %v3776
      %v4039 = vpop.f32.mrb[0].mxu0
      %v4040 = vadd.f32 0.0, %v4039
      %v4041 = vpop.f32.mrb[0].mxu0
      %v4042 = vpop.f32.mrb[0].mxu0
      %v4043 = vadd.f32 0.0, %v4042
      %v4044 = vpop.f32.mrb[0].mxu0
      %4045 = vmatprep.mubr.bf16.mxu0 0
      %4046 = vmatmul.mubr.bf16.gmra.mrb[0].mxu0 %v3779
      %v4047 = vpop.f32.mrb[0].mxu0
      %v4048 = vadd.f32 0.0, %v4047
      %v4049 = vpop.f32.mrb[0].mxu0
      %v4050 = vpop.f32.mrb[0].mxu0
      %v4051 = vadd.f32 0.0, %v4050
      %v4052 = vpop.f32.mrb[0].mxu0
      %4053 = vmatprep.mubr.bf16.mxu0 0
      %4054 = vmatmul.mubr.bf16.gmra.mrb[0].mxu0 %v3782
      %v4055 = vpop.f32.mrb[0].mxu0
      %v4056 = vadd.f32 0.0, %v4055
      %v4057 = vpop.f32.mrb[0].mxu0
      %v4058 = vpop.f32.mrb[0].mxu0
      %v4059 = vadd.f32 0.0, %v4058
      %v4060 = vpop.f32.mrb[0].mxu0
      %4061 = vmatprep.mubr.bf16.mxu0 0
      %4062 = vmatmul.mubr.bf16.gmra.mrb[0].mxu0 %v3785
      %v4063 = vpop.f32.mrb[0].mxu0
      %v4064 = vadd.f32 0.0, %v4063
      %v4065 = vpop.f32.mrb[0].mxu0
      %v4066 = vpop.f32.mrb[0].mxu0
      %v4067 = vadd.f32 0.0, %v4066
      %v4068 = vpop.f32.mrb[0].mxu0
      %4069 = vmatprep.mubr.bf16.mxu0 0
      %4070 = vmatmul.mubr.bf16.gmra.mrb[0].mxu0 %v3788
      %v4071 = vpop.f32.mrb[0].mxu0
      %v4072 = vadd.f32 0.0, %v4071
      %v4073 = vpop.f32.mrb[0].mxu0
      %v4074 = vpop.f32.mrb[0].mxu0
      %v4075 = vadd.f32 0.0, %v4074
      %v4076 = vpop.f32.mrb[0].mxu0
      %4077 = vmatprep.mubr.bf16.mxu0 0
      %4078 = vmatmul.mubr.bf16.gmra.mrb[0].mxu0 %v3791
      %v4079 = vpop.f32.mrb[0].mxu0
      %v4080 = vadd.f32 0.0, %v4079
      %v4081 = vpop.f32.mrb[0].mxu0
      %v4082 = vpop.f32.mrb[0].mxu0
      %v4083 = vadd.f32 0.0, %v4082
      %v4084 = vpop.f32.mrb[0].mxu0
      %4085 = vmatprep.mubr.bf16.mxu0 0
      %4086 = vmatmul.mubr.bf16.gmra.mrb[0].mxu0 %v3794
      %v4087 = vpop.f32.mrb[0].mxu0
      %v4088 = vadd.f32 0.0, %v4087
      %v4089 = vpop.f32.mrb[0].mxu0
      %v4090 = vpop.f32.mrb[0].mxu0
      %v4091 = vadd.f32 0.0, %v4090
      %v4092 = vpop.f32.mrb[0].mxu0
      %4093 = vmatprep.mubr.bf16.mxu0 0
      %4094 = vmatmul.mubr.bf16.gmra.mrb[0].mxu0 %v3797
      %v4095 = vpop.f32.mrb[0].mxu0
      %v4096 = vadd.f32 0.0, %v4095
      %v4097 = vpop.f32.mrb[0].mxu0
      %v4098 = vpop.f32.mrb[0].mxu0
      %v4099 = vadd.f32 0.0, %v4098
      %v4100 = vpop.f32.mrb[0].mxu0
      %4101 = vmatprep.mubr.bf16.mxu0 0
      %4102 = vmatmul.mubr.bf16.gmra.mrb[0].mxu0 %v3800
      %v4103 = vpop.f32.mrb[0].mxu0
      %v4104 = vadd.f32 0.0, %v4103
      %v4105 = vpop.f32.mrb[0].mxu0
      %v4106 = vpop.f32.mrb[0].mxu0
      %v4107 = vadd.f32 0.0, %v4106
      %v4108 = vpop.f32.mrb[0].mxu0
      %4109 = vdwg.mxu0
      %v4110 = vadd.f32 %v3556, %v3840
      %v4111 = vadd.f32 %v3557, %v3843
      %v4112 = vadd.f32 %v3558, %v3848
      %v4113 = vadd.f32 %v3559, %v3851
      %v4114 = vadd.f32 %v3560, %v3856
      %v4115 = vadd.f32 %v3561, %v3859
      %v4116 = vadd.f32 %v3562, %v3864
      %v4117 = vadd.f32 %v3563, %v3867
      %v4118 = vadd.f32 %v3564, %v3872
      %v4119 = vadd.f32 %v3565, %v3875
      %v4120 = vadd.f32 %v3566, %v3880
      %v4121 = vadd.f32 %v3567, %v3883
      %v4122 = vadd.f32 %v3568, %v3888
      %v4123 = vadd.f32 %v3569, %v3891
      %v4124 = vadd.f32 %v3570, %v3896
      %v4125 = vadd.f32 %v3571, %v3899
      %v4126 = vadd.f32 %v3572, %v3904
      %v4127 = vadd.f32 %v3573, %v3907
      %v4128 = vadd.f32 %v3574, %v3912
      %v4129 = vadd.f32 %v3575, %v3915
      %v4130 = vadd.f32 %v3576, %v3920
      %v4131 = vadd.f32 %v3577, %v3923
      %v4132 = vadd.f32 %v3578, %v3928
      %v4133 = vadd.f32 %v3579, %v3931
      %v4134 = vadd.f32 %v3580, %v3936
      %v4135 = vadd.f32 %v3581, %v3939
      %v4136 = vadd.f32 %v3582, %v3944
      %v4137 = vadd.f32 %v3583, %v3947
      %v4138 = vadd.f32 %v3584, %v3952
      %v4139 = vadd.f32 %v3585, %v3955
      %v4140 = vadd.f32 %v3586, %v3960
      %v4141 = vadd.f32 %v3587, %v3963
      %v4142 = vadd.f32 %v3588, %v3968
      %v4143 = vadd.f32 %v3589, %v3971
      %v4144 = vadd.f32 %v3590, %v3976
      %v4145 = vadd.f32 %v3591, %v3979
      %v4146 = vadd.f32 %v3592, %v3984
      %v4147 = vadd.f32 %v3593, %v3987
      %v4148 = vadd.f32 %v3594, %v3992
      %v4149 = vadd.f32 %v3595, %v3995
      %v4150 = vadd.f32 %v3596, %v4000
      %v4151 = vadd.f32 %v3597, %v4003
      %v4152 = vadd.f32 %v3598, %v4008
      %v4153 = vadd.f32 %v3599, %v4011
      %v4154 = vadd.f32 %v3600, %v4016
      %v4155 = vadd.f32 %v3601, %v4019
      %v4156 = vadd.f32 %v3602, %v4024
      %v4157 = vadd.f32 %v3603, %v4027
      %v4158 = vadd.f32 %v3604, %v4032
      %v4159 = vadd.f32 %v3605, %v4035
      %v4160 = vadd.f32 %v3606, %v4040
      %v4161 = vadd.f32 %v3607, %v4043
      %v4162 = vadd.f32 %v3608, %v4048
      %v4163 = vadd.f32 %v3609, %v4051
      %v4164 = vadd.f32 %v3610, %v4056
      %v4165 = vadd.f32 %v3611, %v4059
      %v4166 = vadd.f32 %v3612, %v4064
      %v4167 = vadd.f32 %v3613, %v4067
      %v4168 = vadd.f32 %v3614, %v4072
      %v4169 = vadd.f32 %v3615, %v4075
      %v4170 = vadd.f32 %v3616, %v4080
      %v4171 = vadd.f32 %v3617, %v4083
      %v4172 = vadd.f32 %v3618, %v4088
      %v4173 = vadd.f32 %v3619, %v4091
      %v4174 = vadd.f32 %v3620, %v4096
      %v4175 = vadd.f32 %v3621, %v4099
      %v4176 = vadd.f32 %v3622, %v4104
      %v4177 = vadd.f32 %v3623, %v4107
      %v4178 = vld [vmem:[%s164 + $0x20] sm:$0xc]
      %v4179 = vld [vmem:[%s164 + $0x24] sm:$0xf]
      %v4180 = vld [vmem:[%s164 + $0x28] sm:$0xf]
      %v4181 = vld [vmem:[%s164 + $0x2c] sm:$0xf]
      %v4182 = vld [vmem:[%s164 + $0x30] sm:$0xf]
      %v4183 = vld [vmem:[%s164 + $0x34] sm:$0xf]
      %v4184 = vld [vmem:[%s164 + $0x38] sm:$0xf]
      %v4185 = vld [vmem:[%s164 + $0x3c] sm:$0xf]
      %v4186 = vld [vmem:[%s164 + $0x40] sm:$0xf]
      %v4187 = vld [vmem:[%s164 + $0x44] sm:$0xf]
      %v4188 = vld [vmem:[%s164 + $0x48] sm:$0xf]
      %v4189 = vld [vmem:[%s164 + $0x4c] sm:$0xf]
      %v4190 = vld [vmem:[%s164 + $0x50] sm:$0xf]
      %v4191 = vld [vmem:[%s164 + $0x54] sm:$0xf]
      %v4192 = vld [vmem:[%s164 + $0x58] sm:$0xf]
      %v4193 = vld [vmem:[%s164 + $0x5c] sm:$0xf]
      %v4194 = vld [vmem:[%s164 + $0x60] sm:$0xf]
      %v4195 = vld [vmem:[%s164 + $0x64] sm:$0xf]
      %v4196 = vld [vmem:[%s164 + $0x68] sm:$0xf]
      %v4197 = vld [vmem:[%s164 + $0x6c] sm:$0xf]
      %v4198 = vld [vmem:[%s164 + $0x70] sm:$0xf]
      %v4199 = vld [vmem:[%s164 + $0x74] sm:$0xf]
      %v4200 = vld [vmem:[%s164 + $0x78] sm:$0xf]
      %v4201 = vld [vmem:[%s164 + $0x7c] sm:$0xf]
      %v4202 = vld [vmem:[%s164 + $0x80] sm:$0xf]
      %v4203 = vld [vmem:[%s164 + $0x84] sm:$0xf]
      %v4204 = vld [vmem:[%s164 + $0x88] sm:$0xf]
      %v4205 = vld [vmem:[%s164 + $0x8c] sm:$0xf]
      %v4206 = vld [vmem:[%s164 + $0x90] sm:$0xf]
      %v4207 = vld [vmem:[%s164 + $0x94] sm:$0xf]
      %v4208 = vld [vmem:[%s164 + $0x98] sm:$0xf]
      %v4209 = vld [vmem:[%s164 + $0x9c] sm:$0xf]
      %v4210 = vld [vmem:[%s164 + $0xa0] sm:$0xf]
      %v4211 = vld [vmem:[%s164 + $0xa4] sm:$0xf]
      %v4212 = vld [vmem:[%s164 + $0xa8] sm:$0xf]
      %v4213 = vld [vmem:[%s164 + $0xac] sm:$0xf]
      %v4214 = vld [vmem:[%s164 + $0xb0] sm:$0xf]
      %v4215 = vld [vmem:[%s164 + $0xb4] sm:$0xf]
      %v4216 = vld [vmem:[%s164 + $0xb8] sm:$0xf]
      %v4217 = vld [vmem:[%s164 + $0xbc] sm:$0xf]
      %v4218 = vld [vmem:[%s164 + $0xc0] sm:$0xf]
      %v4219 = vld [vmem:[%s164 + $0xc4] sm:$0xf]
      %v4220 = vld [vmem:[%s164 + $0xc8] sm:$0xf]
      %v4221 = vld [vmem:[%s164 + $0xcc] sm:$0xf]
      %v4222 = vld [vmem:[%s164 + $0xd0] sm:$0xf]
      %v4223 = vld [vmem:[%s164 + $0xd4] sm:$0xf]
      %v4224 = vld [vmem:[%s164 + $0xd8] sm:$0xf]
      %v4225 = vld [vmem:[%s164 + $0xdc] sm:$0xf]
      %v4226 = vld [vmem:[%s164 + $0xe0] sm:$0xf]
      %v4227 = vld [vmem:[%s164 + $0xe4] sm:$0xf]
      %v4228 = vld [vmem:[%s164 + $0xe8] sm:$0xf]
      %v4229 = vld [vmem:[%s164 + $0xec] sm:$0xf]
      %v4230 = vld [vmem:[%s164 + $0xf0] sm:$0xf]
      %v4231 = vld [vmem:[%s164 + $0xf4] sm:$0xf]
      %v4232 = vld [vmem:[%s164 + $0xf8] sm:$0xf]
      %v4233 = vld [vmem:[%s164 + $0xfc] sm:$0xf]
      %v4234 = vld [vmem:[%s164 + $0x100] sm:$0xf]
      %v4235 = vld [vmem:[%s164 + $0x104] sm:$0xf]
      %v4236 = vld [vmem:[%s164 + $0x108] sm:$0xf]
      %v4237 = vld [vmem:[%s164 + $0x10c] sm:$0xf]
      %v4238 = vld [vmem:[%s164 + $0x110] sm:$0xf]
      %v4239 = vld [vmem:[%s164 + $0x114] sm:$0xf]
      %v4240 = vld [vmem:[%s164 + $0x118] sm:$0xf]
      %v4241 = vld [vmem:[%s164 + $0x11c] sm:$0xf]
      %v4242 = vld [vmem:[%s164 + $0x120] sm:$0xf]
      %v4243 = vld [vmem:[%s164 + $0x124] sm:$0xf]
      %v4244 = vld [vmem:[%s164 + $0x128] sm:$0xf]
      %v4245 = vld [vmem:[%s164 + $0x12c] sm:$0xf]
      %v4246 = vld [vmem:[%s164 + $0x130] sm:$0x3]
      %s4247 = scalar_lea.vmem %s1, 24
      %v4248 = vld [vmem:[%s4247] sm:$0xf]
      %v4318 = vunpack.c.l.b16 %v4178
      %v4319 = vunpack.c.l.b16 %v4179
      %v4320 = vunpack.c.l.b16 %v4180
      %v4321 = vunpack.c.l.b16 %v4181
      %v4322 = vunpack.c.l.b16 %v4182
      %v4323 = vunpack.c.l.b16 %v4183
      %v4324 = vunpack.c.l.b16 %v4184
      %v4325 = vunpack.c.l.b16 %v4185
      %v4326 = vunpack.c.l.b16 %v4186
      %v4327 = vunpack.c.l.b16 %v4187
      %v4328 = vunpack.c.l.b16 %v4188
      %v4329 = vunpack.c.l.b16 %v4189
      %v4330 = vunpack.c.l.b16 %v4190
      %v4331 = vunpack.c.l.b16 %v4191
      %v4332 = vunpack.c.l.b16 %v4192
      %v4333 = vunpack.c.l.b16 %v4193
      %v4334 = vunpack.c.l.b16 %v4194
      %v4335 = vunpack.c.l.b16 %v4195
      %v4336 = vunpack.c.l.b16 %v4196
      %v4337 = vunpack.c.l.b16 %v4197
      %v4338 = vunpack.c.l.b16 %v4198
      %v4339 = vunpack.c.l.b16 %v4199
      %v4340 = vunpack.c.l.b16 %v4200
      %v4341 = vunpack.c.l.b16 %v4201
      %v4342 = vunpack.c.l.b16 %v4202
      %v4343 = vunpack.c.l.b16 %v4203
      %v4344 = vunpack.c.l.b16 %v4204
      %v4345 = vunpack.c.l.b16 %v4205
      %v4346 = vunpack.c.l.b16 %v4206
      %v4347 = vunpack.c.l.b16 %v4207
      %v4348 = vunpack.c.l.b16 %v4208
      %v4349 = vunpack.c.l.b16 %v4209
      %v4350 = vunpack.c.l.b16 %v4210
      %v4351 = vunpack.c.l.b16 %v4211
      %v4352 = vunpack.c.l.b16 %v4212
      %v4353 = vunpack.c.l.b16 %v4213
      %v4354 = vunpack.c.l.b16 %v4214
      %v4355 = vunpack.c.l.b16 %v4215
      %v4356 = vunpack.c.l.b16 %v4216
      %v4357 = vunpack.c.l.b16 %v4217
      %v4358 = vunpack.c.l.b16 %v4218
      %v4359 = vunpack.c.l.b16 %v4219
      %v4360 = vunpack.c.l.b16 %v4220
      %v4361 = vunpack.c.l.b16 %v4221
      %v4362 = vunpack.c.l.b16 %v4222
      %v4363 = vunpack.c.l.b16 %v4223
      %v4364 = vunpack.c.l.b16 %v4224
      %v4365 = vunpack.c.l.b16 %v4225
      %v4366 = vunpack.c.l.b16 %v4226
      %v4367 = vunpack.c.l.b16 %v4227
      %v4368 = vunpack.c.l.b16 %v4228
      %v4369 = vunpack.c.l.b16 %v4229
      %v4370 = vunpack.c.l.b16 %v4230
      %v4371 = vunpack.c.l.b16 %v4231
      %v4372 = vunpack.c.l.b16 %v4232
      %v4373 = vunpack.c.l.b16 %v4233
      %v4374 = vunpack.c.l.b16 %v4234
      %v4375 = vunpack.c.l.b16 %v4235
      %v4376 = vunpack.c.l.b16 %v4236
      %v4377 = vunpack.c.l.b16 %v4237
      %v4378 = vunpack.c.l.b16 %v4238
      %v4379 = vunpack.c.l.b16 %v4239
      %v4380 = vunpack.c.l.b16 %v4240
      %v4381 = vunpack.c.l.b16 %v4241
      %v4382 = vunpack.c.l.b16 %v4242
      %v4383 = vunpack.c.l.b16 %v4243
      %v4384 = vunpack.c.l.b16 %v4244
      %v4385 = vunpack.c.l.b16 %v4245
      %v4386 = vunpack.c.l.b16 %v4246
      %v4387 = vpack.c.b16 %v4319, %v4318
      %v4388 = vpack.c.b16 %v4321, %v4320
      %v4389 = vpack.c.b16 %v4323, %v4322
      %v4390 = vpack.c.b16 %v4325, %v4324
      %v4391 = vpack.c.b16 %v4327, %v4326
      %v4392 = vpack.c.b16 %v4329, %v4328
      %v4393 = vpack.c.b16 %v4331, %v4330
      %v4394 = vpack.c.b16 %v4333, %v4332
      %v4395 = vpack.c.b16 %v4335, %v4334
      %v4396 = vpack.c.b16 %v4337, %v4336
      %v4397 = vpack.c.b16 %v4339, %v4338
      %v4398 = vpack.c.b16 %v4341, %v4340
      %v4399 = vpack.c.b16 %v4343, %v4342
      %v4400 = vpack.c.b16 %v4345, %v4344
      %v4401 = vpack.c.b16 %v4347, %v4346
      %v4402 = vpack.c.b16 %v4349, %v4348
      %v4403 = vpack.c.b16 %v4351, %v4350
      %v4404 = vpack.c.b16 %v4353, %v4352
      %v4405 = vpack.c.b16 %v4355, %v4354
      %v4406 = vpack.c.b16 %v4357, %v4356
      %v4407 = vpack.c.b16 %v4359, %v4358
      %v4408 = vpack.c.b16 %v4361, %v4360
      %v4409 = vpack.c.b16 %v4363, %v4362
      %v4410 = vpack.c.b16 %v4365, %v4364
      %v4411 = vpack.c.b16 %v4367, %v4366
      %v4412 = vpack.c.b16 %v4369, %v4368
      %v4413 = vpack.c.b16 %v4371, %v4370
      %v4414 = vpack.c.b16 %v4373, %v4372
      %v4415 = vpack.c.b16 %v4375, %v4374
      %v4416 = vpack.c.b16 %v4377, %v4376
      %v4417 = vpack.c.b16 %v4379, %v4378
      %v4418 = vpack.c.b16 %v4381, %v4380
      %v4419 = vpack.c.b16 %v4383, %v4382
      %v4420 = vpack.c.b16 %v4385, %v4384
      %v4421 = vpack.c.b16 %v4386, %v4386
      %v4422 = vrot.slane %v4387, 2
      %v4423 = vrot.slane %v4388, 2
      %v4424 = vsel %vm3630, %v4422, %v4423
      %v4425 = vrot.slane %v4389, 2
      %v4426 = vsel %vm3630, %v4423, %v4425
      %v4427 = vrot.slane %v4390, 2
      %v4428 = vsel %vm3630, %v4425, %v4427
      %v4429 = vrot.slane %v4391, 2
      %v4430 = vsel %vm3630, %v4427, %v4429
      %v4431 = vrot.slane %v4392, 2
      %v4432 = vsel %vm3630, %v4429, %v4431
      %v4433 = vrot.slane %v4393, 2
      %v4434 = vsel %vm3630, %v4431, %v4433
      %v4435 = vrot.slane %v4394, 2
      %v4436 = vsel %vm3630, %v4433, %v4435
      %v4437 = vrot.slane %v4395, 2
      %v4438 = vsel %vm3630, %v4435, %v4437
      %v4439 = vrot.slane %v4396, 2
      %v4440 = vsel %vm3630, %v4437, %v4439
      %v4441 = vrot.slane %v4397, 2
      %v4442 = vsel %vm3630, %v4439, %v4441
      %v4443 = vrot.slane %v4398, 2
      %v4444 = vsel %vm3630, %v4441, %v4443
      %v4445 = vrot.slane %v4399, 2
      %v4446 = vsel %vm3630, %v4443, %v4445
      %v4447 = vrot.slane %v4400, 2
      %v4448 = vsel %vm3630, %v4445, %v4447
      %v4449 = vrot.slane %v4401, 2
      %v4450 = vsel %vm3630, %v4447, %v4449
      %v4451 = vrot.slane %v4402, 2
      %v4452 = vsel %vm3630, %v4449, %v4451
      %v4453 = vrot.slane %v4403, 2
      %v4454 = vsel %vm3630, %v4451, %v4453
      %v4455 = vrot.slane %v4404, 2
      %v4456 = vsel %vm3630, %v4453, %v4455
      %v4457 = vrot.slane %v4405, 2
      %v4458 = vsel %vm3630, %v4455, %v4457
      %v4459 = vrot.slane %v4406, 2
      %v4460 = vsel %vm3630, %v4457, %v4459
      %v4461 = vrot.slane %v4407, 2
      %v4462 = vsel %vm3630, %v4459, %v4461
      %v4463 = vrot.slane %v4408, 2
      %v4464 = vsel %vm3630, %v4461, %v4463
      %v4465 = vrot.slane %v4409, 2
      %v4466 = vsel %vm3630, %v4463, %v4465
      %v4467 = vrot.slane %v4410, 2
      %v4468 = vsel %vm3630, %v4465, %v4467
      %v4469 = vrot.slane %v4411, 2
      %v4470 = vsel %vm3630, %v4467, %v4469
      %v4471 = vrot.slane %v4412, 2
      %v4472 = vsel %vm3630, %v4469, %v4471
      %v4473 = vrot.slane %v4413, 2
      %v4474 = vsel %vm3630, %v4471, %v4473
      %v4475 = vrot.slane %v4414, 2
      %v4476 = vsel %vm3630, %v4473, %v4475
      %v4477 = vrot.slane %v4415, 2
      %v4478 = vsel %vm3630, %v4475, %v4477
      %v4479 = vrot.slane %v4416, 2
      %v4480 = vsel %vm3630, %v4477, %v4479
      %v4481 = vrot.slane %v4417, 2
      %v4482 = vsel %vm3630, %v4479, %v4481
      %v4483 = vrot.slane %v4418, 2
      %v4484 = vsel %vm3630, %v4481, %v4483
      %v4485 = vrot.slane %v4419, 2
      %v4486 = vsel %vm3630, %v4483, %v4485
      %v4487 = vrot.slane %v4420, 2
      %v4488 = vsel %vm3630, %v4485, %v4487
      %v4489 = vrot.slane %v4421, 2
      %v4490 = vsel %vm3630, %v4487, %v4489
      %v4492 = vsel %vm692, %v4424, 0
      %v4495 = vsel %vm692, %v4426, 0
      %v4498 = vsel %vm692, %v4428, 0
      %v4501 = vsel %vm692, %v4430, 0
      %v4504 = vsel %vm692, %v4432, 0
      %v4507 = vsel %vm692, %v4434, 0
      %v4510 = vsel %vm692, %v4436, 0
      %v4513 = vsel %vm692, %v4438, 0
      %v4516 = vsel %vm692, %v4440, 0
      %v4519 = vsel %vm692, %v4442, 0
      %v4522 = vsel %vm692, %v4444, 0
      %v4525 = vsel %vm692, %v4446, 0
      %v4528 = vsel %vm692, %v4448, 0
      %v4531 = vsel %vm692, %v4450, 0
      %v4534 = vsel %vm692, %v4452, 0
      %v4537 = vsel %vm692, %v4454, 0
      %v4540 = vsel %vm692, %v4456, 0
      %v4543 = vsel %vm692, %v4458, 0
      %v4546 = vsel %vm692, %v4460, 0
      %v4549 = vsel %vm692, %v4462, 0
      %v4552 = vsel %vm692, %v4464, 0
      %v4555 = vsel %vm692, %v4466, 0
      %v4558 = vsel %vm692, %v4468, 0
      %v4561 = vsel %vm692, %v4470, 0
      %v4564 = vsel %vm692, %v4472, 0
      %v4567 = vsel %vm692, %v4474, 0
      %v4570 = vsel %vm692, %v4476, 0
      %v4573 = vsel %vm692, %v4478, 0
      %v4576 = vsel %vm692, %v4480, 0
      %v4579 = vsel %vm692, %v4482, 0
      %v4582 = vsel %vm692, %v4484, 0
      %v4585 = vsel %vm692, %v4486, 0
      %v4588 = vsel %vm692, %v4488, 0
      %v4591 = vsel %vm692, %v4490, 0
      %v4594 = vsel %vm795, %v4248, 0
      %4596 = vmatprep.subr.bf16.mxu0 0
      %4597 = vmatpush1.bf16.msra.mxu0 %v4594
      %4598 = vmatprep.subr.bf16.mxu0 0
      %4599 = vmatpush1.bf16.msra.mxu0 0
      %4600 = vmatprep.subr.bf16.mxu0 0
      %4601 = vmatpush1.bf16.msra.mxu0 0
      %4602 = vmatprep.subr.bf16.mxu0 0
      %4603 = vmatpush1.bf16.msra.mxu0 0
      %4604 = vmatprep.subr.bf16.mxu0 0
      %4605 = vmatpush1.bf16.msra.mxu0 0
      %4606 = vmatprep.subr.bf16.mxu0 0
      %4607 = vmatpush1.bf16.msra.mxu0 0
      %4608 = vmatprep.subr.bf16.mxu0 0
      %4609 = vmatpush1.bf16.msra.mxu0 0
      %4610 = vmatprep.subr.bf16.mxu0 0
      %4611 = vmatpush1.bf16.msra.mxu0 0
      %4612 = vmatprep.subr.bf16.mxu0 0
      %4613 = vmatpush1.bf16.msra.mxu0 0
      %4614 = vmatprep.subr.bf16.mxu0 0
      %4615 = vmatpush1.bf16.msra.mxu0 0
      %4616 = vmatprep.subr.bf16.mxu0 0
      %4617 = vmatpush1.bf16.msra.mxu0 0
      %4618 = vmatprep.subr.bf16.mxu0 0
      %4619 = vmatpush1.bf16.msra.mxu0 0
      %4620 = vmatprep.subr.bf16.mxu0 0
      %4621 = vmatpush1.bf16.msra.mxu0 0
      %4622 = vmatprep.subr.bf16.mxu0 0
      %4623 = vmatpush1.bf16.msra.mxu0 0
      %4624 = vmatprep.subr.bf16.mxu0 0
      %4625 = vmatpush1.bf16.msra.mxu0 0
      %4626 = vmatprep.subr.bf16.mxu0 0
      %4627 = vmatpush1.bf16.msra.mxu0 0
      %4628 = vmatprep.mubr.bf16.mxu0 0
      %4629 = vmatmul.mubr.bf16.gmra.mrb[0].mxu0 %v4492
      %v4630 = vpop.f32.mrb[0].mxu0
      %v4631 = vadd.f32 0.0, %v4630
      %v4632 = vpop.f32.mrb[0].mxu0
      %v4633 = vpop.f32.mrb[0].mxu0
      %v4634 = vadd.f32 0.0, %v4633
      %v4635 = vpop.f32.mrb[0].mxu0
      %4636 = vmatprep.mubr.bf16.mxu0 0
      %4637 = vmatmul.mubr.bf16.gmra.mrb[0].mxu0 %v4495
      %v4638 = vpop.f32.mrb[0].mxu0
      %v4639 = vadd.f32 0.0, %v4638
      %v4640 = vpop.f32.mrb[0].mxu0
      %v4641 = vpop.f32.mrb[0].mxu0
      %v4642 = vadd.f32 0.0, %v4641
      %v4643 = vpop.f32.mrb[0].mxu0
      %4644 = vmatprep.mubr.bf16.mxu0 0
      %4645 = vmatmul.mubr.bf16.gmra.mrb[0].mxu0 %v4498
      %v4646 = vpop.f32.mrb[0].mxu0
      %v4647 = vadd.f32 0.0, %v4646
      %v4648 = vpop.f32.mrb[0].mxu0
      %v4649 = vpop.f32.mrb[0].mxu0
      %v4650 = vadd.f32 0.0, %v4649
      %v4651 = vpop.f32.mrb[0].mxu0
      %4652 = vmatprep.mubr.bf16.mxu0 0
      %4653 = vmatmul.mubr.bf16.gmra.mrb[0].mxu0 %v4501
      %v4654 = vpop.f32.mrb[0].mxu0
      %v4655 = vadd.f32 0.0, %v4654
      %v4656 = vpop.f32.mrb[0].mxu0
      %v4657 = vpop.f32.mrb[0].mxu0
      %v4658 = vadd.f32 0.0, %v4657
      %v4659 = vpop.f32.mrb[0].mxu0
      %4660 = vmatprep.mubr.bf16.mxu0 0
      %4661 = vmatmul.mubr.bf16.gmra.mrb[0].mxu0 %v4504
      %v4662 = vpop.f32.mrb[0].mxu0
      %v4663 = vadd.f32 0.0, %v4662
      %v4664 = vpop.f32.mrb[0].mxu0
      %v4665 = vpop.f32.mrb[0].mxu0
      %v4666 = vadd.f32 0.0, %v4665
      %v4667 = vpop.f32.mrb[0].mxu0
      %4668 = vmatprep.mubr.bf16.mxu0 0
      %4669 = vmatmul.mubr.bf16.gmra.mrb[0].mxu0 %v4507
      %v4670 = vpop.f32.mrb[0].mxu0
      %v4671 = vadd.f32 0.0, %v4670
      %v4672 = vpop.f32.mrb[0].mxu0
      %v4673 = vpop.f32.mrb[0].mxu0
      %v4674 = vadd.f32 0.0, %v4673
      %v4675 = vpop.f32.mrb[0].mxu0
      %4676 = vmatprep.mubr.bf16.mxu0 0
      %4677 = vmatmul.mubr.bf16.gmra.mrb[0].mxu0 %v4510
      %v4678 = vpop.f32.mrb[0].mxu0
      %v4679 = vadd.f32 0.0, %v4678
      %v4680 = vpop.f32.mrb[0].mxu0
      %v4681 = vpop.f32.mrb[0].mxu0
      %v4682 = vadd.f32 0.0, %v4681
      %v4683 = vpop.f32.mrb[0].mxu0
      %4684 = vmatprep.mubr.bf16.mxu0 0
      %4685 = vmatmul.mubr.bf16.gmra.mrb[0].mxu0 %v4513
      %v4686 = vpop.f32.mrb[0].mxu0
      %v4687 = vadd.f32 0.0, %v4686
      %v4688 = vpop.f32.mrb[0].mxu0
      %v4689 = vpop.f32.mrb[0].mxu0
      %v4690 = vadd.f32 0.0, %v4689
      %v4691 = vpop.f32.mrb[0].mxu0
      %4692 = vmatprep.mubr.bf16.mxu0 0
      %4693 = vmatmul.mubr.bf16.gmra.mrb[0].mxu0 %v4516
      %v4694 = vpop.f32.mrb[0].mxu0
      %v4695 = vadd.f32 0.0, %v4694
      %v4696 = vpop.f32.mrb[0].mxu0
      %v4697 = vpop.f32.mrb[0].mxu0
      %v4698 = vadd.f32 0.0, %v4697
      %v4699 = vpop.f32.mrb[0].mxu0
      %4700 = vmatprep.mubr.bf16.mxu0 0
      %4701 = vmatmul.mubr.bf16.gmra.mrb[0].mxu0 %v4519
      %v4702 = vpop.f32.mrb[0].mxu0
      %v4703 = vadd.f32 0.0, %v4702
      %v4704 = vpop.f32.mrb[0].mxu0
      %v4705 = vpop.f32.mrb[0].mxu0
      %v4706 = vadd.f32 0.0, %v4705
      %v4707 = vpop.f32.mrb[0].mxu0
      %4708 = vmatprep.mubr.bf16.mxu0 0
      %4709 = vmatmul.mubr.bf16.gmra.mrb[0].mxu0 %v4522
      %v4710 = vpop.f32.mrb[0].mxu0
      %v4711 = vadd.f32 0.0, %v4710
      %v4712 = vpop.f32.mrb[0].mxu0
      %v4713 = vpop.f32.mrb[0].mxu0
      %v4714 = vadd.f32 0.0, %v4713
      %v4715 = vpop.f32.mrb[0].mxu0
      %4716 = vmatprep.mubr.bf16.mxu0 0
      %4717 = vmatmul.mubr.bf16.gmra.mrb[0].mxu0 %v4525
      %v4718 = vpop.f32.mrb[0].mxu0
      %v4719 = vadd.f32 0.0, %v4718
      %v4720 = vpop.f32.mrb[0].mxu0
      %v4721 = vpop.f32.mrb[0].mxu0
      %v4722 = vadd.f32 0.0, %v4721
      %v4723 = vpop.f32.mrb[0].mxu0
      %4724 = vmatprep.mubr.bf16.mxu0 0
      %4725 = vmatmul.mubr.bf16.gmra.mrb[0].mxu0 %v4528
      %v4726 = vpop.f32.mrb[0].mxu0
      %v4727 = vadd.f32 0.0, %v4726
      %v4728 = vpop.f32.mrb[0].mxu0
      %v4729 = vpop.f32.mrb[0].mxu0
      %v4730 = vadd.f32 0.0, %v4729
      %v4731 = vpop.f32.mrb[0].mxu0
      %4732 = vmatprep.mubr.bf16.mxu0 0
      %4733 = vmatmul.mubr.bf16.gmra.mrb[0].mxu0 %v4531
      %v4734 = vpop.f32.mrb[0].mxu0
      %v4735 = vadd.f32 0.0, %v4734
      %v4736 = vpop.f32.mrb[0].mxu0
      %v4737 = vpop.f32.mrb[0].mxu0
      %v4738 = vadd.f32 0.0, %v4737
      %v4739 = vpop.f32.mrb[0].mxu0
      %4740 = vmatprep.mubr.bf16.mxu0 0
      %4741 = vmatmul.mubr.bf16.gmra.mrb[0].mxu0 %v4534
      %v4742 = vpop.f32.mrb[0].mxu0
      %v4743 = vadd.f32 0.0, %v4742
      %v4744 = vpop.f32.mrb[0].mxu0
      %v4745 = vpop.f32.mrb[0].mxu0
      %v4746 = vadd.f32 0.0, %v4745
      %v4747 = vpop.f32.mrb[0].mxu0
      %4748 = vmatprep.mubr.bf16.mxu0 0
      %4749 = vmatmul.mubr.bf16.gmra.mrb[0].mxu0 %v4537
      %v4750 = vpop.f32.mrb[0].mxu0
      %v4751 = vadd.f32 0.0, %v4750
      %v4752 = vpop.f32.mrb[0].mxu0
      %v4753 = vpop.f32.mrb[0].mxu0
      %v4754 = vadd.f32 0.0, %v4753
      %v4755 = vpop.f32.mrb[0].mxu0
      %4756 = vmatprep.mubr.bf16.mxu0 0
      %4757 = vmatmul.mubr.bf16.gmra.mrb[0].mxu0 %v4540
      %v4758 = vpop.f32.mrb[0].mxu0
      %v4759 = vadd.f32 0.0, %v4758
      %v4760 = vpop.f32.mrb[0].mxu0
      %v4761 = vpop.f32.mrb[0].mxu0
      %v4762 = vadd.f32 0.0, %v4761
      %v4763 = vpop.f32.mrb[0].mxu0
      %4764 = vmatprep.mubr.bf16.mxu0 0
      %4765 = vmatmul.mubr.bf16.gmra.mrb[0].mxu0 %v4543
      %v4766 = vpop.f32.mrb[0].mxu0
      %v4767 = vadd.f32 0.0, %v4766
      %v4768 = vpop.f32.mrb[0].mxu0
      %v4769 = vpop.f32.mrb[0].mxu0
      %v4770 = vadd.f32 0.0, %v4769
      %v4771 = vpop.f32.mrb[0].mxu0
      %4772 = vmatprep.mubr.bf16.mxu0 0
      %4773 = vmatmul.mubr.bf16.gmra.mrb[0].mxu0 %v4546
      %v4774 = vpop.f32.mrb[0].mxu0
      %v4775 = vadd.f32 0.0, %v4774
      %v4776 = vpop.f32.mrb[0].mxu0
      %v4777 = vpop.f32.mrb[0].mxu0
      %v4778 = vadd.f32 0.0, %v4777
      %v4779 = vpop.f32.mrb[0].mxu0
      %4780 = vmatprep.mubr.bf16.mxu0 0
      %4781 = vmatmul.mubr.bf16.gmra.mrb[0].mxu0 %v4549
      %v4782 = vpop.f32.mrb[0].mxu0
      %v4783 = vadd.f32 0.0, %v4782
      %v4784 = vpop.f32.mrb[0].mxu0
      %v4785 = vpop.f32.mrb[0].mxu0
      %v4786 = vadd.f32 0.0, %v4785
      %v4787 = vpop.f32.mrb[0].mxu0
      %4788 = vmatprep.mubr.bf16.mxu0 0
      %4789 = vmatmul.mubr.bf16.gmra.mrb[0].mxu0 %v4552
      %v4790 = vpop.f32.mrb[0].mxu0
      %v4791 = vadd.f32 0.0, %v4790
      %v4792 = vpop.f32.mrb[0].mxu0
      %v4793 = vpop.f32.mrb[0].mxu0
      %v4794 = vadd.f32 0.0, %v4793
      %v4795 = vpop.f32.mrb[0].mxu0
      %4796 = vmatprep.mubr.bf16.mxu0 0
      %4797 = vmatmul.mubr.bf16.gmra.mrb[0].mxu0 %v4555
      %v4798 = vpop.f32.mrb[0].mxu0
      %v4799 = vadd.f32 0.0, %v4798
      %v4800 = vpop.f32.mrb[0].mxu0
      %v4801 = vpop.f32.mrb[0].mxu0
      %v4802 = vadd.f32 0.0, %v4801
      %v4803 = vpop.f32.mrb[0].mxu0
      %4804 = vmatprep.mubr.bf16.mxu0 0
      %4805 = vmatmul.mubr.bf16.gmra.mrb[0].mxu0 %v4558
      %v4806 = vpop.f32.mrb[0].mxu0
      %v4807 = vadd.f32 0.0, %v4806
      %v4808 = vpop.f32.mrb[0].mxu0
      %v4809 = vpop.f32.mrb[0].mxu0
      %v4810 = vadd.f32 0.0, %v4809
      %v4811 = vpop.f32.mrb[0].mxu0
      %4812 = vmatprep.mubr.bf16.mxu0 0
      %4813 = vmatmul.mubr.bf16.gmra.mrb[0].mxu0 %v4561
      %v4814 = vpop.f32.mrb[0].mxu0
      %v4815 = vadd.f32 0.0, %v4814
      %v4816 = vpop.f32.mrb[0].mxu0
      %v4817 = vpop.f32.mrb[0].mxu0
      %v4818 = vadd.f32 0.0, %v4817
      %v4819 = vpop.f32.mrb[0].mxu0
      %4820 = vmatprep.mubr.bf16.mxu0 0
      %4821 = vmatmul.mubr.bf16.gmra.mrb[0].mxu0 %v4564
      %v4822 = vpop.f32.mrb[0].mxu0
      %v4823 = vadd.f32 0.0, %v4822
      %v4824 = vpop.f32.mrb[0].mxu0
      %v4825 = vpop.f32.mrb[0].mxu0
      %v4826 = vadd.f32 0.0, %v4825
      %v4827 = vpop.f32.mrb[0].mxu0
      %4828 = vmatprep.mubr.bf16.mxu0 0
      %4829 = vmatmul.mubr.bf16.gmra.mrb[0].mxu0 %v4567
      %v4830 = vpop.f32.mrb[0].mxu0
      %v4831 = vadd.f32 0.0, %v4830
      %v4832 = vpop.f32.mrb[0].mxu0
      %v4833 = vpop.f32.mrb[0].mxu0
      %v4834 = vadd.f32 0.0, %v4833
      %v4835 = vpop.f32.mrb[0].mxu0
      %4836 = vmatprep.mubr.bf16.mxu0 0
      %4837 = vmatmul.mubr.bf16.gmra.mrb[0].mxu0 %v4570
      %v4838 = vpop.f32.mrb[0].mxu0
      %v4839 = vadd.f32 0.0, %v4838
      %v4840 = vpop.f32.mrb[0].mxu0
      %v4841 = vpop.f32.mrb[0].mxu0
      %v4842 = vadd.f32 0.0, %v4841
      %v4843 = vpop.f32.mrb[0].mxu0
      %4844 = vmatprep.mubr.bf16.mxu0 0
      %4845 = vmatmul.mubr.bf16.gmra.mrb[0].mxu0 %v4573
      %v4846 = vpop.f32.mrb[0].mxu0
      %v4847 = vadd.f32 0.0, %v4846
      %v4848 = vpop.f32.mrb[0].mxu0
      %v4849 = vpop.f32.mrb[0].mxu0
      %v4850 = vadd.f32 0.0, %v4849
      %v4851 = vpop.f32.mrb[0].mxu0
      %4852 = vmatprep.mubr.bf16.mxu0 0
      %4853 = vmatmul.mubr.bf16.gmra.mrb[0].mxu0 %v4576
      %v4854 = vpop.f32.mrb[0].mxu0
      %v4855 = vadd.f32 0.0, %v4854
      %v4856 = vpop.f32.mrb[0].mxu0
      %v4857 = vpop.f32.mrb[0].mxu0
      %v4858 = vadd.f32 0.0, %v4857
      %v4859 = vpop.f32.mrb[0].mxu0
      %4860 = vmatprep.mubr.bf16.mxu0 0
      %4861 = vmatmul.mubr.bf16.gmra.mrb[0].mxu0 %v4579
      %v4862 = vpop.f32.mrb[0].mxu0
      %v4863 = vadd.f32 0.0, %v4862
      %v4864 = vpop.f32.mrb[0].mxu0
      %v4865 = vpop.f32.mrb[0].mxu0
      %v4866 = vadd.f32 0.0, %v4865
      %v4867 = vpop.f32.mrb[0].mxu0
      %4868 = vmatprep.mubr.bf16.mxu0 0
      %4869 = vmatmul.mubr.bf16.gmra.mrb[0].mxu0 %v4582
      %v4870 = vpop.f32.mrb[0].mxu0
      %v4871 = vadd.f32 0.0, %v4870
      %v4872 = vpop.f32.mrb[0].mxu0
      %v4873 = vpop.f32.mrb[0].mxu0
      %v4874 = vadd.f32 0.0, %v4873
      %v4875 = vpop.f32.mrb[0].mxu0
      %4876 = vmatprep.mubr.bf16.mxu0 0
      %4877 = vmatmul.mubr.bf16.gmra.mrb[0].mxu0 %v4585
      %v4878 = vpop.f32.mrb[0].mxu0
      %v4879 = vadd.f32 0.0, %v4878
      %v4880 = vpop.f32.mrb[0].mxu0
      %v4881 = vpop.f32.mrb[0].mxu0
      %v4882 = vadd.f32 0.0, %v4881
      %v4883 = vpop.f32.mrb[0].mxu0
      %4884 = vmatprep.mubr.bf16.mxu0 0
      %4885 = vmatmul.mubr.bf16.gmra.mrb[0].mxu0 %v4588
      %v4886 = vpop.f32.mrb[0].mxu0
      %v4887 = vadd.f32 0.0, %v4886
      %v4888 = vpop.f32.mrb[0].mxu0
      %v4889 = vpop.f32.mrb[0].mxu0
      %v4890 = vadd.f32 0.0, %v4889
      %v4891 = vpop.f32.mrb[0].mxu0
      %4892 = vmatprep.mubr.bf16.mxu0 0
      %4893 = vmatmul.mubr.bf16.gmra.mrb[0].mxu0 %v4591
      %v4894 = vpop.f32.mrb[0].mxu0
      %v4895 = vadd.f32 0.0, %v4894
      %v4896 = vpop.f32.mrb[0].mxu0
      %v4897 = vpop.f32.mrb[0].mxu0
      %v4898 = vadd.f32 0.0, %v4897
      %v4899 = vpop.f32.mrb[0].mxu0
      %4900 = vdwg.mxu0
      %v4901 = vadd.f32 %v4110, %v4631
      %v4902 = vadd.f32 %v4111, %v4634
      %v4903 = vadd.f32 %v4112, %v4639
      %v4904 = vadd.f32 %v4113, %v4642
      %v4905 = vadd.f32 %v4114, %v4647
      %v4906 = vadd.f32 %v4115, %v4650
      %v4907 = vadd.f32 %v4116, %v4655
      %v4908 = vadd.f32 %v4117, %v4658
      %v4909 = vadd.f32 %v4118, %v4663
      %v4910 = vadd.f32 %v4119, %v4666
      %v4911 = vadd.f32 %v4120, %v4671
      %v4912 = vadd.f32 %v4121, %v4674
      %v4913 = vadd.f32 %v4122, %v4679
      %v4914 = vadd.f32 %v4123, %v4682
      %v4915 = vadd.f32 %v4124, %v4687
      %v4916 = vadd.f32 %v4125, %v4690
      %v4917 = vadd.f32 %v4126, %v4695
      %v4918 = vadd.f32 %v4127, %v4698
      %v4919 = vadd.f32 %v4128, %v4703
      %v4920 = vadd.f32 %v4129, %v4706
      %v4921 = vadd.f32 %v4130, %v4711
      %v4922 = vadd.f32 %v4131, %v4714
      %v4923 = vadd.f32 %v4132, %v4719
      %v4924 = vadd.f32 %v4133, %v4722
      %v4925 = vadd.f32 %v4134, %v4727
      %v4926 = vadd.f32 %v4135, %v4730
      %v4927 = vadd.f32 %v4136, %v4735
      %v4928 = vadd.f32 %v4137, %v4738
      %v4929 = vadd.f32 %v4138, %v4743
      %v4930 = vadd.f32 %v4139, %v4746
      %v4931 = vadd.f32 %v4140, %v4751
      %v4932 = vadd.f32 %v4141, %v4754
      %v4933 = vadd.f32 %v4142, %v4759
      %v4934 = vadd.f32 %v4143, %v4762
      %v4935 = vadd.f32 %v4144, %v4767
      %v4936 = vadd.f32 %v4145, %v4770
      %v4937 = vadd.f32 %v4146, %v4775
      %v4938 = vadd.f32 %v4147, %v4778
      %v4939 = vadd.f32 %v4148, %v4783
      %v4940 = vadd.f32 %v4149, %v4786
      %v4941 = vadd.f32 %v4150, %v4791
      %v4942 = vadd.f32 %v4151, %v4794
      %v4943 = vadd.f32 %v4152, %v4799
      %v4944 = vadd.f32 %v4153, %v4802
      %v4945 = vadd.f32 %v4154, %v4807
      %v4946 = vadd.f32 %v4155, %v4810
      %v4947 = vadd.f32 %v4156, %v4815
      %v4948 = vadd.f32 %v4157, %v4818
      %v4949 = vadd.f32 %v4158, %v4823
      %v4950 = vadd.f32 %v4159, %v4826
      %v4951 = vadd.f32 %v4160, %v4831
      %v4952 = vadd.f32 %v4161, %v4834
      %v4953 = vadd.f32 %v4162, %v4839
      %v4954 = vadd.f32 %v4163, %v4842
      %v4955 = vadd.f32 %v4164, %v4847
      %v4956 = vadd.f32 %v4165, %v4850
      %v4957 = vadd.f32 %v4166, %v4855
      %v4958 = vadd.f32 %v4167, %v4858
      %v4959 = vadd.f32 %v4168, %v4863
      %v4960 = vadd.f32 %v4169, %v4866
      %v4961 = vadd.f32 %v4170, %v4871
      %v4962 = vadd.f32 %v4171, %v4874
      %v4963 = vadd.f32 %v4172, %v4879
      %v4964 = vadd.f32 %v4173, %v4882
      %v4965 = vadd.f32 %v4174, %v4887
      %v4966 = vadd.f32 %v4175, %v4890
      %v4967 = vadd.f32 %v4176, %v4895
      %v4968 = vadd.f32 %v4177, %v4898
      %v4969 = vld [vmem:[%s164 + $0x130] sm:$0x7]
      %s4970 = scalar_lea.vmem %s1, 28
      %v4971 = vld [vmem:[%s4970] sm:$0xf]
      %v4973 = vunpack.c.l.b16 %v4969
      %v4974 = vpack.c.b16 %v4973, %v4973
      %vm4975 = vsmask.f32 5376
      %v4977 = vshrl.u32 %v4387, 16
      %v4979 = vrot.slane %v4977, 2
      %v4980 = vshll.u32 %v4387, 16
      %v4982 = vrot.slane %v4980, 3
      %v4983 = vor.u32 %v4979, %v4982
      %v4985 = vshrl.u32 %v4388, 16
      %v4987 = vrot.slane %v4985, 2
      %v4988 = vshll.u32 %v4388, 16
      %v4990 = vrot.slane %v4988, 3
      %v4991 = vor.u32 %v4987, %v4990
      %v4992 = vsel %vm4975, %v4983, %v4991
      %v4994 = vshrl.u32 %v4389, 16
      %v4996 = vrot.slane %v4994, 2
      %v4997 = vshll.u32 %v4389, 16
      %v4999 = vrot.slane %v4997, 3
      %v5000 = vor.u32 %v4996, %v4999
      %v5001 = vsel %vm4975, %v4991, %v5000
      %v5003 = vshrl.u32 %v4390, 16
      %v5005 = vrot.slane %v5003, 2
      %v5006 = vshll.u32 %v4390, 16
      %v5008 = vrot.slane %v5006, 3
      %v5009 = vor.u32 %v5005, %v5008
      %v5010 = vsel %vm4975, %v5000, %v5009
      %v5012 = vshrl.u32 %v4391, 16
      %v5014 = vrot.slane %v5012, 2
      %v5015 = vshll.u32 %v4391, 16
      %v5017 = vrot.slane %v5015, 3
      %v5018 = vor.u32 %v5014, %v5017
      %v5019 = vsel %vm4975, %v5009, %v5018
      %v5021 = vshrl.u32 %v4392, 16
      %v5023 = vrot.slane %v5021, 2
      %v5024 = vshll.u32 %v4392, 16
      %v5026 = vrot.slane %v5024, 3
      %v5027 = vor.u32 %v5023, %v5026
      %v5028 = vsel %vm4975, %v5018, %v5027
      %v5030 = vshrl.u32 %v4393, 16
      %v5032 = vrot.slane %v5030, 2
      %v5033 = vshll.u32 %v4393, 16
      %v5035 = vrot.slane %v5033, 3
      %v5036 = vor.u32 %v5032, %v5035
      %v5037 = vsel %vm4975, %v5027, %v5036
      %v5039 = vshrl.u32 %v4394, 16
      %v5041 = vrot.slane %v5039, 2
      %v5042 = vshll.u32 %v4394, 16
      %v5044 = vrot.slane %v5042, 3
      %v5045 = vor.u32 %v5041, %v5044
      %v5046 = vsel %vm4975, %v5036, %v5045
      %v5048 = vshrl.u32 %v4395, 16
      %v5050 = vrot.slane %v5048, 2
      %v5051 = vshll.u32 %v4395, 16
      %v5053 = vrot.slane %v5051, 3
      %v5054 = vor.u32 %v5050, %v5053
      %v5055 = vsel %vm4975, %v5045, %v5054
      %v5057 = vshrl.u32 %v4396, 16
      %v5059 = vrot.slane %v5057, 2
      %v5060 = vshll.u32 %v4396, 16
      %v5062 = vrot.slane %v5060, 3
      %v5063 = vor.u32 %v5059, %v5062
      %v5064 = vsel %vm4975, %v5054, %v5063
      %v5066 = vshrl.u32 %v4397, 16
      %v5068 = vrot.slane %v5066, 2
      %v5069 = vshll.u32 %v4397, 16
      %v5071 = vrot.slane %v5069, 3
      %v5072 = vor.u32 %v5068, %v5071
      %v5073 = vsel %vm4975, %v5063, %v5072
      %v5075 = vshrl.u32 %v4398, 16
      %v5077 = vrot.slane %v5075, 2
      %v5078 = vshll.u32 %v4398, 16
      %v5080 = vrot.slane %v5078, 3
      %v5081 = vor.u32 %v5077, %v5080
      %v5082 = vsel %vm4975, %v5072, %v5081
      %v5084 = vshrl.u32 %v4399, 16
      %v5086 = vrot.slane %v5084, 2
      %v5087 = vshll.u32 %v4399, 16
      %v5089 = vrot.slane %v5087, 3
      %v5090 = vor.u32 %v5086, %v5089
      %v5091 = vsel %vm4975, %v5081, %v5090
      %v5093 = vshrl.u32 %v4400, 16
      %v5095 = vrot.slane %v5093, 2
      %v5096 = vshll.u32 %v4400, 16
      %v5098 = vrot.slane %v5096, 3
      %v5099 = vor.u32 %v5095, %v5098
      %v5100 = vsel %vm4975, %v5090, %v5099
      %v5102 = vshrl.u32 %v4401, 16
      %v5104 = vrot.slane %v5102, 2
      %v5105 = vshll.u32 %v4401, 16
      %v5107 = vrot.slane %v5105, 3
      %v5108 = vor.u32 %v5104, %v5107
      %v5109 = vsel %vm4975, %v5099, %v5108
      %v5111 = vshrl.u32 %v4402, 16
      %v5113 = vrot.slane %v5111, 2
      %v5114 = vshll.u32 %v4402, 16
      %v5116 = vrot.slane %v5114, 3
      %v5117 = vor.u32 %v5113, %v5116
      %v5118 = vsel %vm4975, %v5108, %v5117
      %v5120 = vshrl.u32 %v4403, 16
      %v5122 = vrot.slane %v5120, 2
      %v5123 = vshll.u32 %v4403, 16
      %v5125 = vrot.slane %v5123, 3
      %v5126 = vor.u32 %v5122, %v5125
      %v5127 = vsel %vm4975, %v5117, %v5126
      %v5129 = vshrl.u32 %v4404, 16
      %v5131 = vrot.slane %v5129, 2
      %v5132 = vshll.u32 %v4404, 16
      %v5134 = vrot.slane %v5132, 3
      %v5135 = vor.u32 %v5131, %v5134
      %v5136 = vsel %vm4975, %v5126, %v5135
      %v5138 = vshrl.u32 %v4405, 16
      %v5140 = vrot.slane %v5138, 2
      %v5141 = vshll.u32 %v4405, 16
      %v5143 = vrot.slane %v5141, 3
      %v5144 = vor.u32 %v5140, %v5143
      %v5145 = vsel %vm4975, %v5135, %v5144
      %v5147 = vshrl.u32 %v4406, 16
      %v5149 = vrot.slane %v5147, 2
      %v5150 = vshll.u32 %v4406, 16
      %v5152 = vrot.slane %v5150, 3
      %v5153 = vor.u32 %v5149, %v5152
      %v5154 = vsel %vm4975, %v5144, %v5153
      %v5156 = vshrl.u32 %v4407, 16
      %v5158 = vrot.slane %v5156, 2
      %v5159 = vshll.u32 %v4407, 16
      %v5161 = vrot.slane %v5159, 3
      %v5162 = vor.u32 %v5158, %v5161
      %v5163 = vsel %vm4975, %v5153, %v5162
      %v5165 = vshrl.u32 %v4408, 16
      %v5167 = vrot.slane %v5165, 2
      %v5168 = vshll.u32 %v4408, 16
      %v5170 = vrot.slane %v5168, 3
      %v5171 = vor.u32 %v5167, %v5170
      %v5172 = vsel %vm4975, %v5162, %v5171
      %v5174 = vshrl.u32 %v4409, 16
      %v5176 = vrot.slane %v5174, 2
      %v5177 = vshll.u32 %v4409, 16
      %v5179 = vrot.slane %v5177, 3
      %v5180 = vor.u32 %v5176, %v5179
      %v5181 = vsel %vm4975, %v5171, %v5180
      %v5183 = vshrl.u32 %v4410, 16
      %v5185 = vrot.slane %v5183, 2
      %v5186 = vshll.u32 %v4410, 16
      %v5188 = vrot.slane %v5186, 3
      %v5189 = vor.u32 %v5185, %v5188
      %v5190 = vsel %vm4975, %v5180, %v5189
      %v5192 = vshrl.u32 %v4411, 16
      %v5194 = vrot.slane %v5192, 2
      %v5195 = vshll.u32 %v4411, 16
      %v5197 = vrot.slane %v5195, 3
      %v5198 = vor.u32 %v5194, %v5197
      %v5199 = vsel %vm4975, %v5189, %v5198
      %v5201 = vshrl.u32 %v4412, 16
      %v5203 = vrot.slane %v5201, 2
      %v5204 = vshll.u32 %v4412, 16
      %v5206 = vrot.slane %v5204, 3
      %v5207 = vor.u32 %v5203, %v5206
      %v5208 = vsel %vm4975, %v5198, %v5207
      %v5210 = vshrl.u32 %v4413, 16
      %v5212 = vrot.slane %v5210, 2
      %v5213 = vshll.u32 %v4413, 16
      %v5215 = vrot.slane %v5213, 3
      %v5216 = vor.u32 %v5212, %v5215
      %v5217 = vsel %vm4975, %v5207, %v5216
      %v5219 = vshrl.u32 %v4414, 16
      %v5221 = vrot.slane %v5219, 2
      %v5222 = vshll.u32 %v4414, 16
      %v5224 = vrot.slane %v5222, 3
      %v5225 = vor.u32 %v5221, %v5224
      %v5226 = vsel %vm4975, %v5216, %v5225
      %v5228 = vshrl.u32 %v4415, 16
      %v5230 = vrot.slane %v5228, 2
      %v5231 = vshll.u32 %v4415, 16
      %v5233 = vrot.slane %v5231, 3
      %v5234 = vor.u32 %v5230, %v5233
      %v5235 = vsel %vm4975, %v5225, %v5234
      %v5237 = vshrl.u32 %v4416, 16
      %v5239 = vrot.slane %v5237, 2
      %v5240 = vshll.u32 %v4416, 16
      %v5242 = vrot.slane %v5240, 3
      %v5243 = vor.u32 %v5239, %v5242
      %v5244 = vsel %vm4975, %v5234, %v5243
      %v5246 = vshrl.u32 %v4417, 16
      %v5248 = vrot.slane %v5246, 2
      %v5249 = vshll.u32 %v4417, 16
      %v5251 = vrot.slane %v5249, 3
      %v5252 = vor.u32 %v5248, %v5251
      %v5253 = vsel %vm4975, %v5243, %v5252
      %v5255 = vshrl.u32 %v4418, 16
      %v5257 = vrot.slane %v5255, 2
      %v5258 = vshll.u32 %v4418, 16
      %v5260 = vrot.slane %v5258, 3
      %v5261 = vor.u32 %v5257, %v5260
      %v5262 = vsel %vm4975, %v5252, %v5261
      %v5264 = vshrl.u32 %v4419, 16
      %v5266 = vrot.slane %v5264, 2
      %v5267 = vshll.u32 %v4419, 16
      %v5269 = vrot.slane %v5267, 3
      %v5270 = vor.u32 %v5266, %v5269
      %v5271 = vsel %vm4975, %v5261, %v5270
      %v5273 = vshrl.u32 %v4420, 16
      %v5275 = vrot.slane %v5273, 2
      %v5276 = vshll.u32 %v4420, 16
      %v5278 = vrot.slane %v5276, 3
      %v5279 = vor.u32 %v5275, %v5278
      %v5280 = vsel %vm4975, %v5270, %v5279
      %v5282 = vshrl.u32 %v4974, 16
      %v5284 = vrot.slane %v5282, 2
      %v5285 = vshll.u32 %v4974, 16
      %v5287 = vrot.slane %v5285, 3
      %v5288 = vor.u32 %v5284, %v5287
      %v5289 = vsel %vm4975, %v5279, %v5288
      %v5291 = vsel %vm692, %v4992, 0
      %v5294 = vsel %vm692, %v5001, 0
      %v5297 = vsel %vm692, %v5010, 0
      %v5300 = vsel %vm692, %v5019, 0
      %v5303 = vsel %vm692, %v5028, 0
      %v5306 = vsel %vm692, %v5037, 0
      %v5309 = vsel %vm692, %v5046, 0
      %v5312 = vsel %vm692, %v5055, 0
      %v5315 = vsel %vm692, %v5064, 0
      %v5318 = vsel %vm692, %v5073, 0
      %v5321 = vsel %vm692, %v5082, 0
      %v5324 = vsel %vm692, %v5091, 0
      %v5327 = vsel %vm692, %v5100, 0
      %v5330 = vsel %vm692, %v5109, 0
      %v5333 = vsel %vm692, %v5118, 0
      %v5336 = vsel %vm692, %v5127, 0
      %v5339 = vsel %vm692, %v5136, 0
      %v5342 = vsel %vm692, %v5145, 0
      %v5345 = vsel %vm692, %v5154, 0
      %v5348 = vsel %vm692, %v5163, 0
      %v5351 = vsel %vm692, %v5172, 0
      %v5354 = vsel %vm692, %v5181, 0
      %v5357 = vsel %vm692, %v5190, 0
      %v5360 = vsel %vm692, %v5199, 0
      %v5363 = vsel %vm692, %v5208, 0
      %v5366 = vsel %vm692, %v5217, 0
      %v5369 = vsel %vm692, %v5226, 0
      %v5372 = vsel %vm692, %v5235, 0
      %v5375 = vsel %vm692, %v5244, 0
      %v5378 = vsel %vm692, %v5253, 0
      %v5381 = vsel %vm692, %v5262, 0
      %v5384 = vsel %vm692, %v5271, 0
      %v5387 = vsel %vm692, %v5280, 0
      %v5390 = vsel %vm692, %v5289, 0
      %v5393 = vsel %vm795, %v4971, 0
      %5395 = vmatprep.subr.bf16.mxu0 0
      %5396 = vmatpush1.bf16.msra.mxu0 %v5393
      %5397 = vmatprep.subr.bf16.mxu0 0
      %5398 = vmatpush1.bf16.msra.mxu0 0
      %5399 = vmatprep.subr.bf16.mxu0 0
      %5400 = vmatpush1.bf16.msra.mxu0 0
      %5401 = vmatprep.subr.bf16.mxu0 0
      %5402 = vmatpush1.bf16.msra.mxu0 0
      %5403 = vmatprep.subr.bf16.mxu0 0
      %5404 = vmatpush1.bf16.msra.mxu0 0
      %5405 = vmatprep.subr.bf16.mxu0 0
      %5406 = vmatpush1.bf16.msra.mxu0 0
      %5407 = vmatprep.subr.bf16.mxu0 0
      %5408 = vmatpush1.bf16.msra.mxu0 0
      %5409 = vmatprep.subr.bf16.mxu0 0
      %5410 = vmatpush1.bf16.msra.mxu0 0
      %5411 = vmatprep.subr.bf16.mxu0 0
      %5412 = vmatpush1.bf16.msra.mxu0 0
      %5413 = vmatprep.subr.bf16.mxu0 0
      %5414 = vmatpush1.bf16.msra.mxu0 0
      %5415 = vmatprep.subr.bf16.mxu0 0
      %5416 = vmatpush1.bf16.msra.mxu0 0
      %5417 = vmatprep.subr.bf16.mxu0 0
      %5418 = vmatpush1.bf16.msra.mxu0 0
      %5419 = vmatprep.subr.bf16.mxu0 0
      %5420 = vmatpush1.bf16.msra.mxu0 0
      %5421 = vmatprep.subr.bf16.mxu0 0
      %5422 = vmatpush1.bf16.msra.mxu0 0
      %5423 = vmatprep.subr.bf16.mxu0 0
      %5424 = vmatpush1.bf16.msra.mxu0 0
      %5425 = vmatprep.subr.bf16.mxu0 0
      %5426 = vmatpush1.bf16.msra.mxu0 0
      %5427 = vmatprep.mubr.bf16.mxu0 0
      %5428 = vmatmul.mubr.bf16.gmra.mrb[0].mxu0 %v5291
      %v5429 = vpop.f32.mrb[0].mxu0
      %v5430 = vadd.f32 0.0, %v5429
      %v5431 = vpop.f32.mrb[0].mxu0
      %v5432 = vpop.f32.mrb[0].mxu0
      %v5433 = vadd.f32 0.0, %v5432
      %v5434 = vpop.f32.mrb[0].mxu0
      %5435 = vmatprep.mubr.bf16.mxu0 0
      %5436 = vmatmul.mubr.bf16.gmra.mrb[0].mxu0 %v5294
      %v5437 = vpop.f32.mrb[0].mxu0
      %v5438 = vadd.f32 0.0, %v5437
      %v5439 = vpop.f32.mrb[0].mxu0
      %v5440 = vpop.f32.mrb[0].mxu0
      %v5441 = vadd.f32 0.0, %v5440
      %v5442 = vpop.f32.mrb[0].mxu0
      %5443 = vmatprep.mubr.bf16.mxu0 0
      %5444 = vmatmul.mubr.bf16.gmra.mrb[0].mxu0 %v5297
      %v5445 = vpop.f32.mrb[0].mxu0
      %v5446 = vadd.f32 0.0, %v5445
      %v5447 = vpop.f32.mrb[0].mxu0
      %v5448 = vpop.f32.mrb[0].mxu0
      %v5449 = vadd.f32 0.0, %v5448
      %v5450 = vpop.f32.mrb[0].mxu0
      %5451 = vmatprep.mubr.bf16.mxu0 0
      %5452 = vmatmul.mubr.bf16.gmra.mrb[0].mxu0 %v5300
      %v5453 = vpop.f32.mrb[0].mxu0
      %v5454 = vadd.f32 0.0, %v5453
      %v5455 = vpop.f32.mrb[0].mxu0
      %v5456 = vpop.f32.mrb[0].mxu0
      %v5457 = vadd.f32 0.0, %v5456
      %v5458 = vpop.f32.mrb[0].mxu0
      %5459 = vmatprep.mubr.bf16.mxu0 0
      %5460 = vmatmul.mubr.bf16.gmra.mrb[0].mxu0 %v5303
      %v5461 = vpop.f32.mrb[0].mxu0
      %v5462 = vadd.f32 0.0, %v5461
      %v5463 = vpop.f32.mrb[0].mxu0
      %v5464 = vpop.f32.mrb[0].mxu0
      %v5465 = vadd.f32 0.0, %v5464
      %v5466 = vpop.f32.mrb[0].mxu0
      %5467 = vmatprep.mubr.bf16.mxu0 0
      %5468 = vmatmul.mubr.bf16.gmra.mrb[0].mxu0 %v5306
      %v5469 = vpop.f32.mrb[0].mxu0
      %v5470 = vadd.f32 0.0, %v5469
      %v5471 = vpop.f32.mrb[0].mxu0
      %v5472 = vpop.f32.mrb[0].mxu0
      %v5473 = vadd.f32 0.0, %v5472
      %v5474 = vpop.f32.mrb[0].mxu0
      %5475 = vmatprep.mubr.bf16.mxu0 0
      %5476 = vmatmul.mubr.bf16.gmra.mrb[0].mxu0 %v5309
      %v5477 = vpop.f32.mrb[0].mxu0
      %v5478 = vadd.f32 0.0, %v5477
      %v5479 = vpop.f32.mrb[0].mxu0
      %v5480 = vpop.f32.mrb[0].mxu0
      %v5481 = vadd.f32 0.0, %v5480
      %v5482 = vpop.f32.mrb[0].mxu0
      %5483 = vmatprep.mubr.bf16.mxu0 0
      %5484 = vmatmul.mubr.bf16.gmra.mrb[0].mxu0 %v5312
      %v5485 = vpop.f32.mrb[0].mxu0
      %v5486 = vadd.f32 0.0, %v5485
      %v5487 = vpop.f32.mrb[0].mxu0
      %v5488 = vpop.f32.mrb[0].mxu0
      %v5489 = vadd.f32 0.0, %v5488
      %v5490 = vpop.f32.mrb[0].mxu0
      %5491 = vmatprep.mubr.bf16.mxu0 0
      %5492 = vmatmul.mubr.bf16.gmra.mrb[0].mxu0 %v5315
      %v5493 = vpop.f32.mrb[0].mxu0
      %v5494 = vadd.f32 0.0, %v5493
      %v5495 = vpop.f32.mrb[0].mxu0
      %v5496 = vpop.f32.mrb[0].mxu0
      %v5497 = vadd.f32 0.0, %v5496
      %v5498 = vpop.f32.mrb[0].mxu0
      %5499 = vmatprep.mubr.bf16.mxu0 0
      %5500 = vmatmul.mubr.bf16.gmra.mrb[0].mxu0 %v5318
      %v5501 = vpop.f32.mrb[0].mxu0
      %v5502 = vadd.f32 0.0, %v5501
      %v5503 = vpop.f32.mrb[0].mxu0
      %v5504 = vpop.f32.mrb[0].mxu0
      %v5505 = vadd.f32 0.0, %v5504
      %v5506 = vpop.f32.mrb[0].mxu0
      %5507 = vmatprep.mubr.bf16.mxu0 0
      %5508 = vmatmul.mubr.bf16.gmra.mrb[0].mxu0 %v5321
      %v5509 = vpop.f32.mrb[0].mxu0
      %v5510 = vadd.f32 0.0, %v5509
      %v5511 = vpop.f32.mrb[0].mxu0
      %v5512 = vpop.f32.mrb[0].mxu0
      %v5513 = vadd.f32 0.0, %v5512
      %v5514 = vpop.f32.mrb[0].mxu0
      %5515 = vmatprep.mubr.bf16.mxu0 0
      %5516 = vmatmul.mubr.bf16.gmra.mrb[0].mxu0 %v5324
      %v5517 = vpop.f32.mrb[0].mxu0
      %v5518 = vadd.f32 0.0, %v5517
      %v5519 = vpop.f32.mrb[0].mxu0
      %v5520 = vpop.f32.mrb[0].mxu0
      %v5521 = vadd.f32 0.0, %v5520
      %v5522 = vpop.f32.mrb[0].mxu0
      %5523 = vmatprep.mubr.bf16.mxu0 0
      %5524 = vmatmul.mubr.bf16.gmra.mrb[0].mxu0 %v5327
      %v5525 = vpop.f32.mrb[0].mxu0
      %v5526 = vadd.f32 0.0, %v5525
      %v5527 = vpop.f32.mrb[0].mxu0
      %v5528 = vpop.f32.mrb[0].mxu0
      %v5529 = vadd.f32 0.0, %v5528
      %v5530 = vpop.f32.mrb[0].mxu0
      %5531 = vmatprep.mubr.bf16.mxu0 0
      %5532 = vmatmul.mubr.bf16.gmra.mrb[0].mxu0 %v5330
      %v5533 = vpop.f32.mrb[0].mxu0
      %v5534 = vadd.f32 0.0, %v5533
      %v5535 = vpop.f32.mrb[0].mxu0
      %v5536 = vpop.f32.mrb[0].mxu0
      %v5537 = vadd.f32 0.0, %v5536
      %v5538 = vpop.f32.mrb[0].mxu0
      %5539 = vmatprep.mubr.bf16.mxu0 0
      %5540 = vmatmul.mubr.bf16.gmra.mrb[0].mxu0 %v5333
      %v5541 = vpop.f32.mrb[0].mxu0
      %v5542 = vadd.f32 0.0, %v5541
      %v5543 = vpop.f32.mrb[0].mxu0
      %v5544 = vpop.f32.mrb[0].mxu0
      %v5545 = vadd.f32 0.0, %v5544
      %v5546 = vpop.f32.mrb[0].mxu0
      %5547 = vmatprep.mubr.bf16.mxu0 0
      %5548 = vmatmul.mubr.bf16.gmra.mrb[0].mxu0 %v5336
      %v5549 = vpop.f32.mrb[0].mxu0
      %v5550 = vadd.f32 0.0, %v5549
      %v5551 = vpop.f32.mrb[0].mxu0
      %v5552 = vpop.f32.mrb[0].mxu0
      %v5553 = vadd.f32 0.0, %v5552
      %v5554 = vpop.f32.mrb[0].mxu0
      %5555 = vmatprep.mubr.bf16.mxu0 0
      %5556 = vmatmul.mubr.bf16.gmra.mrb[0].mxu0 %v5339
      %v5557 = vpop.f32.mrb[0].mxu0
      %v5558 = vadd.f32 0.0, %v5557
      %v5559 = vpop.f32.mrb[0].mxu0
      %v5560 = vpop.f32.mrb[0].mxu0
      %v5561 = vadd.f32 0.0, %v5560
      %v5562 = vpop.f32.mrb[0].mxu0
      %5563 = vmatprep.mubr.bf16.mxu0 0
      %5564 = vmatmul.mubr.bf16.gmra.mrb[0].mxu0 %v5342
      %v5565 = vpop.f32.mrb[0].mxu0
      %v5566 = vadd.f32 0.0, %v5565
      %v5567 = vpop.f32.mrb[0].mxu0
      %v5568 = vpop.f32.mrb[0].mxu0
      %v5569 = vadd.f32 0.0, %v5568
      %v5570 = vpop.f32.mrb[0].mxu0
      %5571 = vmatprep.mubr.bf16.mxu0 0
      %5572 = vmatmul.mubr.bf16.gmra.mrb[0].mxu0 %v5345
      %v5573 = vpop.f32.mrb[0].mxu0
      %v5574 = vadd.f32 0.0, %v5573
      %v5575 = vpop.f32.mrb[0].mxu0
      %v5576 = vpop.f32.mrb[0].mxu0
      %v5577 = vadd.f32 0.0, %v5576
      %v5578 = vpop.f32.mrb[0].mxu0
      %5579 = vmatprep.mubr.bf16.mxu0 0
      %5580 = vmatmul.mubr.bf16.gmra.mrb[0].mxu0 %v5348
      %v5581 = vpop.f32.mrb[0].mxu0
      %v5582 = vadd.f32 0.0, %v5581
      %v5583 = vpop.f32.mrb[0].mxu0
      %v5584 = vpop.f32.mrb[0].mxu0
      %v5585 = vadd.f32 0.0, %v5584
      %v5586 = vpop.f32.mrb[0].mxu0
      %5587 = vmatprep.mubr.bf16.mxu0 0
      %5588 = vmatmul.mubr.bf16.gmra.mrb[0].mxu0 %v5351
      %v5589 = vpop.f32.mrb[0].mxu0
      %v5590 = vadd.f32 0.0, %v5589
      %v5591 = vpop.f32.mrb[0].mxu0
      %v5592 = vpop.f32.mrb[0].mxu0
      %v5593 = vadd.f32 0.0, %v5592
      %v5594 = vpop.f32.mrb[0].mxu0
      %5595 = vmatprep.mubr.bf16.mxu0 0
      %5596 = vmatmul.mubr.bf16.gmra.mrb[0].mxu0 %v5354
      %v5597 = vpop.f32.mrb[0].mxu0
      %v5598 = vadd.f32 0.0, %v5597
      %v5599 = vpop.f32.mrb[0].mxu0
      %v5600 = vpop.f32.mrb[0].mxu0
      %v5601 = vadd.f32 0.0, %v5600
      %v5602 = vpop.f32.mrb[0].mxu0
      %5603 = vmatprep.mubr.bf16.mxu0 0
      %5604 = vmatmul.mubr.bf16.gmra.mrb[0].mxu0 %v5357
      %v5605 = vpop.f32.mrb[0].mxu0
      %v5606 = vadd.f32 0.0, %v5605
      %v5607 = vpop.f32.mrb[0].mxu0
      %v5608 = vpop.f32.mrb[0].mxu0
      %v5609 = vadd.f32 0.0, %v5608
      %v5610 = vpop.f32.mrb[0].mxu0
      %5611 = vmatprep.mubr.bf16.mxu0 0
      %5612 = vmatmul.mubr.bf16.gmra.mrb[0].mxu0 %v5360
      %v5613 = vpop.f32.mrb[0].mxu0
      %v5614 = vadd.f32 0.0, %v5613
      %v5615 = vpop.f32.mrb[0].mxu0
      %v5616 = vpop.f32.mrb[0].mxu0
      %v5617 = vadd.f32 0.0, %v5616
      %v5618 = vpop.f32.mrb[0].mxu0
      %5619 = vmatprep.mubr.bf16.mxu0 0
      %5620 = vmatmul.mubr.bf16.gmra.mrb[0].mxu0 %v5363
      %v5621 = vpop.f32.mrb[0].mxu0
      %v5622 = vadd.f32 0.0, %v5621
      %v5623 = vpop.f32.mrb[0].mxu0
      %v5624 = vpop.f32.mrb[0].mxu0
      %v5625 = vadd.f32 0.0, %v5624
      %v5626 = vpop.f32.mrb[0].mxu0
      %5627 = vmatprep.mubr.bf16.mxu0 0
      %5628 = vmatmul.mubr.bf16.gmra.mrb[0].mxu0 %v5366
      %v5629 = vpop.f32.mrb[0].mxu0
      %v5630 = vadd.f32 0.0, %v5629
      %v5631 = vpop.f32.mrb[0].mxu0
      %v5632 = vpop.f32.mrb[0].mxu0
      %v5633 = vadd.f32 0.0, %v5632
      %v5634 = vpop.f32.mrb[0].mxu0
      %5635 = vmatprep.mubr.bf16.mxu0 0
      %5636 = vmatmul.mubr.bf16.gmra.mrb[0].mxu0 %v5369
      %v5637 = vpop.f32.mrb[0].mxu0
      %v5638 = vadd.f32 0.0, %v5637
      %v5639 = vpop.f32.mrb[0].mxu0
      %v5640 = vpop.f32.mrb[0].mxu0
      %v5641 = vadd.f32 0.0, %v5640
      %v5642 = vpop.f32.mrb[0].mxu0
      %5643 = vmatprep.mubr.bf16.mxu0 0
      %5644 = vmatmul.mubr.bf16.gmra.mrb[0].mxu0 %v5372
      %v5645 = vpop.f32.mrb[0].mxu0
      %v5646 = vadd.f32 0.0, %v5645
      %v5647 = vpop.f32.mrb[0].mxu0
      %v5648 = vpop.f32.mrb[0].mxu0
      %v5649 = vadd.f32 0.0, %v5648
      %v5650 = vpop.f32.mrb[0].mxu0
      %5651 = vmatprep.mubr.bf16.mxu0 0
      %5652 = vmatmul.mubr.bf16.gmra.mrb[0].mxu0 %v5375
      %v5653 = vpop.f32.mrb[0].mxu0
      %v5654 = vadd.f32 0.0, %v5653
      %v5655 = vpop.f32.mrb[0].mxu0
      %v5656 = vpop.f32.mrb[0].mxu0
      %v5657 = vadd.f32 0.0, %v5656
      %v5658 = vpop.f32.mrb[0].mxu0
      %5659 = vmatprep.mubr.bf16.mxu0 0
      %5660 = vmatmul.mubr.bf16.gmra.mrb[0].mxu0 %v5378
      %v5661 = vpop.f32.mrb[0].mxu0
      %v5662 = vadd.f32 0.0, %v5661
      %v5663 = vpop.f32.mrb[0].mxu0
      %v5664 = vpop.f32.mrb[0].mxu0
      %v5665 = vadd.f32 0.0, %v5664
      %v5666 = vpop.f32.mrb[0].mxu0
      %5667 = vmatprep.mubr.bf16.mxu0 0
      %5668 = vmatmul.mubr.bf16.gmra.mrb[0].mxu0 %v5381
      %v5669 = vpop.f32.mrb[0].mxu0
      %v5670 = vadd.f32 0.0, %v5669
      %v5671 = vpop.f32.mrb[0].mxu0
      %v5672 = vpop.f32.mrb[0].mxu0
      %v5673 = vadd.f32 0.0, %v5672
      %v5674 = vpop.f32.mrb[0].mxu0
      %5675 = vmatprep.mubr.bf16.mxu0 0
      %5676 = vmatmul.mubr.bf16.gmra.mrb[0].mxu0 %v5384
      %v5677 = vpop.f32.mrb[0].mxu0
      %v5678 = vadd.f32 0.0, %v5677
      %v5679 = vpop.f32.mrb[0].mxu0
      %v5680 = vpop.f32.mrb[0].mxu0
      %v5681 = vadd.f32 0.0, %v5680
      %v5682 = vpop.f32.mrb[0].mxu0
      %5683 = vmatprep.mubr.bf16.mxu0 0
      %5684 = vmatmul.mubr.bf16.gmra.mrb[0].mxu0 %v5387
      %v5685 = vpop.f32.mrb[0].mxu0
      %v5686 = vadd.f32 0.0, %v5685
      %v5687 = vpop.f32.mrb[0].mxu0
      %v5688 = vpop.f32.mrb[0].mxu0
      %v5689 = vadd.f32 0.0, %v5688
      %v5690 = vpop.f32.mrb[0].mxu0
      %5691 = vmatprep.mubr.bf16.mxu0 0
      %5692 = vmatmul.mubr.bf16.gmra.mrb[0].mxu0 %v5390
      %v5693 = vpop.f32.mrb[0].mxu0
      %v5694 = vadd.f32 0.0, %v5693
      %v5695 = vpop.f32.mrb[0].mxu0
      %v5696 = vpop.f32.mrb[0].mxu0
      %v5697 = vadd.f32 0.0, %v5696
      %v5698 = vpop.f32.mrb[0].mxu0
      %5699 = vdwg.mxu0
      %v5700 = vadd.f32 %v4901, %v5430
      %v5701 = vadd.f32 %v4902, %v5433
      %v5702 = vadd.f32 %v4903, %v5438
      %v5703 = vadd.f32 %v4904, %v5441
      %v5704 = vadd.f32 %v4905, %v5446
      %v5705 = vadd.f32 %v4906, %v5449
      %v5706 = vadd.f32 %v4907, %v5454
      %v5707 = vadd.f32 %v4908, %v5457
      %v5708 = vadd.f32 %v4909, %v5462
      %v5709 = vadd.f32 %v4910, %v5465
      %v5710 = vadd.f32 %v4911, %v5470
      %v5711 = vadd.f32 %v4912, %v5473
      %v5712 = vadd.f32 %v4913, %v5478
      %v5713 = vadd.f32 %v4914, %v5481
      %v5714 = vadd.f32 %v4915, %v5486
      %v5715 = vadd.f32 %v4916, %v5489
      %v5716 = vadd.f32 %v4917, %v5494
      %v5717 = vadd.f32 %v4918, %v5497
      %v5718 = vadd.f32 %v4919, %v5502
      %v5719 = vadd.f32 %v4920, %v5505
      %v5720 = vadd.f32 %v4921, %v5510
      %v5721 = vadd.f32 %v4922, %v5513
      %v5722 = vadd.f32 %v4923, %v5518
      %v5723 = vadd.f32 %v4924, %v5521
      %v5724 = vadd.f32 %v4925, %v5526
      %v5725 = vadd.f32 %v4926, %v5529
      %v5726 = vadd.f32 %v4927, %v5534
      %v5727 = vadd.f32 %v4928, %v5537
      %v5728 = vadd.f32 %v4929, %v5542
      %v5729 = vadd.f32 %v4930, %v5545
      %v5730 = vadd.f32 %v4931, %v5550
      %v5731 = vadd.f32 %v4932, %v5553
      %v5732 = vadd.f32 %v4933, %v5558
      %v5733 = vadd.f32 %v4934, %v5561
      %v5734 = vadd.f32 %v4935, %v5566
      %v5735 = vadd.f32 %v4936, %v5569
      %v5736 = vadd.f32 %v4937, %v5574
      %v5737 = vadd.f32 %v4938, %v5577
      %v5738 = vadd.f32 %v4939, %v5582
      %v5739 = vadd.f32 %v4940, %v5585
      %v5740 = vadd.f32 %v4941, %v5590
      %v5741 = vadd.f32 %v4942, %v5593
      %v5742 = vadd.f32 %v4943, %v5598
      %v5743 = vadd.f32 %v4944, %v5601
      %v5744 = vadd.f32 %v4945, %v5606
      %v5745 = vadd.f32 %v4946, %v5609
      %v5746 = vadd.f32 %v4947, %v5614
      %v5747 = vadd.f32 %v4948, %v5617
      %v5748 = vadd.f32 %v4949, %v5622
      %v5749 = vadd.f32 %v4950, %v5625
      %v5750 = vadd.f32 %v4951, %v5630
      %v5751 = vadd.f32 %v4952, %v5633
      %v5752 = vadd.f32 %v4953, %v5638
      %v5753 = vadd.f32 %v4954, %v5641
      %v5754 = vadd.f32 %v4955, %v5646
      %v5755 = vadd.f32 %v4956, %v5649
      %v5756 = vadd.f32 %v4957, %v5654
      %v5757 = vadd.f32 %v4958, %v5657
      %v5758 = vadd.f32 %v4959, %v5662
      %v5759 = vadd.f32 %v4960, %v5665
      %v5760 = vadd.f32 %v4961, %v5670
      %v5761 = vadd.f32 %v4962, %v5673
      %v5762 = vadd.f32 %v4963, %v5678
      %v5763 = vadd.f32 %v4964, %v5681
      %v5764 = vadd.f32 %v4965, %v5686
      %v5765 = vadd.f32 %v4966, %v5689
      %v5766 = vadd.f32 %v4967, %v5694
      %v5767 = vadd.f32 %v4968, %v5697
      %v5768 = vld [vmem:[%s164 + $0x20] sm:$0x8]
      %s5769 = scalar_lea.vmem %s1, 32
      %v5770 = vld [vmem:[%s5769] sm:$0xf]
      %v5772 = vunpack.c.l.b16 %v5768
      %v5773 = vpack.c.b16 %v4319, %v5772
      %vm5774 = vcmask 1044480
      %v5775 = vrot.slane %v5773, 3
      %v5776 = vrot.slane %v4388, 3
      %v5777 = vsel %vm5774, %v5775, %v5776
      %v5778 = vrot.slane %v4389, 3
      %v5779 = vsel %vm5774, %v5776, %v5778
      %v5780 = vrot.slane %v4390, 3
      %v5781 = vsel %vm5774, %v5778, %v5780
      %v5782 = vrot.slane %v4391, 3
      %v5783 = vsel %vm5774, %v5780, %v5782
      %v5784 = vrot.slane %v4392, 3
      %v5785 = vsel %vm5774, %v5782, %v5784
      %v5786 = vrot.slane %v4393, 3
      %v5787 = vsel %vm5774, %v5784, %v5786
      %v5788 = vrot.slane %v4394, 3
      %v5789 = vsel %vm5774, %v5786, %v5788
      %v5790 = vrot.slane %v4395, 3
      %v5791 = vsel %vm5774, %v5788, %v5790
      %v5792 = vrot.slane %v4396, 3
      %v5793 = vsel %vm5774, %v5790, %v5792
      %v5794 = vrot.slane %v4397, 3
      %v5795 = vsel %vm5774, %v5792, %v5794
      %v5796 = vrot.slane %v4398, 3
      %v5797 = vsel %vm5774, %v5794, %v5796
      %v5798 = vrot.slane %v4399, 3
      %v5799 = vsel %vm5774, %v5796, %v5798
      %v5800 = vrot.slane %v4400, 3
      %v5801 = vsel %vm5774, %v5798, %v5800
      %v5802 = vrot.slane %v4401, 3
      %v5803 = vsel %vm5774, %v5800, %v5802
      %v5804 = vrot.slane %v4402, 3
      %v5805 = vsel %vm5774, %v5802, %v5804
      %v5806 = vrot.slane %v4403, 3
      %v5807 = vsel %vm5774, %v5804, %v5806
      %v5808 = vrot.slane %v4404, 3
      %v5809 = vsel %vm5774, %v5806, %v5808
      %v5810 = vrot.slane %v4405, 3
      %v5811 = vsel %vm5774, %v5808, %v5810
      %v5812 = vrot.slane %v4406, 3
      %v5813 = vsel %vm5774, %v5810, %v5812
      %v5814 = vrot.slane %v4407, 3
      %v5815 = vsel %vm5774, %v5812, %v5814
      %v5816 = vrot.slane %v4408, 3
      %v5817 = vsel %vm5774, %v5814, %v5816
      %v5818 = vrot.slane %v4409, 3
      %v5819 = vsel %vm5774, %v5816, %v5818
      %v5820 = vrot.slane %v4410, 3
      %v5821 = vsel %vm5774, %v5818, %v5820
      %v5822 = vrot.slane %v4411, 3
      %v5823 = vsel %vm5774, %v5820, %v5822
      %v5824 = vrot.slane %v4412, 3
      %v5825 = vsel %vm5774, %v5822, %v5824
      %v5826 = vrot.slane %v4413, 3
      %v5827 = vsel %vm5774, %v5824, %v5826
      %v5828 = vrot.slane %v4414, 3
      %v5829 = vsel %vm5774, %v5826, %v5828
      %v5830 = vrot.slane %v4415, 3
      %v5831 = vsel %vm5774, %v5828, %v5830
      %v5832 = vrot.slane %v4416, 3
      %v5833 = vsel %vm5774, %v5830, %v5832
      %v5834 = vrot.slane %v4417, 3
      %v5835 = vsel %vm5774, %v5832, %v5834
      %v5836 = vrot.slane %v4418, 3
      %v5837 = vsel %vm5774, %v5834, %v5836
      %v5838 = vrot.slane %v4419, 3
      %v5839 = vsel %vm5774, %v5836, %v5838
      %v5840 = vrot.slane %v4420, 3
      %v5841 = vsel %vm5774, %v5838, %v5840
      %v5842 = vrot.slane %v4974, 3
      %v5843 = vsel %vm5774, %v5840, %v5842
      %v5845 = vsel %vm692, %v5777, 0
      %v5848 = vsel %vm692, %v5779, 0
      %v5851 = vsel %vm692, %v5781, 0
      %v5854 = vsel %vm692, %v5783, 0
      %v5857 = vsel %vm692, %v5785, 0
      %v5860 = vsel %vm692, %v5787, 0
      %v5863 = vsel %vm692, %v5789, 0
      %v5866 = vsel %vm692, %v5791, 0
      %v5869 = vsel %vm692, %v5793, 0
      %v5872 = vsel %vm692, %v5795, 0
      %v5875 = vsel %vm692, %v5797, 0
      %v5878 = vsel %vm692, %v5799, 0
      %v5881 = vsel %vm692, %v5801, 0
      %v5884 = vsel %vm692, %v5803, 0
      %v5887 = vsel %vm692, %v5805, 0
      %v5890 = vsel %vm692, %v5807, 0
      %v5893 = vsel %vm692, %v5809, 0
      %v5896 = vsel %vm692, %v5811, 0
      %v5899 = vsel %vm692, %v5813, 0
      %v5902 = vsel %vm692, %v5815, 0
      %v5905 = vsel %vm692, %v5817, 0
      %v5908 = vsel %vm692, %v5819, 0
      %v5911 = vsel %vm692, %v5821, 0
      %v5914 = vsel %vm692, %v5823, 0
      %v5917 = vsel %vm692, %v5825, 0
      %v5920 = vsel %vm692, %v5827, 0
      %v5923 = vsel %vm692, %v5829, 0
      %v5926 = vsel %vm692, %v5831, 0
      %v5929 = vsel %vm692, %v5833, 0
      %v5932 = vsel %vm692, %v5835, 0
      %v5935 = vsel %vm692, %v5837, 0
      %v5938 = vsel %vm692, %v5839, 0
      %v5941 = vsel %vm692, %v5841, 0
      %v5944 = vsel %vm692, %v5843, 0
      %v5947 = vsel %vm795, %v5770, 0
      %5949 = vmatprep.subr.bf16.mxu0 0
      %5950 = vmatpush1.bf16.msra.mxu0 %v5947
      %5951 = vmatprep.subr.bf16.mxu0 0
      %5952 = vmatpush1.bf16.msra.mxu0 0
      %5953 = vmatprep.subr.bf16.mxu0 0
      %5954 = vmatpush1.bf16.msra.mxu0 0
      %5955 = vmatprep.subr.bf16.mxu0 0
      %5956 = vmatpush1.bf16.msra.mxu0 0
      %5957 = vmatprep.subr.bf16.mxu0 0
      %5958 = vmatpush1.bf16.msra.mxu0 0
      %5959 = vmatprep.subr.bf16.mxu0 0
      %5960 = vmatpush1.bf16.msra.mxu0 0
      %5961 = vmatprep.subr.bf16.mxu0 0
      %5962 = vmatpush1.bf16.msra.mxu0 0
      %5963 = vmatprep.subr.bf16.mxu0 0
      %5964 = vmatpush1.bf16.msra.mxu0 0
      %5965 = vmatprep.subr.bf16.mxu0 0
      %5966 = vmatpush1.bf16.msra.mxu0 0
      %5967 = vmatprep.subr.bf16.mxu0 0
      %5968 = vmatpush1.bf16.msra.mxu0 0
      %5969 = vmatprep.subr.bf16.mxu0 0
      %5970 = vmatpush1.bf16.msra.mxu0 0
      %5971 = vmatprep.subr.bf16.mxu0 0
      %5972 = vmatpush1.bf16.msra.mxu0 0
      %5973 = vmatprep.subr.bf16.mxu0 0
      %5974 = vmatpush1.bf16.msra.mxu0 0
      %5975 = vmatprep.subr.bf16.mxu0 0
      %5976 = vmatpush1.bf16.msra.mxu0 0
      %5977 = vmatprep.subr.bf16.mxu0 0
      %5978 = vmatpush1.bf16.msra.mxu0 0
      %5979 = vmatprep.subr.bf16.mxu0 0
      %5980 = vmatpush1.bf16.msra.mxu0 0
      %5981 = vmatprep.mubr.bf16.mxu0 0
      %5982 = vmatmul.mubr.bf16.gmra.mrb[0].mxu0 %v5845
      %v5983 = vpop.f32.mrb[0].mxu0
      %v5984 = vadd.f32 0.0, %v5983
      %v5985 = vpop.f32.mrb[0].mxu0
      %v5986 = vpop.f32.mrb[0].mxu0
      %v5987 = vadd.f32 0.0, %v5986
      %v5988 = vpop.f32.mrb[0].mxu0
      %5989 = vmatprep.mubr.bf16.mxu0 0
      %5990 = vmatmul.mubr.bf16.gmra.mrb[0].mxu0 %v5848
      %v5991 = vpop.f32.mrb[0].mxu0
      %v5992 = vadd.f32 0.0, %v5991
      %v5993 = vpop.f32.mrb[0].mxu0
      %v5994 = vpop.f32.mrb[0].mxu0
      %v5995 = vadd.f32 0.0, %v5994
      %v5996 = vpop.f32.mrb[0].mxu0
      %5997 = vmatprep.mubr.bf16.mxu0 0
      %5998 = vmatmul.mubr.bf16.gmra.mrb[0].mxu0 %v5851
      %v5999 = vpop.f32.mrb[0].mxu0
      %v6000 = vadd.f32 0.0, %v5999
      %v6001 = vpop.f32.mrb[0].mxu0
      %v6002 = vpop.f32.mrb[0].mxu0
      %v6003 = vadd.f32 0.0, %v6002
      %v6004 = vpop.f32.mrb[0].mxu0
      %6005 = vmatprep.mubr.bf16.mxu0 0
      %6006 = vmatmul.mubr.bf16.gmra.mrb[0].mxu0 %v5854
      %v6007 = vpop.f32.mrb[0].mxu0
      %v6008 = vadd.f32 0.0, %v6007
      %v6009 = vpop.f32.mrb[0].mxu0
      %v6010 = vpop.f32.mrb[0].mxu0
      %v6011 = vadd.f32 0.0, %v6010
      %v6012 = vpop.f32.mrb[0].mxu0
      %6013 = vmatprep.mubr.bf16.mxu0 0
      %6014 = vmatmul.mubr.bf16.gmra.mrb[0].mxu0 %v5857
      %v6015 = vpop.f32.mrb[0].mxu0
      %v6016 = vadd.f32 0.0, %v6015
      %v6017 = vpop.f32.mrb[0].mxu0
      %v6018 = vpop.f32.mrb[0].mxu0
      %v6019 = vadd.f32 0.0, %v6018
      %v6020 = vpop.f32.mrb[0].mxu0
      %6021 = vmatprep.mubr.bf16.mxu0 0
      %6022 = vmatmul.mubr.bf16.gmra.mrb[0].mxu0 %v5860
      %v6023 = vpop.f32.mrb[0].mxu0
      %v6024 = vadd.f32 0.0, %v6023
      %v6025 = vpop.f32.mrb[0].mxu0
      %v6026 = vpop.f32.mrb[0].mxu0
      %v6027 = vadd.f32 0.0, %v6026
      %v6028 = vpop.f32.mrb[0].mxu0
      %6029 = vmatprep.mubr.bf16.mxu0 0
      %6030 = vmatmul.mubr.bf16.gmra.mrb[0].mxu0 %v5863
      %v6031 = vpop.f32.mrb[0].mxu0
      %v6032 = vadd.f32 0.0, %v6031
      %v6033 = vpop.f32.mrb[0].mxu0
      %v6034 = vpop.f32.mrb[0].mxu0
      %v6035 = vadd.f32 0.0, %v6034
      %v6036 = vpop.f32.mrb[0].mxu0
      %6037 = vmatprep.mubr.bf16.mxu0 0
      %6038 = vmatmul.mubr.bf16.gmra.mrb[0].mxu0 %v5866
      %v6039 = vpop.f32.mrb[0].mxu0
      %v6040 = vadd.f32 0.0, %v6039
      %v6041 = vpop.f32.mrb[0].mxu0
      %v6042 = vpop.f32.mrb[0].mxu0
      %v6043 = vadd.f32 0.0, %v6042
      %v6044 = vpop.f32.mrb[0].mxu0
      %6045 = vmatprep.mubr.bf16.mxu0 0
      %6046 = vmatmul.mubr.bf16.gmra.mrb[0].mxu0 %v5869
      %v6047 = vpop.f32.mrb[0].mxu0
      %v6048 = vadd.f32 0.0, %v6047
      %v6049 = vpop.f32.mrb[0].mxu0
      %v6050 = vpop.f32.mrb[0].mxu0
      %v6051 = vadd.f32 0.0, %v6050
      %v6052 = vpop.f32.mrb[0].mxu0
      %6053 = vmatprep.mubr.bf16.mxu0 0
      %6054 = vmatmul.mubr.bf16.gmra.mrb[0].mxu0 %v5872
      %v6055 = vpop.f32.mrb[0].mxu0
      %v6056 = vadd.f32 0.0, %v6055
      %v6057 = vpop.f32.mrb[0].mxu0
      %v6058 = vpop.f32.mrb[0].mxu0
      %v6059 = vadd.f32 0.0, %v6058
      %v6060 = vpop.f32.mrb[0].mxu0
      %6061 = vmatprep.mubr.bf16.mxu0 0
      %6062 = vmatmul.mubr.bf16.gmra.mrb[0].mxu0 %v5875
      %v6063 = vpop.f32.mrb[0].mxu0
      %v6064 = vadd.f32 0.0, %v6063
      %v6065 = vpop.f32.mrb[0].mxu0
      %v6066 = vpop.f32.mrb[0].mxu0
      %v6067 = vadd.f32 0.0, %v6066
      %v6068 = vpop.f32.mrb[0].mxu0
      %6069 = vmatprep.mubr.bf16.mxu0 0
      %6070 = vmatmul.mubr.bf16.gmra.mrb[0].mxu0 %v5878
      %v6071 = vpop.f32.mrb[0].mxu0
      %v6072 = vadd.f32 0.0, %v6071
      %v6073 = vpop.f32.mrb[0].mxu0
      %v6074 = vpop.f32.mrb[0].mxu0
      %v6075 = vadd.f32 0.0, %v6074
      %v6076 = vpop.f32.mrb[0].mxu0
      %6077 = vmatprep.mubr.bf16.mxu0 0
      %6078 = vmatmul.mubr.bf16.gmra.mrb[0].mxu0 %v5881
      %v6079 = vpop.f32.mrb[0].mxu0
      %v6080 = vadd.f32 0.0, %v6079
      %v6081 = vpop.f32.mrb[0].mxu0
      %v6082 = vpop.f32.mrb[0].mxu0
      %v6083 = vadd.f32 0.0, %v6082
      %v6084 = vpop.f32.mrb[0].mxu0
      %6085 = vmatprep.mubr.bf16.mxu0 0
      %6086 = vmatmul.mubr.bf16.gmra.mrb[0].mxu0 %v5884
      %v6087 = vpop.f32.mrb[0].mxu0
      %v6088 = vadd.f32 0.0, %v6087
      %v6089 = vpop.f32.mrb[0].mxu0
      %v6090 = vpop.f32.mrb[0].mxu0
      %v6091 = vadd.f32 0.0, %v6090
      %v6092 = vpop.f32.mrb[0].mxu0
      %6093 = vmatprep.mubr.bf16.mxu0 0
      %6094 = vmatmul.mubr.bf16.gmra.mrb[0].mxu0 %v5887
      %v6095 = vpop.f32.mrb[0].mxu0
      %v6096 = vadd.f32 0.0, %v6095
      %v6097 = vpop.f32.mrb[0].mxu0
      %v6098 = vpop.f32.mrb[0].mxu0
      %v6099 = vadd.f32 0.0, %v6098
      %v6100 = vpop.f32.mrb[0].mxu0
      %6101 = vmatprep.mubr.bf16.mxu0 0
      %6102 = vmatmul.mubr.bf16.gmra.mrb[0].mxu0 %v5890
      %v6103 = vpop.f32.mrb[0].mxu0
      %v6104 = vadd.f32 0.0, %v6103
      %v6105 = vpop.f32.mrb[0].mxu0
      %v6106 = vpop.f32.mrb[0].mxu0
      %v6107 = vadd.f32 0.0, %v6106
      %v6108 = vpop.f32.mrb[0].mxu0
      %6109 = vmatprep.mubr.bf16.mxu0 0
      %6110 = vmatmul.mubr.bf16.gmra.mrb[0].mxu0 %v5893
      %v6111 = vpop.f32.mrb[0].mxu0
      %v6112 = vadd.f32 0.0, %v6111
      %v6113 = vpop.f32.mrb[0].mxu0
      %v6114 = vpop.f32.mrb[0].mxu0
      %v6115 = vadd.f32 0.0, %v6114
      %v6116 = vpop.f32.mrb[0].mxu0
      %6117 = vmatprep.mubr.bf16.mxu0 0
      %6118 = vmatmul.mubr.bf16.gmra.mrb[0].mxu0 %v5896
      %v6119 = vpop.f32.mrb[0].mxu0
      %v6120 = vadd.f32 0.0, %v6119
      %v6121 = vpop.f32.mrb[0].mxu0
      %v6122 = vpop.f32.mrb[0].mxu0
      %v6123 = vadd.f32 0.0, %v6122
      %v6124 = vpop.f32.mrb[0].mxu0
      %6125 = vmatprep.mubr.bf16.mxu0 0
      %6126 = vmatmul.mubr.bf16.gmra.mrb[0].mxu0 %v5899
      %v6127 = vpop.f32.mrb[0].mxu0
      %v6128 = vadd.f32 0.0, %v6127
      %v6129 = vpop.f32.mrb[0].mxu0
      %v6130 = vpop.f32.mrb[0].mxu0
      %v6131 = vadd.f32 0.0, %v6130
      %v6132 = vpop.f32.mrb[0].mxu0
      %6133 = vmatprep.mubr.bf16.mxu0 0
      %6134 = vmatmul.mubr.bf16.gmra.mrb[0].mxu0 %v5902
      %v6135 = vpop.f32.mrb[0].mxu0
      %v6136 = vadd.f32 0.0, %v6135
      %v6137 = vpop.f32.mrb[0].mxu0
      %v6138 = vpop.f32.mrb[0].mxu0
      %v6139 = vadd.f32 0.0, %v6138
      %v6140 = vpop.f32.mrb[0].mxu0
      %6141 = vmatprep.mubr.bf16.mxu0 0
      %6142 = vmatmul.mubr.bf16.gmra.mrb[0].mxu0 %v5905
      %v6143 = vpop.f32.mrb[0].mxu0
      %v6144 = vadd.f32 0.0, %v6143
      %v6145 = vpop.f32.mrb[0].mxu0
      %v6146 = vpop.f32.mrb[0].mxu0
      %v6147 = vadd.f32 0.0, %v6146
      %v6148 = vpop.f32.mrb[0].mxu0
      %6149 = vmatprep.mubr.bf16.mxu0 0
      %6150 = vmatmul.mubr.bf16.gmra.mrb[0].mxu0 %v5908
      %v6151 = vpop.f32.mrb[0].mxu0
      %v6152 = vadd.f32 0.0, %v6151
      %v6153 = vpop.f32.mrb[0].mxu0
      %v6154 = vpop.f32.mrb[0].mxu0
      %v6155 = vadd.f32 0.0, %v6154
      %v6156 = vpop.f32.mrb[0].mxu0
      %6157 = vmatprep.mubr.bf16.mxu0 0
      %6158 = vmatmul.mubr.bf16.gmra.mrb[0].mxu0 %v5911
      %v6159 = vpop.f32.mrb[0].mxu0
      %v6160 = vadd.f32 0.0, %v6159
      %v6161 = vpop.f32.mrb[0].mxu0
      %v6162 = vpop.f32.mrb[0].mxu0
      %v6163 = vadd.f32 0.0, %v6162
      %v6164 = vpop.f32.mrb[0].mxu0
      %6165 = vmatprep.mubr.bf16.mxu0 0
      %6166 = vmatmul.mubr.bf16.gmra.mrb[0].mxu0 %v5914
      %v6167 = vpop.f32.mrb[0].mxu0
      %v6168 = vadd.f32 0.0, %v6167
      %v6169 = vpop.f32.mrb[0].mxu0
      %v6170 = vpop.f32.mrb[0].mxu0
      %v6171 = vadd.f32 0.0, %v6170
      %v6172 = vpop.f32.mrb[0].mxu0
      %6173 = vmatprep.mubr.bf16.mxu0 0
      %6174 = vmatmul.mubr.bf16.gmra.mrb[0].mxu0 %v5917
      %v6175 = vpop.f32.mrb[0].mxu0
      %v6176 = vadd.f32 0.0, %v6175
      %v6177 = vpop.f32.mrb[0].mxu0
      %v6178 = vpop.f32.mrb[0].mxu0
      %v6179 = vadd.f32 0.0, %v6178
      %v6180 = vpop.f32.mrb[0].mxu0
      %6181 = vmatprep.mubr.bf16.mxu0 0
      %6182 = vmatmul.mubr.bf16.gmra.mrb[0].mxu0 %v5920
      %v6183 = vpop.f32.mrb[0].mxu0
      %v6184 = vadd.f32 0.0, %v6183
      %v6185 = vpop.f32.mrb[0].mxu0
      %v6186 = vpop.f32.mrb[0].mxu0
      %v6187 = vadd.f32 0.0, %v6186
      %v6188 = vpop.f32.mrb[0].mxu0
      %6189 = vmatprep.mubr.bf16.mxu0 0
      %6190 = vmatmul.mubr.bf16.gmra.mrb[0].mxu0 %v5923
      %v6191 = vpop.f32.mrb[0].mxu0
      %v6192 = vadd.f32 0.0, %v6191
      %v6193 = vpop.f32.mrb[0].mxu0
      %v6194 = vpop.f32.mrb[0].mxu0
      %v6195 = vadd.f32 0.0, %v6194
      %v6196 = vpop.f32.mrb[0].mxu0
      %6197 = vmatprep.mubr.bf16.mxu0 0
      %6198 = vmatmul.mubr.bf16.gmra.mrb[0].mxu0 %v5926
      %v6199 = vpop.f32.mrb[0].mxu0
      %v6200 = vadd.f32 0.0, %v6199
      %v6201 = vpop.f32.mrb[0].mxu0
      %v6202 = vpop.f32.mrb[0].mxu0
      %v6203 = vadd.f32 0.0, %v6202
      %v6204 = vpop.f32.mrb[0].mxu0
      %6205 = vmatprep.mubr.bf16.mxu0 0
      %6206 = vmatmul.mubr.bf16.gmra.mrb[0].mxu0 %v5929
      %v6207 = vpop.f32.mrb[0].mxu0
      %v6208 = vadd.f32 0.0, %v6207
      %v6209 = vpop.f32.mrb[0].mxu0
      %v6210 = vpop.f32.mrb[0].mxu0
      %v6211 = vadd.f32 0.0, %v6210
      %v6212 = vpop.f32.mrb[0].mxu0
      %6213 = vmatprep.mubr.bf16.mxu0 0
      %6214 = vmatmul.mubr.bf16.gmra.mrb[0].mxu0 %v5932
      %v6215 = vpop.f32.mrb[0].mxu0
      %v6216 = vadd.f32 0.0, %v6215
      %v6217 = vpop.f32.mrb[0].mxu0
      %v6218 = vpop.f32.mrb[0].mxu0
      %v6219 = vadd.f32 0.0, %v6218
      %v6220 = vpop.f32.mrb[0].mxu0
      %6221 = vmatprep.mubr.bf16.mxu0 0
      %6222 = vmatmul.mubr.bf16.gmra.mrb[0].mxu0 %v5935
      %v6223 = vpop.f32.mrb[0].mxu0
      %v6224 = vadd.f32 0.0, %v6223
      %v6225 = vpop.f32.mrb[0].mxu0
      %v6226 = vpop.f32.mrb[0].mxu0
      %v6227 = vadd.f32 0.0, %v6226
      %v6228 = vpop.f32.mrb[0].mxu0
      %6229 = vmatprep.mubr.bf16.mxu0 0
      %6230 = vmatmul.mubr.bf16.gmra.mrb[0].mxu0 %v5938
      %v6231 = vpop.f32.mrb[0].mxu0
      %v6232 = vadd.f32 0.0, %v6231
      %v6233 = vpop.f32.mrb[0].mxu0
      %v6234 = vpop.f32.mrb[0].mxu0
      %v6235 = vadd.f32 0.0, %v6234
      %v6236 = vpop.f32.mrb[0].mxu0
      %6237 = vmatprep.mubr.bf16.mxu0 0
      %6238 = vmatmul.mubr.bf16.gmra.mrb[0].mxu0 %v5941
      %v6239 = vpop.f32.mrb[0].mxu0
      %v6240 = vadd.f32 0.0, %v6239
      %v6241 = vpop.f32.mrb[0].mxu0
      %v6242 = vpop.f32.mrb[0].mxu0
      %v6243 = vadd.f32 0.0, %v6242
      %v6244 = vpop.f32.mrb[0].mxu0
      %6245 = vmatprep.mubr.bf16.mxu0 0
      %6246 = vmatmul.mubr.bf16.gmra.mrb[0].mxu0 %v5944
      %v6247 = vpop.f32.mrb[0].mxu0
      %v6248 = vadd.f32 0.0, %v6247
      %v6249 = vpop.f32.mrb[0].mxu0
      %v6250 = vpop.f32.mrb[0].mxu0
      %v6251 = vadd.f32 0.0, %v6250
      %v6252 = vpop.f32.mrb[0].mxu0
      %6253 = vdwg.mxu0
      %v6254 = vadd.f32 %v5700, %v5984
      %v6255 = vadd.f32 %v5701, %v5987
      %v6256 = vadd.f32 %v5702, %v5992
      %v6257 = vadd.f32 %v5703, %v5995
      %v6258 = vadd.f32 %v5704, %v6000
      %v6259 = vadd.f32 %v5705, %v6003
      %v6260 = vadd.f32 %v5706, %v6008
      %v6261 = vadd.f32 %v5707, %v6011
      %v6262 = vadd.f32 %v5708, %v6016
      %v6263 = vadd.f32 %v5709, %v6019
      %v6264 = vadd.f32 %v5710, %v6024
      %v6265 = vadd.f32 %v5711, %v6027
      %v6266 = vadd.f32 %v5712, %v6032
      %v6267 = vadd.f32 %v5713, %v6035
      %v6268 = vadd.f32 %v5714, %v6040
      %v6269 = vadd.f32 %v5715, %v6043
      %v6270 = vadd.f32 %v5716, %v6048
      %v6271 = vadd.f32 %v5717, %v6051
      %v6272 = vadd.f32 %v5718, %v6056
      %v6273 = vadd.f32 %v5719, %v6059
      %v6274 = vadd.f32 %v5720, %v6064
      %v6275 = vadd.f32 %v5721, %v6067
      %v6276 = vadd.f32 %v5722, %v6072
      %v6277 = vadd.f32 %v5723, %v6075
      %v6278 = vadd.f32 %v5724, %v6080
      %v6279 = vadd.f32 %v5725, %v6083
      %v6280 = vadd.f32 %v5726, %v6088
      %v6281 = vadd.f32 %v5727, %v6091
      %v6282 = vadd.f32 %v5728, %v6096
      %v6283 = vadd.f32 %v5729, %v6099
      %v6284 = vadd.f32 %v5730, %v6104
      %v6285 = vadd.f32 %v5731, %v6107
      %v6286 = vadd.f32 %v5732, %v6112
      %v6287 = vadd.f32 %v5733, %v6115
      %v6288 = vadd.f32 %v5734, %v6120
      %v6289 = vadd.f32 %v5735, %v6123
      %v6290 = vadd.f32 %v5736, %v6128
      %v6291 = vadd.f32 %v5737, %v6131
      %v6292 = vadd.f32 %v5738, %v6136
      %v6293 = vadd.f32 %v5739, %v6139
      %v6294 = vadd.f32 %v5740, %v6144
      %v6295 = vadd.f32 %v5741, %v6147
      %v6296 = vadd.f32 %v5742, %v6152
      %v6297 = vadd.f32 %v5743, %v6155
      %v6298 = vadd.f32 %v5744, %v6160
      %v6299 = vadd.f32 %v5745, %v6163
      %v6300 = vadd.f32 %v5746, %v6168
      %v6301 = vadd.f32 %v5747, %v6171
      %v6302 = vadd.f32 %v5748, %v6176
      %v6303 = vadd.f32 %v5749, %v6179
      %v6304 = vadd.f32 %v5750, %v6184
      %v6305 = vadd.f32 %v5751, %v6187
      %v6306 = vadd.f32 %v5752, %v6192
      %v6307 = vadd.f32 %v5753, %v6195
      %v6308 = vadd.f32 %v5754, %v6200
      %v6309 = vadd.f32 %v5755, %v6203
      %v6310 = vadd.f32 %v5756, %v6208
      %v6311 = vadd.f32 %v5757, %v6211
      %v6312 = vadd.f32 %v5758, %v6216
      %v6313 = vadd.f32 %v5759, %v6219
      %v6314 = vadd.f32 %v5760, %v6224
      %v6315 = vadd.f32 %v5761, %v6227
      %v6316 = vadd.f32 %v5762, %v6232
      %v6317 = vadd.f32 %v5763, %v6235
      %v6318 = vadd.f32 %v5764, %v6240
      %v6319 = vadd.f32 %v5765, %v6243
      %v6320 = vadd.f32 %v5766, %v6248
      %v6321 = vadd.f32 %v5767, %v6251
      %v6322 = vld [vmem:[%s2] sm:$0xff]
      %v6323 = vld [vmem:[%s2 + $0x8] sm:$0xff]
      %v6324 = vld [vmem:[%s2 + $0x10] sm:$0xff]
      %v6325 = vld [vmem:[%s2 + $0x18] sm:$0xff]
      %v6326 = vld [vmem:[%s2 + $0x20] sm:$0xff]
      %v6327 = vld [vmem:[%s2 + $0x28] sm:$0xff]
      %v6328 = vld [vmem:[%s2 + $0x30] sm:$0xff]
      %v6329 = vld [vmem:[%s2 + $0x38] sm:$0xff]
      %v6330 = vld [vmem:[%s2 + $0x40] sm:$0xff]
      %v6331 = vld [vmem:[%s2 + $0x48] sm:$0xff]
      %v6332 = vld [vmem:[%s2 + $0x50] sm:$0xff]
      %v6333 = vld [vmem:[%s2 + $0x58] sm:$0xff]
      %v6334 = vld [vmem:[%s2 + $0x60] sm:$0xff]
      %v6335 = vld [vmem:[%s2 + $0x68] sm:$0xff]
      %v6336 = vld [vmem:[%s2 + $0x70] sm:$0xff]
      %v6337 = vld [vmem:[%s2 + $0x78] sm:$0xff]
      %v6338 = vld [vmem:[%s2 + $0x80] sm:$0xff]
      %v6339 = vld [vmem:[%s2 + $0x88] sm:$0xff]
      %v6340 = vld [vmem:[%s2 + $0x90] sm:$0xff]
      %v6341 = vld [vmem:[%s2 + $0x98] sm:$0xff]
      %v6342 = vld [vmem:[%s2 + $0xa0] sm:$0xff]
      %v6343 = vld [vmem:[%s2 + $0xa8] sm:$0xff]
      %v6344 = vld [vmem:[%s2 + $0xb0] sm:$0xff]
      %v6345 = vld [vmem:[%s2 + $0xb8] sm:$0xff]
      %v6346 = vld [vmem:[%s2 + $0xc0] sm:$0xff]
      %v6347 = vld [vmem:[%s2 + $0xc8] sm:$0xff]
      %v6348 = vld [vmem:[%s2 + $0xd0] sm:$0xff]
      %v6349 = vld [vmem:[%s2 + $0xd8] sm:$0xff]
      %v6350 = vld [vmem:[%s2 + $0xe0] sm:$0xff]
      %v6351 = vld [vmem:[%s2 + $0xe8] sm:$0xff]
      %v6352 = vld [vmem:[%s2 + $0xf0] sm:$0xff]
      %v6353 = vld [vmem:[%s2 + $0xf8] sm:$0xff]
      %v6354 = vld [vmem:[%s2 + $0x100] sm:$0xff]
      %v6355 = vld [vmem:[%s2 + $0x108] sm:$0xff]
      %v6356 = vld [vmem:[%s2 + $0x110] sm:$0xff]
      %v6357 = vld [vmem:[%s2 + $0x118] sm:$0xff]
      %v6358 = vld [vmem:[%s2 + $0x120] sm:$0xff]
      %v6359 = vld [vmem:[%s2 + $0x128] sm:$0xff]
      %v6360 = vld [vmem:[%s2 + $0x130] sm:$0xff]
      %v6361 = vld [vmem:[%s2 + $0x138] sm:$0xff]
      %v6362 = vld [vmem:[%s2 + $0x140] sm:$0xff]
      %v6363 = vld [vmem:[%s2 + $0x148] sm:$0xff]
      %v6364 = vld [vmem:[%s2 + $0x150] sm:$0xff]
      %v6365 = vld [vmem:[%s2 + $0x158] sm:$0xff]
      %v6366 = vld [vmem:[%s2 + $0x160] sm:$0xff]
      %v6367 = vld [vmem:[%s2 + $0x168] sm:$0xff]
      %v6368 = vld [vmem:[%s2 + $0x170] sm:$0xff]
      %v6369 = vld [vmem:[%s2 + $0x178] sm:$0xff]
      %v6370 = vld [vmem:[%s2 + $0x180] sm:$0xff]
      %v6371 = vld [vmem:[%s2 + $0x188] sm:$0xff]
      %v6372 = vld [vmem:[%s2 + $0x190] sm:$0xff]
      %v6373 = vld [vmem:[%s2 + $0x198] sm:$0xff]
      %v6374 = vld [vmem:[%s2 + $0x1a0] sm:$0xff]
      %v6375 = vld [vmem:[%s2 + $0x1a8] sm:$0xff]
      %v6376 = vld [vmem:[%s2 + $0x1b0] sm:$0xff]
      %v6377 = vld [vmem:[%s2 + $0x1b8] sm:$0xff]
      %v6378 = vld [vmem:[%s2 + $0x1c0] sm:$0xff]
      %v6379 = vld [vmem:[%s2 + $0x1c8] sm:$0xff]
      %v6380 = vld [vmem:[%s2 + $0x1d0] sm:$0xff]
      %v6381 = vld [vmem:[%s2 + $0x1d8] sm:$0xff]
      %v6382 = vld [vmem:[%s2 + $0x1e0] sm:$0xff]
      %v6383 = vld [vmem:[%s2 + $0x1e8] sm:$0xff]
      %v6384 = vld [vmem:[%s2 + $0x1f0] sm:$0xff]
      %v6385 = vld [vmem:[%s2 + $0x1f8] sm:$0xff]
      %v6386 = vld [vmem:[%s2 + $0x200] sm:$0xff]
      %v6387 = vld [vmem:[%s2 + $0x208] sm:$0xff]
      %v6388 = vld [vmem:[%s2 + $0x210] sm:$0xff]
      %v6389 = vld [vmem:[%s2 + $0x218] sm:$0xff]
      %6391 = vset.pattern.permute.xlu0 0
      %6392 = vperm.xlu0 %6391, %v6322
      %v6393 = vpop.permute.xlu0 %6392
      %6396 = vset.pattern.permute.xlu0 0
      %6397 = vperm.xlu0 %6396, %v6323
      %v6398 = vpop.permute.xlu0 %6397
      %6401 = vset.pattern.permute.xlu0 0
      %6402 = vperm.xlu0 %6401, %v6324
      %v6403 = vpop.permute.xlu0 %6402
      %6406 = vset.pattern.permute.xlu0 0
      %6407 = vperm.xlu0 %6406, %v6325
      %v6408 = vpop.permute.xlu0 %6407
      %6411 = vset.pattern.permute.xlu0 0
      %6412 = vperm.xlu0 %6411, %v6326
      %v6413 = vpop.permute.xlu0 %6412
      %6416 = vset.pattern.permute.xlu0 0
      %6417 = vperm.xlu0 %6416, %v6327
      %v6418 = vpop.permute.xlu0 %6417
      %6421 = vset.pattern.permute.xlu0 0
      %6422 = vperm.xlu0 %6421, %v6328
      %v6423 = vpop.permute.xlu0 %6422
      %6426 = vset.pattern.permute.xlu0 0
      %6427 = vperm.xlu0 %6426, %v6329
      %v6428 = vpop.permute.xlu0 %6427
      %6431 = vset.pattern.permute.xlu0 0
      %6432 = vperm.xlu0 %6431, %v6330
      %v6433 = vpop.permute.xlu0 %6432
      %6436 = vset.pattern.permute.xlu0 0
      %6437 = vperm.xlu0 %6436, %v6331
      %v6438 = vpop.permute.xlu0 %6437
      %6441 = vset.pattern.permute.xlu0 0
      %6442 = vperm.xlu0 %6441, %v6332
      %v6443 = vpop.permute.xlu0 %6442
      %6446 = vset.pattern.permute.xlu0 0
      %6447 = vperm.xlu0 %6446, %v6333
      %v6448 = vpop.permute.xlu0 %6447
      %6451 = vset.pattern.permute.xlu0 0
      %6452 = vperm.xlu0 %6451, %v6334
      %v6453 = vpop.permute.xlu0 %6452
      %6456 = vset.pattern.permute.xlu0 0
      %6457 = vperm.xlu0 %6456, %v6335
      %v6458 = vpop.permute.xlu0 %6457
      %6461 = vset.pattern.permute.xlu0 0
      %6462 = vperm.xlu0 %6461, %v6336
      %v6463 = vpop.permute.xlu0 %6462
      %6466 = vset.pattern.permute.xlu0 0
      %6467 = vperm.xlu0 %6466, %v6337
      %v6468 = vpop.permute.xlu0 %6467
      %6471 = vset.pattern.permute.xlu0 0
      %6472 = vperm.xlu0 %6471, %v6338
      %v6473 = vpop.permute.xlu0 %6472
      %6476 = vset.pattern.permute.xlu0 0
      %6477 = vperm.xlu0 %6476, %v6339
      %v6478 = vpop.permute.xlu0 %6477
      %6481 = vset.pattern.permute.xlu0 0
      %6482 = vperm.xlu0 %6481, %v6340
      %v6483 = vpop.permute.xlu0 %6482
      %6486 = vset.pattern.permute.xlu0 0
      %6487 = vperm.xlu0 %6486, %v6341
      %v6488 = vpop.permute.xlu0 %6487
      %6491 = vset.pattern.permute.xlu0 0
      %6492 = vperm.xlu0 %6491, %v6342
      %v6493 = vpop.permute.xlu0 %6492
      %6496 = vset.pattern.permute.xlu0 0
      %6497 = vperm.xlu0 %6496, %v6343
      %v6498 = vpop.permute.xlu0 %6497
      %6501 = vset.pattern.permute.xlu0 0
      %6502 = vperm.xlu0 %6501, %v6344
      %v6503 = vpop.permute.xlu0 %6502
      %6506 = vset.pattern.permute.xlu0 0
      %6507 = vperm.xlu0 %6506, %v6345
      %v6508 = vpop.permute.xlu0 %6507
      %6511 = vset.pattern.permute.xlu0 0
      %6512 = vperm.xlu0 %6511, %v6346
      %v6513 = vpop.permute.xlu0 %6512
      %6516 = vset.pattern.permute.xlu0 0
      %6517 = vperm.xlu0 %6516, %v6347
      %v6518 = vpop.permute.xlu0 %6517
      %6521 = vset.pattern.permute.xlu0 0
      %6522 = vperm.xlu0 %6521, %v6348
      %v6523 = vpop.permute.xlu0 %6522
      %6526 = vset.pattern.permute.xlu0 0
      %6527 = vperm.xlu0 %6526, %v6349
      %v6528 = vpop.permute.xlu0 %6527
      %6531 = vset.pattern.permute.xlu0 0
      %6532 = vperm.xlu0 %6531, %v6350
      %v6533 = vpop.permute.xlu0 %6532
      %6536 = vset.pattern.permute.xlu0 0
      %6537 = vperm.xlu0 %6536, %v6351
      %v6538 = vpop.permute.xlu0 %6537
      %6541 = vset.pattern.permute.xlu0 0
      %6542 = vperm.xlu0 %6541, %v6352
      %v6543 = vpop.permute.xlu0 %6542
      %6546 = vset.pattern.permute.xlu0 0
      %6547 = vperm.xlu0 %6546, %v6353
      %v6548 = vpop.permute.xlu0 %6547
      %6551 = vset.pattern.permute.xlu0 0
      %6552 = vperm.xlu0 %6551, %v6354
      %v6553 = vpop.permute.xlu0 %6552
      %6556 = vset.pattern.permute.xlu0 0
      %6557 = vperm.xlu0 %6556, %v6355
      %v6558 = vpop.permute.xlu0 %6557
      %6561 = vset.pattern.permute.xlu0 0
      %6562 = vperm.xlu0 %6561, %v6356
      %v6563 = vpop.permute.xlu0 %6562
      %6566 = vset.pattern.permute.xlu0 0
      %6567 = vperm.xlu0 %6566, %v6357
      %v6568 = vpop.permute.xlu0 %6567
      %6571 = vset.pattern.permute.xlu0 0
      %6572 = vperm.xlu0 %6571, %v6358
      %v6573 = vpop.permute.xlu0 %6572
      %6576 = vset.pattern.permute.xlu0 0
      %6577 = vperm.xlu0 %6576, %v6359
      %v6578 = vpop.permute.xlu0 %6577
      %6581 = vset.pattern.permute.xlu0 0
      %6582 = vperm.xlu0 %6581, %v6360
      %v6583 = vpop.permute.xlu0 %6582
      %6586 = vset.pattern.permute.xlu0 0
      %6587 = vperm.xlu0 %6586, %v6361
      %v6588 = vpop.permute.xlu0 %6587
      %6591 = vset.pattern.permute.xlu0 0
      %6592 = vperm.xlu0 %6591, %v6362
      %v6593 = vpop.permute.xlu0 %6592
      %6596 = vset.pattern.permute.xlu0 0
      %6597 = vperm.xlu0 %6596, %v6363
      %v6598 = vpop.permute.xlu0 %6597
      %6601 = vset.pattern.permute.xlu0 0
      %6602 = vperm.xlu0 %6601, %v6364
      %v6603 = vpop.permute.xlu0 %6602
      %6606 = vset.pattern.permute.xlu0 0
      %6607 = vperm.xlu0 %6606, %v6365
      %v6608 = vpop.permute.xlu0 %6607
      %6611 = vset.pattern.permute.xlu0 0
      %6612 = vperm.xlu0 %6611, %v6366
      %v6613 = vpop.permute.xlu0 %6612
      %6616 = vset.pattern.permute.xlu0 0
      %6617 = vperm.xlu0 %6616, %v6367
      %v6618 = vpop.permute.xlu0 %6617
      %6621 = vset.pattern.permute.xlu0 0
      %6622 = vperm.xlu0 %6621, %v6368
      %v6623 = vpop.permute.xlu0 %6622
      %6626 = vset.pattern.permute.xlu0 0
      %6627 = vperm.xlu0 %6626, %v6369
      %v6628 = vpop.permute.xlu0 %6627
      %6631 = vset.pattern.permute.xlu0 0
      %6632 = vperm.xlu0 %6631, %v6370
      %v6633 = vpop.permute.xlu0 %6632
      %6636 = vset.pattern.permute.xlu0 0
      %6637 = vperm.xlu0 %6636, %v6371
      %v6638 = vpop.permute.xlu0 %6637
      %6641 = vset.pattern.permute.xlu0 0
      %6642 = vperm.xlu0 %6641, %v6372
      %v6643 = vpop.permute.xlu0 %6642
      %6646 = vset.pattern.permute.xlu0 0
      %6647 = vperm.xlu0 %6646, %v6373
      %v6648 = vpop.permute.xlu0 %6647
      %6651 = vset.pattern.permute.xlu0 0
      %6652 = vperm.xlu0 %6651, %v6374
      %v6653 = vpop.permute.xlu0 %6652
      %6656 = vset.pattern.permute.xlu0 0
      %6657 = vperm.xlu0 %6656, %v6375
      %v6658 = vpop.permute.xlu0 %6657
      %6661 = vset.pattern.permute.xlu0 0
      %6662 = vperm.xlu0 %6661, %v6376
      %v6663 = vpop.permute.xlu0 %6662
      %6666 = vset.pattern.permute.xlu0 0
      %6667 = vperm.xlu0 %6666, %v6377
      %v6668 = vpop.permute.xlu0 %6667
      %6671 = vset.pattern.permute.xlu0 0
      %6672 = vperm.xlu0 %6671, %v6378
      %v6673 = vpop.permute.xlu0 %6672
      %6676 = vset.pattern.permute.xlu0 0
      %6677 = vperm.xlu0 %6676, %v6379
      %v6678 = vpop.permute.xlu0 %6677
      %6681 = vset.pattern.permute.xlu0 0
      %6682 = vperm.xlu0 %6681, %v6380
      %v6683 = vpop.permute.xlu0 %6682
      %6686 = vset.pattern.permute.xlu0 0
      %6687 = vperm.xlu0 %6686, %v6381
      %v6688 = vpop.permute.xlu0 %6687
      %6691 = vset.pattern.permute.xlu0 0
      %6692 = vperm.xlu0 %6691, %v6382
      %v6693 = vpop.permute.xlu0 %6692
      %6696 = vset.pattern.permute.xlu0 0
      %6697 = vperm.xlu0 %6696, %v6383
      %v6698 = vpop.permute.xlu0 %6697
      %6701 = vset.pattern.permute.xlu0 0
      %6702 = vperm.xlu0 %6701, %v6384
      %v6703 = vpop.permute.xlu0 %6702
      %6706 = vset.pattern.permute.xlu0 0
      %6707 = vperm.xlu0 %6706, %v6385
      %v6708 = vpop.permute.xlu0 %6707
      %6711 = vset.pattern.permute.xlu0 0
      %6712 = vperm.xlu0 %6711, %v6386
      %v6713 = vpop.permute.xlu0 %6712
      %6716 = vset.pattern.permute.xlu0 0
      %6717 = vperm.xlu0 %6716, %v6387
      %v6718 = vpop.permute.xlu0 %6717
      %6721 = vset.pattern.permute.xlu0 0
      %6722 = vperm.xlu0 %6721, %v6388
      %v6723 = vpop.permute.xlu0 %6722
      %6726 = vset.pattern.permute.xlu0 0
      %6727 = vperm.xlu0 %6726, %v6389
      %v6728 = vpop.permute.xlu0 %6727
      %v6730 = vmul.f32 %v6254, %v6393
      %v6731 = vmul.f32 %v6255, %v6398
      %v6732 = vmul.f32 %v6256, %v6403
      %v6733 = vmul.f32 %v6257, %v6408
      %v6734 = vmul.f32 %v6258, %v6413
      %v6735 = vmul.f32 %v6259, %v6418
      %v6736 = vmul.f32 %v6260, %v6423
      %v6737 = vmul.f32 %v6261, %v6428
      %v6738 = vmul.f32 %v6262, %v6433
      %v6739 = vmul.f32 %v6263, %v6438
      %v6740 = vmul.f32 %v6264, %v6443
      %v6741 = vmul.f32 %v6265, %v6448
      %v6742 = vmul.f32 %v6266, %v6453
      %v6743 = vmul.f32 %v6267, %v6458
      %v6744 = vmul.f32 %v6268, %v6463
      %v6745 = vmul.f32 %v6269, %v6468
      %v6746 = vmul.f32 %v6270, %v6473
      %v6747 = vmul.f32 %v6271, %v6478
      %v6748 = vmul.f32 %v6272, %v6483
      %v6749 = vmul.f32 %v6273, %v6488
      %v6750 = vmul.f32 %v6274, %v6493
      %v6751 = vmul.f32 %v6275, %v6498
      %v6752 = vmul.f32 %v6276, %v6503
      %v6753 = vmul.f32 %v6277, %v6508
      %v6754 = vmul.f32 %v6278, %v6513
      %v6755 = vmul.f32 %v6279, %v6518
      %v6756 = vmul.f32 %v6280, %v6523
      %v6757 = vmul.f32 %v6281, %v6528
      %v6758 = vmul.f32 %v6282, %v6533
      %v6759 = vmul.f32 %v6283, %v6538
      %v6760 = vmul.f32 %v6284, %v6543
      %v6761 = vmul.f32 %v6285, %v6548
      %v6762 = vmul.f32 %v6286, %v6553
      %v6763 = vmul.f32 %v6287, %v6558
      %v6764 = vmul.f32 %v6288, %v6563
      %v6765 = vmul.f32 %v6289, %v6568
      %v6766 = vmul.f32 %v6290, %v6573
      %v6767 = vmul.f32 %v6291, %v6578
      %v6768 = vmul.f32 %v6292, %v6583
      %v6769 = vmul.f32 %v6293, %v6588
      %v6770 = vmul.f32 %v6294, %v6593
      %v6771 = vmul.f32 %v6295, %v6598
      %v6772 = vmul.f32 %v6296, %v6603
      %v6773 = vmul.f32 %v6297, %v6608
      %v6774 = vmul.f32 %v6298, %v6613
      %v6775 = vmul.f32 %v6299, %v6618
      %v6776 = vmul.f32 %v6300, %v6623
      %v6777 = vmul.f32 %v6301, %v6628
      %v6778 = vmul.f32 %v6302, %v6633
      %v6779 = vmul.f32 %v6303, %v6638
      %v6780 = vmul.f32 %v6304, %v6643
      %v6781 = vmul.f32 %v6305, %v6648
      %v6782 = vmul.f32 %v6306, %v6653
      %v6783 = vmul.f32 %v6307, %v6658
      %v6784 = vmul.f32 %v6308, %v6663
      %v6785 = vmul.f32 %v6309, %v6668
      %v6786 = vmul.f32 %v6310, %v6673
      %v6787 = vmul.f32 %v6311, %v6678
      %v6788 = vmul.f32 %v6312, %v6683
      %v6789 = vmul.f32 %v6313, %v6688
      %v6790 = vmul.f32 %v6314, %v6693
      %v6791 = vmul.f32 %v6315, %v6698
      %v6792 = vmul.f32 %v6316, %v6703
      %v6793 = vmul.f32 %v6317, %v6708
      %v6794 = vmul.f32 %v6318, %v6713
      %v6795 = vmul.f32 %v6319, %v6718
      %v6796 = vmul.f32 %v6320, %v6723
      %v6797 = vmul.f32 %v6321, %v6728
      %v6798 = vadd.f32 %v6730, %v6731
      %v6799 = vadd.f32 %v6798, %v6732
      %v6800 = vadd.f32 %v6799, %v6733
      %v6801 = vadd.f32 %v6800, %v6734
      %v6802 = vadd.f32 %v6801, %v6735
      %v6803 = vadd.f32 %v6802, %v6736
      %v6804 = vadd.f32 %v6803, %v6737
      %v6805 = vadd.f32 %v6804, %v6738
      %v6806 = vadd.f32 %v6805, %v6739
      %v6807 = vadd.f32 %v6806, %v6740
      %v6808 = vadd.f32 %v6807, %v6741
      %v6809 = vadd.f32 %v6808, %v6742
      %v6810 = vadd.f32 %v6809, %v6743
      %v6811 = vadd.f32 %v6810, %v6744
      %v6812 = vadd.f32 %v6811, %v6745
      %v6813 = vadd.f32 %v6812, %v6746
      %v6814 = vadd.f32 %v6813, %v6747
      %v6815 = vadd.f32 %v6814, %v6748
      %v6816 = vadd.f32 %v6815, %v6749
      %v6817 = vadd.f32 %v6816, %v6750
      %v6818 = vadd.f32 %v6817, %v6751
      %v6819 = vadd.f32 %v6818, %v6752
      %v6820 = vadd.f32 %v6819, %v6753
      %v6821 = vadd.f32 %v6820, %v6754
      %v6822 = vadd.f32 %v6821, %v6755
      %v6823 = vadd.f32 %v6822, %v6756
      %v6824 = vadd.f32 %v6823, %v6757
      %v6825 = vadd.f32 %v6824, %v6758
      %v6826 = vadd.f32 %v6825, %v6759
      %v6827 = vadd.f32 %v6826, %v6760
      %v6828 = vadd.f32 %v6827, %v6761
      %v6829 = vadd.f32 %v6828, %v6762
      %v6830 = vadd.f32 %v6829, %v6763
      %v6831 = vadd.f32 %v6830, %v6764
      %v6832 = vadd.f32 %v6831, %v6765
      %v6833 = vadd.f32 %v6832, %v6766
      %v6834 = vadd.f32 %v6833, %v6767
      %v6835 = vadd.f32 %v6834, %v6768
      %v6836 = vadd.f32 %v6835, %v6769
      %v6837 = vadd.f32 %v6836, %v6770
      %v6838 = vadd.f32 %v6837, %v6771
      %v6839 = vadd.f32 %v6838, %v6772
      %v6840 = vadd.f32 %v6839, %v6773
      %v6841 = vadd.f32 %v6840, %v6774
      %v6842 = vadd.f32 %v6841, %v6775
      %v6843 = vadd.f32 %v6842, %v6776
      %v6844 = vadd.f32 %v6843, %v6777
      %v6845 = vadd.f32 %v6844, %v6778
      %v6846 = vadd.f32 %v6845, %v6779
      %v6847 = vadd.f32 %v6846, %v6780
      %v6848 = vadd.f32 %v6847, %v6781
      %v6849 = vadd.f32 %v6848, %v6782
      %v6850 = vadd.f32 %v6849, %v6783
      %v6851 = vadd.f32 %v6850, %v6784
      %v6852 = vadd.f32 %v6851, %v6785
      %v6853 = vadd.f32 %v6852, %v6786
      %v6854 = vadd.f32 %v6853, %v6787
      %v6855 = vadd.f32 %v6854, %v6788
      %v6856 = vadd.f32 %v6855, %v6789
      %v6857 = vadd.f32 %v6856, %v6790
      %v6858 = vadd.f32 %v6857, %v6791
      %v6859 = vadd.f32 %v6858, %v6792
      %v6860 = vadd.f32 %v6859, %v6793
      %v6861 = vadd.f32 %v6860, %v6794
      %v6862 = vadd.f32 %v6861, %v6795
      %v6863 = vadd.f32 %v6862, %v6796
      %v6864 = vadd.f32 %v6863, %v6797
      %v6865 = vrot.slane %v6864, 4
      %v6866 = vadd.f32 %v6864, %v6865
      %v6867 = vrot.slane %v6866, 2
      %v6868 = vadd.f32 %v6866, %v6867
      %v6869 = vrot.slane %v6868, 1
      %v6870 = vadd.f32 %v6868, %v6869
      %v6871 = vmul.f32 %v6730, %v6254
      %v6872 = vmul.f32 %v6731, %v6255
      %v6873 = vmul.f32 %v6732, %v6256
      %v6874 = vmul.f32 %v6733, %v6257
      %v6875 = vmul.f32 %v6734, %v6258
      %v6876 = vmul.f32 %v6735, %v6259
      %v6877 = vmul.f32 %v6736, %v6260
      %v6878 = vmul.f32 %v6737, %v6261
      %v6879 = vmul.f32 %v6738, %v6262
      %v6880 = vmul.f32 %v6739, %v6263
      %v6881 = vmul.f32 %v6740, %v6264
      %v6882 = vmul.f32 %v6741, %v6265
      %v6883 = vmul.f32 %v6742, %v6266
      %v6884 = vmul.f32 %v6743, %v6267
      %v6885 = vmul.f32 %v6744, %v6268
      %v6886 = vmul.f32 %v6745, %v6269
      %v6887 = vmul.f32 %v6746, %v6270
      %v6888 = vmul.f32 %v6747, %v6271
      %v6889 = vmul.f32 %v6748, %v6272
      %v6890 = vmul.f32 %v6749, %v6273
      %v6891 = vmul.f32 %v6750, %v6274
      %v6892 = vmul.f32 %v6751, %v6275
      %v6893 = vmul.f32 %v6752, %v6276
      %v6894 = vmul.f32 %v6753, %v6277
      %v6895 = vmul.f32 %v6754, %v6278
      %v6896 = vmul.f32 %v6755, %v6279
      %v6897 = vmul.f32 %v6756, %v6280
      %v6898 = vmul.f32 %v6757, %v6281
      %v6899 = vmul.f32 %v6758, %v6282
      %v6900 = vmul.f32 %v6759, %v6283
      %v6901 = vmul.f32 %v6760, %v6284
      %v6902 = vmul.f32 %v6761, %v6285
      %v6903 = vmul.f32 %v6762, %v6286
      %v6904 = vmul.f32 %v6763, %v6287
      %v6905 = vmul.f32 %v6764, %v6288
      %v6906 = vmul.f32 %v6765, %v6289
      %v6907 = vmul.f32 %v6766, %v6290
      %v6908 = vmul.f32 %v6767, %v6291
      %v6909 = vmul.f32 %v6768, %v6292
      %v6910 = vmul.f32 %v6769, %v6293
      %v6911 = vmul.f32 %v6770, %v6294
      %v6912 = vmul.f32 %v6771, %v6295
      %v6913 = vmul.f32 %v6772, %v6296
      %v6914 = vmul.f32 %v6773, %v6297
      %v6915 = vmul.f32 %v6774, %v6298
      %v6916 = vmul.f32 %v6775, %v6299
      %v6917 = vmul.f32 %v6776, %v6300
      %v6918 = vmul.f32 %v6777, %v6301
      %v6919 = vmul.f32 %v6778, %v6302
      %v6920 = vmul.f32 %v6779, %v6303
      %v6921 = vmul.f32 %v6780, %v6304
      %v6922 = vmul.f32 %v6781, %v6305
      %v6923 = vmul.f32 %v6782, %v6306
      %v6924 = vmul.f32 %v6783, %v6307
      %v6925 = vmul.f32 %v6784, %v6308
      %v6926 = vmul.f32 %v6785, %v6309
      %v6927 = vmul.f32 %v6786, %v6310
      %v6928 = vmul.f32 %v6787, %v6311
      %v6929 = vmul.f32 %v6788, %v6312
      %v6930 = vmul.f32 %v6789, %v6313
      %v6931 = vmul.f32 %v6790, %v6314
      %v6932 = vmul.f32 %v6791, %v6315
      %v6933 = vmul.f32 %v6792, %v6316
      %v6934 = vmul.f32 %v6793, %v6317
      %v6935 = vmul.f32 %v6794, %v6318
      %v6936 = vmul.f32 %v6795, %v6319
      %v6937 = vmul.f32 %v6796, %v6320
      %v6938 = vmul.f32 %v6797, %v6321
      %v6939 = vadd.f32 %v6871, %v6872
      %v6940 = vadd.f32 %v6939, %v6873
      %v6941 = vadd.f32 %v6940, %v6874
      %v6942 = vadd.f32 %v6941, %v6875
      %v6943 = vadd.f32 %v6942, %v6876
      %v6944 = vadd.f32 %v6943, %v6877
      %v6945 = vadd.f32 %v6944, %v6878
      %v6946 = vadd.f32 %v6945, %v6879
      %v6947 = vadd.f32 %v6946, %v6880
      %v6948 = vadd.f32 %v6947, %v6881
      %v6949 = vadd.f32 %v6948, %v6882
      %v6950 = vadd.f32 %v6949, %v6883
      %v6951 = vadd.f32 %v6950, %v6884
      %v6952 = vadd.f32 %v6951, %v6885
      %v6953 = vadd.f32 %v6952, %v6886
      %v6954 = vadd.f32 %v6953, %v6887
      %v6955 = vadd.f32 %v6954, %v6888
      %v6956 = vadd.f32 %v6955, %v6889
      %v6957 = vadd.f32 %v6956, %v6890
      %v6958 = vadd.f32 %v6957, %v6891
      %v6959 = vadd.f32 %v6958, %v6892
      %v6960 = vadd.f32 %v6959, %v6893
      %v6961 = vadd.f32 %v6960, %v6894
      %v6962 = vadd.f32 %v6961, %v6895
      %v6963 = vadd.f32 %v6962, %v6896
      %v6964 = vadd.f32 %v6963, %v6897
      %v6965 = vadd.f32 %v6964, %v6898
      %v6966 = vadd.f32 %v6965, %v6899
      %v6967 = vadd.f32 %v6966, %v6900
      %v6968 = vadd.f32 %v6967, %v6901
      %v6969 = vadd.f32 %v6968, %v6902
      %v6970 = vadd.f32 %v6969, %v6903
      %v6971 = vadd.f32 %v6970, %v6904
      %v6972 = vadd.f32 %v6971, %v6905
      %v6973 = vadd.f32 %v6972, %v6906
      %v6974 = vadd.f32 %v6973, %v6907
      %v6975 = vadd.f32 %v6974, %v6908
      %v6976 = vadd.f32 %v6975, %v6909
      %v6977 = vadd.f32 %v6976, %v6910
      %v6978 = vadd.f32 %v6977, %v6911
      %v6979 = vadd.f32 %v6978, %v6912
      %v6980 = vadd.f32 %v6979, %v6913
      %v6981 = vadd.f32 %v6980, %v6914
      %v6982 = vadd.f32 %v6981, %v6915
      %v6983 = vadd.f32 %v6982, %v6916
      %v6984 = vadd.f32 %v6983, %v6917
      %v6985 = vadd.f32 %v6984, %v6918
      %v6986 = vadd.f32 %v6985, %v6919
      %v6987 = vadd.f32 %v6986, %v6920
      %v6988 = vadd.f32 %v6987, %v6921
      %v6989 = vadd.f32 %v6988, %v6922
      %v6990 = vadd.f32 %v6989, %v6923
      %v6991 = vadd.f32 %v6990, %v6924
      %v6992 = vadd.f32 %v6991, %v6925
      %v6993 = vadd.f32 %v6992, %v6926
      %v6994 = vadd.f32 %v6993, %v6927
      %v6995 = vadd.f32 %v6994, %v6928
      %v6996 = vadd.f32 %v6995, %v6929
      %v6997 = vadd.f32 %v6996, %v6930
      %v6998 = vadd.f32 %v6997, %v6931
      %v6999 = vadd.f32 %v6998, %v6932
      %v7000 = vadd.f32 %v6999, %v6933
      %v7001 = vadd.f32 %v7000, %v6934
      %v7002 = vadd.f32 %v7001, %v6935
      %v7003 = vadd.f32 %v7002, %v6936
      %v7004 = vadd.f32 %v7003, %v6937
      %v7005 = vadd.f32 %v7004, %v6938
      %v7006 = vrot.slane %v7005, 4
      %v7007 = vadd.f32 %v7005, %v7006
      %v7008 = vrot.slane %v7007, 2
      %v7009 = vadd.f32 %v7007, %v7008
      %v7010 = vrot.slane %v7009, 1
      %v7011 = vadd.f32 %v7009, %v7010
      %vm7012 = vcmask 1040384
      %v7013 = vsel %vm7012, %v6870, %v7011
      %7014 = vst [vmem:[%s168] sm:$0x3] %v7013
      %p7015 = scmp.lt.s32.totalorder %s14, 3
      %s7016 = scalar_select %p7015, %s14, 3
      %s7017 = smul.addr %s7016, 2
      %s7018 = scalar_lea.vmem %s3, %s7017
      // Predicated region
      $region33: #{deconv_block.2} parent=31 // pred_check
        %p7019 = pneg %p100
      $region34: #{deconv_block.2} parent=31 // pred_check_branch
        %7021 = sbr.rel (%p7019) target = $region36
      $region35: #{deconv_block.2} parent=31 // pred_region
        _
      $region36: #{deconv_block.2} parent=31 // pred_fallthru
        _
    $region32: #{deconv_block.2} parent=5 // pred_fallthru
      _
    %p7022 = scmp.le.s32.totalorder 2, %s9
    // Predicated region
    $region37: #{deconv_block.2} parent=5 // pred_check
      %p7023 = pneg %p7022
    $region38: #{deconv_block.2} parent=5 // pred_check_branch
      %7025 = sbr.rel (%p7023) target = $region40
    $region39: #{deconv_block.2} parent=5 // pred_region
      %s7026 = ssub.s32 %s9, 2
      // Predicated region
      $region41: #{deconv_block.2} parent=39 // pred_check
        %p7027 = pneg %p106
      $region42: #{deconv_block.2} parent=39 // pred_check_branch
        %7029 = sbr.rel (%p7027) target = $region44
      $region43: #{deconv_block.2} parent=39 // pred_region
        %p7030 = scmp.lt.s32.totalorder %s15, 3
        %s7031 = scalar_select %p7030, %s15, 3
        %s7032 = smul.addr %s7031, 2
        %s7033 = scalar_lea.vmem %s3, %s7032
      $region44: #{deconv_block.2} parent=39 // pred_fallthru
        _
    $region40: #{deconv_block.2} parent=5 // pred_fallthru
      _
  $region6: #{deconv_block.2} parent=0 // loop_footer
    %s13 = sadd.s32 1, %s9
  $region7: #{deconv_block.2} parent=0 // loop_footer_branch
    %8 = sbr.rel target = $region3
  $region8: #{deconv_block.2} parent=0 // loop_exit
    _

</llo_original>
